<compile_context>
chip_gen: v7x
topology: tpu7x:2x2x1
jax: 0.10.0
libtpu: 0.0.40
codegen_flags: <defaults>
</compile_context>

<pallas_src>
import functools

import jax
import jax.numpy as jnp
import numpy as np
from jax.experimental import pallas as pl
from jax.experimental.pallas import tpu as pltpu

BN_EPS = 1e-5
HIGHEST = jax.lax.Precision.HIGHEST

CP = 128                      # every channel axis is padded to one lane width
INPUT_SIZE = 32               # spatial size of the NCHW input images

INIT_CH = 16
LAST_CHANNEL = 24
NUM_CLASSES = 10
WIDTH_MULT = 1.0
# rows: [t (expand ratio), c (out channels), n (repeats), s (stride), k (kernel)]
SETTING = [
    [1, 16, 1, 1, 3],
    [4, 24, 1, 2, 5],
    [4, 24, 1, 1, 3],
]


# -------------------------- model config & params ---------------------------


def _make_divisible(v, divisor=8, min_value=None):
    if min_value is None:
        min_value = divisor
    new_v = max(min_value, int(v + divisor / 2) // divisor * divisor)
    if new_v < 0.9 * v:
        new_v += divisor
    return new_v


def block_configs():
    cfgs = []
    in_ch = _make_divisible(INIT_CH * WIDTH_MULT)
    for t, c, n, s, k in SETTING:
        out_ch = _make_divisible(c * WIDTH_MULT)
        for i in range(n):
            stride = s if i == 0 else 1
            hidden = int(round(in_ch * t))
            cfgs.append(dict(inp=in_ch, out=out_ch, hidden=hidden, k=k,
                             stride=stride, expand=(t != 1),
                             use_res=(stride == 1 and in_ch == out_ch)))
            in_ch = out_ch
    return cfgs, in_ch


def _conv_w(key, co, ci, k):
    std = (2.0 / (co * k * k)) ** 0.5       # kaiming_normal_(mode='fan_out')
    return std * jax.random.normal(key, (co, ci, k, k), jnp.float32)


def _bn_params(key, c):
    # Eval-mode BatchNorm folded to scale/bias.  Statistics are perturbed so
    # the numerical check actually exercises the BN folding and the depthwise
    # zero-padding handling.
    k1, k2, k3, k4 = jax.random.split(key, 4)
    gamma = 1.0 + 0.1 * jax.random.normal(k1, (c,), jnp.float32)
    beta = 0.05 * jax.random.normal(k2, (c,), jnp.float32)
    mean = 0.05 * jax.random.normal(k3, (c,), jnp.float32)
    var = 1.0 + 0.1 * jax.random.uniform(k4, (c,), jnp.float32)
    scale = gamma / jnp.sqrt(var + BN_EPS)
    bias = beta - mean * scale
    return scale, bias


def init_params(key):
    cfgs, last_ch = block_configs()
    keys = iter(jax.random.split(key, 16 + 8 * len(cfgs)))
    params = {}
    in_ch = _make_divisible(INIT_CH * WIDTH_MULT)
    params["stem_w"] = _conv_w(next(keys), in_ch, 3, 3)
    params["stem_bn"] = _bn_params(next(keys), in_ch)
    blocks = []
    for cfg in cfgs:
        blk = {}
        if cfg["expand"]:
            blk["exp_w"] = _conv_w(next(keys), cfg["hidden"], cfg["inp"], 1)
            blk["exp_bn"] = _bn_params(next(keys), cfg["hidden"])
        blk["dw_w"] = _conv_w(next(keys), cfg["hidden"], 1, cfg["k"])
        blk["dw_bn"] = _bn_params(next(keys), cfg["hidden"])
        blk["proj_w"] = _conv_w(next(keys), cfg["out"], cfg["hidden"], 1)
        blk["proj_bn"] = _bn_params(next(keys), cfg["out"])
        blocks.append(blk)
    params["blocks"] = blocks
    assert last_ch == _make_divisible(LAST_CHANNEL * max(1.0, WIDTH_MULT))
    params["fc_w"] = 0.01 * jax.random.normal(
        next(keys), (NUM_CLASSES, last_ch), jnp.float32)   # normal(0, 0.01)
    params["fc_b"] = jnp.zeros((NUM_CLASSES,), jnp.float32)
    return params


# ----------------------- host-side packing (one time) ------------------------


def _tap_select_matrices(H, W, k, stride):
    """0/1 matrix (k*k*Ho*Wo, H*W): row (t, o) selects the input position that
    tap t of a kxk / stride / same-pad depthwise conv reads for output o.
    Rows whose tap falls in the zero-padding ring are all-zero, so conv
    padding and the stride are both encoded in the matrix."""
    pad = (k - 1) // 2
    Ho = (H + 2 * pad - k) // stride + 1
    Wo = (W + 2 * pad - k) // stride + 1
    S = np.zeros((k * k, Ho * Wo, H * W), np.float32)
    for dy in range(k):
        for dx in range(k):
            t = dy * k + dx
            for oy in range(Ho):
                iy = oy * stride + dy - pad
                if iy < 0 or iy >= H:
                    continue
                for ox in range(Wo):
                    ix = ox * stride + dx - pad
                    if 0 <= ix < W:
                        S[t, oy * Wo + ox, iy * W + ix] = 1.0
    return S.reshape(k * k * Ho * Wo, H * W), Ho, Wo


def prepare_mcunet(params):
    """Pack all weights (channel-padded to CP=128) into:
         wm   : one bf16 matmul slab (rows indexed statically in the kernel)
         vecs : one f32 per-channel-vector slab (BN scale/bias, dw taps, fc_b)
         s    : the three tap-selection matrices (bf16)
       plus the static `meta` index table used at trace time."""
    cfgs, _ = block_configs()
    wm_parts, vec_parts = [], []

    def _pad_vec(v):
        out = np.zeros((CP,), np.float32)
        v = np.asarray(v, np.float32)
        out[:v.shape[0]] = v
        return out

    def _pad_mat(m, rows):
        out = np.zeros((rows, CP), np.float32)
        m = np.asarray(m, np.float32)
        out[:m.shape[0], :m.shape[1]] = m
        return out

    def add_mat(m, rows=CP):
        slot = (sum(p.shape[0] for p in wm_parts), rows)
        wm_parts.append(_pad_mat(m, rows))
        return slot

    def add_vecs(*vs):
        idx = len(vec_parts)
        for v in vs:
            vec_parts.append(_pad_vec(v))
        return idx

    meta = {}

    # Stem 3x3/s2 conv as an im2col matmul: (27 -> padded 32) x Cout weight.
    w = np.asarray(params["stem_w"], np.float32)                # (Co, 3, 3, 3)
    w_mat = w.transpose(2, 3, 1, 0).reshape(9 * 3, w.shape[0])  # (27, Co)
    meta["stem_w"] = add_mat(w_mat, rows=32)
    meta["stem_bn"] = (add_vecs(params["stem_bn"][0]),
                       add_vecs(params["stem_bn"][1]))

    H = W = INPUT_SIZE // 2          # spatial size after the stride-2 stem
    smats, blocks_meta = [], []
    for blk, cfg in zip(params["blocks"], cfgs):
        bm = {"expand": cfg["expand"], "use_res": cfg["use_res"]}
        k, stride, hidden = cfg["k"], cfg["stride"], cfg["hidden"]
        if cfg["expand"]:
            we = np.asarray(blk["exp_w"], np.float32).reshape(hidden,
                                                              cfg["inp"]).T
            bm["exp_w"] = add_mat(we)
            bm["exp_bn"] = (add_vecs(blk["exp_bn"][0]),
                            add_vecs(blk["exp_bn"][1]))
        smat, Ho, Wo = _tap_select_matrices(H, W, k, stride)
        smats.append(smat)
        wd = np.asarray(blk["dw_w"], np.float32).reshape(hidden, k * k).T
        bm["dw_w"] = add_vecs(*[wd[t] for t in range(k * k)])
        bm["dw_bn"] = (add_vecs(blk["dw_bn"][0]), add_vecs(blk["dw_bn"][1]))
        bm["taps"], bm["npos_out"] = k * k, Ho * Wo
        wp = np.asarray(blk["proj_w"], np.float32).reshape(cfg["out"],
                                                           hidden).T
        bm["proj_w"] = add_mat(wp)
        bm["proj_bn"] = (add_vecs(blk["proj_bn"][0]),
                         add_vecs(blk["proj_bn"][1]))
        blocks_meta.append(bm)
        H, W = Ho, Wo
    meta["blocks"] = tuple(blocks_meta)

    meta["fc_w"] = add_mat(np.asarray(params["fc_w"], np.float32).T)
    meta["fc_b"] = add_vecs(params["fc_b"])

    def _pad_rows(a, mult):
        r = (-a.shape[0]) % mult
        return np.pad(a, ((0, r), (0, 0))) if r else a

    wm = _pad_rows(np.concatenate(wm_parts, axis=0), 16)    # bf16 sublane tile
    vecs = _pad_rows(np.stack(vec_parts, axis=0), 8)        # f32 sublane tile

    return {
        "meta": meta,
        "wm": jnp.asarray(wm, jnp.bfloat16),
        "vecs": jnp.asarray(vecs, jnp.float32),
        "s": tuple(jnp.asarray(s, jnp.bfloat16) for s in smats),
    }


# ------------------------------ Pallas kernel --------------------------------


def _relu6(v):
    return jnp.minimum(jnp.maximum(v, 0.0), 6.0)


def _tree_sum(terms):
    terms = list(terms)
    while len(terms) > 1:
        nxt = [a + b for a, b in zip(terms[0::2], terms[1::2])]
        if len(terms) % 2:
            nxt.append(terms[-1])
        terms = nxt
    return terms[0]


def _mcunet_kernel(p_ref, s1_ref, s2_ref, s3_ref, wm_ref, v_ref, o_ref, *,
                   meta):
    """Whole-network forward for one image; all activations stay on-chip."""
    s_refs = (s1_ref, s2_ref, s3_ref)

    def vec(i):                                  # (1, CP) f32 per-channel row
        return v_ref[i:i + 1, :]

    def mm(a_bf16, slot):                        # MXU matmul, f32 accumulation
        r0, rows = slot
        return jnp.dot(a_bf16, wm_ref[r0:r0 + rows, :],
                       preferred_element_type=jnp.float32)

    def bn(y, slot):                             # folded eval-mode BatchNorm
        return y * vec(slot[0]) + vec(slot[1])

    # Stem: 3x3/s2 conv (im2col matmul) + BN + ReLU6.     -> (256, CP) f32
    x = _relu6(bn(mm(p_ref[0], meta["stem_w"]), meta["stem_bn"]))

    for blk, s_ref in zip(meta["blocks"], s_refs):
        # 1x1 expansion + BN + ReLU6 (skipped when expand_ratio == 1).
        h = x
        if blk["expand"]:
            h = _relu6(bn(mm(h.astype(jnp.bfloat16), blk["exp_w"]),
                          blk["exp_bn"]))
        # Depthwise kxk (stride folded in): one tap-selection matmul on the
        # MXU gathers all k*k taps (zero rows = conv padding), then a
        # per-channel weighted tree-sum + BN + ReLU6 on the VPU.
        T, No = blk["taps"], blk["npos_out"]
        d_all = jnp.dot(s_ref[...], h.astype(jnp.bfloat16),
                        preferred_element_type=jnp.float32)      # (T*No, CP)
        w0 = blk["dw_w"]
        d = _tree_sum(d_all[t * No:(t + 1) * No, :] * vec(w0 + t)
                      for t in range(T))
        d = _relu6(bn(d, blk["dw_bn"]))
        # 1x1 projection + BN, fused residual add.
        y = bn(mm(d.astype(jnp.bfloat16), blk["proj_w"]), blk["proj_bn"])
        if blk["use_res"]:
            y = y + x
        x = y

    # adaptive_avg_pool2d((1,1)) + flatten + Dropout(p=0.0) + Linear, fused.
    pooled = jnp.mean(x, axis=0, keepdims=True)                  # (1, CP)
    logits = mm(pooled.astype(jnp.bfloat16), meta["fc_w"]) + vec(meta["fc_b"])
    o_ref[0] = logits


# ------------------------------ forward wrapper -------------------------------


def make_forward(packed):
    meta = packed["meta"]
    kern = functools.partial(_mcunet_kernel, meta=meta)

    def forward(s1, s2, s3, wm, vecs, x_nchw):
        B, _, H, W = x_nchw.shape
        assert (H, W) == (INPUT_SIZE, INPUT_SIZE)
        # Only remaining XLA glue: NHWC transpose + stem im2col of the raw
        # input (tiny), done once before the single fused pallas_call.
        # TODO(synk): the stem im2col could also move in-kernel at the cost of
        # either strided in-kernel slices or ~4.7 MB of selection constants.
        x = jnp.transpose(x_nchw, (0, 2, 3, 1))
        xp = jnp.pad(x, ((0, 0), (1, 1), (1, 1), (0, 0)))
        Ho = (H + 2 - 3) // 2 + 1
        Wo = (W + 2 - 3) // 2 + 1
        taps = [xp[:, dy:dy + 2 * Ho:2, dx:dx + 2 * Wo:2, :]
                for dy in range(3) for dx in range(3)]
        patches = jnp.concatenate(taps, axis=-1).reshape(B, Ho * Wo, 27)
        patches = jnp.pad(patches, ((0, 0), (0, 0), (0, 32 - 27)))
        patches = patches.astype(jnp.bfloat16)

        def resident(arr):
            nd = arr.ndim
            return pl.BlockSpec(arr.shape, lambda b: (0,) * nd)

        out = pl.pallas_call(
            kern,
            out_shape=jax.ShapeDtypeStruct((B, 1, CP), jnp.float32),
            grid=(B,),
            in_specs=[
                pl.BlockSpec((1, Ho * Wo, 32), lambda b: (b, 0, 0)),
                resident(s1), resident(s2), resident(s3),
                resident(wm), resident(vecs),
            ],
            out_specs=pl.BlockSpec((1, 1, CP), lambda b: (b, 0, 0)),
            compiler_params=pltpu.CompilerParams(
                dimension_semantics=("parallel",),
                vmem_limit_bytes=32 * 1024 * 1024),
        )(patches, s1, s2, s3, wm, vecs)
        return out.reshape(B, CP)[:, :NUM_CLASSES]

    jitted = jax.jit(forward)
    return lambda x: jitted(packed["s"][0], packed["s"][1], packed["s"][2],
                            packed["wm"], packed["vecs"], x)


# ---------------------------- pure-JAX reference ------------------------------


def ref_forward(params, x_nchw):
    cfgs, _ = block_configs()

    def conv(x, w, stride, pad, groups=1):
        return jax.lax.conv_general_dilated(
            x, w, (stride, stride), [(pad, pad), (pad, pad)],
            feature_group_count=groups,
            dimension_numbers=("NCHW", "OIHW", "NCHW"), precision=HIGHEST)

    def bn(x, sb):
        s, b = sb
        return x * s[None, :, None, None] + b[None, :, None, None]

    relu6 = lambda v: jnp.clip(v, 0.0, 6.0)

    x = relu6(bn(conv(x_nchw, params["stem_w"], 2, 1), params["stem_bn"]))
    for blk, cfg in zip(params["blocks"], cfgs):
        y = x
        if cfg["expand"]:
            y = relu6(bn(conv(y, blk["exp_w"], 1, 0), blk["exp_bn"]))
        k = cfg["k"]
        y = relu6(bn(conv(y, blk["dw_w"], cfg["stride"], (k - 1) // 2,
                          groups=blk["dw_w"].shape[0]), blk["dw_bn"]))
        y = bn(conv(y, blk["proj_w"], 1, 0), blk["proj_bn"])
        if cfg["use_res"]:
            y = x + y
        x = y
    pooled = jnp.mean(x, axis=(2, 3))
    return (jnp.dot(pooled, params["fc_w"].T, precision=HIGHEST)
            + params["fc_b"][None, :])


# ---------------------------------- main --------------------------------------

if __name__ == "__main__":
    key = jax.random.PRNGKey(0)
    pkey, xkey = jax.random.split(key)
    params = init_params(pkey)
    x = jax.random.normal(xkey, (2, 3, INPUT_SIZE, INPUT_SIZE), jnp.float32)

    packed = prepare_mcunet(params)
    fwd = make_forward(packed)
    out = jax.block_until_ready(fwd(x))
    assert out.shape == (2, NUM_CLASSES)

    ref = jax.block_until_ready(ref_forward(params, x))
    # bf16 MXU operands vs. the f32 HIGHEST-precision reference.
    np.testing.assert_allclose(np.asarray(out), np.asarray(ref),
                               rtol=2e-2, atol=2e-2)
    print("KERNEL_OK")
</pallas_src>

<mosaic_0001>
module attributes {stable_mosaic.version = 11 : i64} {
  func.func @_mcunet_kernel(%arg0: i32, %arg1: memref<1x256x32xbf16, #tpu.memory_space<vmem>>, %arg2: memref<2304x256xbf16, #tpu.memory_space<vmem>>, %arg3: memref<1600x256xbf16, #tpu.memory_space<vmem>>, %arg4: memref<576x64xbf16, #tpu.memory_space<vmem>>, %arg5: memref<800x128xbf16, #tpu.memory_space<vmem>>, %arg6: memref<64x128xf32, #tpu.memory_space<vmem>>, %arg7: memref<1x1x128xf32, #tpu.memory_space<vmem>>) attributes {dimension_semantics = [#tpu.dimension_semantics<parallel>], iteration_bounds = array<i64: 2>, scalar_prefetch = 0 : i64, scratch_operands = 0 : i64, tpu.core_type = #tpu.core_type<tc>, window_params = [{transform_indices = @transform_0, window_bounds = array<i64: 1, 256, 32>}, {pipeline_mode = #tpu.pipeline_mode<synchronous>, transform_indices = @transform_1, window_bounds = array<i64: 2304, 256>}, {pipeline_mode = #tpu.pipeline_mode<synchronous>, transform_indices = @transform_2, window_bounds = array<i64: 1600, 256>}, {pipeline_mode = #tpu.pipeline_mode<synchronous>, transform_indices = @transform_3, window_bounds = array<i64: 576, 64>}, {pipeline_mode = #tpu.pipeline_mode<synchronous>, transform_indices = @transform_4, window_bounds = array<i64: 800, 128>}, {pipeline_mode = #tpu.pipeline_mode<synchronous>, transform_indices = @transform_5, window_bounds = array<i64: 64, 128>}, {transform_indices = @transform_6, window_bounds = array<i64: 1, 1, 128>}]} {
    %c0 = arith.constant 0 : index
    %c0_0 = arith.constant 0 : index
    %c0_1 = arith.constant 0 : index
    %0 = vector.load %arg1[%c0, %c0_0, %c0_1] : memref<1x256x32xbf16, #tpu.memory_space<vmem>>, vector<1x256x32xbf16>
    %1 = vector.shape_cast %0 : vector<1x256x32xbf16> to vector<256x32xbf16>
    %c0_2 = arith.constant 0 : index
    %c0_3 = arith.constant 0 : index
    %2 = vector.load %arg5[%c0_2, %c0_3] : memref<800x128xbf16, #tpu.memory_space<vmem>>, vector<32x128xbf16>
    %cst = arith.constant dense<0.000000e+00> : vector<256x128xf32>
    %3 = tpu.matmul %1, %2, %cst {dimension_numbers = #tpu.dot_dimension_numbers<[1], [0], [0], [1], [0, 0, 1, 1], [], []>} : vector<256x32xbf16>, vector<32x128xbf16>, vector<256x128xf32> -> vector<256x128xf32>
    %c0_4 = arith.constant 0 : index
    %c0_5 = arith.constant 0 : index
    %4 = vector.load %arg6[%c0_4, %c0_5] : memref<64x128xf32, #tpu.memory_space<vmem>>, vector<1x128xf32>
    %5 = vector.broadcast %4 : vector<1x128xf32> to vector<256x128xf32>
    %6 = arith.mulf %3, %5 : vector<256x128xf32>
    %c1 = arith.constant 1 : index
    %c0_6 = arith.constant 0 : index
    %7 = vector.load %arg6[%c1, %c0_6] : memref<64x128xf32, #tpu.memory_space<vmem>>, vector<1x128xf32>
    %8 = vector.broadcast %7 : vector<1x128xf32> to vector<256x128xf32>
    %9 = arith.addf %6, %8 : vector<256x128xf32>
    %cst_7 = arith.constant 0.000000e+00 : f32
    %10 = vector.broadcast %cst_7 : f32 to vector<256x128xf32>
    %11 = arith.maximumf %9, %10 : vector<256x128xf32>
    %cst_8 = arith.constant 6.000000e+00 : f32
    %12 = vector.broadcast %cst_8 : f32 to vector<256x128xf32>
    %13 = arith.minimumf %11, %12 : vector<256x128xf32>
    %c0_9 = arith.constant 0 : index
    %c0_10 = arith.constant 0 : index
    %14 = vector.load %arg2[%c0_9, %c0_10] : memref<2304x256xbf16, #tpu.memory_space<vmem>>, vector<2304x256xbf16>
    %15 = arith.truncf %13 : vector<256x128xf32> to vector<256x128xbf16>
    %cst_11 = arith.constant dense<0.000000e+00> : vector<2304x128xf32>
    %16 = tpu.matmul %14, %15, %cst_11 {dimension_numbers = #tpu.dot_dimension_numbers<[1], [0], [0], [1], [0, 0, 1, 1], [], []>} : vector<2304x256xbf16>, vector<256x128xbf16>, vector<2304x128xf32> -> vector<2304x128xf32>
    %17 = vector.extract_strided_slice %16 {offsets = [0, 0], sizes = [256, 128], strides = [1, 1]} : vector<2304x128xf32> to vector<256x128xf32>
    %c2 = arith.constant 2 : index
    %c0_12 = arith.constant 0 : index
    %18 = vector.load %arg6[%c2, %c0_12] : memref<64x128xf32, #tpu.memory_space<vmem>>, vector<1x128xf32>
    %19 = vector.broadcast %18 : vector<1x128xf32> to vector<256x128xf32>
    %20 = arith.mulf %17, %19 : vector<256x128xf32>
    %21 = vector.extract_strided_slice %16 {offsets = [256, 0], sizes = [256, 128], strides = [1, 1]} : vector<2304x128xf32> to vector<256x128xf32>
    %c3 = arith.constant 3 : index
    %c0_13 = arith.constant 0 : index
    %22 = vector.load %arg6[%c3, %c0_13] : memref<64x128xf32, #tpu.memory_space<vmem>>, vector<1x128xf32>
    %23 = vector.broadcast %22 : vector<1x128xf32> to vector<256x128xf32>
    %24 = arith.mulf %21, %23 : vector<256x128xf32>
    %25 = vector.extract_strided_slice %16 {offsets = [512, 0], sizes = [256, 128], strides = [1, 1]} : vector<2304x128xf32> to vector<256x128xf32>
    %c4 = arith.constant 4 : index
    %c0_14 = arith.constant 0 : index
    %26 = vector.load %arg6[%c4, %c0_14] : memref<64x128xf32, #tpu.memory_space<vmem>>, vector<1x128xf32>
    %27 = vector.broadcast %26 : vector<1x128xf32> to vector<256x128xf32>
    %28 = arith.mulf %25, %27 : vector<256x128xf32>
    %29 = vector.extract_strided_slice %16 {offsets = [768, 0], sizes = [256, 128], strides = [1, 1]} : vector<2304x128xf32> to vector<256x128xf32>
    %c5 = arith.constant 5 : index
    %c0_15 = arith.constant 0 : index
    %30 = vector.load %arg6[%c5, %c0_15] : memref<64x128xf32, #tpu.memory_space<vmem>>, vector<1x128xf32>
    %31 = vector.broadcast %30 : vector<1x128xf32> to vector<256x128xf32>
    %32 = arith.mulf %29, %31 : vector<256x128xf32>
    %33 = vector.extract_strided_slice %16 {offsets = [1024, 0], sizes = [256, 128], strides = [1, 1]} : vector<2304x128xf32> to vector<256x128xf32>
    %c6 = arith.constant 6 : index
    %c0_16 = arith.constant 0 : index
    %34 = vector.load %arg6[%c6, %c0_16] : memref<64x128xf32, #tpu.memory_space<vmem>>, vector<1x128xf32>
    %35 = vector.broadcast %34 : vector<1x128xf32> to vector<256x128xf32>
    %36 = arith.mulf %33, %35 : vector<256x128xf32>
    %37 = vector.extract_strided_slice %16 {offsets = [1280, 0], sizes = [256, 128], strides = [1, 1]} : vector<2304x128xf32> to vector<256x128xf32>
    %c7 = arith.constant 7 : index
    %c0_17 = arith.constant 0 : index
    %38 = vector.load %arg6[%c7, %c0_17] : memref<64x128xf32, #tpu.memory_space<vmem>>, vector<1x128xf32>
    %39 = vector.broadcast %38 : vector<1x128xf32> to vector<256x128xf32>
    %40 = arith.mulf %37, %39 : vector<256x128xf32>
    %41 = vector.extract_strided_slice %16 {offsets = [1536, 0], sizes = [256, 128], strides = [1, 1]} : vector<2304x128xf32> to vector<256x128xf32>
    %c8 = arith.constant 8 : index
    %c0_18 = arith.constant 0 : index
    %42 = vector.load %arg6[%c8, %c0_18] : memref<64x128xf32, #tpu.memory_space<vmem>>, vector<1x128xf32>
    %43 = vector.broadcast %42 : vector<1x128xf32> to vector<256x128xf32>
    %44 = arith.mulf %41, %43 : vector<256x128xf32>
    %45 = vector.extract_strided_slice %16 {offsets = [1792, 0], sizes = [256, 128], strides = [1, 1]} : vector<2304x128xf32> to vector<256x128xf32>
    %c9 = arith.constant 9 : index
    %c0_19 = arith.constant 0 : index
    %46 = vector.load %arg6[%c9, %c0_19] : memref<64x128xf32, #tpu.memory_space<vmem>>, vector<1x128xf32>
    %47 = vector.broadcast %46 : vector<1x128xf32> to vector<256x128xf32>
    %48 = arith.mulf %45, %47 : vector<256x128xf32>
    %49 = vector.extract_strided_slice %16 {offsets = [2048, 0], sizes = [256, 128], strides = [1, 1]} : vector<2304x128xf32> to vector<256x128xf32>
    %c10 = arith.constant 10 : index
    %c0_20 = arith.constant 0 : index
    %50 = vector.load %arg6[%c10, %c0_20] : memref<64x128xf32, #tpu.memory_space<vmem>>, vector<1x128xf32>
    %51 = vector.broadcast %50 : vector<1x128xf32> to vector<256x128xf32>
    %52 = arith.mulf %49, %51 : vector<256x128xf32>
    %53 = arith.addf %20, %24 : vector<256x128xf32>
    %54 = arith.addf %28, %32 : vector<256x128xf32>
    %55 = arith.addf %36, %40 : vector<256x128xf32>
    %56 = arith.addf %44, %48 : vector<256x128xf32>
    %57 = arith.addf %53, %54 : vector<256x128xf32>
    %58 = arith.addf %55, %56 : vector<256x128xf32>
    %59 = arith.addf %57, %58 : vector<256x128xf32>
    %60 = arith.addf %59, %52 : vector<256x128xf32>
    %c11 = arith.constant 11 : index
    %c0_21 = arith.constant 0 : index
    %61 = vector.load %arg6[%c11, %c0_21] : memref<64x128xf32, #tpu.memory_space<vmem>>, vector<1x128xf32>
    %62 = vector.broadcast %61 : vector<1x128xf32> to vector<256x128xf32>
    %63 = arith.mulf %60, %62 : vector<256x128xf32>
    %c12 = arith.constant 12 : index
    %c0_22 = arith.constant 0 : index
    %64 = vector.load %arg6[%c12, %c0_22] : memref<64x128xf32, #tpu.memory_space<vmem>>, vector<1x128xf32>
    %65 = vector.broadcast %64 : vector<1x128xf32> to vector<256x128xf32>
    %66 = arith.addf %63, %65 : vector<256x128xf32>
    %cst_23 = arith.constant 0.000000e+00 : f32
    %67 = vector.broadcast %cst_23 : f32 to vector<256x128xf32>
    %68 = arith.maximumf %66, %67 : vector<256x128xf32>
    %cst_24 = arith.constant 6.000000e+00 : f32
    %69 = vector.broadcast %cst_24 : f32 to vector<256x128xf32>
    %70 = arith.minimumf %68, %69 : vector<256x128xf32>
    %71 = arith.truncf %70 : vector<256x128xf32> to vector<256x128xbf16>
    %c32 = arith.constant 32 : index
    %c0_25 = arith.constant 0 : index
    %72 = vector.load %arg5[%c32, %c0_25] : memref<800x128xbf16, #tpu.memory_space<vmem>>, vector<128x128xbf16>
    %cst_26 = arith.constant dense<0.000000e+00> : vector<256x128xf32>
    %73 = tpu.matmul %71, %72, %cst_26 {dimension_numbers = #tpu.dot_dimension_numbers<[1], [0], [0], [1], [0, 0, 1, 1], [], []>} : vector<256x128xbf16>, vector<128x128xbf16>, vector<256x128xf32> -> vector<256x128xf32>
    %c13 = arith.constant 13 : index
    %c0_27 = arith.constant 0 : index
    %74 = vector.load %arg6[%c13, %c0_27] : memref<64x128xf32, #tpu.memory_space<vmem>>, vector<1x128xf32>
    %75 = vector.broadcast %74 : vector<1x128xf32> to vector<256x128xf32>
    %76 = arith.mulf %73, %75 : vector<256x128xf32>
    %c14 = arith.constant 14 : index
    %c0_28 = arith.constant 0 : index
    %77 = vector.load %arg6[%c14, %c0_28] : memref<64x128xf32, #tpu.memory_space<vmem>>, vector<1x128xf32>
    %78 = vector.broadcast %77 : vector<1x128xf32> to vector<256x128xf32>
    %79 = arith.addf %76, %78 : vector<256x128xf32>
    %80 = arith.addf %79, %13 : vector<256x128xf32>
    %81 = arith.truncf %80 : vector<256x128xf32> to vector<256x128xbf16>
    %c160 = arith.constant 160 : index
    %c0_29 = arith.constant 0 : index
    %82 = vector.load %arg5[%c160, %c0_29] : memref<800x128xbf16, #tpu.memory_space<vmem>>, vector<128x128xbf16>
    %cst_30 = arith.constant dense<0.000000e+00> : vector<256x128xf32>
    %83 = tpu.matmul %81, %82, %cst_30 {dimension_numbers = #tpu.dot_dimension_numbers<[1], [0], [0], [1], [0, 0, 1, 1], [], []>} : vector<256x128xbf16>, vector<128x128xbf16>, vector<256x128xf32> -> vector<256x128xf32>
    %c15 = arith.constant 15 : index
    %c0_31 = arith.constant 0 : index
    %84 = vector.load %arg6[%c15, %c0_31] : memref<64x128xf32, #tpu.memory_space<vmem>>, vector<1x128xf32>
    %85 = vector.broadcast %84 : vector<1x128xf32> to vector<256x128xf32>
    %86 = arith.mulf %83, %85 : vector<256x128xf32>
    %c16 = arith.constant 16 : index
    %c0_32 = arith.constant 0 : index
    %87 = vector.load %arg6[%c16, %c0_32] : memref<64x128xf32, #tpu.memory_space<vmem>>, vector<1x128xf32>
    %88 = vector.broadcast %87 : vector<1x128xf32> to vector<256x128xf32>
    %89 = arith.addf %86, %88 : vector<256x128xf32>
    %cst_33 = arith.constant 0.000000e+00 : f32
    %90 = vector.broadcast %cst_33 : f32 to vector<256x128xf32>
    %91 = arith.maximumf %89, %90 : vector<256x128xf32>
    %cst_34 = arith.constant 6.000000e+00 : f32
    %92 = vector.broadcast %cst_34 : f32 to vector<256x128xf32>
    %93 = arith.minimumf %91, %92 : vector<256x128xf32>
    %c0_35 = arith.constant 0 : index
    %c0_36 = arith.constant 0 : index
    %94 = vector.load %arg3[%c0_35, %c0_36] : memref<1600x256xbf16, #tpu.memory_space<vmem>>, vector<1600x256xbf16>
    %95 = arith.truncf %93 : vector<256x128xf32> to vector<256x128xbf16>
    %cst_37 = arith.constant dense<0.000000e+00> : vector<1600x128xf32>
    %96 = tpu.matmul %94, %95, %cst_37 {dimension_numbers = #tpu.dot_dimension_numbers<[1], [0], [0], [1], [0, 0, 1, 1], [], []>} : vector<1600x256xbf16>, vector<256x128xbf16>, vector<1600x128xf32> -> vector<1600x128xf32>
    %97 = vector.extract_strided_slice %96 {offsets = [0, 0], sizes = [64, 128], strides = [1, 1]} : vector<1600x128xf32> to vector<64x128xf32>
    %c17 = arith.constant 17 : index
    %c0_38 = arith.constant 0 : index
    %98 = vector.load %arg6[%c17, %c0_38] : memref<64x128xf32, #tpu.memory_space<vmem>>, vector<1x128xf32>
    %99 = vector.broadcast %98 : vector<1x128xf32> to vector<64x128xf32>
    %100 = arith.mulf %97, %99 : vector<64x128xf32>
    %101 = vector.extract_strided_slice %96 {offsets = [64, 0], sizes = [64, 128], strides = [1, 1]} : vector<1600x128xf32> to vector<64x128xf32>
    %c18 = arith.constant 18 : index
    %c0_39 = arith.constant 0 : index
    %102 = vector.load %arg6[%c18, %c0_39] : memref<64x128xf32, #tpu.memory_space<vmem>>, vector<1x128xf32>
    %103 = vector.broadcast %102 : vector<1x128xf32> to vector<64x128xf32>
    %104 = arith.mulf %101, %103 : vector<64x128xf32>
    %105 = vector.extract_strided_slice %96 {offsets = [128, 0], sizes = [64, 128], strides = [1, 1]} : vector<1600x128xf32> to vector<64x128xf32>
    %c19 = arith.constant 19 : index
    %c0_40 = arith.constant 0 : index
    %106 = vector.load %arg6[%c19, %c0_40] : memref<64x128xf32, #tpu.memory_space<vmem>>, vector<1x128xf32>
    %107 = vector.broadcast %106 : vector<1x128xf32> to vector<64x128xf32>
    %108 = arith.mulf %105, %107 : vector<64x128xf32>
    %109 = vector.extract_strided_slice %96 {offsets = [192, 0], sizes = [64, 128], strides = [1, 1]} : vector<1600x128xf32> to vector<64x128xf32>
    %c20 = arith.constant 20 : index
    %c0_41 = arith.constant 0 : index
    %110 = vector.load %arg6[%c20, %c0_41] : memref<64x128xf32, #tpu.memory_space<vmem>>, vector<1x128xf32>
    %111 = vector.broadcast %110 : vector<1x128xf32> to vector<64x128xf32>
    %112 = arith.mulf %109, %111 : vector<64x128xf32>
    %113 = vector.extract_strided_slice %96 {offsets = [256, 0], sizes = [64, 128], strides = [1, 1]} : vector<1600x128xf32> to vector<64x128xf32>
    %c21 = arith.constant 21 : index
    %c0_42 = arith.constant 0 : index
    %114 = vector.load %arg6[%c21, %c0_42] : memref<64x128xf32, #tpu.memory_space<vmem>>, vector<1x128xf32>
    %115 = vector.broadcast %114 : vector<1x128xf32> to vector<64x128xf32>
    %116 = arith.mulf %113, %115 : vector<64x128xf32>
    %117 = vector.extract_strided_slice %96 {offsets = [320, 0], sizes = [64, 128], strides = [1, 1]} : vector<1600x128xf32> to vector<64x128xf32>
    %c22 = arith.constant 22 : index
    %c0_43 = arith.constant 0 : index
    %118 = vector.load %arg6[%c22, %c0_43] : memref<64x128xf32, #tpu.memory_space<vmem>>, vector<1x128xf32>
    %119 = vector.broadcast %118 : vector<1x128xf32> to vector<64x128xf32>
    %120 = arith.mulf %117, %119 : vector<64x128xf32>
    %121 = vector.extract_strided_slice %96 {offsets = [384, 0], sizes = [64, 128], strides = [1, 1]} : vector<1600x128xf32> to vector<64x128xf32>
    %c23 = arith.constant 23 : index
    %c0_44 = arith.constant 0 : index
    %122 = vector.load %arg6[%c23, %c0_44] : memref<64x128xf32, #tpu.memory_space<vmem>>, vector<1x128xf32>
    %123 = vector.broadcast %122 : vector<1x128xf32> to vector<64x128xf32>
    %124 = arith.mulf %121, %123 : vector<64x128xf32>
    %125 = vector.extract_strided_slice %96 {offsets = [448, 0], sizes = [64, 128], strides = [1, 1]} : vector<1600x128xf32> to vector<64x128xf32>
    %c24 = arith.constant 24 : index
    %c0_45 = arith.constant 0 : index
    %126 = vector.load %arg6[%c24, %c0_45] : memref<64x128xf32, #tpu.memory_space<vmem>>, vector<1x128xf32>
    %127 = vector.broadcast %126 : vector<1x128xf32> to vector<64x128xf32>
    %128 = arith.mulf %125, %127 : vector<64x128xf32>
    %129 = vector.extract_strided_slice %96 {offsets = [512, 0], sizes = [64, 128], strides = [1, 1]} : vector<1600x128xf32> to vector<64x128xf32>
    %c25 = arith.constant 25 : index
    %c0_46 = arith.constant 0 : index
    %130 = vector.load %arg6[%c25, %c0_46] : memref<64x128xf32, #tpu.memory_space<vmem>>, vector<1x128xf32>
    %131 = vector.broadcast %130 : vector<1x128xf32> to vector<64x128xf32>
    %132 = arith.mulf %129, %131 : vector<64x128xf32>
    %133 = vector.extract_strided_slice %96 {offsets = [576, 0], sizes = [64, 128], strides = [1, 1]} : vector<1600x128xf32> to vector<64x128xf32>
    %c26 = arith.constant 26 : index
    %c0_47 = arith.constant 0 : index
    %134 = vector.load %arg6[%c26, %c0_47] : memref<64x128xf32, #tpu.memory_space<vmem>>, vector<1x128xf32>
    %135 = vector.broadcast %134 : vector<1x128xf32> to vector<64x128xf32>
    %136 = arith.mulf %133, %135 : vector<64x128xf32>
    %137 = vector.extract_strided_slice %96 {offsets = [640, 0], sizes = [64, 128], strides = [1, 1]} : vector<1600x128xf32> to vector<64x128xf32>
    %c27 = arith.constant 27 : index
    %c0_48 = arith.constant 0 : index
    %138 = vector.load %arg6[%c27, %c0_48] : memref<64x128xf32, #tpu.memory_space<vmem>>, vector<1x128xf32>
    %139 = vector.broadcast %138 : vector<1x128xf32> to vector<64x128xf32>
    %140 = arith.mulf %137, %139 : vector<64x128xf32>
    %141 = vector.extract_strided_slice %96 {offsets = [704, 0], sizes = [64, 128], strides = [1, 1]} : vector<1600x128xf32> to vector<64x128xf32>
    %c28 = arith.constant 28 : index
    %c0_49 = arith.constant 0 : index
    %142 = vector.load %arg6[%c28, %c0_49] : memref<64x128xf32, #tpu.memory_space<vmem>>, vector<1x128xf32>
    %143 = vector.broadcast %142 : vector<1x128xf32> to vector<64x128xf32>
    %144 = arith.mulf %141, %143 : vector<64x128xf32>
    %145 = vector.extract_strided_slice %96 {offsets = [768, 0], sizes = [64, 128], strides = [1, 1]} : vector<1600x128xf32> to vector<64x128xf32>
    %c29 = arith.constant 29 : index
    %c0_50 = arith.constant 0 : index
    %146 = vector.load %arg6[%c29, %c0_50] : memref<64x128xf32, #tpu.memory_space<vmem>>, vector<1x128xf32>
    %147 = vector.broadcast %146 : vector<1x128xf32> to vector<64x128xf32>
    %148 = arith.mulf %145, %147 : vector<64x128xf32>
    %149 = vector.extract_strided_slice %96 {offsets = [832, 0], sizes = [64, 128], strides = [1, 1]} : vector<1600x128xf32> to vector<64x128xf32>
    %c30 = arith.constant 30 : index
    %c0_51 = arith.constant 0 : index
    %150 = vector.load %arg6[%c30, %c0_51] : memref<64x128xf32, #tpu.memory_space<vmem>>, vector<1x128xf32>
    %151 = vector.broadcast %150 : vector<1x128xf32> to vector<64x128xf32>
    %152 = arith.mulf %149, %151 : vector<64x128xf32>
    %153 = vector.extract_strided_slice %96 {offsets = [896, 0], sizes = [64, 128], strides = [1, 1]} : vector<1600x128xf32> to vector<64x128xf32>
    %c31 = arith.constant 31 : index
    %c0_52 = arith.constant 0 : index
    %154 = vector.load %arg6[%c31, %c0_52] : memref<64x128xf32, #tpu.memory_space<vmem>>, vector<1x128xf32>
    %155 = vector.broadcast %154 : vector<1x128xf32> to vector<64x128xf32>
    %156 = arith.mulf %153, %155 : vector<64x128xf32>
    %157 = vector.extract_strided_slice %96 {offsets = [960, 0], sizes = [64, 128], strides = [1, 1]} : vector<1600x128xf32> to vector<64x128xf32>
    %c32_53 = arith.constant 32 : index
    %c0_54 = arith.constant 0 : index
    %158 = vector.load %arg6[%c32_53, %c0_54] : memref<64x128xf32, #tpu.memory_space<vmem>>, vector<1x128xf32>
    %159 = vector.broadcast %158 : vector<1x128xf32> to vector<64x128xf32>
    %160 = arith.mulf %157, %159 : vector<64x128xf32>
    %161 = vector.extract_strided_slice %96 {offsets = [1024, 0], sizes = [64, 128], strides = [1, 1]} : vector<1600x128xf32> to vector<64x128xf32>
    %c33 = arith.constant 33 : index
    %c0_55 = arith.constant 0 : index
    %162 = vector.load %arg6[%c33, %c0_55] : memref<64x128xf32, #tpu.memory_space<vmem>>, vector<1x128xf32>
    %163 = vector.broadcast %162 : vector<1x128xf32> to vector<64x128xf32>
    %164 = arith.mulf %161, %163 : vector<64x128xf32>
    %165 = vector.extract_strided_slice %96 {offsets = [1088, 0], sizes = [64, 128], strides = [1, 1]} : vector<1600x128xf32> to vector<64x128xf32>
    %c34 = arith.constant 34 : index
    %c0_56 = arith.constant 0 : index
    %166 = vector.load %arg6[%c34, %c0_56] : memref<64x128xf32, #tpu.memory_space<vmem>>, vector<1x128xf32>
    %167 = vector.broadcast %166 : vector<1x128xf32> to vector<64x128xf32>
    %168 = arith.mulf %165, %167 : vector<64x128xf32>
    %169 = vector.extract_strided_slice %96 {offsets = [1152, 0], sizes = [64, 128], strides = [1, 1]} : vector<1600x128xf32> to vector<64x128xf32>
    %c35 = arith.constant 35 : index
    %c0_57 = arith.constant 0 : index
    %170 = vector.load %arg6[%c35, %c0_57] : memref<64x128xf32, #tpu.memory_space<vmem>>, vector<1x128xf32>
    %171 = vector.broadcast %170 : vector<1x128xf32> to vector<64x128xf32>
    %172 = arith.mulf %169, %171 : vector<64x128xf32>
    %173 = vector.extract_strided_slice %96 {offsets = [1216, 0], sizes = [64, 128], strides = [1, 1]} : vector<1600x128xf32> to vector<64x128xf32>
    %c36 = arith.constant 36 : index
    %c0_58 = arith.constant 0 : index
    %174 = vector.load %arg6[%c36, %c0_58] : memref<64x128xf32, #tpu.memory_space<vmem>>, vector<1x128xf32>
    %175 = vector.broadcast %174 : vector<1x128xf32> to vector<64x128xf32>
    %176 = arith.mulf %173, %175 : vector<64x128xf32>
    %177 = vector.extract_strided_slice %96 {offsets = [1280, 0], sizes = [64, 128], strides = [1, 1]} : vector<1600x128xf32> to vector<64x128xf32>
    %c37 = arith.constant 37 : index
    %c0_59 = arith.constant 0 : index
    %178 = vector.load %arg6[%c37, %c0_59] : memref<64x128xf32, #tpu.memory_space<vmem>>, vector<1x128xf32>
    %179 = vector.broadcast %178 : vector<1x128xf32> to vector<64x128xf32>
    %180 = arith.mulf %177, %179 : vector<64x128xf32>
    %181 = vector.extract_strided_slice %96 {offsets = [1344, 0], sizes = [64, 128], strides = [1, 1]} : vector<1600x128xf32> to vector<64x128xf32>
    %c38 = arith.constant 38 : index
    %c0_60 = arith.constant 0 : index
    %182 = vector.load %arg6[%c38, %c0_60] : memref<64x128xf32, #tpu.memory_space<vmem>>, vector<1x128xf32>
    %183 = vector.broadcast %182 : vector<1x128xf32> to vector<64x128xf32>
    %184 = arith.mulf %181, %183 : vector<64x128xf32>
    %185 = vector.extract_strided_slice %96 {offsets = [1408, 0], sizes = [64, 128], strides = [1, 1]} : vector<1600x128xf32> to vector<64x128xf32>
    %c39 = arith.constant 39 : index
    %c0_61 = arith.constant 0 : index
    %186 = vector.load %arg6[%c39, %c0_61] : memref<64x128xf32, #tpu.memory_space<vmem>>, vector<1x128xf32>
    %187 = vector.broadcast %186 : vector<1x128xf32> to vector<64x128xf32>
    %188 = arith.mulf %185, %187 : vector<64x128xf32>
    %189 = vector.extract_strided_slice %96 {offsets = [1472, 0], sizes = [64, 128], strides = [1, 1]} : vector<1600x128xf32> to vector<64x128xf32>
    %c40 = arith.constant 40 : index
    %c0_62 = arith.constant 0 : index
    %190 = vector.load %arg6[%c40, %c0_62] : memref<64x128xf32, #tpu.memory_space<vmem>>, vector<1x128xf32>
    %191 = vector.broadcast %190 : vector<1x128xf32> to vector<64x128xf32>
    %192 = arith.mulf %189, %191 : vector<64x128xf32>
    %193 = vector.extract_strided_slice %96 {offsets = [1536, 0], sizes = [64, 128], strides = [1, 1]} : vector<1600x128xf32> to vector<64x128xf32>
    %c41 = arith.constant 41 : index
    %c0_63 = arith.constant 0 : index
    %194 = vector.load %arg6[%c41, %c0_63] : memref<64x128xf32, #tpu.memory_space<vmem>>, vector<1x128xf32>
    %195 = vector.broadcast %194 : vector<1x128xf32> to vector<64x128xf32>
    %196 = arith.mulf %193, %195 : vector<64x128xf32>
    %197 = arith.addf %100, %104 : vector<64x128xf32>
    %198 = arith.addf %108, %112 : vector<64x128xf32>
    %199 = arith.addf %116, %120 : vector<64x128xf32>
    %200 = arith.addf %124, %128 : vector<64x128xf32>
    %201 = arith.addf %132, %136 : vector<64x128xf32>
    %202 = arith.addf %140, %144 : vector<64x128xf32>
    %203 = arith.addf %148, %152 : vector<64x128xf32>
    %204 = arith.addf %156, %160 : vector<64x128xf32>
    %205 = arith.addf %164, %168 : vector<64x128xf32>
    %206 = arith.addf %172, %176 : vector<64x128xf32>
    %207 = arith.addf %180, %184 : vector<64x128xf32>
    %208 = arith.addf %188, %192 : vector<64x128xf32>
    %209 = arith.addf %197, %198 : vector<64x128xf32>
    %210 = arith.addf %199, %200 : vector<64x128xf32>
    %211 = arith.addf %201, %202 : vector<64x128xf32>
    %212 = arith.addf %203, %204 : vector<64x128xf32>
    %213 = arith.addf %205, %206 : vector<64x128xf32>
    %214 = arith.addf %207, %208 : vector<64x128xf32>
    %215 = arith.addf %209, %210 : vector<64x128xf32>
    %216 = arith.addf %211, %212 : vector<64x128xf32>
    %217 = arith.addf %213, %214 : vector<64x128xf32>
    %218 = arith.addf %215, %216 : vector<64x128xf32>
    %219 = arith.addf %217, %196 : vector<64x128xf32>
    %220 = arith.addf %218, %219 : vector<64x128xf32>
    %c42 = arith.constant 42 : index
    %c0_64 = arith.constant 0 : index
    %221 = vector.load %arg6[%c42, %c0_64] : memref<64x128xf32, #tpu.memory_space<vmem>>, vector<1x128xf32>
    %222 = vector.broadcast %221 : vector<1x128xf32> to vector<64x128xf32>
    %223 = arith.mulf %220, %222 : vector<64x128xf32>
    %c43 = arith.constant 43 : index
    %c0_65 = arith.constant 0 : index
    %224 = vector.load %arg6[%c43, %c0_65] : memref<64x128xf32, #tpu.memory_space<vmem>>, vector<1x128xf32>
    %225 = vector.broadcast %224 : vector<1x128xf32> to vector<64x128xf32>
    %226 = arith.addf %223, %225 : vector<64x128xf32>
    %cst_66 = arith.constant 0.000000e+00 : f32
    %227 = vector.broadcast %cst_66 : f32 to vector<64x128xf32>
    %228 = arith.maximumf %226, %227 : vector<64x128xf32>
    %cst_67 = arith.constant 6.000000e+00 : f32
    %229 = vector.broadcast %cst_67 : f32 to vector<64x128xf32>
    %230 = arith.minimumf %228, %229 : vector<64x128xf32>
    %231 = arith.truncf %230 : vector<64x128xf32> to vector<64x128xbf16>
    %c288 = arith.constant 288 : index
    %c0_68 = arith.constant 0 : index
    %232 = vector.load %arg5[%c288, %c0_68] : memref<800x128xbf16, #tpu.memory_space<vmem>>, vector<128x128xbf16>
    %cst_69 = arith.constant dense<0.000000e+00> : vector<64x128xf32>
    %233 = tpu.matmul %231, %232, %cst_69 {dimension_numbers = #tpu.dot_dimension_numbers<[1], [0], [0], [1], [0, 0, 1, 1], [], []>} : vector<64x128xbf16>, vector<128x128xbf16>, vector<64x128xf32> -> vector<64x128xf32>
    %c44 = arith.constant 44 : index
    %c0_70 = arith.constant 0 : index
    %234 = vector.load %arg6[%c44, %c0_70] : memref<64x128xf32, #tpu.memory_space<vmem>>, vector<1x128xf32>
    %235 = vector.broadcast %234 : vector<1x128xf32> to vector<64x128xf32>
    %236 = arith.mulf %233, %235 : vector<64x128xf32>
    %c45 = arith.constant 45 : index
    %c0_71 = arith.constant 0 : index
    %237 = vector.load %arg6[%c45, %c0_71] : memref<64x128xf32, #tpu.memory_space<vmem>>, vector<1x128xf32>
    %238 = vector.broadcast %237 : vector<1x128xf32> to vector<64x128xf32>
    %239 = arith.addf %236, %238 : vector<64x128xf32>
    %240 = arith.truncf %239 : vector<64x128xf32> to vector<64x128xbf16>
    %c416 = arith.constant 416 : index
    %c0_72 = arith.constant 0 : index
    %241 = vector.load %arg5[%c416, %c0_72] : memref<800x128xbf16, #tpu.memory_space<vmem>>, vector<128x128xbf16>
    %cst_73 = arith.constant dense<0.000000e+00> : vector<64x128xf32>
    %242 = tpu.matmul %240, %241, %cst_73 {dimension_numbers = #tpu.dot_dimension_numbers<[1], [0], [0], [1], [0, 0, 1, 1], [], []>} : vector<64x128xbf16>, vector<128x128xbf16>, vector<64x128xf32> -> vector<64x128xf32>
    %c46 = arith.constant 46 : index
    %c0_74 = arith.constant 0 : index
    %243 = vector.load %arg6[%c46, %c0_74] : memref<64x128xf32, #tpu.memory_space<vmem>>, vector<1x128xf32>
    %244 = vector.broadcast %243 : vector<1x128xf32> to vector<64x128xf32>
    %245 = arith.mulf %242, %244 : vector<64x128xf32>
    %c47 = arith.constant 47 : index
    %c0_75 = arith.constant 0 : index
    %246 = vector.load %arg6[%c47, %c0_75] : memref<64x128xf32, #tpu.memory_space<vmem>>, vector<1x128xf32>
    %247 = vector.broadcast %246 : vector<1x128xf32> to vector<64x128xf32>
    %248 = arith.addf %245, %247 : vector<64x128xf32>
    %cst_76 = arith.constant 0.000000e+00 : f32
    %249 = vector.broadcast %cst_76 : f32 to vector<64x128xf32>
    %250 = arith.maximumf %248, %249 : vector<64x128xf32>
    %cst_77 = arith.constant 6.000000e+00 : f32
    %251 = vector.broadcast %cst_77 : f32 to vector<64x128xf32>
    %252 = arith.minimumf %250, %251 : vector<64x128xf32>
    %c0_78 = arith.constant 0 : index
    %c0_79 = arith.constant 0 : index
    %253 = vector.load %arg4[%c0_78, %c0_79] : memref<576x64xbf16, #tpu.memory_space<vmem>>, vector<576x64xbf16>
    %254 = arith.truncf %252 : vector<64x128xf32> to vector<64x128xbf16>
    %cst_80 = arith.constant dense<0.000000e+00> : vector<576x128xf32>
    %255 = tpu.matmul %253, %254, %cst_80 {dimension_numbers = #tpu.dot_dimension_numbers<[1], [0], [0], [1], [0, 0, 1, 1], [], []>} : vector<576x64xbf16>, vector<64x128xbf16>, vector<576x128xf32> -> vector<576x128xf32>
    %256 = vector.extract_strided_slice %255 {offsets = [0, 0], sizes = [64, 128], strides = [1, 1]} : vector<576x128xf32> to vector<64x128xf32>
    %c48 = arith.constant 48 : index
    %c0_81 = arith.constant 0 : index
    %257 = vector.load %arg6[%c48, %c0_81] : memref<64x128xf32, #tpu.memory_space<vmem>>, vector<1x128xf32>
    %258 = vector.broadcast %257 : vector<1x128xf32> to vector<64x128xf32>
    %259 = arith.mulf %256, %258 : vector<64x128xf32>
    %260 = vector.extract_strided_slice %255 {offsets = [64, 0], sizes = [64, 128], strides = [1, 1]} : vector<576x128xf32> to vector<64x128xf32>
    %c49 = arith.constant 49 : index
    %c0_82 = arith.constant 0 : index
    %261 = vector.load %arg6[%c49, %c0_82] : memref<64x128xf32, #tpu.memory_space<vmem>>, vector<1x128xf32>
    %262 = vector.broadcast %261 : vector<1x128xf32> to vector<64x128xf32>
    %263 = arith.mulf %260, %262 : vector<64x128xf32>
    %264 = vector.extract_strided_slice %255 {offsets = [128, 0], sizes = [64, 128], strides = [1, 1]} : vector<576x128xf32> to vector<64x128xf32>
    %c50 = arith.constant 50 : index
    %c0_83 = arith.constant 0 : index
    %265 = vector.load %arg6[%c50, %c0_83] : memref<64x128xf32, #tpu.memory_space<vmem>>, vector<1x128xf32>
    %266 = vector.broadcast %265 : vector<1x128xf32> to vector<64x128xf32>
    %267 = arith.mulf %264, %266 : vector<64x128xf32>
    %268 = vector.extract_strided_slice %255 {offsets = [192, 0], sizes = [64, 128], strides = [1, 1]} : vector<576x128xf32> to vector<64x128xf32>
    %c51 = arith.constant 51 : index
    %c0_84 = arith.constant 0 : index
    %269 = vector.load %arg6[%c51, %c0_84] : memref<64x128xf32, #tpu.memory_space<vmem>>, vector<1x128xf32>
    %270 = vector.broadcast %269 : vector<1x128xf32> to vector<64x128xf32>
    %271 = arith.mulf %268, %270 : vector<64x128xf32>
    %272 = vector.extract_strided_slice %255 {offsets = [256, 0], sizes = [64, 128], strides = [1, 1]} : vector<576x128xf32> to vector<64x128xf32>
    %c52 = arith.constant 52 : index
    %c0_85 = arith.constant 0 : index
    %273 = vector.load %arg6[%c52, %c0_85] : memref<64x128xf32, #tpu.memory_space<vmem>>, vector<1x128xf32>
    %274 = vector.broadcast %273 : vector<1x128xf32> to vector<64x128xf32>
    %275 = arith.mulf %272, %274 : vector<64x128xf32>
    %276 = vector.extract_strided_slice %255 {offsets = [320, 0], sizes = [64, 128], strides = [1, 1]} : vector<576x128xf32> to vector<64x128xf32>
    %c53 = arith.constant 53 : index
    %c0_86 = arith.constant 0 : index
    %277 = vector.load %arg6[%c53, %c0_86] : memref<64x128xf32, #tpu.memory_space<vmem>>, vector<1x128xf32>
    %278 = vector.broadcast %277 : vector<1x128xf32> to vector<64x128xf32>
    %279 = arith.mulf %276, %278 : vector<64x128xf32>
    %280 = vector.extract_strided_slice %255 {offsets = [384, 0], sizes = [64, 128], strides = [1, 1]} : vector<576x128xf32> to vector<64x128xf32>
    %c54 = arith.constant 54 : index
    %c0_87 = arith.constant 0 : index
    %281 = vector.load %arg6[%c54, %c0_87] : memref<64x128xf32, #tpu.memory_space<vmem>>, vector<1x128xf32>
    %282 = vector.broadcast %281 : vector<1x128xf32> to vector<64x128xf32>
    %283 = arith.mulf %280, %282 : vector<64x128xf32>
    %284 = vector.extract_strided_slice %255 {offsets = [448, 0], sizes = [64, 128], strides = [1, 1]} : vector<576x128xf32> to vector<64x128xf32>
    %c55 = arith.constant 55 : index
    %c0_88 = arith.constant 0 : index
    %285 = vector.load %arg6[%c55, %c0_88] : memref<64x128xf32, #tpu.memory_space<vmem>>, vector<1x128xf32>
    %286 = vector.broadcast %285 : vector<1x128xf32> to vector<64x128xf32>
    %287 = arith.mulf %284, %286 : vector<64x128xf32>
    %288 = vector.extract_strided_slice %255 {offsets = [512, 0], sizes = [64, 128], strides = [1, 1]} : vector<576x128xf32> to vector<64x128xf32>
    %c56 = arith.constant 56 : index
    %c0_89 = arith.constant 0 : index
    %289 = vector.load %arg6[%c56, %c0_89] : memref<64x128xf32, #tpu.memory_space<vmem>>, vector<1x128xf32>
    %290 = vector.broadcast %289 : vector<1x128xf32> to vector<64x128xf32>
    %291 = arith.mulf %288, %290 : vector<64x128xf32>
    %292 = arith.addf %259, %263 : vector<64x128xf32>
    %293 = arith.addf %267, %271 : vector<64x128xf32>
    %294 = arith.addf %275, %279 : vector<64x128xf32>
    %295 = arith.addf %283, %287 : vector<64x128xf32>
    %296 = arith.addf %292, %293 : vector<64x128xf32>
    %297 = arith.addf %294, %295 : vector<64x128xf32>
    %298 = arith.addf %296, %297 : vector<64x128xf32>
    %299 = arith.addf %298, %291 : vector<64x128xf32>
    %c57 = arith.constant 57 : index
    %c0_90 = arith.constant 0 : index
    %300 = vector.load %arg6[%c57, %c0_90] : memref<64x128xf32, #tpu.memory_space<vmem>>, vector<1x128xf32>
    %301 = vector.broadcast %300 : vector<1x128xf32> to vector<64x128xf32>
    %302 = arith.mulf %299, %301 : vector<64x128xf32>
    %c58 = arith.constant 58 : index
    %c0_91 = arith.constant 0 : index
    %303 = vector.load %arg6[%c58, %c0_91] : memref<64x128xf32, #tpu.memory_space<vmem>>, vector<1x128xf32>
    %304 = vector.broadcast %303 : vector<1x128xf32> to vector<64x128xf32>
    %305 = arith.addf %302, %304 : vector<64x128xf32>
    %cst_92 = arith.constant 0.000000e+00 : f32
    %306 = vector.broadcast %cst_92 : f32 to vector<64x128xf32>
    %307 = arith.maximumf %305, %306 : vector<64x128xf32>
    %cst_93 = arith.constant 6.000000e+00 : f32
    %308 = vector.broadcast %cst_93 : f32 to vector<64x128xf32>
    %309 = arith.minimumf %307, %308 : vector<64x128xf32>
    %310 = arith.truncf %309 : vector<64x128xf32> to vector<64x128xbf16>
    %c544 = arith.constant 544 : index
    %c0_94 = arith.constant 0 : index
    %311 = vector.load %arg5[%c544, %c0_94] : memref<800x128xbf16, #tpu.memory_space<vmem>>, vector<128x128xbf16>
    %cst_95 = arith.constant dense<0.000000e+00> : vector<64x128xf32>
    %312 = tpu.matmul %310, %311, %cst_95 {dimension_numbers = #tpu.dot_dimension_numbers<[1], [0], [0], [1], [0, 0, 1, 1], [], []>} : vector<64x128xbf16>, vector<128x128xbf16>, vector<64x128xf32> -> vector<64x128xf32>
    %c59 = arith.constant 59 : index
    %c0_96 = arith.constant 0 : index
    %313 = vector.load %arg6[%c59, %c0_96] : memref<64x128xf32, #tpu.memory_space<vmem>>, vector<1x128xf32>
    %314 = vector.broadcast %313 : vector<1x128xf32> to vector<64x128xf32>
    %315 = arith.mulf %312, %314 : vector<64x128xf32>
    %c60 = arith.constant 60 : index
    %c0_97 = arith.constant 0 : index
    %316 = vector.load %arg6[%c60, %c0_97] : memref<64x128xf32, #tpu.memory_space<vmem>>, vector<1x128xf32>
    %317 = vector.broadcast %316 : vector<1x128xf32> to vector<64x128xf32>
    %318 = arith.addf %315, %317 : vector<64x128xf32>
    %319 = arith.addf %318, %239 : vector<64x128xf32>
    %cst_98 = arith.constant dense<0.000000e+00> : vector<128xf32>
    %320 = vector.multi_reduction <add>, %319, %cst_98 [0] : vector<64x128xf32> to vector<128xf32>
    %321 = vector.shape_cast %320 : vector<128xf32> to vector<1x128xf32>
    %cst_99 = arith.constant 6.400000e+01 : f32
    %322 = vector.broadcast %cst_99 : f32 to vector<1x128xf32>
    %323 = arith.divf %321, %322 : vector<1x128xf32>
    %324 = arith.truncf %323 : vector<1x128xf32> to vector<1x128xbf16>
    %c672 = arith.constant 672 : index
    %c0_100 = arith.constant 0 : index
    %325 = vector.load %arg5[%c672, %c0_100] : memref<800x128xbf16, #tpu.memory_space<vmem>>, vector<128x128xbf16>
    %cst_101 = arith.constant dense<0.000000e+00> : vector<1x128xf32>
    %326 = tpu.matmul %324, %325, %cst_101 {dimension_numbers = #tpu.dot_dimension_numbers<[1], [0], [0], [1], [0, 0, 1, 1], [], []>} : vector<1x128xbf16>, vector<128x128xbf16>, vector<1x128xf32> -> vector<1x128xf32>
    %c61 = arith.constant 61 : index
    %c0_102 = arith.constant 0 : index
    %327 = vector.load %arg6[%c61, %c0_102] : memref<64x128xf32, #tpu.memory_space<vmem>>, vector<1x128xf32>
    %328 = arith.addf %326, %327 : vector<1x128xf32>
    %c0_103 = arith.constant 0 : index
    %c0_104 = arith.constant 0 : index
    %c0_105 = arith.constant 0 : index
    %329 = vector.load %arg7[%c0_103, %c0_104, %c0_105] : memref<1x1x128xf32, #tpu.memory_space<vmem>>, vector<1x1x128xf32>
    %330 = vector.shape_cast %329 : vector<1x1x128xf32> to vector<1x128xf32>
    %331 = vector.shape_cast %328 : vector<1x128xf32> to vector<1x1x128xf32>
    tpu.vector_store %arg7[%c0_103, %c0_104, %c0_105], %331 {strides = array<i32>} : memref<1x1x128xf32, #tpu.memory_space<vmem>>, vector<1x1x128xf32>,
    return
  }
  func.func @transform_0(%arg0: i32) -> (i32, i32, i32) {
    %c0_i32 = arith.constant 0 : i32
    %c0_i32_0 = arith.constant 0 : i32
    %c0_i32_1 = arith.constant 0 : i32
    return %arg0, %c0_i32, %c0_i32_0 : i32, i32, i32
  }
  func.func @transform_1(%arg0: i32) -> (i32, i32) {
    %c0_i32 = arith.constant 0 : i32
    %c0_i32_0 = arith.constant 0 : i32
    %c0_i32_1 = arith.constant 0 : i32
    return %c0_i32, %c0_i32_0 : i32, i32
  }
  func.func @transform_2(%arg0: i32) -> (i32, i32) {
    %c0_i32 = arith.constant 0 : i32
    %c0_i32_0 = arith.constant 0 : i32
    %c0_i32_1 = arith.constant 0 : i32
    return %c0_i32, %c0_i32_0 : i32, i32
  }
  func.func @transform_3(%arg0: i32) -> (i32, i32) {
    %c0_i32 = arith.constant 0 : i32
    %c0_i32_0 = arith.constant 0 : i32
    %c0_i32_1 = arith.constant 0 : i32
    return %c0_i32, %c0_i32_0 : i32, i32
  }
  func.func @transform_4(%arg0: i32) -> (i32, i32) {
    %c0_i32 = arith.constant 0 : i32
    %c0_i32_0 = arith.constant 0 : i32
    %c0_i32_1 = arith.constant 0 : i32
    return %c0_i32, %c0_i32_0 : i32, i32
  }
  func.func @transform_5(%arg0: i32) -> (i32, i32) {
    %c0_i32 = arith.constant 0 : i32
    %c0_i32_0 = arith.constant 0 : i32
    %c0_i32_1 = arith.constant 0 : i32
    return %c0_i32, %c0_i32_0 : i32, i32
  }
  func.func @transform_6(%arg0: i32) -> (i32, i32, i32) {
    %c0_i32 = arith.constant 0 : i32
    %c0_i32_0 = arith.constant 0 : i32
    %c0_i32_1 = arith.constant 0 : i32
    return %arg0, %c0_i32, %c0_i32_0 : i32, i32, i32
  }
}

</mosaic_0001>

<llo_original>
// kernel: forward.1
$region0: #{forward.1}
  #allocation0 [shape = 'u32[]', space=smem, size = 0x4, offset = 0x4, fixed_abs, tag = 'smem constant byte address 0x4 - core index']
  #allocation1 [shape = 'u32[144,128]{1,0:T(1,128)}', space=vmem, size = 0x12000, scoped, tag = 'internal scratch']
  %s0 = inlined_call_operand.vmem [shape: bf16[2,256,32], index: 0, kind: input, shape index: {}]
  %s1 = inlined_call_operand.vmem [shape: bf16[2304,256], index: 1, kind: input, shape index: {}]
  %s2 = inlined_call_operand.hbm [shape: bf16[1600,256], index: 2, kind: input, shape index: {}]
  %s3 = inlined_call_operand.vmem [shape: bf16[576,64], index: 3, kind: input, shape index: {}]
  %s4 = inlined_call_operand.vmem [shape: bf16[800,128], index: 4, kind: input, shape index: {}]
  %s5 = inlined_call_operand.vmem [shape: f32[64,128], index: 5, kind: input, shape index: {}]
  %s6 = inlined_call_operand.hbm [shape: f32[2,1,128], index: 6, kind: output, shape index: {}]
  %s7 = sld [smem:[#allocation0]]
  $region61: #{forward.1} parent=0
    _
  %s9 = ssub.s32 1, %s7
  %s10 = scalar_select 0, %s9, %s7
  $region1: #{forward.1} parent=0
    #allocation2 [shape = 'u8[819200]{0}', space=vmem, size = 0xc8000, scoped, tag = 'input window, operand 2, single buffered']
    #allocation3 [shape = 's32[2]{0}', space=sflag, size = 0x8, scoped, tag = 'scoped memory for forward.1']
    #allocation4 [shape = 's32[2]{0}', space=sflag, size = 0x8, scoped, tag = 'scoped memory for forward.1']
    #allocation5 [shape = 'u8[1024]{0}', space=vmem, size = 0x400, scoped, tag = 'output window, operand 0']
    %11 = vsyncpa [#allocation3], 0
    %12 = vsyncpa [#allocation4], 0
    %s13 = scalar_lea.sflag [#allocation4], 1
    %14 = vsyncpa %s13, 0
    loop: start=0, step=1, limit=4
    $region2: #{forward.1} parent=1 // loop_pre_header
      _
    $region3: #{forward.1} parent=1 // loop_header
      %s16 = sphi 0, %s20
      %p17 = scmp.ge.s32.totalorder %s16, 4
      %s26 = sphi 0, %s28
      %s29 = sphi 0, %s26
      %s30 = sphi 0, %s29
      %s46 = sphi 0, %s30
      %s50 = sphi 0, %s50
      %s52 = sphi 0, %s50
      %s53 = sphi 0, %s52
      %s67 = sphi 0, %s53
      %s71 = sphi 0, %s71
      %s73 = sphi 0, %s71
      %s74 = sphi 0, %s73
      %s88 = sphi 0, %s74
      %s92 = sphi 0, %s92
      %s94 = sphi 0, %s92
      %s95 = sphi 0, %s94
      %s109 = sphi 0, %s95
      %s113 = sphi 0, %s113
      %s115 = sphi 0, %s113
      %s116 = sphi 0, %s115
      %s130 = sphi 0, %s116
      %s134 = sphi 0, %s134
      %s136 = sphi 0, %s134
      %s137 = sphi 0, %s136
      %s151 = sphi 0, %s137
      %s157 = sphi 0, %s159
      %s160 = sphi 0, %s157
      %s161 = sphi 0, %s160
      %s177 = sphi 0, %s161
    $region4: #{forward.1} parent=1 // loop_header_branch
      %19 = sbr.rel (%p17) target = $region8
    $region5: #{forward.1} parent=1 // loop_body
      %s21 = ssub.s32 %s16, 1
      %s22 = ssub.s32 %s16, 2
      %s23 = sadd.s32 %s16, 1
      %s24 = ssub.s32 %s16, %s23
      %p25 = scmp.eq.s32.totalorder %s24, 0
      %s27 = sadd.s32 %s26, 1
      %s28 = scalar_select %p25, %s26, %s27
      %p31 = pneg %p25
      %p32 = scmp.eq.s32.totalorder %s16, 1
      %p33 = por %p31, %p32
      %p34 = scmp.ne.s32.totalorder %s26, %s29
      %p35 = scmp.eq.s32.totalorder %s16, 0
      %p36 = por %p34, %p35
      %p37 = scmp.ne.s32.totalorder %s26, %s29
      %p38 = scmp.eq.s32.totalorder %s21, 1
      %p39 = por %p37, %p38
      %p40 = scmp.ne.s32.totalorder %s29, %s30
      %p41 = scmp.eq.s32.totalorder %s21, 0
      %p42 = por %p40, %p41
      %p43 = scmp.ne.s32.totalorder %s29, %s30
      %p44 = scmp.eq.s32.totalorder %s22, 1
      %p45 = por %p43, %p44
      %p47 = scmp.ne.s32.totalorder %s30, %s46
      %p48 = scmp.eq.s32.totalorder %s22, 0
      %p49 = por %p47, %p48
      %s51 = sadd.s32 %s50, 1
      %p54 = scmp.eq.s32.totalorder %s16, 1
      %p55 = scmp.ne.s32.totalorder %s50, %s52
      %p56 = scmp.eq.s32.totalorder %s16, 0
      %p57 = por %p55, %p56
      %p58 = scmp.ne.s32.totalorder %s50, %s52
      %p59 = scmp.eq.s32.totalorder %s21, 1
      %p60 = por %p58, %p59
      %p61 = scmp.ne.s32.totalorder %s52, %s53
      %p62 = scmp.eq.s32.totalorder %s21, 0
      %p63 = por %p61, %p62
      %p64 = scmp.ne.s32.totalorder %s52, %s53
      %p65 = scmp.eq.s32.totalorder %s22, 1
      %p66 = por %p64, %p65
      %p68 = scmp.ne.s32.totalorder %s53, %s67
      %p69 = scmp.eq.s32.totalorder %s22, 0
      %p70 = por %p68, %p69
      %s72 = sadd.s32 %s71, 1
      %p75 = scmp.eq.s32.totalorder %s16, 1
      %p76 = scmp.ne.s32.totalorder %s71, %s73
      %p77 = scmp.eq.s32.totalorder %s16, 0
      %p78 = por %p76, %p77
      %p79 = scmp.ne.s32.totalorder %s71, %s73
      %p80 = scmp.eq.s32.totalorder %s21, 1
      %p81 = por %p79, %p80
      %p82 = scmp.ne.s32.totalorder %s73, %s74
      %p83 = scmp.eq.s32.totalorder %s21, 0
      %p84 = por %p82, %p83
      %p85 = scmp.ne.s32.totalorder %s73, %s74
      %p86 = scmp.eq.s32.totalorder %s22, 1
      %p87 = por %p85, %p86
      %p89 = scmp.ne.s32.totalorder %s74, %s88
      %p90 = scmp.eq.s32.totalorder %s22, 0
      %p91 = por %p89, %p90
      %s93 = sadd.s32 %s92, 1
      %p96 = scmp.eq.s32.totalorder %s16, 1
      %p97 = scmp.ne.s32.totalorder %s92, %s94
      %p98 = scmp.eq.s32.totalorder %s16, 0
      %p99 = por %p97, %p98
      %p100 = scmp.ne.s32.totalorder %s92, %s94
      %p101 = scmp.eq.s32.totalorder %s21, 1
      %p102 = por %p100, %p101
      %p103 = scmp.ne.s32.totalorder %s94, %s95
      %p104 = scmp.eq.s32.totalorder %s21, 0
      %p105 = por %p103, %p104
      %p106 = scmp.ne.s32.totalorder %s94, %s95
      %p107 = scmp.eq.s32.totalorder %s22, 1
      %p108 = por %p106, %p107
      %p110 = scmp.ne.s32.totalorder %s95, %s109
      %p111 = scmp.eq.s32.totalorder %s22, 0
      %p112 = por %p110, %p111
      %s114 = sadd.s32 %s113, 1
      %p117 = scmp.eq.s32.totalorder %s16, 1
      %p118 = scmp.ne.s32.totalorder %s113, %s115
      %p119 = scmp.eq.s32.totalorder %s16, 0
      %p120 = por %p118, %p119
      %p121 = scmp.ne.s32.totalorder %s113, %s115
      %p122 = scmp.eq.s32.totalorder %s21, 1
      %p123 = por %p121, %p122
      %p124 = scmp.ne.s32.totalorder %s115, %s116
      %p125 = scmp.eq.s32.totalorder %s21, 0
      %p126 = por %p124, %p125
      %p127 = scmp.ne.s32.totalorder %s115, %s116
      %p128 = scmp.eq.s32.totalorder %s22, 1
      %p129 = por %p127, %p128
      %p131 = scmp.ne.s32.totalorder %s116, %s130
      %p132 = scmp.eq.s32.totalorder %s22, 0
      %p133 = por %p131, %p132
      %s135 = sadd.s32 %s134, 1
      %p138 = scmp.eq.s32.totalorder %s16, 1
      %p139 = scmp.ne.s32.totalorder %s134, %s136
      %p140 = scmp.eq.s32.totalorder %s16, 0
      %p141 = por %p139, %p140
      %p142 = scmp.ne.s32.totalorder %s134, %s136
      %p143 = scmp.eq.s32.totalorder %s21, 1
      %p144 = por %p142, %p143
      %p145 = scmp.ne.s32.totalorder %s136, %s137
      %p146 = scmp.eq.s32.totalorder %s21, 0
      %p147 = por %p145, %p146
      %p148 = scmp.ne.s32.totalorder %s136, %s137
      %p149 = scmp.eq.s32.totalorder %s22, 1
      %p150 = por %p148, %p149
      %p152 = scmp.ne.s32.totalorder %s137, %s151
      %p153 = scmp.eq.s32.totalorder %s22, 0
      %p154 = por %p152, %p153
      %s155 = ssub.s32 %s16, %s23
      %p156 = scmp.eq.s32.totalorder %s155, 0
      %s158 = sadd.s32 %s157, 1
      %s159 = scalar_select %p156, %s157, %s158
      %p162 = pneg %p156
      %p163 = scmp.eq.s32.totalorder %s16, 1
      %p164 = por %p162, %p163
      %p165 = scmp.ne.s32.totalorder %s157, %s160
      %p166 = scmp.eq.s32.totalorder %s16, 0
      %p167 = por %p165, %p166
      %p168 = scmp.ne.s32.totalorder %s157, %s160
      %p169 = scmp.eq.s32.totalorder %s21, 1
      %p170 = por %p168, %p169
      %p171 = scmp.ne.s32.totalorder %s160, %s161
      %p172 = scmp.eq.s32.totalorder %s21, 0
      %p173 = por %p171, %p172
      %p174 = scmp.ne.s32.totalorder %s160, %s161
      %p175 = scmp.eq.s32.totalorder %s22, 1
      %p176 = por %p174, %p175
      %p178 = scmp.ne.s32.totalorder %s161, %s177
      %p179 = scmp.eq.s32.totalorder %s22, 0
      %p180 = por %p178, %p179
      %p181 = scmp.le.s32.totalorder 1, %s16
      %p182 = scmp.lt.s32.totalorder %s16, 3
      %p183 = pnand %p181, %p182
      %p184 = pneg %p183
      // Predicated region
      $region9: #{forward.1} parent=5 // pred_check
        _
      $region10: #{forward.1} parent=5 // pred_check_branch
        %186 = sbr.rel (%p183) target = $region12
      $region11: #{forward.1} parent=5 // pred_region
        %s187 = ssub.s32 %s16, 1
        // Predicated region
        $region13: #{forward.1} parent=11 // pred_check
          %p188 = pneg %p63
        $region14: #{forward.1} parent=11 // pred_check_branch
          %190 = sbr.rel (%p188) target = $region16
        $region15: #{forward.1} parent=11 // pred_region
          _
        $region16: #{forward.1} parent=11 // pred_fallthru
          _
        // Predicated region
        $region17: #{forward.1} parent=11 // pred_check
          %p191 = pneg %p84
        $region18: #{forward.1} parent=11 // pred_check_branch
          %193 = sbr.rel (%p191) target = $region20
        $region19: #{forward.1} parent=11 // pred_region
          %s195 = ssub.s32 25600, 25600
          %196 = vsyncadd [#allocation3], %s195
          %s197 = sshll.u32 [#allocation2], 4
          %s198 = int_to_ptr.vmem [resolvable:$true] %s197
          %203 = dma.hbm_to_vmem [thread:$0]  %s2, 25600, %s198, [#allocation3], 128, 128, 8
        $region20: #{forward.1} parent=11 // pred_fallthru
          _
        // Predicated region
        $region21: #{forward.1} parent=11 // pred_check
          %p204 = pneg %p105
        $region22: #{forward.1} parent=11 // pred_check_branch
          %206 = sbr.rel (%p204) target = $region24
        $region23: #{forward.1} parent=11 // pred_region
          _
        $region24: #{forward.1} parent=11 // pred_fallthru
          _
        // Predicated region
        $region25: #{forward.1} parent=11 // pred_check
          %p207 = pneg %p126
        $region26: #{forward.1} parent=11 // pred_check_branch
          %209 = sbr.rel (%p207) target = $region28
        $region27: #{forward.1} parent=11 // pred_region
          _
        $region28: #{forward.1} parent=11 // pred_fallthru
          _
        // Predicated region
        $region29: #{forward.1} parent=11 // pred_check
          %p210 = pneg %p147
        $region30: #{forward.1} parent=11 // pred_check_branch
          %212 = sbr.rel (%p210) target = $region32
        $region31: #{forward.1} parent=11 // pred_region
          _
        $region32: #{forward.1} parent=11 // pred_fallthru
          _
      $region12: #{forward.1} parent=5 // pred_fallthru
        _
      %p213 = scmp.lt.s32.totalorder %s16, 2
      // Predicated region
      $region33: #{forward.1} parent=5 // pred_check
        %p214 = pneg %p213
      $region34: #{forward.1} parent=5 // pred_check_branch
        %216 = sbr.rel (%p214) target = $region36
      $region35: #{forward.1} parent=5 // pred_region
        // Predicated region
        $region37: #{forward.1} parent=35 // pred_check
          %p217 = pneg %p36
        $region38: #{forward.1} parent=35 // pred_check_branch
          %219 = sbr.rel (%p217) target = $region40
        $region39: #{forward.1} parent=35 // pred_region
          %p220 = scmp.lt.s32.totalorder %s16, 1
          %s221 = scalar_select %p220, %s16, 1
          %s222 = smul.addr %s221, 32
          %s223 = smul.addr %s222, 4
          %s224 = scalar_lea.vmem %s0, %s223
        $region40: #{forward.1} parent=35 // pred_fallthru
          _
      $region36: #{forward.1} parent=5 // pred_fallthru
        _
      %p225 = scmp.le.s32.totalorder 1, %s16
      %p226 = scmp.lt.s32.totalorder %s16, 3
      %p227 = pnand %p225, %p226
      %p228 = pneg %p227
      // Predicated region
      $region41: #{forward.1} parent=5 // pred_check
        _
      $region42: #{forward.1} parent=5 // pred_check_branch
        %230 = sbr.rel (%p227) target = $region44
      $region43: #{forward.1} parent=5 // pred_region
        %s231 = ssub.s32 %s16, 1
        // Predicated region
        $region45: #{forward.1} parent=43 // pred_check
          %p232 = pneg %p84
        $region46: #{forward.1} parent=43 // pred_check_branch
          %234 = sbr.rel (%p232) target = $region48
        $region47: #{forward.1} parent=43 // pred_region
          %235 = dma.done [#allocation3], 25600
        $region48: #{forward.1} parent=43 // pred_fallthru
          _
        %p236 = scmp.lt.s32.totalorder %s21, 1
        %s237 = scalar_select %p236, %s21, 1
        %s238 = smul.addr %s237, 32
        %s239 = smul.addr %s238, 4
        %s240 = scalar_lea.vmem %s0, %s239
        %p241 = pneg %p42
        %p242 = pneg %p39
        %p243 = pneg %p63
        %p244 = pneg %p60
        %p245 = pneg %p84
        %p246 = pneg %p81
        %p247 = pneg %p105
        %p248 = pneg %p102
        %p249 = pneg %p126
        %p250 = pneg %p123
        %p251 = pneg %p147
        %p252 = pneg %p144
        %p253 = pneg %p173
        %p254 = pneg %p170
        %s255 = sand.u32 %s160, 1
        %s256 = scalar_lea.sflag [#allocation4], %s255
        %s257 = sand.u32 %s160, 1
        %s258 = scalar_lea.vmem [#allocation5], %s257
        %p259 = scmp.lt.s32.totalorder %s21, 1
        %s260 = scalar_select %p259, %s21, 1
        %s261 = smul.addr %s260, 32
        %s262 = smul.addr %s261, 4
        %s263 = scalar_lea.vmem %s0, %s262
        %v265 = vld [vmem:[%s263] sm:$0xf]
        %v266 = vld [vmem:[%s263 + $0x4] sm:$0xf]
        %v267 = vld [vmem:[%s263 + $0x8] sm:$0xf]
        %v268 = vld [vmem:[%s263 + $0xc] sm:$0xf]
        %v269 = vld [vmem:[%s263 + $0x10] sm:$0xf]
        %v270 = vld [vmem:[%s263 + $0x14] sm:$0xf]
        %v271 = vld [vmem:[%s263 + $0x18] sm:$0xf]
        %v272 = vld [vmem:[%s263 + $0x1c] sm:$0xf]
        %v273 = vld [vmem:[%s263 + $0x20] sm:$0xf]
        %v274 = vld [vmem:[%s263 + $0x24] sm:$0xf]
        %v275 = vld [vmem:[%s263 + $0x28] sm:$0xf]
        %v276 = vld [vmem:[%s263 + $0x2c] sm:$0xf]
        %v277 = vld [vmem:[%s263 + $0x30] sm:$0xf]
        %v278 = vld [vmem:[%s263 + $0x34] sm:$0xf]
        %v279 = vld [vmem:[%s263 + $0x38] sm:$0xf]
        %v280 = vld [vmem:[%s263 + $0x3c] sm:$0xf]
        %v281 = vld [vmem:[%s263 + $0x40] sm:$0xf]
        %v282 = vld [vmem:[%s263 + $0x44] sm:$0xf]
        %v283 = vld [vmem:[%s263 + $0x48] sm:$0xf]
        %v284 = vld [vmem:[%s263 + $0x4c] sm:$0xf]
        %v285 = vld [vmem:[%s263 + $0x50] sm:$0xf]
        %v286 = vld [vmem:[%s263 + $0x54] sm:$0xf]
        %v287 = vld [vmem:[%s263 + $0x58] sm:$0xf]
        %v288 = vld [vmem:[%s263 + $0x5c] sm:$0xf]
        %v289 = vld [vmem:[%s263 + $0x60] sm:$0xf]
        %v290 = vld [vmem:[%s263 + $0x64] sm:$0xf]
        %v291 = vld [vmem:[%s263 + $0x68] sm:$0xf]
        %v292 = vld [vmem:[%s263 + $0x6c] sm:$0xf]
        %v293 = vld [vmem:[%s263 + $0x70] sm:$0xf]
        %v294 = vld [vmem:[%s263 + $0x74] sm:$0xf]
        %v295 = vld [vmem:[%s263 + $0x78] sm:$0xf]
        %v296 = vld [vmem:[%s263 + $0x7c] sm:$0xf]
        %v297 = vld [vmem:[%s4] sm:$0xf]
        %v298 = vld [vmem:[%s4 + $0x4] sm:$0xf]
        %v299 = vld [vmem:[%s4 + $0x8] sm:$0xf]
        %v300 = vld [vmem:[%s4 + $0xc] sm:$0xf]
        %v333 = vunpack.c.l.b16 %v265
        %v334 = vunpack.c.l.b16 %v266
        %v335 = vunpack.c.l.b16 %v267
        %v336 = vunpack.c.l.b16 %v268
        %v337 = vunpack.c.l.b16 %v269
        %v338 = vunpack.c.l.b16 %v270
        %v339 = vunpack.c.l.b16 %v271
        %v340 = vunpack.c.l.b16 %v272
        %v341 = vunpack.c.l.b16 %v273
        %v342 = vunpack.c.l.b16 %v274
        %v343 = vunpack.c.l.b16 %v275
        %v344 = vunpack.c.l.b16 %v276
        %v345 = vunpack.c.l.b16 %v277
        %v346 = vunpack.c.l.b16 %v278
        %v347 = vunpack.c.l.b16 %v279
        %v348 = vunpack.c.l.b16 %v280
        %v349 = vunpack.c.l.b16 %v281
        %v350 = vunpack.c.l.b16 %v282
        %v351 = vunpack.c.l.b16 %v283
        %v352 = vunpack.c.l.b16 %v284
        %v353 = vunpack.c.l.b16 %v285
        %v354 = vunpack.c.l.b16 %v286
        %v355 = vunpack.c.l.b16 %v287
        %v356 = vunpack.c.l.b16 %v288
        %v357 = vunpack.c.l.b16 %v289
        %v358 = vunpack.c.l.b16 %v290
        %v359 = vunpack.c.l.b16 %v291
        %v360 = vunpack.c.l.b16 %v292
        %v361 = vunpack.c.l.b16 %v293
        %v362 = vunpack.c.l.b16 %v294
        %v363 = vunpack.c.l.b16 %v295
        %v364 = vunpack.c.l.b16 %v296
        %v365 = vpack.c.b16 %v334, %v333
        %v366 = vpack.c.b16 %v336, %v335
        %v367 = vpack.c.b16 %v338, %v337
        %v368 = vpack.c.b16 %v340, %v339
        %v369 = vpack.c.b16 %v342, %v341
        %v370 = vpack.c.b16 %v344, %v343
        %v371 = vpack.c.b16 %v346, %v345
        %v372 = vpack.c.b16 %v348, %v347
        %v373 = vpack.c.b16 %v350, %v349
        %v374 = vpack.c.b16 %v352, %v351
        %v375 = vpack.c.b16 %v354, %v353
        %v376 = vpack.c.b16 %v356, %v355
        %v377 = vpack.c.b16 %v358, %v357
        %v378 = vpack.c.b16 %v360, %v359
        %v379 = vpack.c.b16 %v362, %v361
        %v380 = vpack.c.b16 %v364, %v363
        %v385 = vunpack.c.l.b16 %v297
        %v386 = vunpack.c.l.b16 %v298
        %v387 = vunpack.c.l.b16 %v299
        %v388 = vunpack.c.l.b16 %v300
        %v389 = vpack.c.b16 %v386, %v385
        %v390 = vpack.c.b16 %v388, %v387
        %vm393 = vcmask 261120
        %v395 = vsel %vm393, %v365, 0
        %v398 = vsel %vm393, %v366, 0
        %v401 = vsel %vm393, %v367, 0
        %v404 = vsel %vm393, %v368, 0
        %v407 = vsel %vm393, %v369, 0
        %v410 = vsel %vm393, %v370, 0
        %v413 = vsel %vm393, %v371, 0
        %v416 = vsel %vm393, %v372, 0
        %v419 = vsel %vm393, %v373, 0
        %v422 = vsel %vm393, %v374, 0
        %v425 = vsel %vm393, %v375, 0
        %v428 = vsel %vm393, %v376, 0
        %v431 = vsel %vm393, %v377, 0
        %v434 = vsel %vm393, %v378, 0
        %v437 = vsel %vm393, %v379, 0
        %v440 = vsel %vm393, %v380, 0
        %442 = vmatprep.subr.bf16.mxu0 0
        %443 = vmatpush1.bf16.msra.mxu0 %v389
        %444 = vmatprep.subr.bf16.mxu0 0
        %445 = vmatpush1.bf16.msra.mxu0 %v390
        %446 = vmatprep.subr.bf16.mxu0 0
        %447 = vmatpush1.bf16.msra.mxu0 0
        %448 = vmatprep.subr.bf16.mxu0 0
        %449 = vmatpush1.bf16.msra.mxu0 0
        %450 = vmatprep.subr.bf16.mxu0 0
        %451 = vmatpush1.bf16.msra.mxu0 0
        %452 = vmatprep.subr.bf16.mxu0 0
        %453 = vmatpush1.bf16.msra.mxu0 0
        %454 = vmatprep.subr.bf16.mxu0 0
        %455 = vmatpush1.bf16.msra.mxu0 0
        %456 = vmatprep.subr.bf16.mxu0 0
        %457 = vmatpush1.bf16.msra.mxu0 0
        %458 = vmatprep.subr.bf16.mxu0 0
        %459 = vmatpush1.bf16.msra.mxu0 0
        %460 = vmatprep.subr.bf16.mxu0 0
        %461 = vmatpush1.bf16.msra.mxu0 0
        %462 = vmatprep.subr.bf16.mxu0 0
        %463 = vmatpush1.bf16.msra.mxu0 0
        %464 = vmatprep.subr.bf16.mxu0 0
        %465 = vmatpush1.bf16.msra.mxu0 0
        %466 = vmatprep.subr.bf16.mxu0 0
        %467 = vmatpush1.bf16.msra.mxu0 0
        %468 = vmatprep.subr.bf16.mxu0 0
        %469 = vmatpush1.bf16.msra.mxu0 0
        %470 = vmatprep.subr.bf16.mxu0 0
        %471 = vmatpush1.bf16.msra.mxu0 0
        %472 = vmatprep.subr.bf16.mxu0 0
        %473 = vmatpush1.bf16.msra.mxu0 0
        %474 = vmatprep.mubr.bf16.mxu0 0
        %475 = vmatmul.mubr.bf16.gmra.mrb[0].mxu0 %v395
        %v476 = vpop.f32.mrb[0].mxu0
        %v477 = vadd.f32 0.0, %v476
        %v478 = vpop.f32.mrb[0].mxu0
        %v479 = vpop.f32.mrb[0].mxu0
        %v480 = vadd.f32 0.0, %v479
        %v481 = vpop.f32.mrb[0].mxu0
        %482 = vmatprep.mubr.bf16.mxu0 0
        %483 = vmatmul.mubr.bf16.gmra.mrb[0].mxu0 %v398
        %v484 = vpop.f32.mrb[0].mxu0
        %v485 = vadd.f32 0.0, %v484
        %v486 = vpop.f32.mrb[0].mxu0
        %v487 = vpop.f32.mrb[0].mxu0
        %v488 = vadd.f32 0.0, %v487
        %v489 = vpop.f32.mrb[0].mxu0
        %490 = vmatprep.mubr.bf16.mxu0 0
        %491 = vmatmul.mubr.bf16.gmra.mrb[0].mxu0 %v401
        %v492 = vpop.f32.mrb[0].mxu0
        %v493 = vadd.f32 0.0, %v492
        %v494 = vpop.f32.mrb[0].mxu0
        %v495 = vpop.f32.mrb[0].mxu0
        %v496 = vadd.f32 0.0, %v495
        %v497 = vpop.f32.mrb[0].mxu0
        %498 = vmatprep.mubr.bf16.mxu0 0
        %499 = vmatmul.mubr.bf16.gmra.mrb[0].mxu0 %v404
        %v500 = vpop.f32.mrb[0].mxu0
        %v501 = vadd.f32 0.0, %v500
        %v502 = vpop.f32.mrb[0].mxu0
        %v503 = vpop.f32.mrb[0].mxu0
        %v504 = vadd.f32 0.0, %v503
        %v505 = vpop.f32.mrb[0].mxu0
        %506 = vmatprep.mubr.bf16.mxu0 0
        %507 = vmatmul.mubr.bf16.gmra.mrb[0].mxu0 %v407
        %v508 = vpop.f32.mrb[0].mxu0
        %v509 = vadd.f32 0.0, %v508
        %v510 = vpop.f32.mrb[0].mxu0
        %v511 = vpop.f32.mrb[0].mxu0
        %v512 = vadd.f32 0.0, %v511
        %v513 = vpop.f32.mrb[0].mxu0
        %514 = vmatprep.mubr.bf16.mxu0 0
        %515 = vmatmul.mubr.bf16.gmra.mrb[0].mxu0 %v410
        %v516 = vpop.f32.mrb[0].mxu0
        %v517 = vadd.f32 0.0, %v516
        %v518 = vpop.f32.mrb[0].mxu0
        %v519 = vpop.f32.mrb[0].mxu0
        %v520 = vadd.f32 0.0, %v519
        %v521 = vpop.f32.mrb[0].mxu0
        %522 = vmatprep.mubr.bf16.mxu0 0
        %523 = vmatmul.mubr.bf16.gmra.mrb[0].mxu0 %v413
        %v524 = vpop.f32.mrb[0].mxu0
        %v525 = vadd.f32 0.0, %v524
        %v526 = vpop.f32.mrb[0].mxu0
        %v527 = vpop.f32.mrb[0].mxu0
        %v528 = vadd.f32 0.0, %v527
        %v529 = vpop.f32.mrb[0].mxu0
        %530 = vmatprep.mubr.bf16.mxu0 0
        %531 = vmatmul.mubr.bf16.gmra.mrb[0].mxu0 %v416
        %v532 = vpop.f32.mrb[0].mxu0
        %v533 = vadd.f32 0.0, %v532
        %v534 = vpop.f32.mrb[0].mxu0
        %v535 = vpop.f32.mrb[0].mxu0
        %v536 = vadd.f32 0.0, %v535
        %v537 = vpop.f32.mrb[0].mxu0
        %538 = vmatprep.mubr.bf16.mxu0 0
        %539 = vmatmul.mubr.bf16.gmra.mrb[0].mxu0 %v419
        %v540 = vpop.f32.mrb[0].mxu0
        %v541 = vadd.f32 0.0, %v540
        %v542 = vpop.f32.mrb[0].mxu0
        %v543 = vpop.f32.mrb[0].mxu0
        %v544 = vadd.f32 0.0, %v543
        %v545 = vpop.f32.mrb[0].mxu0
        %546 = vmatprep.mubr.bf16.mxu0 0
        %547 = vmatmul.mubr.bf16.gmra.mrb[0].mxu0 %v422
        %v548 = vpop.f32.mrb[0].mxu0
        %v549 = vadd.f32 0.0, %v548
        %v550 = vpop.f32.mrb[0].mxu0
        %v551 = vpop.f32.mrb[0].mxu0
        %v552 = vadd.f32 0.0, %v551
        %v553 = vpop.f32.mrb[0].mxu0
        %554 = vmatprep.mubr.bf16.mxu0 0
        %555 = vmatmul.mubr.bf16.gmra.mrb[0].mxu0 %v425
        %v556 = vpop.f32.mrb[0].mxu0
        %v557 = vadd.f32 0.0, %v556
        %v558 = vpop.f32.mrb[0].mxu0
        %v559 = vpop.f32.mrb[0].mxu0
        %v560 = vadd.f32 0.0, %v559
        %v561 = vpop.f32.mrb[0].mxu0
        %562 = vmatprep.mubr.bf16.mxu0 0
        %563 = vmatmul.mubr.bf16.gmra.mrb[0].mxu0 %v428
        %v564 = vpop.f32.mrb[0].mxu0
        %v565 = vadd.f32 0.0, %v564
        %v566 = vpop.f32.mrb[0].mxu0
        %v567 = vpop.f32.mrb[0].mxu0
        %v568 = vadd.f32 0.0, %v567
        %v569 = vpop.f32.mrb[0].mxu0
        %570 = vmatprep.mubr.bf16.mxu0 0
        %571 = vmatmul.mubr.bf16.gmra.mrb[0].mxu0 %v431
        %v572 = vpop.f32.mrb[0].mxu0
        %v573 = vadd.f32 0.0, %v572
        %v574 = vpop.f32.mrb[0].mxu0
        %v575 = vpop.f32.mrb[0].mxu0
        %v576 = vadd.f32 0.0, %v575
        %v577 = vpop.f32.mrb[0].mxu0
        %578 = vmatprep.mubr.bf16.mxu0 0
        %579 = vmatmul.mubr.bf16.gmra.mrb[0].mxu0 %v434
        %v580 = vpop.f32.mrb[0].mxu0
        %v581 = vadd.f32 0.0, %v580
        %v582 = vpop.f32.mrb[0].mxu0
        %v583 = vpop.f32.mrb[0].mxu0
        %v584 = vadd.f32 0.0, %v583
        %v585 = vpop.f32.mrb[0].mxu0
        %586 = vmatprep.mubr.bf16.mxu0 0
        %587 = vmatmul.mubr.bf16.gmra.mrb[0].mxu0 %v437
        %v588 = vpop.f32.mrb[0].mxu0
        %v589 = vadd.f32 0.0, %v588
        %v590 = vpop.f32.mrb[0].mxu0
        %v591 = vpop.f32.mrb[0].mxu0
        %v592 = vadd.f32 0.0, %v591
        %v593 = vpop.f32.mrb[0].mxu0
        %594 = vmatprep.mubr.bf16.mxu0 0
        %595 = vmatmul.mubr.bf16.gmra.mrb[0].mxu0 %v440
        %v596 = vpop.f32.mrb[0].mxu0
        %v597 = vadd.f32 0.0, %v596
        %v598 = vpop.f32.mrb[0].mxu0
        %v599 = vpop.f32.mrb[0].mxu0
        %v600 = vadd.f32 0.0, %v599
        %v601 = vpop.f32.mrb[0].mxu0
        %602 = vdwg.mxu0
        %v603 = vld [vmem:[%s5] sm:$0x1]
        %v604 = vlaneseq
        %v605 = vshrl.u32 %v604, 7
        %v606 = vsub.s32 0, %v605
        %v607 = vrot.slane %v603, %v606
        %v608 = vmul.f32 %v477, %v607
        %v609 = vmul.f32 %v480, %v607
        %v610 = vmul.f32 %v485, %v607
        %v611 = vmul.f32 %v488, %v607
        %v612 = vmul.f32 %v493, %v607
        %v613 = vmul.f32 %v496, %v607
        %v614 = vmul.f32 %v501, %v607
        %v615 = vmul.f32 %v504, %v607
        %v616 = vmul.f32 %v509, %v607
        %v617 = vmul.f32 %v512, %v607
        %v618 = vmul.f32 %v517, %v607
        %v619 = vmul.f32 %v520, %v607
        %v620 = vmul.f32 %v525, %v607
        %v621 = vmul.f32 %v528, %v607
        %v622 = vmul.f32 %v533, %v607
        %v623 = vmul.f32 %v536, %v607
        %v624 = vmul.f32 %v541, %v607
        %v625 = vmul.f32 %v544, %v607
        %v626 = vmul.f32 %v549, %v607
        %v627 = vmul.f32 %v552, %v607
        %v628 = vmul.f32 %v557, %v607
        %v629 = vmul.f32 %v560, %v607
        %v630 = vmul.f32 %v565, %v607
        %v631 = vmul.f32 %v568, %v607
        %v632 = vmul.f32 %v573, %v607
        %v633 = vmul.f32 %v576, %v607
        %v634 = vmul.f32 %v581, %v607
        %v635 = vmul.f32 %v584, %v607
        %v636 = vmul.f32 %v589, %v607
        %v637 = vmul.f32 %v592, %v607
        %v638 = vmul.f32 %v597, %v607
        %v639 = vmul.f32 %v600, %v607
        %v640 = vld [vmem:[%s5 + $0x1] sm:$0x1]
        %v641 = vlaneseq
        %v642 = vshrl.u32 %v641, 7
        %v643 = vsub.s32 0, %v642
        %v644 = vrot.slane %v640, %v643
        %v645 = vadd.f32 %v608, %v644
        %v646 = vadd.f32 %v609, %v644
        %v647 = vadd.f32 %v610, %v644
        %v648 = vadd.f32 %v611, %v644
        %v649 = vadd.f32 %v612, %v644
        %v650 = vadd.f32 %v613, %v644
        %v651 = vadd.f32 %v614, %v644
        %v652 = vadd.f32 %v615, %v644
        %v653 = vadd.f32 %v616, %v644
        %v654 = vadd.f32 %v617, %v644
        %v655 = vadd.f32 %v618, %v644
        %v656 = vadd.f32 %v619, %v644
        %v657 = vadd.f32 %v620, %v644
        %v658 = vadd.f32 %v621, %v644
        %v659 = vadd.f32 %v622, %v644
        %v660 = vadd.f32 %v623, %v644
        %v661 = vadd.f32 %v624, %v644
        %v662 = vadd.f32 %v625, %v644
        %v663 = vadd.f32 %v626, %v644
        %v664 = vadd.f32 %v627, %v644
        %v665 = vadd.f32 %v628, %v644
        %v666 = vadd.f32 %v629, %v644
        %v667 = vadd.f32 %v630, %v644
        %v668 = vadd.f32 %v631, %v644
        %v669 = vadd.f32 %v632, %v644
        %v670 = vadd.f32 %v633, %v644
        %v671 = vadd.f32 %v634, %v644
        %v672 = vadd.f32 %v635, %v644
        %v673 = vadd.f32 %v636, %v644
        %v674 = vadd.f32 %v637, %v644
        %v675 = vadd.f32 %v638, %v644
        %v676 = vadd.f32 %v639, %v644
        %v677 = vmax.f32 %v645, 0.0
        %v678 = vmax.f32 %v646, 0.0
        %v679 = vmax.f32 %v647, 0.0
        %v680 = vmax.f32 %v648, 0.0
        %v681 = vmax.f32 %v649, 0.0
        %v682 = vmax.f32 %v650, 0.0
        %v683 = vmax.f32 %v651, 0.0
        %v684 = vmax.f32 %v652, 0.0
        %v685 = vmax.f32 %v653, 0.0
        %v686 = vmax.f32 %v654, 0.0
        %v687 = vmax.f32 %v655, 0.0
        %v688 = vmax.f32 %v656, 0.0
        %v689 = vmax.f32 %v657, 0.0
        %v690 = vmax.f32 %v658, 0.0
        %v691 = vmax.f32 %v659, 0.0
        %v692 = vmax.f32 %v660, 0.0
        %v693 = vmax.f32 %v661, 0.0
        %v694 = vmax.f32 %v662, 0.0
        %v695 = vmax.f32 %v663, 0.0
        %v696 = vmax.f32 %v664, 0.0
        %v697 = vmax.f32 %v665, 0.0
        %v698 = vmax.f32 %v666, 0.0
        %v699 = vmax.f32 %v667, 0.0
        %v700 = vmax.f32 %v668, 0.0
        %v701 = vmax.f32 %v669, 0.0
        %v702 = vmax.f32 %v670, 0.0
        %v703 = vmax.f32 %v671, 0.0
        %v704 = vmax.f32 %v672, 0.0
        %v705 = vmax.f32 %v673, 0.0
        %v706 = vmax.f32 %v674, 0.0
        %v707 = vmax.f32 %v675, 0.0
        %v708 = vmax.f32 %v676, 0.0
        %v709 = vmin.f32 %v677, 6.0
        %v710 = vmin.f32 %v678, 6.0
        %v711 = vmin.f32 %v679, 6.0
        %v712 = vmin.f32 %v680, 6.0
        %v713 = vmin.f32 %v681, 6.0
        %v714 = vmin.f32 %v682, 6.0
        %v715 = vmin.f32 %v683, 6.0
        %v716 = vmin.f32 %v684, 6.0
        %v717 = vmin.f32 %v685, 6.0
        %v718 = vmin.f32 %v686, 6.0
        %v719 = vmin.f32 %v687, 6.0
        %v720 = vmin.f32 %v688, 6.0
        %v721 = vmin.f32 %v689, 6.0
        %v722 = vmin.f32 %v690, 6.0
        %v723 = vmin.f32 %v691, 6.0
        %v724 = vmin.f32 %v692, 6.0
        %v725 = vmin.f32 %v693, 6.0
        %v726 = vmin.f32 %v694, 6.0
        %v727 = vmin.f32 %v695, 6.0
        %v728 = vmin.f32 %v696, 6.0
        %v729 = vmin.f32 %v697, 6.0
        %v730 = vmin.f32 %v698, 6.0
        %v731 = vmin.f32 %v699, 6.0
        %v732 = vmin.f32 %v700, 6.0
        %v733 = vmin.f32 %v701, 6.0
        %v734 = vmin.f32 %v702, 6.0
        %v735 = vmin.f32 %v703, 6.0
        %v736 = vmin.f32 %v704, 6.0
        %v737 = vmin.f32 %v705, 6.0
        %v738 = vmin.f32 %v706, 6.0
        %v739 = vmin.f32 %v707, 6.0
        %v740 = vmin.f32 %v708, 6.0
        %v741 = vld [vmem:[%s1] sm:$0xff]
        %v742 = vld [vmem:[%s1 + $0x8] sm:$0xff]
        %v743 = vld [vmem:[%s1 + $0x10] sm:$0xff]
        %v744 = vld [vmem:[%s1 + $0x18] sm:$0xff]
        %v745 = vld [vmem:[%s1 + $0x20] sm:$0xff]
        %v746 = vld [vmem:[%s1 + $0x28] sm:$0xff]
        %v747 = vld [vmem:[%s1 + $0x30] sm:$0xff]
        %v748 = vld [vmem:[%s1 + $0x38] sm:$0xff]
        %v749 = vld [vmem:[%s1 + $0x40] sm:$0xff]
        %v750 = vld [vmem:[%s1 + $0x48] sm:$0xff]
        %v751 = vld [vmem:[%s1 + $0x50] sm:$0xff]
        %v752 = vld [vmem:[%s1 + $0x58] sm:$0xff]
        %v753 = vld [vmem:[%s1 + $0x60] sm:$0xff]
        %v754 = vld [vmem:[%s1 + $0x68] sm:$0xff]
        %v755 = vld [vmem:[%s1 + $0x70] sm:$0xff]
        %v756 = vld [vmem:[%s1 + $0x78] sm:$0xff]
        %v757 = vld [vmem:[%s1 + $0x80] sm:$0xff]
        %v758 = vld [vmem:[%s1 + $0x88] sm:$0xff]
        %v759 = vld [vmem:[%s1 + $0x90] sm:$0xff]
        %v760 = vld [vmem:[%s1 + $0x98] sm:$0xff]
        %v761 = vld [vmem:[%s1 + $0xa0] sm:$0xff]
        %v762 = vld [vmem:[%s1 + $0xa8] sm:$0xff]
        %v763 = vld [vmem:[%s1 + $0xb0] sm:$0xff]
        %v764 = vld [vmem:[%s1 + $0xb8] sm:$0xff]
        %v765 = vld [vmem:[%s1 + $0xc0] sm:$0xff]
        %v766 = vld [vmem:[%s1 + $0xc8] sm:$0xff]
        %v767 = vld [vmem:[%s1 + $0xd0] sm:$0xff]
        %v768 = vld [vmem:[%s1 + $0xd8] sm:$0xff]
        %v769 = vld [vmem:[%s1 + $0xe0] sm:$0xff]
        %v770 = vld [vmem:[%s1 + $0xe8] sm:$0xff]
        %v771 = vld [vmem:[%s1 + $0xf0] sm:$0xff]
        %v772 = vld [vmem:[%s1 + $0xf8] sm:$0xff]
        %v773 = vld [vmem:[%s1 + $0x100] sm:$0xff]
        %v774 = vld [vmem:[%s1 + $0x108] sm:$0xff]
        %v775 = vld [vmem:[%s1 + $0x110] sm:$0xff]
        %v776 = vld [vmem:[%s1 + $0x118] sm:$0xff]
        %v777 = vld [vmem:[%s1 + $0x120] sm:$0xff]
        %v778 = vld [vmem:[%s1 + $0x128] sm:$0xff]
        %v779 = vld [vmem:[%s1 + $0x130] sm:$0xff]
        %v780 = vld [vmem:[%s1 + $0x138] sm:$0xff]
        %v781 = vld [vmem:[%s1 + $0x140] sm:$0xff]
        %v782 = vld [vmem:[%s1 + $0x148] sm:$0xff]
        %v783 = vld [vmem:[%s1 + $0x150] sm:$0xff]
        %v784 = vld [vmem:[%s1 + $0x158] sm:$0xff]
        %v785 = vld [vmem:[%s1 + $0x160] sm:$0xff]
        %v786 = vld [vmem:[%s1 + $0x168] sm:$0xff]
        %v787 = vld [vmem:[%s1 + $0x170] sm:$0xff]
        %v788 = vld [vmem:[%s1 + $0x178] sm:$0xff]
        %v789 = vld [vmem:[%s1 + $0x180] sm:$0xff]
        %v790 = vld [vmem:[%s1 + $0x188] sm:$0xff]
        %v791 = vld [vmem:[%s1 + $0x190] sm:$0xff]
        %v792 = vld [vmem:[%s1 + $0x198] sm:$0xff]
        %v793 = vld [vmem:[%s1 + $0x1a0] sm:$0xff]
        %v794 = vld [vmem:[%s1 + $0x1a8] sm:$0xff]
        %v795 = vld [vmem:[%s1 + $0x1b0] sm:$0xff]
        %v796 = vld [vmem:[%s1 + $0x1b8] sm:$0xff]
        %v797 = vld [vmem:[%s1 + $0x1c0] sm:$0xff]
        %v798 = vld [vmem:[%s1 + $0x1c8] sm:$0xff]
        %v799 = vld [vmem:[%s1 + $0x1d0] sm:$0xff]
        %v800 = vld [vmem:[%s1 + $0x1d8] sm:$0xff]
        %v801 = vld [vmem:[%s1 + $0x1e0] sm:$0xff]
        %v802 = vld [vmem:[%s1 + $0x1e8] sm:$0xff]
        %v803 = vld [vmem:[%s1 + $0x1f0] sm:$0xff]
        %v804 = vld [vmem:[%s1 + $0x1f8] sm:$0xff]
        %v805 = vld [vmem:[%s1 + $0x200] sm:$0xff]
        %v806 = vld [vmem:[%s1 + $0x208] sm:$0xff]
        %v807 = vld [vmem:[%s1 + $0x210] sm:$0xff]
        %v808 = vld [vmem:[%s1 + $0x218] sm:$0xff]
        %v809 = vld [vmem:[%s1 + $0x220] sm:$0xff]
        %v810 = vld [vmem:[%s1 + $0x228] sm:$0xff]
        %v811 = vld [vmem:[%s1 + $0x230] sm:$0xff]
        %v812 = vld [vmem:[%s1 + $0x238] sm:$0xff]
        %v813 = vld [vmem:[%s1 + $0x240] sm:$0xff]
        %v814 = vld [vmem:[%s1 + $0x248] sm:$0xff]
        %v815 = vld [vmem:[%s1 + $0x250] sm:$0xff]
        %v816 = vld [vmem:[%s1 + $0x258] sm:$0xff]
        %v817 = vld [vmem:[%s1 + $0x260] sm:$0xff]
        %v818 = vld [vmem:[%s1 + $0x268] sm:$0xff]
        %v819 = vld [vmem:[%s1 + $0x270] sm:$0xff]
        %v820 = vld [vmem:[%s1 + $0x278] sm:$0xff]
        %v821 = vld [vmem:[%s1 + $0x280] sm:$0xff]
        %v822 = vld [vmem:[%s1 + $0x288] sm:$0xff]
        %v823 = vld [vmem:[%s1 + $0x290] sm:$0xff]
        %v824 = vld [vmem:[%s1 + $0x298] sm:$0xff]
        %v825 = vld [vmem:[%s1 + $0x2a0] sm:$0xff]
        %v826 = vld [vmem:[%s1 + $0x2a8] sm:$0xff]
        %v827 = vld [vmem:[%s1 + $0x2b0] sm:$0xff]
        %v828 = vld [vmem:[%s1 + $0x2b8] sm:$0xff]
        %v829 = vld [vmem:[%s1 + $0x2c0] sm:$0xff]
        %v830 = vld [vmem:[%s1 + $0x2c8] sm:$0xff]
        %v831 = vld [vmem:[%s1 + $0x2d0] sm:$0xff]
        %v832 = vld [vmem:[%s1 + $0x2d8] sm:$0xff]
        %v833 = vld [vmem:[%s1 + $0x2e0] sm:$0xff]
        %v834 = vld [vmem:[%s1 + $0x2e8] sm:$0xff]
        %v835 = vld [vmem:[%s1 + $0x2f0] sm:$0xff]
        %v836 = vld [vmem:[%s1 + $0x2f8] sm:$0xff]
        %v837 = vld [vmem:[%s1 + $0x300] sm:$0xff]
        %v838 = vld [vmem:[%s1 + $0x308] sm:$0xff]
        %v839 = vld [vmem:[%s1 + $0x310] sm:$0xff]
        %v840 = vld [vmem:[%s1 + $0x318] sm:$0xff]
        %v841 = vld [vmem:[%s1 + $0x320] sm:$0xff]
        %v842 = vld [vmem:[%s1 + $0x328] sm:$0xff]
        %v843 = vld [vmem:[%s1 + $0x330] sm:$0xff]
        %v844 = vld [vmem:[%s1 + $0x338] sm:$0xff]
        %v845 = vld [vmem:[%s1 + $0x340] sm:$0xff]
        %v846 = vld [vmem:[%s1 + $0x348] sm:$0xff]
        %v847 = vld [vmem:[%s1 + $0x350] sm:$0xff]
        %v848 = vld [vmem:[%s1 + $0x358] sm:$0xff]
        %v849 = vld [vmem:[%s1 + $0x360] sm:$0xff]
        %v850 = vld [vmem:[%s1 + $0x368] sm:$0xff]
        %v851 = vld [vmem:[%s1 + $0x370] sm:$0xff]
        %v852 = vld [vmem:[%s1 + $0x378] sm:$0xff]
        %v853 = vld [vmem:[%s1 + $0x380] sm:$0xff]
        %v854 = vld [vmem:[%s1 + $0x388] sm:$0xff]
        %v855 = vld [vmem:[%s1 + $0x390] sm:$0xff]
        %v856 = vld [vmem:[%s1 + $0x398] sm:$0xff]
        %v857 = vld [vmem:[%s1 + $0x3a0] sm:$0xff]
        %v858 = vld [vmem:[%s1 + $0x3a8] sm:$0xff]
        %v859 = vld [vmem:[%s1 + $0x3b0] sm:$0xff]
        %v860 = vld [vmem:[%s1 + $0x3b8] sm:$0xff]
        %v861 = vld [vmem:[%s1 + $0x3c0] sm:$0xff]
        %v862 = vld [vmem:[%s1 + $0x3c8] sm:$0xff]
        %v863 = vld [vmem:[%s1 + $0x3d0] sm:$0xff]
        %v864 = vld [vmem:[%s1 + $0x3d8] sm:$0xff]
        %v865 = vld [vmem:[%s1 + $0x3e0] sm:$0xff]
        %v866 = vld [vmem:[%s1 + $0x3e8] sm:$0xff]
        %v867 = vld [vmem:[%s1 + $0x3f0] sm:$0xff]
        %v868 = vld [vmem:[%s1 + $0x3f8] sm:$0xff]
        %v869 = vld [vmem:[%s1 + $0x400] sm:$0xff]
        %v870 = vld [vmem:[%s1 + $0x408] sm:$0xff]
        %v871 = vld [vmem:[%s1 + $0x410] sm:$0xff]
        %v872 = vld [vmem:[%s1 + $0x418] sm:$0xff]
        %v873 = vld [vmem:[%s1 + $0x420] sm:$0xff]
        %v874 = vld [vmem:[%s1 + $0x428] sm:$0xff]
        %v875 = vld [vmem:[%s1 + $0x430] sm:$0xff]
        %v876 = vld [vmem:[%s1 + $0x438] sm:$0xff]
        %v877 = vld [vmem:[%s1 + $0x440] sm:$0xff]
        %v878 = vld [vmem:[%s1 + $0x448] sm:$0xff]
        %v879 = vld [vmem:[%s1 + $0x450] sm:$0xff]
        %v880 = vld [vmem:[%s1 + $0x458] sm:$0xff]
        %v881 = vld [vmem:[%s1 + $0x460] sm:$0xff]
        %v882 = vld [vmem:[%s1 + $0x468] sm:$0xff]
        %v883 = vld [vmem:[%s1 + $0x470] sm:$0xff]
        %v884 = vld [vmem:[%s1 + $0x478] sm:$0xff]
        %v885 = vld [vmem:[%s1 + $0x480] sm:$0xff]
        %v886 = vld [vmem:[%s1 + $0x488] sm:$0xff]
        %v887 = vld [vmem:[%s1 + $0x490] sm:$0xff]
        %v888 = vld [vmem:[%s1 + $0x498] sm:$0xff]
        %v889 = vld [vmem:[%s1 + $0x4a0] sm:$0xff]
        %v890 = vld [vmem:[%s1 + $0x4a8] sm:$0xff]
        %v891 = vld [vmem:[%s1 + $0x4b0] sm:$0xff]
        %v892 = vld [vmem:[%s1 + $0x4b8] sm:$0xff]
        %v893 = vld [vmem:[%s1 + $0x4c0] sm:$0xff]
        %v894 = vld [vmem:[%s1 + $0x4c8] sm:$0xff]
        %v895 = vld [vmem:[%s1 + $0x4d0] sm:$0xff]
        %v896 = vld [vmem:[%s1 + $0x4d8] sm:$0xff]
        %v897 = vld [vmem:[%s1 + $0x4e0] sm:$0xff]
        %v898 = vld [vmem:[%s1 + $0x4e8] sm:$0xff]
        %v899 = vld [vmem:[%s1 + $0x4f0] sm:$0xff]
        %v900 = vld [vmem:[%s1 + $0x4f8] sm:$0xff]
        %v901 = vld [vmem:[%s1 + $0x500] sm:$0xff]
        %v902 = vld [vmem:[%s1 + $0x508] sm:$0xff]
        %v903 = vld [vmem:[%s1 + $0x510] sm:$0xff]
        %v904 = vld [vmem:[%s1 + $0x518] sm:$0xff]
        %v905 = vld [vmem:[%s1 + $0x520] sm:$0xff]
        %v906 = vld [vmem:[%s1 + $0x528] sm:$0xff]
        %v907 = vld [vmem:[%s1 + $0x530] sm:$0xff]
        %v908 = vld [vmem:[%s1 + $0x538] sm:$0xff]
        %v909 = vld [vmem:[%s1 + $0x540] sm:$0xff]
        %v910 = vld [vmem:[%s1 + $0x548] sm:$0xff]
        %v911 = vld [vmem:[%s1 + $0x550] sm:$0xff]
        %v912 = vld [vmem:[%s1 + $0x558] sm:$0xff]
        %v913 = vld [vmem:[%s1 + $0x560] sm:$0xff]
        %v914 = vld [vmem:[%s1 + $0x568] sm:$0xff]
        %v915 = vld [vmem:[%s1 + $0x570] sm:$0xff]
        %v916 = vld [vmem:[%s1 + $0x578] sm:$0xff]
        %v917 = vld [vmem:[%s1 + $0x580] sm:$0xff]
        %v918 = vld [vmem:[%s1 + $0x588] sm:$0xff]
        %v919 = vld [vmem:[%s1 + $0x590] sm:$0xff]
        %v920 = vld [vmem:[%s1 + $0x598] sm:$0xff]
        %v921 = vld [vmem:[%s1 + $0x5a0] sm:$0xff]
        %v922 = vld [vmem:[%s1 + $0x5a8] sm:$0xff]
        %v923 = vld [vmem:[%s1 + $0x5b0] sm:$0xff]
        %v924 = vld [vmem:[%s1 + $0x5b8] sm:$0xff]
        %v925 = vld [vmem:[%s1 + $0x5c0] sm:$0xff]
        %v926 = vld [vmem:[%s1 + $0x5c8] sm:$0xff]
        %v927 = vld [vmem:[%s1 + $0x5d0] sm:$0xff]
        %v928 = vld [vmem:[%s1 + $0x5d8] sm:$0xff]
        %v929 = vld [vmem:[%s1 + $0x5e0] sm:$0xff]
        %v930 = vld [vmem:[%s1 + $0x5e8] sm:$0xff]
        %v931 = vld [vmem:[%s1 + $0x5f0] sm:$0xff]
        %v932 = vld [vmem:[%s1 + $0x5f8] sm:$0xff]
        %v933 = vld [vmem:[%s1 + $0x600] sm:$0xff]
        %v934 = vld [vmem:[%s1 + $0x608] sm:$0xff]
        %v935 = vld [vmem:[%s1 + $0x610] sm:$0xff]
        %v936 = vld [vmem:[%s1 + $0x618] sm:$0xff]
        %v937 = vld [vmem:[%s1 + $0x620] sm:$0xff]
        %v938 = vld [vmem:[%s1 + $0x628] sm:$0xff]
        %v939 = vld [vmem:[%s1 + $0x630] sm:$0xff]
        %v940 = vld [vmem:[%s1 + $0x638] sm:$0xff]
        %v941 = vld [vmem:[%s1 + $0x640] sm:$0xff]
        %v942 = vld [vmem:[%s1 + $0x648] sm:$0xff]
        %v943 = vld [vmem:[%s1 + $0x650] sm:$0xff]
        %v944 = vld [vmem:[%s1 + $0x658] sm:$0xff]
        %v945 = vld [vmem:[%s1 + $0x660] sm:$0xff]
        %v946 = vld [vmem:[%s1 + $0x668] sm:$0xff]
        %v947 = vld [vmem:[%s1 + $0x670] sm:$0xff]
        %v948 = vld [vmem:[%s1 + $0x678] sm:$0xff]
        %v949 = vld [vmem:[%s1 + $0x680] sm:$0xff]
        %v950 = vld [vmem:[%s1 + $0x688] sm:$0xff]
        %v951 = vld [vmem:[%s1 + $0x690] sm:$0xff]
        %v952 = vld [vmem:[%s1 + $0x698] sm:$0xff]
        %v953 = vld [vmem:[%s1 + $0x6a0] sm:$0xff]
        %v954 = vld [vmem:[%s1 + $0x6a8] sm:$0xff]
        %v955 = vld [vmem:[%s1 + $0x6b0] sm:$0xff]
        %v956 = vld [vmem:[%s1 + $0x6b8] sm:$0xff]
        %v957 = vld [vmem:[%s1 + $0x6c0] sm:$0xff]
        %v958 = vld [vmem:[%s1 + $0x6c8] sm:$0xff]
        %v959 = vld [vmem:[%s1 + $0x6d0] sm:$0xff]
        %v960 = vld [vmem:[%s1 + $0x6d8] sm:$0xff]
        %v961 = vld [vmem:[%s1 + $0x6e0] sm:$0xff]
        %v962 = vld [vmem:[%s1 + $0x6e8] sm:$0xff]
        %v963 = vld [vmem:[%s1 + $0x6f0] sm:$0xff]
        %v964 = vld [vmem:[%s1 + $0x6f8] sm:$0xff]
        %v965 = vld [vmem:[%s1 + $0x700] sm:$0xff]
        %v966 = vld [vmem:[%s1 + $0x708] sm:$0xff]
        %v967 = vld [vmem:[%s1 + $0x710] sm:$0xff]
        %v968 = vld [vmem:[%s1 + $0x718] sm:$0xff]
        %v969 = vld [vmem:[%s1 + $0x720] sm:$0xff]
        %v970 = vld [vmem:[%s1 + $0x728] sm:$0xff]
        %v971 = vld [vmem:[%s1 + $0x730] sm:$0xff]
        %v972 = vld [vmem:[%s1 + $0x738] sm:$0xff]
        %v973 = vld [vmem:[%s1 + $0x740] sm:$0xff]
        %v974 = vld [vmem:[%s1 + $0x748] sm:$0xff]
        %v975 = vld [vmem:[%s1 + $0x750] sm:$0xff]
        %v976 = vld [vmem:[%s1 + $0x758] sm:$0xff]
        %v977 = vld [vmem:[%s1 + $0x760] sm:$0xff]
        %v978 = vld [vmem:[%s1 + $0x768] sm:$0xff]
        %v979 = vld [vmem:[%s1 + $0x770] sm:$0xff]
        %v980 = vld [vmem:[%s1 + $0x778] sm:$0xff]
        %v981 = vld [vmem:[%s1 + $0x780] sm:$0xff]
        %v982 = vld [vmem:[%s1 + $0x788] sm:$0xff]
        %v983 = vld [vmem:[%s1 + $0x790] sm:$0xff]
        %v984 = vld [vmem:[%s1 + $0x798] sm:$0xff]
        %v985 = vld [vmem:[%s1 + $0x7a0] sm:$0xff]
        %v986 = vld [vmem:[%s1 + $0x7a8] sm:$0xff]
        %v987 = vld [vmem:[%s1 + $0x7b0] sm:$0xff]
        %v988 = vld [vmem:[%s1 + $0x7b8] sm:$0xff]
        %v989 = vld [vmem:[%s1 + $0x7c0] sm:$0xff]
        %v990 = vld [vmem:[%s1 + $0x7c8] sm:$0xff]
        %v991 = vld [vmem:[%s1 + $0x7d0] sm:$0xff]
        %v992 = vld [vmem:[%s1 + $0x7d8] sm:$0xff]
        %v993 = vld [vmem:[%s1 + $0x7e0] sm:$0xff]
        %v994 = vld [vmem:[%s1 + $0x7e8] sm:$0xff]
        %v995 = vld [vmem:[%s1 + $0x7f0] sm:$0xff]
        %v996 = vld [vmem:[%s1 + $0x7f8] sm:$0xff]
        %v997 = vld [vmem:[%s1 + $0x800] sm:$0xff]
        %v998 = vld [vmem:[%s1 + $0x808] sm:$0xff]
        %v999 = vld [vmem:[%s1 + $0x810] sm:$0xff]
        %v1000 = vld [vmem:[%s1 + $0x818] sm:$0xff]
        %v1001 = vld [vmem:[%s1 + $0x820] sm:$0xff]
        %v1002 = vld [vmem:[%s1 + $0x828] sm:$0xff]
        %v1003 = vld [vmem:[%s1 + $0x830] sm:$0xff]
        %v1004 = vld [vmem:[%s1 + $0x838] sm:$0xff]
        %v1005 = vld [vmem:[%s1 + $0x840] sm:$0xff]
        %v1006 = vld [vmem:[%s1 + $0x848] sm:$0xff]
        %v1007 = vld [vmem:[%s1 + $0x850] sm:$0xff]
        %v1008 = vld [vmem:[%s1 + $0x858] sm:$0xff]
        %v1009 = vld [vmem:[%s1 + $0x860] sm:$0xff]
        %v1010 = vld [vmem:[%s1 + $0x868] sm:$0xff]
        %v1011 = vld [vmem:[%s1 + $0x870] sm:$0xff]
        %v1012 = vld [vmem:[%s1 + $0x878] sm:$0xff]
        %v1013 = vld [vmem:[%s1 + $0x880] sm:$0xff]
        %v1014 = vld [vmem:[%s1 + $0x888] sm:$0xff]
        %v1015 = vld [vmem:[%s1 + $0x890] sm:$0xff]
        %v1016 = vld [vmem:[%s1 + $0x898] sm:$0xff]
        %v1017 = vld [vmem:[%s1 + $0x8a0] sm:$0xff]
        %v1018 = vld [vmem:[%s1 + $0x8a8] sm:$0xff]
        %v1019 = vld [vmem:[%s1 + $0x8b0] sm:$0xff]
        %v1020 = vld [vmem:[%s1 + $0x8b8] sm:$0xff]
        %v1021 = vld [vmem:[%s1 + $0x8c0] sm:$0xff]
        %v1022 = vld [vmem:[%s1 + $0x8c8] sm:$0xff]
        %v1023 = vld [vmem:[%s1 + $0x8d0] sm:$0xff]
        %v1024 = vld [vmem:[%s1 + $0x8d8] sm:$0xff]
        %v1025 = vld [vmem:[%s1 + $0x8e0] sm:$0xff]
        %v1026 = vld [vmem:[%s1 + $0x8e8] sm:$0xff]
        %v1027 = vld [vmem:[%s1 + $0x8f0] sm:$0xff]
        %v1028 = vld [vmem:[%s1 + $0x8f8] sm:$0xff]
        %v1029 = vpack.c.bf16 %v710, %v709
        %v1030 = vpack.c.bf16 %v712, %v711
        %v1031 = vpack.c.bf16 %v714, %v713
        %v1032 = vpack.c.bf16 %v716, %v715
        %v1033 = vpack.c.bf16 %v718, %v717
        %v1034 = vpack.c.bf16 %v720, %v719
        %v1035 = vpack.c.bf16 %v722, %v721
        %v1036 = vpack.c.bf16 %v724, %v723
        %v1037 = vpack.c.bf16 %v726, %v725
        %v1038 = vpack.c.bf16 %v728, %v727
        %v1039 = vpack.c.bf16 %v730, %v729
        %v1040 = vpack.c.bf16 %v732, %v731
        %v1041 = vpack.c.bf16 %v734, %v733
        %v1042 = vpack.c.bf16 %v736, %v735
        %v1043 = vpack.c.bf16 %v738, %v737
        %v1044 = vpack.c.bf16 %v740, %v739
        %v1333 = vunpack.c.l.b16 %v741
        %v1334 = vunpack.c.h.b16 %v741
        %v1335 = vunpack.c.l.b16 %v742
        %v1336 = vunpack.c.h.b16 %v742
        %v1337 = vunpack.c.l.b16 %v743
        %v1338 = vunpack.c.h.b16 %v743
        %v1339 = vunpack.c.l.b16 %v744
        %v1340 = vunpack.c.h.b16 %v744
        %v1341 = vunpack.c.l.b16 %v745
        %v1342 = vunpack.c.h.b16 %v745
        %v1343 = vunpack.c.l.b16 %v746
        %v1344 = vunpack.c.h.b16 %v746
        %v1345 = vunpack.c.l.b16 %v747
        %v1346 = vunpack.c.h.b16 %v747
        %v1347 = vunpack.c.l.b16 %v748
        %v1348 = vunpack.c.h.b16 %v748
        %v1349 = vunpack.c.l.b16 %v749
        %v1350 = vunpack.c.h.b16 %v749
        %v1351 = vunpack.c.l.b16 %v750
        %v1352 = vunpack.c.h.b16 %v750
        %v1353 = vunpack.c.l.b16 %v751
        %v1354 = vunpack.c.h.b16 %v751
        %v1355 = vunpack.c.l.b16 %v752
        %v1356 = vunpack.c.h.b16 %v752
        %v1357 = vunpack.c.l.b16 %v753
        %v1358 = vunpack.c.h.b16 %v753
        %v1359 = vunpack.c.l.b16 %v754
        %v1360 = vunpack.c.h.b16 %v754
        %v1361 = vunpack.c.l.b16 %v755
        %v1362 = vunpack.c.h.b16 %v755
        %v1363 = vunpack.c.l.b16 %v756
        %v1364 = vunpack.c.h.b16 %v756
        %v1365 = vunpack.c.l.b16 %v757
        %v1366 = vunpack.c.h.b16 %v757
        %v1367 = vunpack.c.l.b16 %v758
        %v1368 = vunpack.c.h.b16 %v758
        %v1369 = vunpack.c.l.b16 %v759
        %v1370 = vunpack.c.h.b16 %v759
        %v1371 = vunpack.c.l.b16 %v760
        %v1372 = vunpack.c.h.b16 %v760
        %v1373 = vunpack.c.l.b16 %v761
        %v1374 = vunpack.c.h.b16 %v761
        %v1375 = vunpack.c.l.b16 %v762
        %v1376 = vunpack.c.h.b16 %v762
        %v1377 = vunpack.c.l.b16 %v763
        %v1378 = vunpack.c.h.b16 %v763
        %v1379 = vunpack.c.l.b16 %v764
        %v1380 = vunpack.c.h.b16 %v764
        %v1381 = vunpack.c.l.b16 %v765
        %v1382 = vunpack.c.h.b16 %v765
        %v1383 = vunpack.c.l.b16 %v766
        %v1384 = vunpack.c.h.b16 %v766
        %v1385 = vunpack.c.l.b16 %v767
        %v1386 = vunpack.c.h.b16 %v767
        %v1387 = vunpack.c.l.b16 %v768
        %v1388 = vunpack.c.h.b16 %v768
        %v1389 = vunpack.c.l.b16 %v769
        %v1390 = vunpack.c.h.b16 %v769
        %v1391 = vunpack.c.l.b16 %v770
        %v1392 = vunpack.c.h.b16 %v770
        %v1393 = vunpack.c.l.b16 %v771
        %v1394 = vunpack.c.h.b16 %v771
        %v1395 = vunpack.c.l.b16 %v772
        %v1396 = vunpack.c.h.b16 %v772
        %v1397 = vunpack.c.l.b16 %v773
        %v1398 = vunpack.c.h.b16 %v773
        %v1399 = vunpack.c.l.b16 %v774
        %v1400 = vunpack.c.h.b16 %v774
        %v1401 = vunpack.c.l.b16 %v775
        %v1402 = vunpack.c.h.b16 %v775
        %v1403 = vunpack.c.l.b16 %v776
        %v1404 = vunpack.c.h.b16 %v776
        %v1405 = vunpack.c.l.b16 %v777
        %v1406 = vunpack.c.h.b16 %v777
        %v1407 = vunpack.c.l.b16 %v778
        %v1408 = vunpack.c.h.b16 %v778
        %v1409 = vunpack.c.l.b16 %v779
        %v1410 = vunpack.c.h.b16 %v779
        %v1411 = vunpack.c.l.b16 %v780
        %v1412 = vunpack.c.h.b16 %v780
        %v1413 = vunpack.c.l.b16 %v781
        %v1414 = vunpack.c.h.b16 %v781
        %v1415 = vunpack.c.l.b16 %v782
        %v1416 = vunpack.c.h.b16 %v782
        %v1417 = vunpack.c.l.b16 %v783
        %v1418 = vunpack.c.h.b16 %v783
        %v1419 = vunpack.c.l.b16 %v784
        %v1420 = vunpack.c.h.b16 %v784
        %v1421 = vunpack.c.l.b16 %v785
        %v1422 = vunpack.c.h.b16 %v785
        %v1423 = vunpack.c.l.b16 %v786
        %v1424 = vunpack.c.h.b16 %v786
        %v1425 = vunpack.c.l.b16 %v787
        %v1426 = vunpack.c.h.b16 %v787
        %v1427 = vunpack.c.l.b16 %v788
        %v1428 = vunpack.c.h.b16 %v788
        %v1429 = vunpack.c.l.b16 %v789
        %v1430 = vunpack.c.h.b16 %v789
        %v1431 = vunpack.c.l.b16 %v790
        %v1432 = vunpack.c.h.b16 %v790
        %v1433 = vunpack.c.l.b16 %v791
        %v1434 = vunpack.c.h.b16 %v791
        %v1435 = vunpack.c.l.b16 %v792
        %v1436 = vunpack.c.h.b16 %v792
        %v1437 = vunpack.c.l.b16 %v793
        %v1438 = vunpack.c.h.b16 %v793
        %v1439 = vunpack.c.l.b16 %v794
        %v1440 = vunpack.c.h.b16 %v794
        %v1441 = vunpack.c.l.b16 %v795
        %v1442 = vunpack.c.h.b16 %v795
        %v1443 = vunpack.c.l.b16 %v796
        %v1444 = vunpack.c.h.b16 %v796
        %v1445 = vunpack.c.l.b16 %v797
        %v1446 = vunpack.c.h.b16 %v797
        %v1447 = vunpack.c.l.b16 %v798
        %v1448 = vunpack.c.h.b16 %v798
        %v1449 = vunpack.c.l.b16 %v799
        %v1450 = vunpack.c.h.b16 %v799
        %v1451 = vunpack.c.l.b16 %v800
        %v1452 = vunpack.c.h.b16 %v800
        %v1453 = vunpack.c.l.b16 %v801
        %v1454 = vunpack.c.h.b16 %v801
        %v1455 = vunpack.c.l.b16 %v802
        %v1456 = vunpack.c.h.b16 %v802
        %v1457 = vunpack.c.l.b16 %v803
        %v1458 = vunpack.c.h.b16 %v803
        %v1459 = vunpack.c.l.b16 %v804
        %v1460 = vunpack.c.h.b16 %v804
        %v1461 = vunpack.c.l.b16 %v805
        %v1462 = vunpack.c.h.b16 %v805
        %v1463 = vunpack.c.l.b16 %v806
        %v1464 = vunpack.c.h.b16 %v806
        %v1465 = vunpack.c.l.b16 %v807
        %v1466 = vunpack.c.h.b16 %v807
        %v1467 = vunpack.c.l.b16 %v808
        %v1468 = vunpack.c.h.b16 %v808
        %v1469 = vunpack.c.l.b16 %v809
        %v1470 = vunpack.c.h.b16 %v809
        %v1471 = vunpack.c.l.b16 %v810
        %v1472 = vunpack.c.h.b16 %v810
        %v1473 = vunpack.c.l.b16 %v811
        %v1474 = vunpack.c.h.b16 %v811
        %v1475 = vunpack.c.l.b16 %v812
        %v1476 = vunpack.c.h.b16 %v812
        %v1477 = vunpack.c.l.b16 %v813
        %v1478 = vunpack.c.h.b16 %v813
        %v1479 = vunpack.c.l.b16 %v814
        %v1480 = vunpack.c.h.b16 %v814
        %v1481 = vunpack.c.l.b16 %v815
        %v1482 = vunpack.c.h.b16 %v815
        %v1483 = vunpack.c.l.b16 %v816
        %v1484 = vunpack.c.h.b16 %v816
        %v1485 = vunpack.c.l.b16 %v817
        %v1486 = vunpack.c.h.b16 %v817
        %v1487 = vunpack.c.l.b16 %v818
        %v1488 = vunpack.c.h.b16 %v818
        %v1489 = vunpack.c.l.b16 %v819
        %v1490 = vunpack.c.h.b16 %v819
        %v1491 = vunpack.c.l.b16 %v820
        %v1492 = vunpack.c.h.b16 %v820
        %v1493 = vunpack.c.l.b16 %v821
        %v1494 = vunpack.c.h.b16 %v821
        %v1495 = vunpack.c.l.b16 %v822
        %v1496 = vunpack.c.h.b16 %v822
        %v1497 = vunpack.c.l.b16 %v823
        %v1498 = vunpack.c.h.b16 %v823
        %v1499 = vunpack.c.l.b16 %v824
        %v1500 = vunpack.c.h.b16 %v824
        %v1501 = vunpack.c.l.b16 %v825
        %v1502 = vunpack.c.h.b16 %v825
        %v1503 = vunpack.c.l.b16 %v826
        %v1504 = vunpack.c.h.b16 %v826
        %v1505 = vunpack.c.l.b16 %v827
        %v1506 = vunpack.c.h.b16 %v827
        %v1507 = vunpack.c.l.b16 %v828
        %v1508 = vunpack.c.h.b16 %v828
        %v1509 = vunpack.c.l.b16 %v829
        %v1510 = vunpack.c.h.b16 %v829
        %v1511 = vunpack.c.l.b16 %v830
        %v1512 = vunpack.c.h.b16 %v830
        %v1513 = vunpack.c.l.b16 %v831
        %v1514 = vunpack.c.h.b16 %v831
        %v1515 = vunpack.c.l.b16 %v832
        %v1516 = vunpack.c.h.b16 %v832
        %v1517 = vunpack.c.l.b16 %v833
        %v1518 = vunpack.c.h.b16 %v833
        %v1519 = vunpack.c.l.b16 %v834
        %v1520 = vunpack.c.h.b16 %v834
        %v1521 = vunpack.c.l.b16 %v835
        %v1522 = vunpack.c.h.b16 %v835
        %v1523 = vunpack.c.l.b16 %v836
        %v1524 = vunpack.c.h.b16 %v836
        %v1525 = vunpack.c.l.b16 %v837
        %v1526 = vunpack.c.h.b16 %v837
        %v1527 = vunpack.c.l.b16 %v838
        %v1528 = vunpack.c.h.b16 %v838
        %v1529 = vunpack.c.l.b16 %v839
        %v1530 = vunpack.c.h.b16 %v839
        %v1531 = vunpack.c.l.b16 %v840
        %v1532 = vunpack.c.h.b16 %v840
        %v1533 = vunpack.c.l.b16 %v841
        %v1534 = vunpack.c.h.b16 %v841
        %v1535 = vunpack.c.l.b16 %v842
        %v1536 = vunpack.c.h.b16 %v842
        %v1537 = vunpack.c.l.b16 %v843
        %v1538 = vunpack.c.h.b16 %v843
        %v1539 = vunpack.c.l.b16 %v844
        %v1540 = vunpack.c.h.b16 %v844
        %v1541 = vunpack.c.l.b16 %v845
        %v1542 = vunpack.c.h.b16 %v845
        %v1543 = vunpack.c.l.b16 %v846
        %v1544 = vunpack.c.h.b16 %v846
        %v1545 = vunpack.c.l.b16 %v847
        %v1546 = vunpack.c.h.b16 %v847
        %v1547 = vunpack.c.l.b16 %v848
        %v1548 = vunpack.c.h.b16 %v848
        %v1549 = vunpack.c.l.b16 %v849
        %v1550 = vunpack.c.h.b16 %v849
        %v1551 = vunpack.c.l.b16 %v850
        %v1552 = vunpack.c.h.b16 %v850
        %v1553 = vunpack.c.l.b16 %v851
        %v1554 = vunpack.c.h.b16 %v851
        %v1555 = vunpack.c.l.b16 %v852
        %v1556 = vunpack.c.h.b16 %v852
        %v1557 = vunpack.c.l.b16 %v853
        %v1558 = vunpack.c.h.b16 %v853
        %v1559 = vunpack.c.l.b16 %v854
        %v1560 = vunpack.c.h.b16 %v854
        %v1561 = vunpack.c.l.b16 %v855
        %v1562 = vunpack.c.h.b16 %v855
        %v1563 = vunpack.c.l.b16 %v856
        %v1564 = vunpack.c.h.b16 %v856
        %v1565 = vunpack.c.l.b16 %v857
        %v1566 = vunpack.c.h.b16 %v857
        %v1567 = vunpack.c.l.b16 %v858
        %v1568 = vunpack.c.h.b16 %v858
        %v1569 = vunpack.c.l.b16 %v859
        %v1570 = vunpack.c.h.b16 %v859
        %v1571 = vunpack.c.l.b16 %v860
        %v1572 = vunpack.c.h.b16 %v860
        %v1573 = vunpack.c.l.b16 %v861
        %v1574 = vunpack.c.h.b16 %v861
        %v1575 = vunpack.c.l.b16 %v862
        %v1576 = vunpack.c.h.b16 %v862
        %v1577 = vunpack.c.l.b16 %v863
        %v1578 = vunpack.c.h.b16 %v863
        %v1579 = vunpack.c.l.b16 %v864
        %v1580 = vunpack.c.h.b16 %v864
        %v1581 = vunpack.c.l.b16 %v865
        %v1582 = vunpack.c.h.b16 %v865
        %v1583 = vunpack.c.l.b16 %v866
        %v1584 = vunpack.c.h.b16 %v866
        %v1585 = vunpack.c.l.b16 %v867
        %v1586 = vunpack.c.h.b16 %v867
        %v1587 = vunpack.c.l.b16 %v868
        %v1588 = vunpack.c.h.b16 %v868
        %v1589 = vunpack.c.l.b16 %v869
        %v1590 = vunpack.c.h.b16 %v869
        %v1591 = vunpack.c.l.b16 %v870
        %v1592 = vunpack.c.h.b16 %v870
        %v1593 = vunpack.c.l.b16 %v871
        %v1594 = vunpack.c.h.b16 %v871
        %v1595 = vunpack.c.l.b16 %v872
        %v1596 = vunpack.c.h.b16 %v872
        %v1597 = vunpack.c.l.b16 %v873
        %v1598 = vunpack.c.h.b16 %v873
        %v1599 = vunpack.c.l.b16 %v874
        %v1600 = vunpack.c.h.b16 %v874
        %v1601 = vunpack.c.l.b16 %v875
        %v1602 = vunpack.c.h.b16 %v875
        %v1603 = vunpack.c.l.b16 %v876
        %v1604 = vunpack.c.h.b16 %v876
        %v1605 = vunpack.c.l.b16 %v877
        %v1606 = vunpack.c.h.b16 %v877
        %v1607 = vunpack.c.l.b16 %v878
        %v1608 = vunpack.c.h.b16 %v878
        %v1609 = vunpack.c.l.b16 %v879
        %v1610 = vunpack.c.h.b16 %v879
        %v1611 = vunpack.c.l.b16 %v880
        %v1612 = vunpack.c.h.b16 %v880
        %v1613 = vunpack.c.l.b16 %v881
        %v1614 = vunpack.c.h.b16 %v881
        %v1615 = vunpack.c.l.b16 %v882
        %v1616 = vunpack.c.h.b16 %v882
        %v1617 = vunpack.c.l.b16 %v883
        %v1618 = vunpack.c.h.b16 %v883
        %v1619 = vunpack.c.l.b16 %v884
        %v1620 = vunpack.c.h.b16 %v884
        %v1621 = vunpack.c.l.b16 %v885
        %v1622 = vunpack.c.h.b16 %v885
        %v1623 = vunpack.c.l.b16 %v886
        %v1624 = vunpack.c.h.b16 %v886
        %v1625 = vunpack.c.l.b16 %v887
        %v1626 = vunpack.c.h.b16 %v887
        %v1627 = vunpack.c.l.b16 %v888
        %v1628 = vunpack.c.h.b16 %v888
        %v1629 = vunpack.c.l.b16 %v889
        %v1630 = vunpack.c.h.b16 %v889
        %v1631 = vunpack.c.l.b16 %v890
        %v1632 = vunpack.c.h.b16 %v890
        %v1633 = vunpack.c.l.b16 %v891
        %v1634 = vunpack.c.h.b16 %v891
        %v1635 = vunpack.c.l.b16 %v892
        %v1636 = vunpack.c.h.b16 %v892
        %v1637 = vunpack.c.l.b16 %v893
        %v1638 = vunpack.c.h.b16 %v893
        %v1639 = vunpack.c.l.b16 %v894
        %v1640 = vunpack.c.h.b16 %v894
        %v1641 = vunpack.c.l.b16 %v895
        %v1642 = vunpack.c.h.b16 %v895
        %v1643 = vunpack.c.l.b16 %v896
        %v1644 = vunpack.c.h.b16 %v896
        %v1645 = vunpack.c.l.b16 %v897
        %v1646 = vunpack.c.h.b16 %v897
        %v1647 = vunpack.c.l.b16 %v898
        %v1648 = vunpack.c.h.b16 %v898
        %v1649 = vunpack.c.l.b16 %v899
        %v1650 = vunpack.c.h.b16 %v899
        %v1651 = vunpack.c.l.b16 %v900
        %v1652 = vunpack.c.h.b16 %v900
        %v1653 = vunpack.c.l.b16 %v901
        %v1654 = vunpack.c.h.b16 %v901
        %v1655 = vunpack.c.l.b16 %v902
        %v1656 = vunpack.c.h.b16 %v902
        %v1657 = vunpack.c.l.b16 %v903
        %v1658 = vunpack.c.h.b16 %v903
        %v1659 = vunpack.c.l.b16 %v904
        %v1660 = vunpack.c.h.b16 %v904
        %v1661 = vunpack.c.l.b16 %v905
        %v1662 = vunpack.c.h.b16 %v905
        %v1663 = vunpack.c.l.b16 %v906
        %v1664 = vunpack.c.h.b16 %v906
        %v1665 = vunpack.c.l.b16 %v907
        %v1666 = vunpack.c.h.b16 %v907
        %v1667 = vunpack.c.l.b16 %v908
        %v1668 = vunpack.c.h.b16 %v908
        %v1669 = vunpack.c.l.b16 %v909
        %v1670 = vunpack.c.h.b16 %v909
        %v1671 = vunpack.c.l.b16 %v910
        %v1672 = vunpack.c.h.b16 %v910
        %v1673 = vunpack.c.l.b16 %v911
        %v1674 = vunpack.c.h.b16 %v911
        %v1675 = vunpack.c.l.b16 %v912
        %v1676 = vunpack.c.h.b16 %v912
        %v1677 = vunpack.c.l.b16 %v913
        %v1678 = vunpack.c.h.b16 %v913
        %v1679 = vunpack.c.l.b16 %v914
        %v1680 = vunpack.c.h.b16 %v914
        %v1681 = vunpack.c.l.b16 %v915
        %v1682 = vunpack.c.h.b16 %v915
        %v1683 = vunpack.c.l.b16 %v916
        %v1684 = vunpack.c.h.b16 %v916
        %v1685 = vunpack.c.l.b16 %v917
        %v1686 = vunpack.c.h.b16 %v917
        %v1687 = vunpack.c.l.b16 %v918
        %v1688 = vunpack.c.h.b16 %v918
        %v1689 = vunpack.c.l.b16 %v919
        %v1690 = vunpack.c.h.b16 %v919
        %v1691 = vunpack.c.l.b16 %v920
        %v1692 = vunpack.c.h.b16 %v920
        %v1693 = vunpack.c.l.b16 %v921
        %v1694 = vunpack.c.h.b16 %v921
        %v1695 = vunpack.c.l.b16 %v922
        %v1696 = vunpack.c.h.b16 %v922
        %v1697 = vunpack.c.l.b16 %v923
        %v1698 = vunpack.c.h.b16 %v923
        %v1699 = vunpack.c.l.b16 %v924
        %v1700 = vunpack.c.h.b16 %v924
        %v1701 = vunpack.c.l.b16 %v925
        %v1702 = vunpack.c.h.b16 %v925
        %v1703 = vunpack.c.l.b16 %v926
        %v1704 = vunpack.c.h.b16 %v926
        %v1705 = vunpack.c.l.b16 %v927
        %v1706 = vunpack.c.h.b16 %v927
        %v1707 = vunpack.c.l.b16 %v928
        %v1708 = vunpack.c.h.b16 %v928
        %v1709 = vunpack.c.l.b16 %v929
        %v1710 = vunpack.c.h.b16 %v929
        %v1711 = vunpack.c.l.b16 %v930
        %v1712 = vunpack.c.h.b16 %v930
        %v1713 = vunpack.c.l.b16 %v931
        %v1714 = vunpack.c.h.b16 %v931
        %v1715 = vunpack.c.l.b16 %v932
        %v1716 = vunpack.c.h.b16 %v932
        %v1717 = vunpack.c.l.b16 %v933
        %v1718 = vunpack.c.h.b16 %v933
        %v1719 = vunpack.c.l.b16 %v934
        %v1720 = vunpack.c.h.b16 %v934
        %v1721 = vunpack.c.l.b16 %v935
        %v1722 = vunpack.c.h.b16 %v935
        %v1723 = vunpack.c.l.b16 %v936
        %v1724 = vunpack.c.h.b16 %v936
        %v1725 = vunpack.c.l.b16 %v937
        %v1726 = vunpack.c.h.b16 %v937
        %v1727 = vunpack.c.l.b16 %v938
        %v1728 = vunpack.c.h.b16 %v938
        %v1729 = vunpack.c.l.b16 %v939
        %v1730 = vunpack.c.h.b16 %v939
        %v1731 = vunpack.c.l.b16 %v940
        %v1732 = vunpack.c.h.b16 %v940
        %v1733 = vunpack.c.l.b16 %v941
        %v1734 = vunpack.c.h.b16 %v941
        %v1735 = vunpack.c.l.b16 %v942
        %v1736 = vunpack.c.h.b16 %v942
        %v1737 = vunpack.c.l.b16 %v943
        %v1738 = vunpack.c.h.b16 %v943
        %v1739 = vunpack.c.l.b16 %v944
        %v1740 = vunpack.c.h.b16 %v944
        %v1741 = vunpack.c.l.b16 %v945
        %v1742 = vunpack.c.h.b16 %v945
        %v1743 = vunpack.c.l.b16 %v946
        %v1744 = vunpack.c.h.b16 %v946
        %v1745 = vunpack.c.l.b16 %v947
        %v1746 = vunpack.c.h.b16 %v947
        %v1747 = vunpack.c.l.b16 %v948
        %v1748 = vunpack.c.h.b16 %v948
        %v1749 = vunpack.c.l.b16 %v949
        %v1750 = vunpack.c.h.b16 %v949
        %v1751 = vunpack.c.l.b16 %v950
        %v1752 = vunpack.c.h.b16 %v950
        %v1753 = vunpack.c.l.b16 %v951
        %v1754 = vunpack.c.h.b16 %v951
        %v1755 = vunpack.c.l.b16 %v952
        %v1756 = vunpack.c.h.b16 %v952
        %v1757 = vunpack.c.l.b16 %v953
        %v1758 = vunpack.c.h.b16 %v953
        %v1759 = vunpack.c.l.b16 %v954
        %v1760 = vunpack.c.h.b16 %v954
        %v1761 = vunpack.c.l.b16 %v955
        %v1762 = vunpack.c.h.b16 %v955
        %v1763 = vunpack.c.l.b16 %v956
        %v1764 = vunpack.c.h.b16 %v956
        %v1765 = vunpack.c.l.b16 %v957
        %v1766 = vunpack.c.h.b16 %v957
        %v1767 = vunpack.c.l.b16 %v958
        %v1768 = vunpack.c.h.b16 %v958
        %v1769 = vunpack.c.l.b16 %v959
        %v1770 = vunpack.c.h.b16 %v959
        %v1771 = vunpack.c.l.b16 %v960
        %v1772 = vunpack.c.h.b16 %v960
        %v1773 = vunpack.c.l.b16 %v961
        %v1774 = vunpack.c.h.b16 %v961
        %v1775 = vunpack.c.l.b16 %v962
        %v1776 = vunpack.c.h.b16 %v962
        %v1777 = vunpack.c.l.b16 %v963
        %v1778 = vunpack.c.h.b16 %v963
        %v1779 = vunpack.c.l.b16 %v964
        %v1780 = vunpack.c.h.b16 %v964
        %v1781 = vunpack.c.l.b16 %v965
        %v1782 = vunpack.c.h.b16 %v965
        %v1783 = vunpack.c.l.b16 %v966
        %v1784 = vunpack.c.h.b16 %v966
        %v1785 = vunpack.c.l.b16 %v967
        %v1786 = vunpack.c.h.b16 %v967
        %v1787 = vunpack.c.l.b16 %v968
        %v1788 = vunpack.c.h.b16 %v968
        %v1789 = vunpack.c.l.b16 %v969
        %v1790 = vunpack.c.h.b16 %v969
        %v1791 = vunpack.c.l.b16 %v970
        %v1792 = vunpack.c.h.b16 %v970
        %v1793 = vunpack.c.l.b16 %v971
        %v1794 = vunpack.c.h.b16 %v971
        %v1795 = vunpack.c.l.b16 %v972
        %v1796 = vunpack.c.h.b16 %v972
        %v1797 = vunpack.c.l.b16 %v973
        %v1798 = vunpack.c.h.b16 %v973
        %v1799 = vunpack.c.l.b16 %v974
        %v1800 = vunpack.c.h.b16 %v974
        %v1801 = vunpack.c.l.b16 %v975
        %v1802 = vunpack.c.h.b16 %v975
        %v1803 = vunpack.c.l.b16 %v976
        %v1804 = vunpack.c.h.b16 %v976
        %v1805 = vunpack.c.l.b16 %v977
        %v1806 = vunpack.c.h.b16 %v977
        %v1807 = vunpack.c.l.b16 %v978
        %v1808 = vunpack.c.h.b16 %v978
        %v1809 = vunpack.c.l.b16 %v979
        %v1810 = vunpack.c.h.b16 %v979
        %v1811 = vunpack.c.l.b16 %v980
        %v1812 = vunpack.c.h.b16 %v980
        %v1813 = vunpack.c.l.b16 %v981
        %v1814 = vunpack.c.h.b16 %v981
        %v1815 = vunpack.c.l.b16 %v982
        %v1816 = vunpack.c.h.b16 %v982
        %v1817 = vunpack.c.l.b16 %v983
        %v1818 = vunpack.c.h.b16 %v983
        %v1819 = vunpack.c.l.b16 %v984
        %v1820 = vunpack.c.h.b16 %v984
        %v1821 = vunpack.c.l.b16 %v985
        %v1822 = vunpack.c.h.b16 %v985
        %v1823 = vunpack.c.l.b16 %v986
        %v1824 = vunpack.c.h.b16 %v986
        %v1825 = vunpack.c.l.b16 %v987
        %v1826 = vunpack.c.h.b16 %v987
        %v1827 = vunpack.c.l.b16 %v988
        %v1828 = vunpack.c.h.b16 %v988
        %v1829 = vunpack.c.l.b16 %v989
        %v1830 = vunpack.c.h.b16 %v989
        %v1831 = vunpack.c.l.b16 %v990
        %v1832 = vunpack.c.h.b16 %v990
        %v1833 = vunpack.c.l.b16 %v991
        %v1834 = vunpack.c.h.b16 %v991
        %v1835 = vunpack.c.l.b16 %v992
        %v1836 = vunpack.c.h.b16 %v992
        %v1837 = vunpack.c.l.b16 %v993
        %v1838 = vunpack.c.h.b16 %v993
        %v1839 = vunpack.c.l.b16 %v994
        %v1840 = vunpack.c.h.b16 %v994
        %v1841 = vunpack.c.l.b16 %v995
        %v1842 = vunpack.c.h.b16 %v995
        %v1843 = vunpack.c.l.b16 %v996
        %v1844 = vunpack.c.h.b16 %v996
        %v1845 = vunpack.c.l.b16 %v997
        %v1846 = vunpack.c.h.b16 %v997
        %v1847 = vunpack.c.l.b16 %v998
        %v1848 = vunpack.c.h.b16 %v998
        %v1849 = vunpack.c.l.b16 %v999
        %v1850 = vunpack.c.h.b16 %v999
        %v1851 = vunpack.c.l.b16 %v1000
        %v1852 = vunpack.c.h.b16 %v1000
        %v1853 = vunpack.c.l.b16 %v1001
        %v1854 = vunpack.c.h.b16 %v1001
        %v1855 = vunpack.c.l.b16 %v1002
        %v1856 = vunpack.c.h.b16 %v1002
        %v1857 = vunpack.c.l.b16 %v1003
        %v1858 = vunpack.c.h.b16 %v1003
        %v1859 = vunpack.c.l.b16 %v1004
        %v1860 = vunpack.c.h.b16 %v1004
        %v1861 = vunpack.c.l.b16 %v1005
        %v1862 = vunpack.c.h.b16 %v1005
        %v1863 = vunpack.c.l.b16 %v1006
        %v1864 = vunpack.c.h.b16 %v1006
        %v1865 = vunpack.c.l.b16 %v1007
        %v1866 = vunpack.c.h.b16 %v1007
        %v1867 = vunpack.c.l.b16 %v1008
        %v1868 = vunpack.c.h.b16 %v1008
        %v1869 = vunpack.c.l.b16 %v1009
        %v1870 = vunpack.c.h.b16 %v1009
        %v1871 = vunpack.c.l.b16 %v1010
        %v1872 = vunpack.c.h.b16 %v1010
        %v1873 = vunpack.c.l.b16 %v1011
        %v1874 = vunpack.c.h.b16 %v1011
        %v1875 = vunpack.c.l.b16 %v1012
        %v1876 = vunpack.c.h.b16 %v1012
        %v1877 = vunpack.c.l.b16 %v1013
        %v1878 = vunpack.c.h.b16 %v1013
        %v1879 = vunpack.c.l.b16 %v1014
        %v1880 = vunpack.c.h.b16 %v1014
        %v1881 = vunpack.c.l.b16 %v1015
        %v1882 = vunpack.c.h.b16 %v1015
        %v1883 = vunpack.c.l.b16 %v1016
        %v1884 = vunpack.c.h.b16 %v1016
        %v1885 = vunpack.c.l.b16 %v1017
        %v1886 = vunpack.c.h.b16 %v1017
        %v1887 = vunpack.c.l.b16 %v1018
        %v1888 = vunpack.c.h.b16 %v1018
        %v1889 = vunpack.c.l.b16 %v1019
        %v1890 = vunpack.c.h.b16 %v1019
        %v1891 = vunpack.c.l.b16 %v1020
        %v1892 = vunpack.c.h.b16 %v1020
        %v1893 = vunpack.c.l.b16 %v1021
        %v1894 = vunpack.c.h.b16 %v1021
        %v1895 = vunpack.c.l.b16 %v1022
        %v1896 = vunpack.c.h.b16 %v1022
        %v1897 = vunpack.c.l.b16 %v1023
        %v1898 = vunpack.c.h.b16 %v1023
        %v1899 = vunpack.c.l.b16 %v1024
        %v1900 = vunpack.c.h.b16 %v1024
        %v1901 = vunpack.c.l.b16 %v1025
        %v1902 = vunpack.c.h.b16 %v1025
        %v1903 = vunpack.c.l.b16 %v1026
        %v1904 = vunpack.c.h.b16 %v1026
        %v1905 = vunpack.c.l.b16 %v1027
        %v1906 = vunpack.c.h.b16 %v1027
        %v1907 = vunpack.c.l.b16 %v1028
        %v1908 = vunpack.c.h.b16 %v1028
        %v1909 = vpack.c.b16 %v1335, %v1333
        %v1910 = vpack.c.b16 %v1336, %v1334
        %v1911 = vpack.c.b16 %v1339, %v1337
        %v1912 = vpack.c.b16 %v1340, %v1338
        %v1913 = vpack.c.b16 %v1343, %v1341
        %v1914 = vpack.c.b16 %v1344, %v1342
        %v1915 = vpack.c.b16 %v1347, %v1345
        %v1916 = vpack.c.b16 %v1348, %v1346
        %v1917 = vpack.c.b16 %v1351, %v1349
        %v1918 = vpack.c.b16 %v1352, %v1350
        %v1919 = vpack.c.b16 %v1355, %v1353
        %v1920 = vpack.c.b16 %v1356, %v1354
        %v1921 = vpack.c.b16 %v1359, %v1357
        %v1922 = vpack.c.b16 %v1360, %v1358
        %v1923 = vpack.c.b16 %v1363, %v1361
        %v1924 = vpack.c.b16 %v1364, %v1362
        %v1925 = vpack.c.b16 %v1367, %v1365
        %v1926 = vpack.c.b16 %v1368, %v1366
        %v1927 = vpack.c.b16 %v1371, %v1369
        %v1928 = vpack.c.b16 %v1372, %v1370
        %v1929 = vpack.c.b16 %v1375, %v1373
        %v1930 = vpack.c.b16 %v1376, %v1374
        %v1931 = vpack.c.b16 %v1379, %v1377
        %v1932 = vpack.c.b16 %v1380, %v1378
        %v1933 = vpack.c.b16 %v1383, %v1381
        %v1934 = vpack.c.b16 %v1384, %v1382
        %v1935 = vpack.c.b16 %v1387, %v1385
        %v1936 = vpack.c.b16 %v1388, %v1386
        %v1937 = vpack.c.b16 %v1391, %v1389
        %v1938 = vpack.c.b16 %v1392, %v1390
        %v1939 = vpack.c.b16 %v1395, %v1393
        %v1940 = vpack.c.b16 %v1396, %v1394
        %v1941 = vpack.c.b16 %v1399, %v1397
        %v1942 = vpack.c.b16 %v1400, %v1398
        %v1943 = vpack.c.b16 %v1403, %v1401
        %v1944 = vpack.c.b16 %v1404, %v1402
        %v1945 = vpack.c.b16 %v1407, %v1405
        %v1946 = vpack.c.b16 %v1408, %v1406
        %v1947 = vpack.c.b16 %v1411, %v1409
        %v1948 = vpack.c.b16 %v1412, %v1410
        %v1949 = vpack.c.b16 %v1415, %v1413
        %v1950 = vpack.c.b16 %v1416, %v1414
        %v1951 = vpack.c.b16 %v1419, %v1417
        %v1952 = vpack.c.b16 %v1420, %v1418
        %v1953 = vpack.c.b16 %v1423, %v1421
        %v1954 = vpack.c.b16 %v1424, %v1422
        %v1955 = vpack.c.b16 %v1427, %v1425
        %v1956 = vpack.c.b16 %v1428, %v1426
        %v1957 = vpack.c.b16 %v1431, %v1429
        %v1958 = vpack.c.b16 %v1432, %v1430
        %v1959 = vpack.c.b16 %v1435, %v1433
        %v1960 = vpack.c.b16 %v1436, %v1434
        %v1961 = vpack.c.b16 %v1439, %v1437
        %v1962 = vpack.c.b16 %v1440, %v1438
        %v1963 = vpack.c.b16 %v1443, %v1441
        %v1964 = vpack.c.b16 %v1444, %v1442
        %v1965 = vpack.c.b16 %v1447, %v1445
        %v1966 = vpack.c.b16 %v1448, %v1446
        %v1967 = vpack.c.b16 %v1451, %v1449
        %v1968 = vpack.c.b16 %v1452, %v1450
        %v1969 = vpack.c.b16 %v1455, %v1453
        %v1970 = vpack.c.b16 %v1456, %v1454
        %v1971 = vpack.c.b16 %v1459, %v1457
        %v1972 = vpack.c.b16 %v1460, %v1458
        %v1973 = vpack.c.b16 %v1463, %v1461
        %v1974 = vpack.c.b16 %v1464, %v1462
        %v1975 = vpack.c.b16 %v1467, %v1465
        %v1976 = vpack.c.b16 %v1468, %v1466
        %v1977 = vpack.c.b16 %v1471, %v1469
        %v1978 = vpack.c.b16 %v1472, %v1470
        %v1979 = vpack.c.b16 %v1475, %v1473
        %v1980 = vpack.c.b16 %v1476, %v1474
        %v1981 = vpack.c.b16 %v1479, %v1477
        %v1982 = vpack.c.b16 %v1480, %v1478
        %v1983 = vpack.c.b16 %v1483, %v1481
        %v1984 = vpack.c.b16 %v1484, %v1482
        %v1985 = vpack.c.b16 %v1487, %v1485
        %v1986 = vpack.c.b16 %v1488, %v1486
        %v1987 = vpack.c.b16 %v1491, %v1489
        %v1988 = vpack.c.b16 %v1492, %v1490
        %v1989 = vpack.c.b16 %v1495, %v1493
        %v1990 = vpack.c.b16 %v1496, %v1494
        %v1991 = vpack.c.b16 %v1499, %v1497
        %v1992 = vpack.c.b16 %v1500, %v1498
        %v1993 = vpack.c.b16 %v1503, %v1501
        %v1994 = vpack.c.b16 %v1504, %v1502
        %v1995 = vpack.c.b16 %v1507, %v1505
        %v1996 = vpack.c.b16 %v1508, %v1506
        %v1997 = vpack.c.b16 %v1511, %v1509
        %v1998 = vpack.c.b16 %v1512, %v1510
        %v1999 = vpack.c.b16 %v1515, %v1513
        %v2000 = vpack.c.b16 %v1516, %v1514
        %v2001 = vpack.c.b16 %v1519, %v1517
        %v2002 = vpack.c.b16 %v1520, %v1518
        %v2003 = vpack.c.b16 %v1523, %v1521
        %v2004 = vpack.c.b16 %v1524, %v1522
        %v2005 = vpack.c.b16 %v1527, %v1525
        %v2006 = vpack.c.b16 %v1528, %v1526
        %v2007 = vpack.c.b16 %v1531, %v1529
        %v2008 = vpack.c.b16 %v1532, %v1530
        %v2009 = vpack.c.b16 %v1535, %v1533
        %v2010 = vpack.c.b16 %v1536, %v1534
        %v2011 = vpack.c.b16 %v1539, %v1537
        %v2012 = vpack.c.b16 %v1540, %v1538
        %v2013 = vpack.c.b16 %v1543, %v1541
        %v2014 = vpack.c.b16 %v1544, %v1542
        %v2015 = vpack.c.b16 %v1547, %v1545
        %v2016 = vpack.c.b16 %v1548, %v1546
        %v2017 = vpack.c.b16 %v1551, %v1549
        %v2018 = vpack.c.b16 %v1552, %v1550
        %v2019 = vpack.c.b16 %v1555, %v1553
        %v2020 = vpack.c.b16 %v1556, %v1554
        %v2021 = vpack.c.b16 %v1559, %v1557
        %v2022 = vpack.c.b16 %v1560, %v1558
        %v2023 = vpack.c.b16 %v1563, %v1561
        %v2024 = vpack.c.b16 %v1564, %v1562
        %v2025 = vpack.c.b16 %v1567, %v1565
        %v2026 = vpack.c.b16 %v1568, %v1566
        %v2027 = vpack.c.b16 %v1571, %v1569
        %v2028 = vpack.c.b16 %v1572, %v1570
        %v2029 = vpack.c.b16 %v1575, %v1573
        %v2030 = vpack.c.b16 %v1576, %v1574
        %v2031 = vpack.c.b16 %v1579, %v1577
        %v2032 = vpack.c.b16 %v1580, %v1578
        %v2033 = vpack.c.b16 %v1583, %v1581
        %v2034 = vpack.c.b16 %v1584, %v1582
        %v2035 = vpack.c.b16 %v1587, %v1585
        %v2036 = vpack.c.b16 %v1588, %v1586
        %v2037 = vpack.c.b16 %v1591, %v1589
        %v2038 = vpack.c.b16 %v1592, %v1590
        %v2039 = vpack.c.b16 %v1595, %v1593
        %v2040 = vpack.c.b16 %v1596, %v1594
        %v2041 = vpack.c.b16 %v1599, %v1597
        %v2042 = vpack.c.b16 %v1600, %v1598
        %v2043 = vpack.c.b16 %v1603, %v1601
        %v2044 = vpack.c.b16 %v1604, %v1602
        %v2045 = vpack.c.b16 %v1607, %v1605
        %v2046 = vpack.c.b16 %v1608, %v1606
        %v2047 = vpack.c.b16 %v1611, %v1609
        %v2048 = vpack.c.b16 %v1612, %v1610
        %v2049 = vpack.c.b16 %v1615, %v1613
        %v2050 = vpack.c.b16 %v1616, %v1614
        %v2051 = vpack.c.b16 %v1619, %v1617
        %v2052 = vpack.c.b16 %v1620, %v1618
        %v2053 = vpack.c.b16 %v1623, %v1621
        %v2054 = vpack.c.b16 %v1624, %v1622
        %v2055 = vpack.c.b16 %v1627, %v1625
        %v2056 = vpack.c.b16 %v1628, %v1626
        %v2057 = vpack.c.b16 %v1631, %v1629
        %v2058 = vpack.c.b16 %v1632, %v1630
        %v2059 = vpack.c.b16 %v1635, %v1633
        %v2060 = vpack.c.b16 %v1636, %v1634
        %v2061 = vpack.c.b16 %v1639, %v1637
        %v2062 = vpack.c.b16 %v1640, %v1638
        %v2063 = vpack.c.b16 %v1643, %v1641
        %v2064 = vpack.c.b16 %v1644, %v1642
        %v2065 = vpack.c.b16 %v1647, %v1645
        %v2066 = vpack.c.b16 %v1648, %v1646
        %v2067 = vpack.c.b16 %v1651, %v1649
        %v2068 = vpack.c.b16 %v1652, %v1650
        %v2069 = vpack.c.b16 %v1655, %v1653
        %v2070 = vpack.c.b16 %v1656, %v1654
        %v2071 = vpack.c.b16 %v1659, %v1657
        %v2072 = vpack.c.b16 %v1660, %v1658
        %v2073 = vpack.c.b16 %v1663, %v1661
        %v2074 = vpack.c.b16 %v1664, %v1662
        %v2075 = vpack.c.b16 %v1667, %v1665
        %v2076 = vpack.c.b16 %v1668, %v1666
        %v2077 = vpack.c.b16 %v1671, %v1669
        %v2078 = vpack.c.b16 %v1672, %v1670
        %v2079 = vpack.c.b16 %v1675, %v1673
        %v2080 = vpack.c.b16 %v1676, %v1674
        %v2081 = vpack.c.b16 %v1679, %v1677
        %v2082 = vpack.c.b16 %v1680, %v1678
        %v2083 = vpack.c.b16 %v1683, %v1681
        %v2084 = vpack.c.b16 %v1684, %v1682
        %v2085 = vpack.c.b16 %v1687, %v1685
        %v2086 = vpack.c.b16 %v1688, %v1686
        %v2087 = vpack.c.b16 %v1691, %v1689
        %v2088 = vpack.c.b16 %v1692, %v1690
        %v2089 = vpack.c.b16 %v1695, %v1693
        %v2090 = vpack.c.b16 %v1696, %v1694
        %v2091 = vpack.c.b16 %v1699, %v1697
        %v2092 = vpack.c.b16 %v1700, %v1698
        %v2093 = vpack.c.b16 %v1703, %v1701
        %v2094 = vpack.c.b16 %v1704, %v1702
        %v2095 = vpack.c.b16 %v1707, %v1705
        %v2096 = vpack.c.b16 %v1708, %v1706
        %v2097 = vpack.c.b16 %v1711, %v1709
        %v2098 = vpack.c.b16 %v1712, %v1710
        %v2099 = vpack.c.b16 %v1715, %v1713
        %v2100 = vpack.c.b16 %v1716, %v1714
        %v2101 = vpack.c.b16 %v1719, %v1717
        %v2102 = vpack.c.b16 %v1720, %v1718
        %v2103 = vpack.c.b16 %v1723, %v1721
        %v2104 = vpack.c.b16 %v1724, %v1722
        %v2105 = vpack.c.b16 %v1727, %v1725
        %v2106 = vpack.c.b16 %v1728, %v1726
        %v2107 = vpack.c.b16 %v1731, %v1729
        %v2108 = vpack.c.b16 %v1732, %v1730
        %v2109 = vpack.c.b16 %v1735, %v1733
        %v2110 = vpack.c.b16 %v1736, %v1734
        %v2111 = vpack.c.b16 %v1739, %v1737
        %v2112 = vpack.c.b16 %v1740, %v1738
        %v2113 = vpack.c.b16 %v1743, %v1741
        %v2114 = vpack.c.b16 %v1744, %v1742
        %v2115 = vpack.c.b16 %v1747, %v1745
        %v2116 = vpack.c.b16 %v1748, %v1746
        %v2117 = vpack.c.b16 %v1751, %v1749
        %v2118 = vpack.c.b16 %v1752, %v1750
        %v2119 = vpack.c.b16 %v1755, %v1753
        %v2120 = vpack.c.b16 %v1756, %v1754
        %v2121 = vpack.c.b16 %v1759, %v1757
        %v2122 = vpack.c.b16 %v1760, %v1758
        %v2123 = vpack.c.b16 %v1763, %v1761
        %v2124 = vpack.c.b16 %v1764, %v1762
        %v2125 = vpack.c.b16 %v1767, %v1765
        %v2126 = vpack.c.b16 %v1768, %v1766
        %v2127 = vpack.c.b16 %v1771, %v1769
        %v2128 = vpack.c.b16 %v1772, %v1770
        %v2129 = vpack.c.b16 %v1775, %v1773
        %v2130 = vpack.c.b16 %v1776, %v1774
        %v2131 = vpack.c.b16 %v1779, %v1777
        %v2132 = vpack.c.b16 %v1780, %v1778
        %v2133 = vpack.c.b16 %v1783, %v1781
        %v2134 = vpack.c.b16 %v1784, %v1782
        %v2135 = vpack.c.b16 %v1787, %v1785
        %v2136 = vpack.c.b16 %v1788, %v1786
        %v2137 = vpack.c.b16 %v1791, %v1789
        %v2138 = vpack.c.b16 %v1792, %v1790
        %v2139 = vpack.c.b16 %v1795, %v1793
        %v2140 = vpack.c.b16 %v1796, %v1794
        %v2141 = vpack.c.b16 %v1799, %v1797
        %v2142 = vpack.c.b16 %v1800, %v1798
        %v2143 = vpack.c.b16 %v1803, %v1801
        %v2144 = vpack.c.b16 %v1804, %v1802
        %v2145 = vpack.c.b16 %v1807, %v1805
        %v2146 = vpack.c.b16 %v1808, %v1806
        %v2147 = vpack.c.b16 %v1811, %v1809
        %v2148 = vpack.c.b16 %v1812, %v1810
        %v2149 = vpack.c.b16 %v1815, %v1813
        %v2150 = vpack.c.b16 %v1816, %v1814
        %v2151 = vpack.c.b16 %v1819, %v1817
        %v2152 = vpack.c.b16 %v1820, %v1818
        %v2153 = vpack.c.b16 %v1823, %v1821
        %v2154 = vpack.c.b16 %v1824, %v1822
        %v2155 = vpack.c.b16 %v1827, %v1825
        %v2156 = vpack.c.b16 %v1828, %v1826
        %v2157 = vpack.c.b16 %v1831, %v1829
        %v2158 = vpack.c.b16 %v1832, %v1830
        %v2159 = vpack.c.b16 %v1835, %v1833
        %v2160 = vpack.c.b16 %v1836, %v1834
        %v2161 = vpack.c.b16 %v1839, %v1837
        %v2162 = vpack.c.b16 %v1840, %v1838
        %v2163 = vpack.c.b16 %v1843, %v1841
        %v2164 = vpack.c.b16 %v1844, %v1842
        %v2165 = vpack.c.b16 %v1847, %v1845
        %v2166 = vpack.c.b16 %v1848, %v1846
        %v2167 = vpack.c.b16 %v1851, %v1849
        %v2168 = vpack.c.b16 %v1852, %v1850
        %v2169 = vpack.c.b16 %v1855, %v1853
        %v2170 = vpack.c.b16 %v1856, %v1854
        %v2171 = vpack.c.b16 %v1859, %v1857
        %v2172 = vpack.c.b16 %v1860, %v1858
        %v2173 = vpack.c.b16 %v1863, %v1861
        %v2174 = vpack.c.b16 %v1864, %v1862
        %v2175 = vpack.c.b16 %v1867, %v1865
        %v2176 = vpack.c.b16 %v1868, %v1866
        %v2177 = vpack.c.b16 %v1871, %v1869
        %v2178 = vpack.c.b16 %v1872, %v1870
        %v2179 = vpack.c.b16 %v1875, %v1873
        %v2180 = vpack.c.b16 %v1876, %v1874
        %v2181 = vpack.c.b16 %v1879, %v1877
        %v2182 = vpack.c.b16 %v1880, %v1878
        %v2183 = vpack.c.b16 %v1883, %v1881
        %v2184 = vpack.c.b16 %v1884, %v1882
        %v2185 = vpack.c.b16 %v1887, %v1885
        %v2186 = vpack.c.b16 %v1888, %v1886
        %v2187 = vpack.c.b16 %v1891, %v1889
        %v2188 = vpack.c.b16 %v1892, %v1890
        %v2189 = vpack.c.b16 %v1895, %v1893
        %v2190 = vpack.c.b16 %v1896, %v1894
        %v2191 = vpack.c.b16 %v1899, %v1897
        %v2192 = vpack.c.b16 %v1900, %v1898
        %v2193 = vpack.c.b16 %v1903, %v1901
        %v2194 = vpack.c.b16 %v1904, %v1902
        %v2195 = vpack.c.b16 %v1907, %v1905
        %v2196 = vpack.c.b16 %v1908, %v1906
        %2485 = vmatprep.subr.bf16.mxu0 0
        %2486 = vmatpush1.bf16.msra.mxu0 %v1029
        %2487 = vmatprep.subr.bf16.mxu0 0
        %2488 = vmatpush1.bf16.msra.mxu0 %v1030
        %2489 = vmatprep.subr.bf16.mxu0 0
        %2490 = vmatpush1.bf16.msra.mxu0 %v1031
        %2491 = vmatprep.subr.bf16.mxu0 0
        %2492 = vmatpush1.bf16.msra.mxu0 %v1032
        %2493 = vmatprep.subr.bf16.mxu0 0
        %2494 = vmatpush1.bf16.msra.mxu0 %v1033
        %2495 = vmatprep.subr.bf16.mxu0 0
        %2496 = vmatpush1.bf16.msra.mxu0 %v1034
        %2497 = vmatprep.subr.bf16.mxu0 0
        %2498 = vmatpush1.bf16.msra.mxu0 %v1035
        %2499 = vmatprep.subr.bf16.mxu0 0
        %2500 = vmatpush1.bf16.msra.mxu0 %v1036
        %2501 = vmatprep.subr.bf16.mxu0 0
        %2502 = vmatpush1.bf16.msra.mxu0 %v1037
        %2503 = vmatprep.subr.bf16.mxu0 0
        %2504 = vmatpush1.bf16.msra.mxu0 %v1038
        %2505 = vmatprep.subr.bf16.mxu0 0
        %2506 = vmatpush1.bf16.msra.mxu0 %v1039
        %2507 = vmatprep.subr.bf16.mxu0 0
        %2508 = vmatpush1.bf16.msra.mxu0 %v1040
        %2509 = vmatprep.subr.bf16.mxu0 0
        %2510 = vmatpush1.bf16.msra.mxu0 %v1041
        %2511 = vmatprep.subr.bf16.mxu0 0
        %2512 = vmatpush1.bf16.msra.mxu0 %v1042
        %2513 = vmatprep.subr.bf16.mxu0 0
        %2514 = vmatpush1.bf16.msra.mxu0 %v1043
        %2515 = vmatprep.subr.bf16.mxu0 0
        %2516 = vmatpush1.bf16.msra.mxu0 %v1044
        %2517 = vmatprep.mubr.bf16.mxu0 %v1910
        %2518 = vmatmul.mubr.bf16.gmra.mrb[0].mxu0 %v1909
        %v2519 = vpop.f32.mrb[0].mxu0
        %v2520 = vadd.f32 0.0, %v2519
        %v2521 = vpop.f32.mrb[0].mxu0
        %v2522 = vpop.f32.mrb[0].mxu0
        %v2523 = vadd.f32 0.0, %v2522
        %v2524 = vpop.f32.mrb[0].mxu0
        %2525 = vmatprep.mubr.bf16.mxu0 %v1912
        %2526 = vmatmul.mubr.bf16.gmra.mrb[0].mxu0 %v1911
        %v2527 = vpop.f32.mrb[0].mxu0
        %v2528 = vadd.f32 0.0, %v2527
        %v2529 = vpop.f32.mrb[0].mxu0
        %v2530 = vpop.f32.mrb[0].mxu0
        %v2531 = vadd.f32 0.0, %v2530
        %v2532 = vpop.f32.mrb[0].mxu0
        %2533 = vmatprep.mubr.bf16.mxu0 %v1914
        %2534 = vmatmul.mubr.bf16.gmra.mrb[0].mxu0 %v1913
        %v2535 = vpop.f32.mrb[0].mxu0
        %v2536 = vadd.f32 0.0, %v2535
        %v2537 = vpop.f32.mrb[0].mxu0
        %v2538 = vpop.f32.mrb[0].mxu0
        %v2539 = vadd.f32 0.0, %v2538
        %v2540 = vpop.f32.mrb[0].mxu0
        %2541 = vmatprep.mubr.bf16.mxu0 %v1916
        %2542 = vmatmul.mubr.bf16.gmra.mrb[0].mxu0 %v1915
        %v2543 = vpop.f32.mrb[0].mxu0
        %v2544 = vadd.f32 0.0, %v2543
        %v2545 = vpop.f32.mrb[0].mxu0
        %v2546 = vpop.f32.mrb[0].mxu0
        %v2547 = vadd.f32 0.0, %v2546
        %v2548 = vpop.f32.mrb[0].mxu0
        %2549 = vmatprep.mubr.bf16.mxu0 %v1918
        %2550 = vmatmul.mubr.bf16.gmra.mrb[0].mxu0 %v1917
        %v2551 = vpop.f32.mrb[0].mxu0
        %v2552 = vadd.f32 0.0, %v2551
        %v2553 = vpop.f32.mrb[0].mxu0
        %v2554 = vpop.f32.mrb[0].mxu0
        %v2555 = vadd.f32 0.0, %v2554
        %v2556 = vpop.f32.mrb[0].mxu0
        %2557 = vmatprep.mubr.bf16.mxu0 %v1920
        %2558 = vmatmul.mubr.bf16.gmra.mrb[0].mxu0 %v1919
        %v2559 = vpop.f32.mrb[0].mxu0
        %v2560 = vadd.f32 0.0, %v2559
        %v2561 = vpop.f32.mrb[0].mxu0
        %v2562 = vpop.f32.mrb[0].mxu0
        %v2563 = vadd.f32 0.0, %v2562
        %v2564 = vpop.f32.mrb[0].mxu0
        %2565 = vmatprep.mubr.bf16.mxu0 %v1922
        %2566 = vmatmul.mubr.bf16.gmra.mrb[0].mxu0 %v1921
        %v2567 = vpop.f32.mrb[0].mxu0
        %v2568 = vadd.f32 0.0, %v2567
        %v2569 = vpop.f32.mrb[0].mxu0
        %v2570 = vpop.f32.mrb[0].mxu0
        %v2571 = vadd.f32 0.0, %v2570
        %v2572 = vpop.f32.mrb[0].mxu0
        %2573 = vmatprep.mubr.bf16.mxu0 %v1924
        %2574 = vmatmul.mubr.bf16.gmra.mrb[0].mxu0 %v1923
        %v2575 = vpop.f32.mrb[0].mxu0
        %v2576 = vadd.f32 0.0, %v2575
        %v2577 = vpop.f32.mrb[0].mxu0
        %v2578 = vpop.f32.mrb[0].mxu0
        %v2579 = vadd.f32 0.0, %v2578
        %v2580 = vpop.f32.mrb[0].mxu0
        %2581 = vmatprep.mubr.bf16.mxu0 %v1926
        %2582 = vmatmul.mubr.bf16.gmra.mrb[0].mxu0 %v1925
        %v2583 = vpop.f32.mrb[0].mxu0
        %v2584 = vadd.f32 0.0, %v2583
        %v2585 = vpop.f32.mrb[0].mxu0
        %v2586 = vpop.f32.mrb[0].mxu0
        %v2587 = vadd.f32 0.0, %v2586
        %v2588 = vpop.f32.mrb[0].mxu0
        %2589 = vmatprep.mubr.bf16.mxu0 %v1928
        %2590 = vmatmul.mubr.bf16.gmra.mrb[0].mxu0 %v1927
        %v2591 = vpop.f32.mrb[0].mxu0
        %v2592 = vadd.f32 0.0, %v2591
        %v2593 = vpop.f32.mrb[0].mxu0
        %v2594 = vpop.f32.mrb[0].mxu0
        %v2595 = vadd.f32 0.0, %v2594
        %v2596 = vpop.f32.mrb[0].mxu0
        %2597 = vmatprep.mubr.bf16.mxu0 %v1930
        %2598 = vmatmul.mubr.bf16.gmra.mrb[0].mxu0 %v1929
        %v2599 = vpop.f32.mrb[0].mxu0
        %v2600 = vadd.f32 0.0, %v2599
        %v2601 = vpop.f32.mrb[0].mxu0
        %v2602 = vpop.f32.mrb[0].mxu0
        %v2603 = vadd.f32 0.0, %v2602
        %v2604 = vpop.f32.mrb[0].mxu0
        %2605 = vmatprep.mubr.bf16.mxu0 %v1932
        %2606 = vmatmul.mubr.bf16.gmra.mrb[0].mxu0 %v1931
        %v2607 = vpop.f32.mrb[0].mxu0
        %v2608 = vadd.f32 0.0, %v2607
        %v2609 = vpop.f32.mrb[0].mxu0
        %v2610 = vpop.f32.mrb[0].mxu0
        %v2611 = vadd.f32 0.0, %v2610
        %v2612 = vpop.f32.mrb[0].mxu0
        %2613 = vmatprep.mubr.bf16.mxu0 %v1934
        %2614 = vmatmul.mubr.bf16.gmra.mrb[0].mxu0 %v1933
        %v2615 = vpop.f32.mrb[0].mxu0
        %v2616 = vadd.f32 0.0, %v2615
        %v2617 = vpop.f32.mrb[0].mxu0
        %v2618 = vpop.f32.mrb[0].mxu0
        %v2619 = vadd.f32 0.0, %v2618
        %v2620 = vpop.f32.mrb[0].mxu0
        %2621 = vmatprep.mubr.bf16.mxu0 %v1936
        %2622 = vmatmul.mubr.bf16.gmra.mrb[0].mxu0 %v1935
        %v2623 = vpop.f32.mrb[0].mxu0
        %v2624 = vadd.f32 0.0, %v2623
        %v2625 = vpop.f32.mrb[0].mxu0
        %v2626 = vpop.f32.mrb[0].mxu0
        %v2627 = vadd.f32 0.0, %v2626
        %v2628 = vpop.f32.mrb[0].mxu0
        %2629 = vmatprep.mubr.bf16.mxu0 %v1938
        %2630 = vmatmul.mubr.bf16.gmra.mrb[0].mxu0 %v1937
        %v2631 = vpop.f32.mrb[0].mxu0
        %v2632 = vadd.f32 0.0, %v2631
        %v2633 = vpop.f32.mrb[0].mxu0
        %v2634 = vpop.f32.mrb[0].mxu0
        %v2635 = vadd.f32 0.0, %v2634
        %v2636 = vpop.f32.mrb[0].mxu0
        %2637 = vmatprep.mubr.bf16.mxu0 %v1940
        %2638 = vmatmul.mubr.bf16.gmra.mrb[0].mxu0 %v1939
        %v2639 = vpop.f32.mrb[0].mxu0
        %v2640 = vadd.f32 0.0, %v2639
        %v2641 = vpop.f32.mrb[0].mxu0
        %v2642 = vpop.f32.mrb[0].mxu0
        %v2643 = vadd.f32 0.0, %v2642
        %v2644 = vpop.f32.mrb[0].mxu0
        %2645 = vmatprep.mubr.bf16.mxu0 %v1942
        %2646 = vmatmul.mubr.bf16.gmra.mrb[0].mxu0 %v1941
        %v2647 = vpop.f32.mrb[0].mxu0
        %v2648 = vadd.f32 0.0, %v2647
        %v2649 = vpop.f32.mrb[0].mxu0
        %v2650 = vpop.f32.mrb[0].mxu0
        %v2651 = vadd.f32 0.0, %v2650
        %v2652 = vpop.f32.mrb[0].mxu0
        %2653 = vmatprep.mubr.bf16.mxu0 %v1944
        %2654 = vmatmul.mubr.bf16.gmra.mrb[0].mxu0 %v1943
        %v2655 = vpop.f32.mrb[0].mxu0
        %v2656 = vadd.f32 0.0, %v2655
        %v2657 = vpop.f32.mrb[0].mxu0
        %v2658 = vpop.f32.mrb[0].mxu0
        %v2659 = vadd.f32 0.0, %v2658
        %v2660 = vpop.f32.mrb[0].mxu0
        %2661 = vmatprep.mubr.bf16.mxu0 %v1946
        %2662 = vmatmul.mubr.bf16.gmra.mrb[0].mxu0 %v1945
        %v2663 = vpop.f32.mrb[0].mxu0
        %v2664 = vadd.f32 0.0, %v2663
        %v2665 = vpop.f32.mrb[0].mxu0
        %v2666 = vpop.f32.mrb[0].mxu0
        %v2667 = vadd.f32 0.0, %v2666
        %v2668 = vpop.f32.mrb[0].mxu0
        %2669 = vmatprep.mubr.bf16.mxu0 %v1948
        %2670 = vmatmul.mubr.bf16.gmra.mrb[0].mxu0 %v1947
        %v2671 = vpop.f32.mrb[0].mxu0
        %v2672 = vadd.f32 0.0, %v2671
        %v2673 = vpop.f32.mrb[0].mxu0
        %v2674 = vpop.f32.mrb[0].mxu0
        %v2675 = vadd.f32 0.0, %v2674
        %v2676 = vpop.f32.mrb[0].mxu0
        %2677 = vmatprep.mubr.bf16.mxu0 %v1950
        %2678 = vmatmul.mubr.bf16.gmra.mrb[0].mxu0 %v1949
        %v2679 = vpop.f32.mrb[0].mxu0
        %v2680 = vadd.f32 0.0, %v2679
        %v2681 = vpop.f32.mrb[0].mxu0
        %v2682 = vpop.f32.mrb[0].mxu0
        %v2683 = vadd.f32 0.0, %v2682
        %v2684 = vpop.f32.mrb[0].mxu0
        %2685 = vmatprep.mubr.bf16.mxu0 %v1952
        %2686 = vmatmul.mubr.bf16.gmra.mrb[0].mxu0 %v1951
        %v2687 = vpop.f32.mrb[0].mxu0
        %v2688 = vadd.f32 0.0, %v2687
        %v2689 = vpop.f32.mrb[0].mxu0
        %v2690 = vpop.f32.mrb[0].mxu0
        %v2691 = vadd.f32 0.0, %v2690
        %v2692 = vpop.f32.mrb[0].mxu0
        %2693 = vmatprep.mubr.bf16.mxu0 %v1954
        %2694 = vmatmul.mubr.bf16.gmra.mrb[0].mxu0 %v1953
        %v2695 = vpop.f32.mrb[0].mxu0
        %v2696 = vadd.f32 0.0, %v2695
        %v2697 = vpop.f32.mrb[0].mxu0
        %v2698 = vpop.f32.mrb[0].mxu0
        %v2699 = vadd.f32 0.0, %v2698
        %v2700 = vpop.f32.mrb[0].mxu0
        %2701 = vmatprep.mubr.bf16.mxu0 %v1956
        %2702 = vmatmul.mubr.bf16.gmra.mrb[0].mxu0 %v1955
        %v2703 = vpop.f32.mrb[0].mxu0
        %v2704 = vadd.f32 0.0, %v2703
        %v2705 = vpop.f32.mrb[0].mxu0
        %v2706 = vpop.f32.mrb[0].mxu0
        %v2707 = vadd.f32 0.0, %v2706
        %v2708 = vpop.f32.mrb[0].mxu0
        %2709 = vmatprep.mubr.bf16.mxu0 %v1958
        %2710 = vmatmul.mubr.bf16.gmra.mrb[0].mxu0 %v1957
        %v2711 = vpop.f32.mrb[0].mxu0
        %v2712 = vadd.f32 0.0, %v2711
        %v2713 = vpop.f32.mrb[0].mxu0
        %v2714 = vpop.f32.mrb[0].mxu0
        %v2715 = vadd.f32 0.0, %v2714
        %v2716 = vpop.f32.mrb[0].mxu0
        %2717 = vmatprep.mubr.bf16.mxu0 %v1960
        %2718 = vmatmul.mubr.bf16.gmra.mrb[0].mxu0 %v1959
        %v2719 = vpop.f32.mrb[0].mxu0
        %v2720 = vadd.f32 0.0, %v2719
        %v2721 = vpop.f32.mrb[0].mxu0
        %v2722 = vpop.f32.mrb[0].mxu0
        %v2723 = vadd.f32 0.0, %v2722
        %v2724 = vpop.f32.mrb[0].mxu0
        %2725 = vmatprep.mubr.bf16.mxu0 %v1962
        %2726 = vmatmul.mubr.bf16.gmra.mrb[0].mxu0 %v1961
        %v2727 = vpop.f32.mrb[0].mxu0
        %v2728 = vadd.f32 0.0, %v2727
        %v2729 = vpop.f32.mrb[0].mxu0
        %v2730 = vpop.f32.mrb[0].mxu0
        %v2731 = vadd.f32 0.0, %v2730
        %v2732 = vpop.f32.mrb[0].mxu0
        %2733 = vmatprep.mubr.bf16.mxu0 %v1964
        %2734 = vmatmul.mubr.bf16.gmra.mrb[0].mxu0 %v1963
        %v2735 = vpop.f32.mrb[0].mxu0
        %v2736 = vadd.f32 0.0, %v2735
        %v2737 = vpop.f32.mrb[0].mxu0
        %v2738 = vpop.f32.mrb[0].mxu0
        %v2739 = vadd.f32 0.0, %v2738
        %v2740 = vpop.f32.mrb[0].mxu0
        %2741 = vmatprep.mubr.bf16.mxu0 %v1966
        %2742 = vmatmul.mubr.bf16.gmra.mrb[0].mxu0 %v1965
        %v2743 = vpop.f32.mrb[0].mxu0
        %v2744 = vadd.f32 0.0, %v2743
        %v2745 = vpop.f32.mrb[0].mxu0
        %v2746 = vpop.f32.mrb[0].mxu0
        %v2747 = vadd.f32 0.0, %v2746
        %v2748 = vpop.f32.mrb[0].mxu0
        %2749 = vmatprep.mubr.bf16.mxu0 %v1968
        %2750 = vmatmul.mubr.bf16.gmra.mrb[0].mxu0 %v1967
        %v2751 = vpop.f32.mrb[0].mxu0
        %v2752 = vadd.f32 0.0, %v2751
        %v2753 = vpop.f32.mrb[0].mxu0
        %v2754 = vpop.f32.mrb[0].mxu0
        %v2755 = vadd.f32 0.0, %v2754
        %v2756 = vpop.f32.mrb[0].mxu0
        %2757 = vmatprep.mubr.bf16.mxu0 %v1970
        %2758 = vmatmul.mubr.bf16.gmra.mrb[0].mxu0 %v1969
        %v2759 = vpop.f32.mrb[0].mxu0
        %v2760 = vadd.f32 0.0, %v2759
        %v2761 = vpop.f32.mrb[0].mxu0
        %v2762 = vpop.f32.mrb[0].mxu0
        %v2763 = vadd.f32 0.0, %v2762
        %v2764 = vpop.f32.mrb[0].mxu0
        %2765 = vmatprep.mubr.bf16.mxu0 %v1972
        %2766 = vmatmul.mubr.bf16.gmra.mrb[0].mxu0 %v1971
        %v2767 = vpop.f32.mrb[0].mxu0
        %v2768 = vadd.f32 0.0, %v2767
        %v2769 = vpop.f32.mrb[0].mxu0
        %v2770 = vpop.f32.mrb[0].mxu0
        %v2771 = vadd.f32 0.0, %v2770
        %v2772 = vpop.f32.mrb[0].mxu0
        %2773 = vmatprep.mubr.bf16.mxu0 %v1974
        %2774 = vmatmul.mubr.bf16.gmra.mrb[0].mxu0 %v1973
        %v2775 = vpop.f32.mrb[0].mxu0
        %v2776 = vadd.f32 0.0, %v2775
        %v2777 = vpop.f32.mrb[0].mxu0
        %v2778 = vpop.f32.mrb[0].mxu0
        %v2779 = vadd.f32 0.0, %v2778
        %v2780 = vpop.f32.mrb[0].mxu0
        %2781 = vmatprep.mubr.bf16.mxu0 %v1976
        %2782 = vmatmul.mubr.bf16.gmra.mrb[0].mxu0 %v1975
        %v2783 = vpop.f32.mrb[0].mxu0
        %v2784 = vadd.f32 0.0, %v2783
        %v2785 = vpop.f32.mrb[0].mxu0
        %v2786 = vpop.f32.mrb[0].mxu0
        %v2787 = vadd.f32 0.0, %v2786
        %v2788 = vpop.f32.mrb[0].mxu0
        %2789 = vmatprep.mubr.bf16.mxu0 %v1978
        %2790 = vmatmul.mubr.bf16.gmra.mrb[0].mxu0 %v1977
        %v2791 = vpop.f32.mrb[0].mxu0
        %v2792 = vadd.f32 0.0, %v2791
        %v2793 = vpop.f32.mrb[0].mxu0
        %v2794 = vpop.f32.mrb[0].mxu0
        %v2795 = vadd.f32 0.0, %v2794
        %v2796 = vpop.f32.mrb[0].mxu0
        %2797 = vmatprep.mubr.bf16.mxu0 %v1980
        %2798 = vmatmul.mubr.bf16.gmra.mrb[0].mxu0 %v1979
        %v2799 = vpop.f32.mrb[0].mxu0
        %v2800 = vadd.f32 0.0, %v2799
        %v2801 = vpop.f32.mrb[0].mxu0
        %v2802 = vpop.f32.mrb[0].mxu0
        %v2803 = vadd.f32 0.0, %v2802
        %v2804 = vpop.f32.mrb[0].mxu0
        %2805 = vmatprep.mubr.bf16.mxu0 %v1982
        %2806 = vmatmul.mubr.bf16.gmra.mrb[0].mxu0 %v1981
        %v2807 = vpop.f32.mrb[0].mxu0
        %v2808 = vadd.f32 0.0, %v2807
        %v2809 = vpop.f32.mrb[0].mxu0
        %v2810 = vpop.f32.mrb[0].mxu0
        %v2811 = vadd.f32 0.0, %v2810
        %v2812 = vpop.f32.mrb[0].mxu0
        %2813 = vmatprep.mubr.bf16.mxu0 %v1984
        %2814 = vmatmul.mubr.bf16.gmra.mrb[0].mxu0 %v1983
        %v2815 = vpop.f32.mrb[0].mxu0
        %v2816 = vadd.f32 0.0, %v2815
        %v2817 = vpop.f32.mrb[0].mxu0
        %v2818 = vpop.f32.mrb[0].mxu0
        %v2819 = vadd.f32 0.0, %v2818
        %v2820 = vpop.f32.mrb[0].mxu0
        %2821 = vmatprep.mubr.bf16.mxu0 %v1986
        %2822 = vmatmul.mubr.bf16.gmra.mrb[0].mxu0 %v1985
        %v2823 = vpop.f32.mrb[0].mxu0
        %v2824 = vadd.f32 0.0, %v2823
        %v2825 = vpop.f32.mrb[0].mxu0
        %v2826 = vpop.f32.mrb[0].mxu0
        %v2827 = vadd.f32 0.0, %v2826
        %v2828 = vpop.f32.mrb[0].mxu0
        %2829 = vmatprep.mubr.bf16.mxu0 %v1988
        %2830 = vmatmul.mubr.bf16.gmra.mrb[0].mxu0 %v1987
        %v2831 = vpop.f32.mrb[0].mxu0
        %v2832 = vadd.f32 0.0, %v2831
        %v2833 = vpop.f32.mrb[0].mxu0
        %v2834 = vpop.f32.mrb[0].mxu0
        %v2835 = vadd.f32 0.0, %v2834
        %v2836 = vpop.f32.mrb[0].mxu0
        %2837 = vmatprep.mubr.bf16.mxu0 %v1990
        %2838 = vmatmul.mubr.bf16.gmra.mrb[0].mxu0 %v1989
        %v2839 = vpop.f32.mrb[0].mxu0
        %v2840 = vadd.f32 0.0, %v2839
        %v2841 = vpop.f32.mrb[0].mxu0
        %v2842 = vpop.f32.mrb[0].mxu0
        %v2843 = vadd.f32 0.0, %v2842
        %v2844 = vpop.f32.mrb[0].mxu0
        %2845 = vmatprep.mubr.bf16.mxu0 %v1992
        %2846 = vmatmul.mubr.bf16.gmra.mrb[0].mxu0 %v1991
        %v2847 = vpop.f32.mrb[0].mxu0
        %v2848 = vadd.f32 0.0, %v2847
        %v2849 = vpop.f32.mrb[0].mxu0
        %v2850 = vpop.f32.mrb[0].mxu0
        %v2851 = vadd.f32 0.0, %v2850
        %v2852 = vpop.f32.mrb[0].mxu0
        %2853 = vmatprep.mubr.bf16.mxu0 %v1994
        %2854 = vmatmul.mubr.bf16.gmra.mrb[0].mxu0 %v1993
        %v2855 = vpop.f32.mrb[0].mxu0
        %v2856 = vadd.f32 0.0, %v2855
        %v2857 = vpop.f32.mrb[0].mxu0
        %v2858 = vpop.f32.mrb[0].mxu0
        %v2859 = vadd.f32 0.0, %v2858
        %v2860 = vpop.f32.mrb[0].mxu0
        %2861 = vmatprep.mubr.bf16.mxu0 %v1996
        %2862 = vmatmul.mubr.bf16.gmra.mrb[0].mxu0 %v1995
        %v2863 = vpop.f32.mrb[0].mxu0
        %v2864 = vadd.f32 0.0, %v2863
        %v2865 = vpop.f32.mrb[0].mxu0
        %v2866 = vpop.f32.mrb[0].mxu0
        %v2867 = vadd.f32 0.0, %v2866
        %v2868 = vpop.f32.mrb[0].mxu0
        %2869 = vmatprep.mubr.bf16.mxu0 %v1998
        %2870 = vmatmul.mubr.bf16.gmra.mrb[0].mxu0 %v1997
        %v2871 = vpop.f32.mrb[0].mxu0
        %v2872 = vadd.f32 0.0, %v2871
        %v2873 = vpop.f32.mrb[0].mxu0
        %v2874 = vpop.f32.mrb[0].mxu0
        %v2875 = vadd.f32 0.0, %v2874
        %v2876 = vpop.f32.mrb[0].mxu0
        %2877 = vmatprep.mubr.bf16.mxu0 %v2000
        %2878 = vmatmul.mubr.bf16.gmra.mrb[0].mxu0 %v1999
        %v2879 = vpop.f32.mrb[0].mxu0
        %v2880 = vadd.f32 0.0, %v2879
        %v2881 = vpop.f32.mrb[0].mxu0
        %v2882 = vpop.f32.mrb[0].mxu0
        %v2883 = vadd.f32 0.0, %v2882
        %v2884 = vpop.f32.mrb[0].mxu0
        %2885 = vmatprep.mubr.bf16.mxu0 %v2002
        %2886 = vmatmul.mubr.bf16.gmra.mrb[0].mxu0 %v2001
        %v2887 = vpop.f32.mrb[0].mxu0
        %v2888 = vadd.f32 0.0, %v2887
        %v2889 = vpop.f32.mrb[0].mxu0
        %v2890 = vpop.f32.mrb[0].mxu0
        %v2891 = vadd.f32 0.0, %v2890
        %v2892 = vpop.f32.mrb[0].mxu0
        %2893 = vmatprep.mubr.bf16.mxu0 %v2004
        %2894 = vmatmul.mubr.bf16.gmra.mrb[0].mxu0 %v2003
        %v2895 = vpop.f32.mrb[0].mxu0
        %v2896 = vadd.f32 0.0, %v2895
        %v2897 = vpop.f32.mrb[0].mxu0
        %v2898 = vpop.f32.mrb[0].mxu0
        %v2899 = vadd.f32 0.0, %v2898
        %v2900 = vpop.f32.mrb[0].mxu0
        %2901 = vmatprep.mubr.bf16.mxu0 %v2006
        %2902 = vmatmul.mubr.bf16.gmra.mrb[0].mxu0 %v2005
        %v2903 = vpop.f32.mrb[0].mxu0
        %v2904 = vadd.f32 0.0, %v2903
        %v2905 = vpop.f32.mrb[0].mxu0
        %v2906 = vpop.f32.mrb[0].mxu0
        %v2907 = vadd.f32 0.0, %v2906
        %v2908 = vpop.f32.mrb[0].mxu0
        %2909 = vmatprep.mubr.bf16.mxu0 %v2008
        %2910 = vmatmul.mubr.bf16.gmra.mrb[0].mxu0 %v2007
        %v2911 = vpop.f32.mrb[0].mxu0
        %v2912 = vadd.f32 0.0, %v2911
        %v2913 = vpop.f32.mrb[0].mxu0
        %v2914 = vpop.f32.mrb[0].mxu0
        %v2915 = vadd.f32 0.0, %v2914
        %v2916 = vpop.f32.mrb[0].mxu0
        %2917 = vmatprep.mubr.bf16.mxu0 %v2010
        %2918 = vmatmul.mubr.bf16.gmra.mrb[0].mxu0 %v2009
        %v2919 = vpop.f32.mrb[0].mxu0
        %v2920 = vadd.f32 0.0, %v2919
        %v2921 = vpop.f32.mrb[0].mxu0
        %v2922 = vpop.f32.mrb[0].mxu0
        %v2923 = vadd.f32 0.0, %v2922
        %v2924 = vpop.f32.mrb[0].mxu0
        %2925 = vmatprep.mubr.bf16.mxu0 %v2012
        %2926 = vmatmul.mubr.bf16.gmra.mrb[0].mxu0 %v2011
        %v2927 = vpop.f32.mrb[0].mxu0
        %v2928 = vadd.f32 0.0, %v2927
        %v2929 = vpop.f32.mrb[0].mxu0
        %v2930 = vpop.f32.mrb[0].mxu0
        %v2931 = vadd.f32 0.0, %v2930
        %v2932 = vpop.f32.mrb[0].mxu0
        %2933 = vmatprep.mubr.bf16.mxu0 %v2014
        %2934 = vmatmul.mubr.bf16.gmra.mrb[0].mxu0 %v2013
        %v2935 = vpop.f32.mrb[0].mxu0
        %v2936 = vadd.f32 0.0, %v2935
        %v2937 = vpop.f32.mrb[0].mxu0
        %v2938 = vpop.f32.mrb[0].mxu0
        %v2939 = vadd.f32 0.0, %v2938
        %v2940 = vpop.f32.mrb[0].mxu0
        %2941 = vmatprep.mubr.bf16.mxu0 %v2016
        %2942 = vmatmul.mubr.bf16.gmra.mrb[0].mxu0 %v2015
        %v2943 = vpop.f32.mrb[0].mxu0
        %v2944 = vadd.f32 0.0, %v2943
        %v2945 = vpop.f32.mrb[0].mxu0
        %v2946 = vpop.f32.mrb[0].mxu0
        %v2947 = vadd.f32 0.0, %v2946
        %v2948 = vpop.f32.mrb[0].mxu0
        %2949 = vmatprep.mubr.bf16.mxu0 %v2018
        %2950 = vmatmul.mubr.bf16.gmra.mrb[0].mxu0 %v2017
        %v2951 = vpop.f32.mrb[0].mxu0
        %v2952 = vadd.f32 0.0, %v2951
        %v2953 = vpop.f32.mrb[0].mxu0
        %v2954 = vpop.f32.mrb[0].mxu0
        %v2955 = vadd.f32 0.0, %v2954
        %v2956 = vpop.f32.mrb[0].mxu0
        %2957 = vmatprep.mubr.bf16.mxu0 %v2020
        %2958 = vmatmul.mubr.bf16.gmra.mrb[0].mxu0 %v2019
        %v2959 = vpop.f32.mrb[0].mxu0
        %v2960 = vadd.f32 0.0, %v2959
        %v2961 = vpop.f32.mrb[0].mxu0
        %v2962 = vpop.f32.mrb[0].mxu0
        %v2963 = vadd.f32 0.0, %v2962
        %v2964 = vpop.f32.mrb[0].mxu0
        %2965 = vmatprep.mubr.bf16.mxu0 %v2022
        %2966 = vmatmul.mubr.bf16.gmra.mrb[0].mxu0 %v2021
        %v2967 = vpop.f32.mrb[0].mxu0
        %v2968 = vadd.f32 0.0, %v2967
        %v2969 = vpop.f32.mrb[0].mxu0
        %v2970 = vpop.f32.mrb[0].mxu0
        %v2971 = vadd.f32 0.0, %v2970
        %v2972 = vpop.f32.mrb[0].mxu0
        %2973 = vmatprep.mubr.bf16.mxu0 %v2024
        %2974 = vmatmul.mubr.bf16.gmra.mrb[0].mxu0 %v2023
        %v2975 = vpop.f32.mrb[0].mxu0
        %v2976 = vadd.f32 0.0, %v2975
        %v2977 = vpop.f32.mrb[0].mxu0
        %v2978 = vpop.f32.mrb[0].mxu0
        %v2979 = vadd.f32 0.0, %v2978
        %v2980 = vpop.f32.mrb[0].mxu0
        %2981 = vmatprep.mubr.bf16.mxu0 %v2026
        %2982 = vmatmul.mubr.bf16.gmra.mrb[0].mxu0 %v2025
        %v2983 = vpop.f32.mrb[0].mxu0
        %v2984 = vadd.f32 0.0, %v2983
        %v2985 = vpop.f32.mrb[0].mxu0
        %v2986 = vpop.f32.mrb[0].mxu0
        %v2987 = vadd.f32 0.0, %v2986
        %v2988 = vpop.f32.mrb[0].mxu0
        %2989 = vmatprep.mubr.bf16.mxu0 %v2028
        %2990 = vmatmul.mubr.bf16.gmra.mrb[0].mxu0 %v2027
        %v2991 = vpop.f32.mrb[0].mxu0
        %v2992 = vadd.f32 0.0, %v2991
        %v2993 = vpop.f32.mrb[0].mxu0
        %v2994 = vpop.f32.mrb[0].mxu0
        %v2995 = vadd.f32 0.0, %v2994
        %v2996 = vpop.f32.mrb[0].mxu0
        %2997 = vmatprep.mubr.bf16.mxu0 %v2030
        %2998 = vmatmul.mubr.bf16.gmra.mrb[0].mxu0 %v2029
        %v2999 = vpop.f32.mrb[0].mxu0
        %v3000 = vadd.f32 0.0, %v2999
        %v3001 = vpop.f32.mrb[0].mxu0
        %v3002 = vpop.f32.mrb[0].mxu0
        %v3003 = vadd.f32 0.0, %v3002
        %v3004 = vpop.f32.mrb[0].mxu0
        %3005 = vmatprep.mubr.bf16.mxu0 %v2032
        %3006 = vmatmul.mubr.bf16.gmra.mrb[0].mxu0 %v2031
        %v3007 = vpop.f32.mrb[0].mxu0
        %v3008 = vadd.f32 0.0, %v3007
        %v3009 = vpop.f32.mrb[0].mxu0
        %v3010 = vpop.f32.mrb[0].mxu0
        %v3011 = vadd.f32 0.0, %v3010
        %v3012 = vpop.f32.mrb[0].mxu0
        %3013 = vmatprep.mubr.bf16.mxu0 %v2034
        %3014 = vmatmul.mubr.bf16.gmra.mrb[0].mxu0 %v2033
        %v3015 = vpop.f32.mrb[0].mxu0
        %v3016 = vadd.f32 0.0, %v3015
        %v3017 = vpop.f32.mrb[0].mxu0
        %v3018 = vpop.f32.mrb[0].mxu0
        %v3019 = vadd.f32 0.0, %v3018
        %v3020 = vpop.f32.mrb[0].mxu0
        %3021 = vmatprep.mubr.bf16.mxu0 %v2036
        %3022 = vmatmul.mubr.bf16.gmra.mrb[0].mxu0 %v2035
        %v3023 = vpop.f32.mrb[0].mxu0
        %v3024 = vadd.f32 0.0, %v3023
        %v3025 = vpop.f32.mrb[0].mxu0
        %v3026 = vpop.f32.mrb[0].mxu0
        %v3027 = vadd.f32 0.0, %v3026
        %v3028 = vpop.f32.mrb[0].mxu0
        %3029 = vmatprep.mubr.bf16.mxu0 %v2038
        %3030 = vmatmul.mubr.bf16.gmra.mrb[0].mxu0 %v2037
        %v3031 = vpop.f32.mrb[0].mxu0
        %v3032 = vadd.f32 0.0, %v3031
        %v3033 = vpop.f32.mrb[0].mxu0
        %v3034 = vpop.f32.mrb[0].mxu0
        %v3035 = vadd.f32 0.0, %v3034
        %v3036 = vpop.f32.mrb[0].mxu0
        %3037 = vmatprep.mubr.bf16.mxu0 %v2040
        %3038 = vmatmul.mubr.bf16.gmra.mrb[0].mxu0 %v2039
        %v3039 = vpop.f32.mrb[0].mxu0
        %v3040 = vadd.f32 0.0, %v3039
        %v3041 = vpop.f32.mrb[0].mxu0
        %v3042 = vpop.f32.mrb[0].mxu0
        %v3043 = vadd.f32 0.0, %v3042
        %v3044 = vpop.f32.mrb[0].mxu0
        %3045 = vmatprep.mubr.bf16.mxu0 %v2042
        %3046 = vmatmul.mubr.bf16.gmra.mrb[0].mxu0 %v2041
        %v3047 = vpop.f32.mrb[0].mxu0
        %v3048 = vadd.f32 0.0, %v3047
        %v3049 = vpop.f32.mrb[0].mxu0
        %v3050 = vpop.f32.mrb[0].mxu0
        %v3051 = vadd.f32 0.0, %v3050
        %v3052 = vpop.f32.mrb[0].mxu0
        %3053 = vmatprep.mubr.bf16.mxu0 %v2044
        %3054 = vmatmul.mubr.bf16.gmra.mrb[0].mxu0 %v2043
        %v3055 = vpop.f32.mrb[0].mxu0
        %v3056 = vadd.f32 0.0, %v3055
        %v3057 = vpop.f32.mrb[0].mxu0
        %v3058 = vpop.f32.mrb[0].mxu0
        %v3059 = vadd.f32 0.0, %v3058
        %v3060 = vpop.f32.mrb[0].mxu0
        %3061 = vmatprep.mubr.bf16.mxu0 %v2046
        %3062 = vmatmul.mubr.bf16.gmra.mrb[0].mxu0 %v2045
        %v3063 = vpop.f32.mrb[0].mxu0
        %v3064 = vadd.f32 0.0, %v3063
        %v3065 = vpop.f32.mrb[0].mxu0
        %v3066 = vpop.f32.mrb[0].mxu0
        %v3067 = vadd.f32 0.0, %v3066
        %v3068 = vpop.f32.mrb[0].mxu0
        %3069 = vmatprep.mubr.bf16.mxu0 %v2048
        %3070 = vmatmul.mubr.bf16.gmra.mrb[0].mxu0 %v2047
        %v3071 = vpop.f32.mrb[0].mxu0
        %v3072 = vadd.f32 0.0, %v3071
        %v3073 = vpop.f32.mrb[0].mxu0
        %v3074 = vpop.f32.mrb[0].mxu0
        %v3075 = vadd.f32 0.0, %v3074
        %v3076 = vpop.f32.mrb[0].mxu0
        %3077 = vmatprep.mubr.bf16.mxu0 %v2050
        %3078 = vmatmul.mubr.bf16.gmra.mrb[0].mxu0 %v2049
        %v3079 = vpop.f32.mrb[0].mxu0
        %v3080 = vadd.f32 0.0, %v3079
        %v3081 = vpop.f32.mrb[0].mxu0
        %v3082 = vpop.f32.mrb[0].mxu0
        %v3083 = vadd.f32 0.0, %v3082
        %v3084 = vpop.f32.mrb[0].mxu0
        %3085 = vmatprep.mubr.bf16.mxu0 %v2052
        %3086 = vmatmul.mubr.bf16.gmra.mrb[0].mxu0 %v2051
        %v3087 = vpop.f32.mrb[0].mxu0
        %v3088 = vadd.f32 0.0, %v3087
        %v3089 = vpop.f32.mrb[0].mxu0
        %v3090 = vpop.f32.mrb[0].mxu0
        %v3091 = vadd.f32 0.0, %v3090
        %v3092 = vpop.f32.mrb[0].mxu0
        %3093 = vmatprep.mubr.bf16.mxu0 %v2054
        %3094 = vmatmul.mubr.bf16.gmra.mrb[0].mxu0 %v2053
        %v3095 = vpop.f32.mrb[0].mxu0
        %v3096 = vadd.f32 0.0, %v3095
        %v3097 = vpop.f32.mrb[0].mxu0
        %v3098 = vpop.f32.mrb[0].mxu0
        %v3099 = vadd.f32 0.0, %v3098
        %v3100 = vpop.f32.mrb[0].mxu0
        %3101 = vmatprep.mubr.bf16.mxu0 %v2056
        %3102 = vmatmul.mubr.bf16.gmra.mrb[0].mxu0 %v2055
        %v3103 = vpop.f32.mrb[0].mxu0
        %v3104 = vadd.f32 0.0, %v3103
        %v3105 = vpop.f32.mrb[0].mxu0
        %v3106 = vpop.f32.mrb[0].mxu0
        %v3107 = vadd.f32 0.0, %v3106
        %v3108 = vpop.f32.mrb[0].mxu0
        %3109 = vmatprep.mubr.bf16.mxu0 %v2058
        %3110 = vmatmul.mubr.bf16.gmra.mrb[0].mxu0 %v2057
        %v3111 = vpop.f32.mrb[0].mxu0
        %v3112 = vadd.f32 0.0, %v3111
        %v3113 = vpop.f32.mrb[0].mxu0
        %v3114 = vpop.f32.mrb[0].mxu0
        %v3115 = vadd.f32 0.0, %v3114
        %v3116 = vpop.f32.mrb[0].mxu0
        %3117 = vmatprep.mubr.bf16.mxu0 %v2060
        %3118 = vmatmul.mubr.bf16.gmra.mrb[0].mxu0 %v2059
        %v3119 = vpop.f32.mrb[0].mxu0
        %v3120 = vadd.f32 0.0, %v3119
        %v3121 = vpop.f32.mrb[0].mxu0
        %v3122 = vpop.f32.mrb[0].mxu0
        %v3123 = vadd.f32 0.0, %v3122
        %v3124 = vpop.f32.mrb[0].mxu0
        %3125 = vmatprep.mubr.bf16.mxu0 %v2062
        %3126 = vmatmul.mubr.bf16.gmra.mrb[0].mxu0 %v2061
        %v3127 = vpop.f32.mrb[0].mxu0
        %v3128 = vadd.f32 0.0, %v3127
        %v3129 = vpop.f32.mrb[0].mxu0
        %v3130 = vpop.f32.mrb[0].mxu0
        %v3131 = vadd.f32 0.0, %v3130
        %v3132 = vpop.f32.mrb[0].mxu0
        %3133 = vmatprep.mubr.bf16.mxu0 %v2064
        %3134 = vmatmul.mubr.bf16.gmra.mrb[0].mxu0 %v2063
        %v3135 = vpop.f32.mrb[0].mxu0
        %v3136 = vadd.f32 0.0, %v3135
        %v3137 = vpop.f32.mrb[0].mxu0
        %v3138 = vpop.f32.mrb[0].mxu0
        %v3139 = vadd.f32 0.0, %v3138
        %v3140 = vpop.f32.mrb[0].mxu0
        %3141 = vmatprep.mubr.bf16.mxu0 %v2066
        %3142 = vmatmul.mubr.bf16.gmra.mrb[0].mxu0 %v2065
        %v3143 = vpop.f32.mrb[0].mxu0
        %v3144 = vadd.f32 0.0, %v3143
        %v3145 = vpop.f32.mrb[0].mxu0
        %v3146 = vpop.f32.mrb[0].mxu0
        %v3147 = vadd.f32 0.0, %v3146
        %v3148 = vpop.f32.mrb[0].mxu0
        %3149 = vmatprep.mubr.bf16.mxu0 %v2068
        %3150 = vmatmul.mubr.bf16.gmra.mrb[0].mxu0 %v2067
        %v3151 = vpop.f32.mrb[0].mxu0
        %v3152 = vadd.f32 0.0, %v3151
        %v3153 = vpop.f32.mrb[0].mxu0
        %v3154 = vpop.f32.mrb[0].mxu0
        %v3155 = vadd.f32 0.0, %v3154
        %v3156 = vpop.f32.mrb[0].mxu0
        %3157 = vmatprep.mubr.bf16.mxu0 %v2070
        %3158 = vmatmul.mubr.bf16.gmra.mrb[0].mxu0 %v2069
        %v3159 = vpop.f32.mrb[0].mxu0
        %v3160 = vadd.f32 0.0, %v3159
        %v3161 = vpop.f32.mrb[0].mxu0
        %v3162 = vpop.f32.mrb[0].mxu0
        %v3163 = vadd.f32 0.0, %v3162
        %v3164 = vpop.f32.mrb[0].mxu0
        %3165 = vmatprep.mubr.bf16.mxu0 %v2072
        %3166 = vmatmul.mubr.bf16.gmra.mrb[0].mxu0 %v2071
        %v3167 = vpop.f32.mrb[0].mxu0
        %v3168 = vadd.f32 0.0, %v3167
        %v3169 = vpop.f32.mrb[0].mxu0
        %v3170 = vpop.f32.mrb[0].mxu0
        %v3171 = vadd.f32 0.0, %v3170
        %v3172 = vpop.f32.mrb[0].mxu0
        %3173 = vmatprep.mubr.bf16.mxu0 %v2074
        %3174 = vmatmul.mubr.bf16.gmra.mrb[0].mxu0 %v2073
        %v3175 = vpop.f32.mrb[0].mxu0
        %v3176 = vadd.f32 0.0, %v3175
        %v3177 = vpop.f32.mrb[0].mxu0
        %v3178 = vpop.f32.mrb[0].mxu0
        %v3179 = vadd.f32 0.0, %v3178
        %v3180 = vpop.f32.mrb[0].mxu0
        %3181 = vmatprep.mubr.bf16.mxu0 %v2076
        %3182 = vmatmul.mubr.bf16.gmra.mrb[0].mxu0 %v2075
        %v3183 = vpop.f32.mrb[0].mxu0
        %v3184 = vadd.f32 0.0, %v3183
        %v3185 = vpop.f32.mrb[0].mxu0
        %v3186 = vpop.f32.mrb[0].mxu0
        %v3187 = vadd.f32 0.0, %v3186
        %v3188 = vpop.f32.mrb[0].mxu0
        %3189 = vmatprep.mubr.bf16.mxu0 %v2078
        %3190 = vmatmul.mubr.bf16.gmra.mrb[0].mxu0 %v2077
        %v3191 = vpop.f32.mrb[0].mxu0
        %v3192 = vadd.f32 0.0, %v3191
        %v3193 = vpop.f32.mrb[0].mxu0
        %v3194 = vpop.f32.mrb[0].mxu0
        %v3195 = vadd.f32 0.0, %v3194
        %v3196 = vpop.f32.mrb[0].mxu0
        %3197 = vmatprep.mubr.bf16.mxu0 %v2080
        %3198 = vmatmul.mubr.bf16.gmra.mrb[0].mxu0 %v2079
        %v3199 = vpop.f32.mrb[0].mxu0
        %v3200 = vadd.f32 0.0, %v3199
        %v3201 = vpop.f32.mrb[0].mxu0
        %v3202 = vpop.f32.mrb[0].mxu0
        %v3203 = vadd.f32 0.0, %v3202
        %v3204 = vpop.f32.mrb[0].mxu0
        %3205 = vmatprep.mubr.bf16.mxu0 %v2082
        %3206 = vmatmul.mubr.bf16.gmra.mrb[0].mxu0 %v2081
        %v3207 = vpop.f32.mrb[0].mxu0
        %v3208 = vadd.f32 0.0, %v3207
        %v3209 = vpop.f32.mrb[0].mxu0
        %v3210 = vpop.f32.mrb[0].mxu0
        %v3211 = vadd.f32 0.0, %v3210
        %v3212 = vpop.f32.mrb[0].mxu0
        %3213 = vmatprep.mubr.bf16.mxu0 %v2084
        %3214 = vmatmul.mubr.bf16.gmra.mrb[0].mxu0 %v2083
        %v3215 = vpop.f32.mrb[0].mxu0
        %v3216 = vadd.f32 0.0, %v3215
        %v3217 = vpop.f32.mrb[0].mxu0
        %v3218 = vpop.f32.mrb[0].mxu0
        %v3219 = vadd.f32 0.0, %v3218
        %v3220 = vpop.f32.mrb[0].mxu0
        %3221 = vmatprep.mubr.bf16.mxu0 %v2086
        %3222 = vmatmul.mubr.bf16.gmra.mrb[0].mxu0 %v2085
        %v3223 = vpop.f32.mrb[0].mxu0
        %v3224 = vadd.f32 0.0, %v3223
        %v3225 = vpop.f32.mrb[0].mxu0
        %v3226 = vpop.f32.mrb[0].mxu0
        %v3227 = vadd.f32 0.0, %v3226
        %v3228 = vpop.f32.mrb[0].mxu0
        %3229 = vmatprep.mubr.bf16.mxu0 %v2088
        %3230 = vmatmul.mubr.bf16.gmra.mrb[0].mxu0 %v2087
        %v3231 = vpop.f32.mrb[0].mxu0
        %v3232 = vadd.f32 0.0, %v3231
        %v3233 = vpop.f32.mrb[0].mxu0
        %v3234 = vpop.f32.mrb[0].mxu0
        %v3235 = vadd.f32 0.0, %v3234
        %v3236 = vpop.f32.mrb[0].mxu0
        %3237 = vmatprep.mubr.bf16.mxu0 %v2090
        %3238 = vmatmul.mubr.bf16.gmra.mrb[0].mxu0 %v2089
        %v3239 = vpop.f32.mrb[0].mxu0
        %v3240 = vadd.f32 0.0, %v3239
        %v3241 = vpop.f32.mrb[0].mxu0
        %v3242 = vpop.f32.mrb[0].mxu0
        %v3243 = vadd.f32 0.0, %v3242
        %v3244 = vpop.f32.mrb[0].mxu0
        %3245 = vmatprep.mubr.bf16.mxu0 %v2092
        %3246 = vmatmul.mubr.bf16.gmra.mrb[0].mxu0 %v2091
        %v3247 = vpop.f32.mrb[0].mxu0
        %v3248 = vadd.f32 0.0, %v3247
        %v3249 = vpop.f32.mrb[0].mxu0
        %v3250 = vpop.f32.mrb[0].mxu0
        %v3251 = vadd.f32 0.0, %v3250
        %v3252 = vpop.f32.mrb[0].mxu0
        %3253 = vmatprep.mubr.bf16.mxu0 %v2094
        %3254 = vmatmul.mubr.bf16.gmra.mrb[0].mxu0 %v2093
        %v3255 = vpop.f32.mrb[0].mxu0
        %v3256 = vadd.f32 0.0, %v3255
        %v3257 = vpop.f32.mrb[0].mxu0
        %v3258 = vpop.f32.mrb[0].mxu0
        %v3259 = vadd.f32 0.0, %v3258
        %v3260 = vpop.f32.mrb[0].mxu0
        %3261 = vmatprep.mubr.bf16.mxu0 %v2096
        %3262 = vmatmul.mubr.bf16.gmra.mrb[0].mxu0 %v2095
        %v3263 = vpop.f32.mrb[0].mxu0
        %v3264 = vadd.f32 0.0, %v3263
        %v3265 = vpop.f32.mrb[0].mxu0
        %v3266 = vpop.f32.mrb[0].mxu0
        %v3267 = vadd.f32 0.0, %v3266
        %v3268 = vpop.f32.mrb[0].mxu0
        %3269 = vmatprep.mubr.bf16.mxu0 %v2098
        %3270 = vmatmul.mubr.bf16.gmra.mrb[0].mxu0 %v2097
        %v3271 = vpop.f32.mrb[0].mxu0
        %v3272 = vadd.f32 0.0, %v3271
        %v3273 = vpop.f32.mrb[0].mxu0
        %v3274 = vpop.f32.mrb[0].mxu0
        %v3275 = vadd.f32 0.0, %v3274
        %v3276 = vpop.f32.mrb[0].mxu0
        %3277 = vmatprep.mubr.bf16.mxu0 %v2100
        %3278 = vmatmul.mubr.bf16.gmra.mrb[0].mxu0 %v2099
        %v3279 = vpop.f32.mrb[0].mxu0
        %v3280 = vadd.f32 0.0, %v3279
        %v3281 = vpop.f32.mrb[0].mxu0
        %v3282 = vpop.f32.mrb[0].mxu0
        %v3283 = vadd.f32 0.0, %v3282
        %v3284 = vpop.f32.mrb[0].mxu0
        %3285 = vmatprep.mubr.bf16.mxu0 %v2102
        %3286 = vmatmul.mubr.bf16.gmra.mrb[0].mxu0 %v2101
        %v3287 = vpop.f32.mrb[0].mxu0
        %v3288 = vadd.f32 0.0, %v3287
        %v3289 = vpop.f32.mrb[0].mxu0
        %v3290 = vpop.f32.mrb[0].mxu0
        %v3291 = vadd.f32 0.0, %v3290
        %v3292 = vpop.f32.mrb[0].mxu0
        %3293 = vmatprep.mubr.bf16.mxu0 %v2104
        %3294 = vmatmul.mubr.bf16.gmra.mrb[0].mxu0 %v2103
        %v3295 = vpop.f32.mrb[0].mxu0
        %v3296 = vadd.f32 0.0, %v3295
        %v3297 = vpop.f32.mrb[0].mxu0
        %v3298 = vpop.f32.mrb[0].mxu0
        %v3299 = vadd.f32 0.0, %v3298
        %v3300 = vpop.f32.mrb[0].mxu0
        %3301 = vmatprep.mubr.bf16.mxu0 %v2106
        %3302 = vmatmul.mubr.bf16.gmra.mrb[0].mxu0 %v2105
        %v3303 = vpop.f32.mrb[0].mxu0
        %v3304 = vadd.f32 0.0, %v3303
        %v3305 = vpop.f32.mrb[0].mxu0
        %v3306 = vpop.f32.mrb[0].mxu0
        %v3307 = vadd.f32 0.0, %v3306
        %v3308 = vpop.f32.mrb[0].mxu0
        %3309 = vmatprep.mubr.bf16.mxu0 %v2108
        %3310 = vmatmul.mubr.bf16.gmra.mrb[0].mxu0 %v2107
        %v3311 = vpop.f32.mrb[0].mxu0
        %v3312 = vadd.f32 0.0, %v3311
        %v3313 = vpop.f32.mrb[0].mxu0
        %v3314 = vpop.f32.mrb[0].mxu0
        %v3315 = vadd.f32 0.0, %v3314
        %v3316 = vpop.f32.mrb[0].mxu0
        %3317 = vmatprep.mubr.bf16.mxu0 %v2110
        %3318 = vmatmul.mubr.bf16.gmra.mrb[0].mxu0 %v2109
        %v3319 = vpop.f32.mrb[0].mxu0
        %v3320 = vadd.f32 0.0, %v3319
        %v3321 = vpop.f32.mrb[0].mxu0
        %v3322 = vpop.f32.mrb[0].mxu0
        %v3323 = vadd.f32 0.0, %v3322
        %v3324 = vpop.f32.mrb[0].mxu0
        %3325 = vmatprep.mubr.bf16.mxu0 %v2112
        %3326 = vmatmul.mubr.bf16.gmra.mrb[0].mxu0 %v2111
        %v3327 = vpop.f32.mrb[0].mxu0
        %v3328 = vadd.f32 0.0, %v3327
        %v3329 = vpop.f32.mrb[0].mxu0
        %v3330 = vpop.f32.mrb[0].mxu0
        %v3331 = vadd.f32 0.0, %v3330
        %v3332 = vpop.f32.mrb[0].mxu0
        %3333 = vmatprep.mubr.bf16.mxu0 %v2114
        %3334 = vmatmul.mubr.bf16.gmra.mrb[0].mxu0 %v2113
        %v3335 = vpop.f32.mrb[0].mxu0
        %v3336 = vadd.f32 0.0, %v3335
        %v3337 = vpop.f32.mrb[0].mxu0
        %v3338 = vpop.f32.mrb[0].mxu0
        %v3339 = vadd.f32 0.0, %v3338
        %v3340 = vpop.f32.mrb[0].mxu0
        %3341 = vmatprep.mubr.bf16.mxu0 %v2116
        %3342 = vmatmul.mubr.bf16.gmra.mrb[0].mxu0 %v2115
        %v3343 = vpop.f32.mrb[0].mxu0
        %v3344 = vadd.f32 0.0, %v3343
        %v3345 = vpop.f32.mrb[0].mxu0
        %v3346 = vpop.f32.mrb[0].mxu0
        %v3347 = vadd.f32 0.0, %v3346
        %v3348 = vpop.f32.mrb[0].mxu0
        %3349 = vmatprep.mubr.bf16.mxu0 %v2118
        %3350 = vmatmul.mubr.bf16.gmra.mrb[0].mxu0 %v2117
        %v3351 = vpop.f32.mrb[0].mxu0
        %v3352 = vadd.f32 0.0, %v3351
        %v3353 = vpop.f32.mrb[0].mxu0
        %v3354 = vpop.f32.mrb[0].mxu0
        %v3355 = vadd.f32 0.0, %v3354
        %v3356 = vpop.f32.mrb[0].mxu0
        %3357 = vmatprep.mubr.bf16.mxu0 %v2120
        %3358 = vmatmul.mubr.bf16.gmra.mrb[0].mxu0 %v2119
        %v3359 = vpop.f32.mrb[0].mxu0
        %v3360 = vadd.f32 0.0, %v3359
        %v3361 = vpop.f32.mrb[0].mxu0
        %v3362 = vpop.f32.mrb[0].mxu0
        %v3363 = vadd.f32 0.0, %v3362
        %v3364 = vpop.f32.mrb[0].mxu0
        %3365 = vmatprep.mubr.bf16.mxu0 %v2122
        %3366 = vmatmul.mubr.bf16.gmra.mrb[0].mxu0 %v2121
        %v3367 = vpop.f32.mrb[0].mxu0
        %v3368 = vadd.f32 0.0, %v3367
        %v3369 = vpop.f32.mrb[0].mxu0
        %v3370 = vpop.f32.mrb[0].mxu0
        %v3371 = vadd.f32 0.0, %v3370
        %v3372 = vpop.f32.mrb[0].mxu0
        %3373 = vmatprep.mubr.bf16.mxu0 %v2124
        %3374 = vmatmul.mubr.bf16.gmra.mrb[0].mxu0 %v2123
        %v3375 = vpop.f32.mrb[0].mxu0
        %v3376 = vadd.f32 0.0, %v3375
        %v3377 = vpop.f32.mrb[0].mxu0
        %v3378 = vpop.f32.mrb[0].mxu0
        %v3379 = vadd.f32 0.0, %v3378
        %v3380 = vpop.f32.mrb[0].mxu0
        %3381 = vmatprep.mubr.bf16.mxu0 %v2126
        %3382 = vmatmul.mubr.bf16.gmra.mrb[0].mxu0 %v2125
        %v3383 = vpop.f32.mrb[0].mxu0
        %v3384 = vadd.f32 0.0, %v3383
        %v3385 = vpop.f32.mrb[0].mxu0
        %v3386 = vpop.f32.mrb[0].mxu0
        %v3387 = vadd.f32 0.0, %v3386
        %v3388 = vpop.f32.mrb[0].mxu0
        %3389 = vmatprep.mubr.bf16.mxu0 %v2128
        %3390 = vmatmul.mubr.bf16.gmra.mrb[0].mxu0 %v2127
        %v3391 = vpop.f32.mrb[0].mxu0
        %v3392 = vadd.f32 0.0, %v3391
        %v3393 = vpop.f32.mrb[0].mxu0
        %v3394 = vpop.f32.mrb[0].mxu0
        %v3395 = vadd.f32 0.0, %v3394
        %v3396 = vpop.f32.mrb[0].mxu0
        %3397 = vmatprep.mubr.bf16.mxu0 %v2130
        %3398 = vmatmul.mubr.bf16.gmra.mrb[0].mxu0 %v2129
        %v3399 = vpop.f32.mrb[0].mxu0
        %v3400 = vadd.f32 0.0, %v3399
        %v3401 = vpop.f32.mrb[0].mxu0
        %v3402 = vpop.f32.mrb[0].mxu0
        %v3403 = vadd.f32 0.0, %v3402
        %v3404 = vpop.f32.mrb[0].mxu0
        %3405 = vmatprep.mubr.bf16.mxu0 %v2132
        %3406 = vmatmul.mubr.bf16.gmra.mrb[0].mxu0 %v2131
        %v3407 = vpop.f32.mrb[0].mxu0
        %v3408 = vadd.f32 0.0, %v3407
        %v3409 = vpop.f32.mrb[0].mxu0
        %v3410 = vpop.f32.mrb[0].mxu0
        %v3411 = vadd.f32 0.0, %v3410
        %v3412 = vpop.f32.mrb[0].mxu0
        %3413 = vmatprep.mubr.bf16.mxu0 %v2134
        %3414 = vmatmul.mubr.bf16.gmra.mrb[0].mxu0 %v2133
        %v3415 = vpop.f32.mrb[0].mxu0
        %v3416 = vadd.f32 0.0, %v3415
        %v3417 = vpop.f32.mrb[0].mxu0
        %v3418 = vpop.f32.mrb[0].mxu0
        %v3419 = vadd.f32 0.0, %v3418
        %v3420 = vpop.f32.mrb[0].mxu0
        %3421 = vmatprep.mubr.bf16.mxu0 %v2136
        %3422 = vmatmul.mubr.bf16.gmra.mrb[0].mxu0 %v2135
        %v3423 = vpop.f32.mrb[0].mxu0
        %v3424 = vadd.f32 0.0, %v3423
        %v3425 = vpop.f32.mrb[0].mxu0
        %v3426 = vpop.f32.mrb[0].mxu0
        %v3427 = vadd.f32 0.0, %v3426
        %v3428 = vpop.f32.mrb[0].mxu0
        %3429 = vmatprep.mubr.bf16.mxu0 %v2138
        %3430 = vmatmul.mubr.bf16.gmra.mrb[0].mxu0 %v2137
        %v3431 = vpop.f32.mrb[0].mxu0
        %v3432 = vadd.f32 0.0, %v3431
        %v3433 = vpop.f32.mrb[0].mxu0
        %v3434 = vpop.f32.mrb[0].mxu0
        %v3435 = vadd.f32 0.0, %v3434
        %v3436 = vpop.f32.mrb[0].mxu0
        %3437 = vmatprep.mubr.bf16.mxu0 %v2140
        %3438 = vmatmul.mubr.bf16.gmra.mrb[0].mxu0 %v2139
        %v3439 = vpop.f32.mrb[0].mxu0
        %v3440 = vadd.f32 0.0, %v3439
        %v3441 = vpop.f32.mrb[0].mxu0
        %v3442 = vpop.f32.mrb[0].mxu0
        %v3443 = vadd.f32 0.0, %v3442
        %v3444 = vpop.f32.mrb[0].mxu0
        %3445 = vmatprep.mubr.bf16.mxu0 %v2142
        %3446 = vmatmul.mubr.bf16.gmra.mrb[0].mxu0 %v2141
        %v3447 = vpop.f32.mrb[0].mxu0
        %v3448 = vadd.f32 0.0, %v3447
        %v3449 = vpop.f32.mrb[0].mxu0
        %v3450 = vpop.f32.mrb[0].mxu0
        %v3451 = vadd.f32 0.0, %v3450
        %v3452 = vpop.f32.mrb[0].mxu0
        %3453 = vmatprep.mubr.bf16.mxu0 %v2144
        %3454 = vmatmul.mubr.bf16.gmra.mrb[0].mxu0 %v2143
        %v3455 = vpop.f32.mrb[0].mxu0
        %v3456 = vadd.f32 0.0, %v3455
        %v3457 = vpop.f32.mrb[0].mxu0
        %v3458 = vpop.f32.mrb[0].mxu0
        %v3459 = vadd.f32 0.0, %v3458
        %v3460 = vpop.f32.mrb[0].mxu0
        %3461 = vmatprep.mubr.bf16.mxu0 %v2146
        %3462 = vmatmul.mubr.bf16.gmra.mrb[0].mxu0 %v2145
        %v3463 = vpop.f32.mrb[0].mxu0
        %v3464 = vadd.f32 0.0, %v3463
        %v3465 = vpop.f32.mrb[0].mxu0
        %v3466 = vpop.f32.mrb[0].mxu0
        %v3467 = vadd.f32 0.0, %v3466
        %v3468 = vpop.f32.mrb[0].mxu0
        %3469 = vmatprep.mubr.bf16.mxu0 %v2148
        %3470 = vmatmul.mubr.bf16.gmra.mrb[0].mxu0 %v2147
        %v3471 = vpop.f32.mrb[0].mxu0
        %v3472 = vadd.f32 0.0, %v3471
        %v3473 = vpop.f32.mrb[0].mxu0
        %v3474 = vpop.f32.mrb[0].mxu0
        %v3475 = vadd.f32 0.0, %v3474
        %v3476 = vpop.f32.mrb[0].mxu0
        %3477 = vmatprep.mubr.bf16.mxu0 %v2150
        %3478 = vmatmul.mubr.bf16.gmra.mrb[0].mxu0 %v2149
        %v3479 = vpop.f32.mrb[0].mxu0
        %v3480 = vadd.f32 0.0, %v3479
        %v3481 = vpop.f32.mrb[0].mxu0
        %v3482 = vpop.f32.mrb[0].mxu0
        %v3483 = vadd.f32 0.0, %v3482
        %v3484 = vpop.f32.mrb[0].mxu0
        %3485 = vmatprep.mubr.bf16.mxu0 %v2152
        %3486 = vmatmul.mubr.bf16.gmra.mrb[0].mxu0 %v2151
        %v3487 = vpop.f32.mrb[0].mxu0
        %v3488 = vadd.f32 0.0, %v3487
        %v3489 = vpop.f32.mrb[0].mxu0
        %v3490 = vpop.f32.mrb[0].mxu0
        %v3491 = vadd.f32 0.0, %v3490
        %v3492 = vpop.f32.mrb[0].mxu0
        %3493 = vmatprep.mubr.bf16.mxu0 %v2154
        %3494 = vmatmul.mubr.bf16.gmra.mrb[0].mxu0 %v2153
        %v3495 = vpop.f32.mrb[0].mxu0
        %v3496 = vadd.f32 0.0, %v3495
        %v3497 = vpop.f32.mrb[0].mxu0
        %v3498 = vpop.f32.mrb[0].mxu0
        %v3499 = vadd.f32 0.0, %v3498
        %v3500 = vpop.f32.mrb[0].mxu0
        %3501 = vmatprep.mubr.bf16.mxu0 %v2156
        %3502 = vmatmul.mubr.bf16.gmra.mrb[0].mxu0 %v2155
        %v3503 = vpop.f32.mrb[0].mxu0
        %v3504 = vadd.f32 0.0, %v3503
        %v3505 = vpop.f32.mrb[0].mxu0
        %v3506 = vpop.f32.mrb[0].mxu0
        %v3507 = vadd.f32 0.0, %v3506
        %v3508 = vpop.f32.mrb[0].mxu0
        %3509 = vmatprep.mubr.bf16.mxu0 %v2158
        %3510 = vmatmul.mubr.bf16.gmra.mrb[0].mxu0 %v2157
        %v3511 = vpop.f32.mrb[0].mxu0
        %v3512 = vadd.f32 0.0, %v3511
        %v3513 = vpop.f32.mrb[0].mxu0
        %v3514 = vpop.f32.mrb[0].mxu0
        %v3515 = vadd.f32 0.0, %v3514
        %v3516 = vpop.f32.mrb[0].mxu0
        %3517 = vmatprep.mubr.bf16.mxu0 %v2160
        %3518 = vmatmul.mubr.bf16.gmra.mrb[0].mxu0 %v2159
        %v3519 = vpop.f32.mrb[0].mxu0
        %v3520 = vadd.f32 0.0, %v3519
        %v3521 = vpop.f32.mrb[0].mxu0
        %v3522 = vpop.f32.mrb[0].mxu0
        %v3523 = vadd.f32 0.0, %v3522
        %v3524 = vpop.f32.mrb[0].mxu0
        %3525 = vmatprep.mubr.bf16.mxu0 %v2162
        %3526 = vmatmul.mubr.bf16.gmra.mrb[0].mxu0 %v2161
        %v3527 = vpop.f32.mrb[0].mxu0
        %v3528 = vadd.f32 0.0, %v3527
        %v3529 = vpop.f32.mrb[0].mxu0
        %v3530 = vpop.f32.mrb[0].mxu0
        %v3531 = vadd.f32 0.0, %v3530
        %v3532 = vpop.f32.mrb[0].mxu0
        %3533 = vmatprep.mubr.bf16.mxu0 %v2164
        %3534 = vmatmul.mubr.bf16.gmra.mrb[0].mxu0 %v2163
        %v3535 = vpop.f32.mrb[0].mxu0
        %v3536 = vadd.f32 0.0, %v3535
        %v3537 = vpop.f32.mrb[0].mxu0
        %v3538 = vpop.f32.mrb[0].mxu0
        %v3539 = vadd.f32 0.0, %v3538
        %v3540 = vpop.f32.mrb[0].mxu0
        %3541 = vmatprep.mubr.bf16.mxu0 %v2166
        %3542 = vmatmul.mubr.bf16.gmra.mrb[0].mxu0 %v2165
        %v3543 = vpop.f32.mrb[0].mxu0
        %v3544 = vadd.f32 0.0, %v3543
        %v3545 = vpop.f32.mrb[0].mxu0
        %v3546 = vpop.f32.mrb[0].mxu0
        %v3547 = vadd.f32 0.0, %v3546
        %v3548 = vpop.f32.mrb[0].mxu0
        %3549 = vmatprep.mubr.bf16.mxu0 %v2168
        %3550 = vmatmul.mubr.bf16.gmra.mrb[0].mxu0 %v2167
        %v3551 = vpop.f32.mrb[0].mxu0
        %v3552 = vadd.f32 0.0, %v3551
        %v3553 = vpop.f32.mrb[0].mxu0
        %v3554 = vpop.f32.mrb[0].mxu0
        %v3555 = vadd.f32 0.0, %v3554
        %v3556 = vpop.f32.mrb[0].mxu0
        %3557 = vmatprep.mubr.bf16.mxu0 %v2170
        %3558 = vmatmul.mubr.bf16.gmra.mrb[0].mxu0 %v2169
        %v3559 = vpop.f32.mrb[0].mxu0
        %v3560 = vadd.f32 0.0, %v3559
        %v3561 = vpop.f32.mrb[0].mxu0
        %v3562 = vpop.f32.mrb[0].mxu0
        %v3563 = vadd.f32 0.0, %v3562
        %v3564 = vpop.f32.mrb[0].mxu0
        %3565 = vmatprep.mubr.bf16.mxu0 %v2172
        %3566 = vmatmul.mubr.bf16.gmra.mrb[0].mxu0 %v2171
        %v3567 = vpop.f32.mrb[0].mxu0
        %v3568 = vadd.f32 0.0, %v3567
        %v3569 = vpop.f32.mrb[0].mxu0
        %v3570 = vpop.f32.mrb[0].mxu0
        %v3571 = vadd.f32 0.0, %v3570
        %v3572 = vpop.f32.mrb[0].mxu0
        %3573 = vmatprep.mubr.bf16.mxu0 %v2174
        %3574 = vmatmul.mubr.bf16.gmra.mrb[0].mxu0 %v2173
        %v3575 = vpop.f32.mrb[0].mxu0
        %v3576 = vadd.f32 0.0, %v3575
        %v3577 = vpop.f32.mrb[0].mxu0
        %v3578 = vpop.f32.mrb[0].mxu0
        %v3579 = vadd.f32 0.0, %v3578
        %v3580 = vpop.f32.mrb[0].mxu0
        %3581 = vmatprep.mubr.bf16.mxu0 %v2176
        %3582 = vmatmul.mubr.bf16.gmra.mrb[0].mxu0 %v2175
        %v3583 = vpop.f32.mrb[0].mxu0
        %v3584 = vadd.f32 0.0, %v3583
        %v3585 = vpop.f32.mrb[0].mxu0
        %v3586 = vpop.f32.mrb[0].mxu0
        %v3587 = vadd.f32 0.0, %v3586
        %v3588 = vpop.f32.mrb[0].mxu0
        %3589 = vmatprep.mubr.bf16.mxu0 %v2178
        %3590 = vmatmul.mubr.bf16.gmra.mrb[0].mxu0 %v2177
        %v3591 = vpop.f32.mrb[0].mxu0
        %v3592 = vadd.f32 0.0, %v3591
        %v3593 = vpop.f32.mrb[0].mxu0
        %v3594 = vpop.f32.mrb[0].mxu0
        %v3595 = vadd.f32 0.0, %v3594
        %v3596 = vpop.f32.mrb[0].mxu0
        %3597 = vmatprep.mubr.bf16.mxu0 %v2180
        %3598 = vmatmul.mubr.bf16.gmra.mrb[0].mxu0 %v2179
        %v3599 = vpop.f32.mrb[0].mxu0
        %v3600 = vadd.f32 0.0, %v3599
        %v3601 = vpop.f32.mrb[0].mxu0
        %v3602 = vpop.f32.mrb[0].mxu0
        %v3603 = vadd.f32 0.0, %v3602
        %v3604 = vpop.f32.mrb[0].mxu0
        %3605 = vmatprep.mubr.bf16.mxu0 %v2182
        %3606 = vmatmul.mubr.bf16.gmra.mrb[0].mxu0 %v2181
        %v3607 = vpop.f32.mrb[0].mxu0
        %v3608 = vadd.f32 0.0, %v3607
        %v3609 = vpop.f32.mrb[0].mxu0
        %v3610 = vpop.f32.mrb[0].mxu0
        %v3611 = vadd.f32 0.0, %v3610
        %v3612 = vpop.f32.mrb[0].mxu0
        %3613 = vmatprep.mubr.bf16.mxu0 %v2184
        %3614 = vmatmul.mubr.bf16.gmra.mrb[0].mxu0 %v2183
        %v3615 = vpop.f32.mrb[0].mxu0
        %v3616 = vadd.f32 0.0, %v3615
        %v3617 = vpop.f32.mrb[0].mxu0
        %v3618 = vpop.f32.mrb[0].mxu0
        %v3619 = vadd.f32 0.0, %v3618
        %v3620 = vpop.f32.mrb[0].mxu0
        %3621 = vmatprep.mubr.bf16.mxu0 %v2186
        %3622 = vmatmul.mubr.bf16.gmra.mrb[0].mxu0 %v2185
        %v3623 = vpop.f32.mrb[0].mxu0
        %v3624 = vadd.f32 0.0, %v3623
        %v3625 = vpop.f32.mrb[0].mxu0
        %v3626 = vpop.f32.mrb[0].mxu0
        %v3627 = vadd.f32 0.0, %v3626
        %v3628 = vpop.f32.mrb[0].mxu0
        %3629 = vmatprep.mubr.bf16.mxu0 %v2188
        %3630 = vmatmul.mubr.bf16.gmra.mrb[0].mxu0 %v2187
        %v3631 = vpop.f32.mrb[0].mxu0
        %v3632 = vadd.f32 0.0, %v3631
        %v3633 = vpop.f32.mrb[0].mxu0
        %v3634 = vpop.f32.mrb[0].mxu0
        %v3635 = vadd.f32 0.0, %v3634
        %v3636 = vpop.f32.mrb[0].mxu0
        %3637 = vmatprep.mubr.bf16.mxu0 %v2190
        %3638 = vmatmul.mubr.bf16.gmra.mrb[0].mxu0 %v2189
        %v3639 = vpop.f32.mrb[0].mxu0
        %v3640 = vadd.f32 0.0, %v3639
        %v3641 = vpop.f32.mrb[0].mxu0
        %v3642 = vpop.f32.mrb[0].mxu0
        %v3643 = vadd.f32 0.0, %v3642
        %v3644 = vpop.f32.mrb[0].mxu0
        %3645 = vmatprep.mubr.bf16.mxu0 %v2192
        %3646 = vmatmul.mubr.bf16.gmra.mrb[0].mxu0 %v2191
        %v3647 = vpop.f32.mrb[0].mxu0
        %v3648 = vadd.f32 0.0, %v3647
        %v3649 = vpop.f32.mrb[0].mxu0
        %v3650 = vpop.f32.mrb[0].mxu0
        %v3651 = vadd.f32 0.0, %v3650
        %v3652 = vpop.f32.mrb[0].mxu0
        %3653 = vmatprep.mubr.bf16.mxu0 %v2194
        %3654 = vmatmul.mubr.bf16.gmra.mrb[0].mxu0 %v2193
        %v3655 = vpop.f32.mrb[0].mxu0
        %v3656 = vadd.f32 0.0, %v3655
        %v3657 = vpop.f32.mrb[0].mxu0
        %v3658 = vpop.f32.mrb[0].mxu0
        %v3659 = vadd.f32 0.0, %v3658
        %v3660 = vpop.f32.mrb[0].mxu0
        %3661 = vmatprep.mubr.bf16.mxu0 %v2196
        %3662 = vmatmul.mubr.bf16.gmra.mrb[0].mxu0 %v2195
        %v3663 = vpop.f32.mrb[0].mxu0
        %v3664 = vadd.f32 0.0, %v3663
        %v3665 = vpop.f32.mrb[0].mxu0
        %v3666 = vpop.f32.mrb[0].mxu0
        %v3667 = vadd.f32 0.0, %v3666
        %v3668 = vpop.f32.mrb[0].mxu0
        %3669 = vdwg.mxu0
        %v3670 = vld [vmem:[%s5 + $0x2] sm:$0x1]
        %v3671 = vlaneseq
        %v3672 = vshrl.u32 %v3671, 7
        %v3673 = vsub.s32 0, %v3672
        %v3674 = vrot.slane %v3670, %v3673
        %v3675 = vmul.f32 %v2520, %v3674
        %v3676 = vmul.f32 %v2523, %v3674
        %v3677 = vmul.f32 %v2528, %v3674
        %v3678 = vmul.f32 %v2531, %v3674
        %v3679 = vmul.f32 %v2536, %v3674
        %v3680 = vmul.f32 %v2539, %v3674
        %v3681 = vmul.f32 %v2544, %v3674
        %v3682 = vmul.f32 %v2547, %v3674
        %v3683 = vmul.f32 %v2552, %v3674
        %v3684 = vmul.f32 %v2555, %v3674
        %v3685 = vmul.f32 %v2560, %v3674
        %v3686 = vmul.f32 %v2563, %v3674
        %v3687 = vmul.f32 %v2568, %v3674
        %v3688 = vmul.f32 %v2571, %v3674
        %v3689 = vmul.f32 %v2576, %v3674
        %v3690 = vmul.f32 %v2579, %v3674
        %v3691 = vmul.f32 %v2584, %v3674
        %v3692 = vmul.f32 %v2587, %v3674
        %v3693 = vmul.f32 %v2592, %v3674
        %v3694 = vmul.f32 %v2595, %v3674
        %v3695 = vmul.f32 %v2600, %v3674
        %v3696 = vmul.f32 %v2603, %v3674
        %v3697 = vmul.f32 %v2608, %v3674
        %v3698 = vmul.f32 %v2611, %v3674
        %v3699 = vmul.f32 %v2616, %v3674
        %v3700 = vmul.f32 %v2619, %v3674
        %v3701 = vmul.f32 %v2624, %v3674
        %v3702 = vmul.f32 %v2627, %v3674
        %v3703 = vmul.f32 %v2632, %v3674
        %v3704 = vmul.f32 %v2635, %v3674
        %v3705 = vmul.f32 %v2640, %v3674
        %v3706 = vmul.f32 %v2643, %v3674
        %v3707 = vld [vmem:[%s5 + $0x3] sm:$0x1]
        %v3708 = vlaneseq
        %v3709 = vshrl.u32 %v3708, 7
        %v3710 = vsub.s32 0, %v3709
        %v3711 = vrot.slane %v3707, %v3710
        %v3712 = vmul.f32 %v2648, %v3711
        %v3713 = vmul.f32 %v2651, %v3711
        %v3714 = vmul.f32 %v2656, %v3711
        %v3715 = vmul.f32 %v2659, %v3711
        %v3716 = vmul.f32 %v2664, %v3711
        %v3717 = vmul.f32 %v2667, %v3711
        %v3718 = vmul.f32 %v2672, %v3711
        %v3719 = vmul.f32 %v2675, %v3711
        %v3720 = vmul.f32 %v2680, %v3711
        %v3721 = vmul.f32 %v2683, %v3711
        %v3722 = vmul.f32 %v2688, %v3711
        %v3723 = vmul.f32 %v2691, %v3711
        %v3724 = vmul.f32 %v2696, %v3711
        %v3725 = vmul.f32 %v2699, %v3711
        %v3726 = vmul.f32 %v2704, %v3711
        %v3727 = vmul.f32 %v2707, %v3711
        %v3728 = vmul.f32 %v2712, %v3711
        %v3729 = vmul.f32 %v2715, %v3711
        %v3730 = vmul.f32 %v2720, %v3711
        %v3731 = vmul.f32 %v2723, %v3711
        %v3732 = vmul.f32 %v2728, %v3711
        %v3733 = vmul.f32 %v2731, %v3711
        %v3734 = vmul.f32 %v2736, %v3711
        %v3735 = vmul.f32 %v2739, %v3711
        %v3736 = vmul.f32 %v2744, %v3711
        %v3737 = vmul.f32 %v2747, %v3711
        %v3738 = vmul.f32 %v2752, %v3711
        %v3739 = vmul.f32 %v2755, %v3711
        %v3740 = vmul.f32 %v2760, %v3711
        %v3741 = vmul.f32 %v2763, %v3711
        %v3742 = vmul.f32 %v2768, %v3711
        %v3743 = vmul.f32 %v2771, %v3711
        %v3744 = vld [vmem:[%s5 + $0x4] sm:$0x1]
        %v3745 = vlaneseq
        %v3746 = vshrl.u32 %v3745, 7
        %v3747 = vsub.s32 0, %v3746
        %v3748 = vrot.slane %v3744, %v3747
        %v3749 = vmul.f32 %v2776, %v3748
        %v3750 = vmul.f32 %v2779, %v3748
        %v3751 = vmul.f32 %v2784, %v3748
        %v3752 = vmul.f32 %v2787, %v3748
        %v3753 = vmul.f32 %v2792, %v3748
        %v3754 = vmul.f32 %v2795, %v3748
        %v3755 = vmul.f32 %v2800, %v3748
        %v3756 = vmul.f32 %v2803, %v3748
        %v3757 = vmul.f32 %v2808, %v3748
        %v3758 = vmul.f32 %v2811, %v3748
        %v3759 = vmul.f32 %v2816, %v3748
        %v3760 = vmul.f32 %v2819, %v3748
        %v3761 = vmul.f32 %v2824, %v3748
        %v3762 = vmul.f32 %v2827, %v3748
        %v3763 = vmul.f32 %v2832, %v3748
        %v3764 = vmul.f32 %v2835, %v3748
        %v3765 = vmul.f32 %v2840, %v3748
        %v3766 = vmul.f32 %v2843, %v3748
        %v3767 = vmul.f32 %v2848, %v3748
        %v3768 = vmul.f32 %v2851, %v3748
        %v3769 = vmul.f32 %v2856, %v3748
        %v3770 = vmul.f32 %v2859, %v3748
        %v3771 = vmul.f32 %v2864, %v3748
        %v3772 = vmul.f32 %v2867, %v3748
        %v3773 = vmul.f32 %v2872, %v3748
        %v3774 = vmul.f32 %v2875, %v3748
        %v3775 = vmul.f32 %v2880, %v3748
        %v3776 = vmul.f32 %v2883, %v3748
        %v3777 = vmul.f32 %v2888, %v3748
        %v3778 = vmul.f32 %v2891, %v3748
        %v3779 = vmul.f32 %v2896, %v3748
        %v3780 = vmul.f32 %v2899, %v3748
        %v3781 = vld [vmem:[%s5 + $0x5] sm:$0x1]
        %v3782 = vlaneseq
        %v3783 = vshrl.u32 %v3782, 7
        %v3784 = vsub.s32 0, %v3783
        %v3785 = vrot.slane %v3781, %v3784
        %v3786 = vmul.f32 %v2904, %v3785
        %v3787 = vmul.f32 %v2907, %v3785
        %v3788 = vmul.f32 %v2912, %v3785
        %v3789 = vmul.f32 %v2915, %v3785
        %v3790 = vmul.f32 %v2920, %v3785
        %v3791 = vmul.f32 %v2923, %v3785
        %v3792 = vmul.f32 %v2928, %v3785
        %v3793 = vmul.f32 %v2931, %v3785
        %v3794 = vmul.f32 %v2936, %v3785
        %v3795 = vmul.f32 %v2939, %v3785
        %v3796 = vmul.f32 %v2944, %v3785
        %v3797 = vmul.f32 %v2947, %v3785
        %v3798 = vmul.f32 %v2952, %v3785
        %v3799 = vmul.f32 %v2955, %v3785
        %v3800 = vmul.f32 %v2960, %v3785
        %v3801 = vmul.f32 %v2963, %v3785
        %v3802 = vmul.f32 %v2968, %v3785
        %v3803 = vmul.f32 %v2971, %v3785
        %v3804 = vmul.f32 %v2976, %v3785
        %v3805 = vmul.f32 %v2979, %v3785
        %v3806 = vmul.f32 %v2984, %v3785
        %v3807 = vmul.f32 %v2987, %v3785
        %v3808 = vmul.f32 %v2992, %v3785
        %v3809 = vmul.f32 %v2995, %v3785
        %v3810 = vmul.f32 %v3000, %v3785
        %v3811 = vmul.f32 %v3003, %v3785
        %v3812 = vmul.f32 %v3008, %v3785
        %v3813 = vmul.f32 %v3011, %v3785
        %v3814 = vmul.f32 %v3016, %v3785
        %v3815 = vmul.f32 %v3019, %v3785
        %v3816 = vmul.f32 %v3024, %v3785
        %v3817 = vmul.f32 %v3027, %v3785
        %v3818 = vld [vmem:[%s5 + $0x6] sm:$0x1]
        %v3819 = vlaneseq
        %v3820 = vshrl.u32 %v3819, 7
        %v3821 = vsub.s32 0, %v3820
        %v3822 = vrot.slane %v3818, %v3821
        %v3823 = vmul.f32 %v3032, %v3822
        %v3824 = vmul.f32 %v3035, %v3822
        %v3825 = vmul.f32 %v3040, %v3822
        %v3826 = vmul.f32 %v3043, %v3822
        %v3827 = vmul.f32 %v3048, %v3822
        %v3828 = vmul.f32 %v3051, %v3822
        %v3829 = vmul.f32 %v3056, %v3822
        %v3830 = vmul.f32 %v3059, %v3822
        %v3831 = vmul.f32 %v3064, %v3822
        %v3832 = vmul.f32 %v3067, %v3822
        %v3833 = vmul.f32 %v3072, %v3822
        %v3834 = vmul.f32 %v3075, %v3822
        %v3835 = vmul.f32 %v3080, %v3822
        %v3836 = vmul.f32 %v3083, %v3822
        %v3837 = vmul.f32 %v3088, %v3822
        %v3838 = vmul.f32 %v3091, %v3822
        %v3839 = vmul.f32 %v3096, %v3822
        %v3840 = vmul.f32 %v3099, %v3822
        %v3841 = vmul.f32 %v3104, %v3822
        %v3842 = vmul.f32 %v3107, %v3822
        %v3843 = vmul.f32 %v3112, %v3822
        %v3844 = vmul.f32 %v3115, %v3822
        %v3845 = vmul.f32 %v3120, %v3822
        %v3846 = vmul.f32 %v3123, %v3822
        %v3847 = vmul.f32 %v3128, %v3822
        %v3848 = vmul.f32 %v3131, %v3822
        %v3849 = vmul.f32 %v3136, %v3822
        %v3850 = vmul.f32 %v3139, %v3822
        %v3851 = vmul.f32 %v3144, %v3822
        %v3852 = vmul.f32 %v3147, %v3822
        %v3853 = vmul.f32 %v3152, %v3822
        %v3854 = vmul.f32 %v3155, %v3822
        %v3855 = vld [vmem:[%s5 + $0x7] sm:$0x1]
        %v3856 = vlaneseq
        %v3857 = vshrl.u32 %v3856, 7
        %v3858 = vsub.s32 0, %v3857
        %v3859 = vrot.slane %v3855, %v3858
        %v3860 = vmul.f32 %v3160, %v3859
        %v3861 = vmul.f32 %v3163, %v3859
        %v3862 = vmul.f32 %v3168, %v3859
        %v3863 = vmul.f32 %v3171, %v3859
        %v3864 = vmul.f32 %v3176, %v3859
        %v3865 = vmul.f32 %v3179, %v3859
        %v3866 = vmul.f32 %v3184, %v3859
        %v3867 = vmul.f32 %v3187, %v3859
        %v3868 = vmul.f32 %v3192, %v3859
        %v3869 = vmul.f32 %v3195, %v3859
        %v3870 = vmul.f32 %v3200, %v3859
        %v3871 = vmul.f32 %v3203, %v3859
        %v3872 = vmul.f32 %v3208, %v3859
        %v3873 = vmul.f32 %v3211, %v3859
        %v3874 = vmul.f32 %v3216, %v3859
        %v3875 = vmul.f32 %v3219, %v3859
        %v3876 = vmul.f32 %v3224, %v3859
        %v3877 = vmul.f32 %v3227, %v3859
        %v3878 = vmul.f32 %v3232, %v3859
        %v3879 = vmul.f32 %v3235, %v3859
        %v3880 = vmul.f32 %v3240, %v3859
        %v3881 = vmul.f32 %v3243, %v3859
        %v3882 = vmul.f32 %v3248, %v3859
        %v3883 = vmul.f32 %v3251, %v3859
        %v3884 = vmul.f32 %v3256, %v3859
        %v3885 = vmul.f32 %v3259, %v3859
        %v3886 = vmul.f32 %v3264, %v3859
        %v3887 = vmul.f32 %v3267, %v3859
        %v3888 = vmul.f32 %v3272, %v3859
        %v3889 = vmul.f32 %v3275, %v3859
        %v3890 = vmul.f32 %v3280, %v3859
        %v3891 = vmul.f32 %v3283, %v3859
        %v3892 = vld [vmem:[%s5 + $0x8] sm:$0x1]
        %v3893 = vlaneseq
        %v3894 = vshrl.u32 %v3893, 7
        %v3895 = vsub.s32 0, %v3894
        %v3896 = vrot.slane %v3892, %v3895
        %v3897 = vmul.f32 %v3288, %v3896
        %v3898 = vmul.f32 %v3291, %v3896
        %v3899 = vmul.f32 %v3296, %v3896
        %v3900 = vmul.f32 %v3299, %v3896
        %v3901 = vmul.f32 %v3304, %v3896
        %v3902 = vmul.f32 %v3307, %v3896
        %v3903 = vmul.f32 %v3312, %v3896
        %v3904 = vmul.f32 %v3315, %v3896
        %v3905 = vmul.f32 %v3320, %v3896
        %v3906 = vmul.f32 %v3323, %v3896
        %v3907 = vmul.f32 %v3328, %v3896
        %v3908 = vmul.f32 %v3331, %v3896
        %v3909 = vmul.f32 %v3336, %v3896
        %v3910 = vmul.f32 %v3339, %v3896
        %v3911 = vmul.f32 %v3344, %v3896
        %v3912 = vmul.f32 %v3347, %v3896
        %v3913 = vmul.f32 %v3352, %v3896
        %v3914 = vmul.f32 %v3355, %v3896
        %v3915 = vmul.f32 %v3360, %v3896
        %v3916 = vmul.f32 %v3363, %v3896
        %v3917 = vmul.f32 %v3368, %v3896
        %v3918 = vmul.f32 %v3371, %v3896
        %v3919 = vmul.f32 %v3376, %v3896
        %v3920 = vmul.f32 %v3379, %v3896
        %v3921 = vmul.f32 %v3384, %v3896
        %v3922 = vmul.f32 %v3387, %v3896
        %v3923 = vmul.f32 %v3392, %v3896
        %v3924 = vmul.f32 %v3395, %v3896
        %v3925 = vmul.f32 %v3400, %v3896
        %v3926 = vmul.f32 %v3403, %v3896
        %v3927 = vmul.f32 %v3408, %v3896
        %v3928 = vmul.f32 %v3411, %v3896
        %v3929 = vld [vmem:[%s5 + $0x9] sm:$0x1]
        %v3930 = vlaneseq
        %v3931 = vshrl.u32 %v3930, 7
        %v3932 = vsub.s32 0, %v3931
        %v3933 = vrot.slane %v3929, %v3932
        %v3934 = vmul.f32 %v3416, %v3933
        %v3935 = vmul.f32 %v3419, %v3933
        %v3936 = vmul.f32 %v3424, %v3933
        %v3937 = vmul.f32 %v3427, %v3933
        %v3938 = vmul.f32 %v3432, %v3933
        %v3939 = vmul.f32 %v3435, %v3933
        %v3940 = vmul.f32 %v3440, %v3933
        %v3941 = vmul.f32 %v3443, %v3933
        %v3942 = vmul.f32 %v3448, %v3933
        %v3943 = vmul.f32 %v3451, %v3933
        %v3944 = vmul.f32 %v3456, %v3933
        %v3945 = vmul.f32 %v3459, %v3933
        %v3946 = vmul.f32 %v3464, %v3933
        %v3947 = vmul.f32 %v3467, %v3933
        %v3948 = vmul.f32 %v3472, %v3933
        %v3949 = vmul.f32 %v3475, %v3933
        %v3950 = vmul.f32 %v3480, %v3933
        %v3951 = vmul.f32 %v3483, %v3933
        %v3952 = vmul.f32 %v3488, %v3933
        %v3953 = vmul.f32 %v3491, %v3933
        %v3954 = vmul.f32 %v3496, %v3933
        %v3955 = vmul.f32 %v3499, %v3933
        %v3956 = vmul.f32 %v3504, %v3933
        %v3957 = vmul.f32 %v3507, %v3933
        %v3958 = vmul.f32 %v3512, %v3933
        %v3959 = vmul.f32 %v3515, %v3933
        %v3960 = vmul.f32 %v3520, %v3933
        %v3961 = vmul.f32 %v3523, %v3933
        %v3962 = vmul.f32 %v3528, %v3933
        %v3963 = vmul.f32 %v3531, %v3933
        %v3964 = vmul.f32 %v3536, %v3933
        %v3965 = vmul.f32 %v3539, %v3933
        %v3966 = vld [vmem:[%s5 + $0xa] sm:$0x1]
        %v3967 = vlaneseq
        %v3968 = vshrl.u32 %v3967, 7
        %v3969 = vsub.s32 0, %v3968
        %v3970 = vrot.slane %v3966, %v3969
        %v3971 = vmul.f32 %v3544, %v3970
        %v3972 = vmul.f32 %v3547, %v3970
        %v3973 = vmul.f32 %v3552, %v3970
        %v3974 = vmul.f32 %v3555, %v3970
        %v3975 = vmul.f32 %v3560, %v3970
        %v3976 = vmul.f32 %v3563, %v3970
        %v3977 = vmul.f32 %v3568, %v3970
        %v3978 = vmul.f32 %v3571, %v3970
        %v3979 = vmul.f32 %v3576, %v3970
        %v3980 = vmul.f32 %v3579, %v3970
        %v3981 = vmul.f32 %v3584, %v3970
        %v3982 = vmul.f32 %v3587, %v3970
        %v3983 = vmul.f32 %v3592, %v3970
        %v3984 = vmul.f32 %v3595, %v3970
        %v3985 = vmul.f32 %v3600, %v3970
        %v3986 = vmul.f32 %v3603, %v3970
        %v3987 = vmul.f32 %v3608, %v3970
        %v3988 = vmul.f32 %v3611, %v3970
        %v3989 = vmul.f32 %v3616, %v3970
        %v3990 = vmul.f32 %v3619, %v3970
        %v3991 = vmul.f32 %v3624, %v3970
        %v3992 = vmul.f32 %v3627, %v3970
        %v3993 = vmul.f32 %v3632, %v3970
        %v3994 = vmul.f32 %v3635, %v3970
        %v3995 = vmul.f32 %v3640, %v3970
        %v3996 = vmul.f32 %v3643, %v3970
        %v3997 = vmul.f32 %v3648, %v3970
        %v3998 = vmul.f32 %v3651, %v3970
        %v3999 = vmul.f32 %v3656, %v3970
        %v4000 = vmul.f32 %v3659, %v3970
        %v4001 = vmul.f32 %v3664, %v3970
        %v4002 = vmul.f32 %v3667, %v3970
        %v4003 = vadd.f32 %v3675, %v3712
        %v4004 = vadd.f32 %v3676, %v3713
        %v4005 = vadd.f32 %v3677, %v3714
        %v4006 = vadd.f32 %v3678, %v3715
        %v4007 = vadd.f32 %v3679, %v3716
        %v4008 = vadd.f32 %v3680, %v3717
        %v4009 = vadd.f32 %v3681, %v3718
        %v4010 = vadd.f32 %v3682, %v3719
        %v4011 = vadd.f32 %v3683, %v3720
        %v4012 = vadd.f32 %v3684, %v3721
        %v4013 = vadd.f32 %v3685, %v3722
        %v4014 = vadd.f32 %v3686, %v3723
        %v4015 = vadd.f32 %v3687, %v3724
        %v4016 = vadd.f32 %v3688, %v3725
        %v4017 = vadd.f32 %v3689, %v3726
        %v4018 = vadd.f32 %v3690, %v3727
        %v4019 = vadd.f32 %v3691, %v3728
        %v4020 = vadd.f32 %v3692, %v3729
        %v4021 = vadd.f32 %v3693, %v3730
        %v4022 = vadd.f32 %v3694, %v3731
        %v4023 = vadd.f32 %v3695, %v3732
        %v4024 = vadd.f32 %v3696, %v3733
        %v4025 = vadd.f32 %v3697, %v3734
        %v4026 = vadd.f32 %v3698, %v3735
        %v4027 = vadd.f32 %v3699, %v3736
        %v4028 = vadd.f32 %v3700, %v3737
        %v4029 = vadd.f32 %v3701, %v3738
        %v4030 = vadd.f32 %v3702, %v3739
        %v4031 = vadd.f32 %v3703, %v3740
        %v4032 = vadd.f32 %v3704, %v3741
        %v4033 = vadd.f32 %v3705, %v3742
        %v4034 = vadd.f32 %v3706, %v3743
        %v4035 = vadd.f32 %v3749, %v3786
        %v4036 = vadd.f32 %v3750, %v3787
        %v4037 = vadd.f32 %v3751, %v3788
        %v4038 = vadd.f32 %v3752, %v3789
        %v4039 = vadd.f32 %v3753, %v3790
        %v4040 = vadd.f32 %v3754, %v3791
        %v4041 = vadd.f32 %v3755, %v3792
        %v4042 = vadd.f32 %v3756, %v3793
        %v4043 = vadd.f32 %v3757, %v3794
        %v4044 = vadd.f32 %v3758, %v3795
        %v4045 = vadd.f32 %v3759, %v3796
        %v4046 = vadd.f32 %v3760, %v3797
        %v4047 = vadd.f32 %v3761, %v3798
        %v4048 = vadd.f32 %v3762, %v3799
        %v4049 = vadd.f32 %v3763, %v3800
        %v4050 = vadd.f32 %v3764, %v3801
        %v4051 = vadd.f32 %v3765, %v3802
        %v4052 = vadd.f32 %v3766, %v3803
        %v4053 = vadd.f32 %v3767, %v3804
        %v4054 = vadd.f32 %v3768, %v3805
        %v4055 = vadd.f32 %v3769, %v3806
        %v4056 = vadd.f32 %v3770, %v3807
        %v4057 = vadd.f32 %v3771, %v3808
        %v4058 = vadd.f32 %v3772, %v3809
        %v4059 = vadd.f32 %v3773, %v3810
        %v4060 = vadd.f32 %v3774, %v3811
        %v4061 = vadd.f32 %v3775, %v3812
        %v4062 = vadd.f32 %v3776, %v3813
        %v4063 = vadd.f32 %v3777, %v3814
        %v4064 = vadd.f32 %v3778, %v3815
        %v4065 = vadd.f32 %v3779, %v3816
        %v4066 = vadd.f32 %v3780, %v3817
        %v4067 = vadd.f32 %v3823, %v3860
        %v4068 = vadd.f32 %v3824, %v3861
        %v4069 = vadd.f32 %v3825, %v3862
        %v4070 = vadd.f32 %v3826, %v3863
        %v4071 = vadd.f32 %v3827, %v3864
        %v4072 = vadd.f32 %v3828, %v3865
        %v4073 = vadd.f32 %v3829, %v3866
        %v4074 = vadd.f32 %v3830, %v3867
        %v4075 = vadd.f32 %v3831, %v3868
        %v4076 = vadd.f32 %v3832, %v3869
        %v4077 = vadd.f32 %v3833, %v3870
        %v4078 = vadd.f32 %v3834, %v3871
        %v4079 = vadd.f32 %v3835, %v3872
        %v4080 = vadd.f32 %v3836, %v3873
        %v4081 = vadd.f32 %v3837, %v3874
        %v4082 = vadd.f32 %v3838, %v3875
        %v4083 = vadd.f32 %v3839, %v3876
        %v4084 = vadd.f32 %v3840, %v3877
        %v4085 = vadd.f32 %v3841, %v3878
        %v4086 = vadd.f32 %v3842, %v3879
        %v4087 = vadd.f32 %v3843, %v3880
        %v4088 = vadd.f32 %v3844, %v3881
        %v4089 = vadd.f32 %v3845, %v3882
        %v4090 = vadd.f32 %v3846, %v3883
        %v4091 = vadd.f32 %v3847, %v3884
        %v4092 = vadd.f32 %v3848, %v3885
        %v4093 = vadd.f32 %v3849, %v3886
        %v4094 = vadd.f32 %v3850, %v3887
        %v4095 = vadd.f32 %v3851, %v3888
        %v4096 = vadd.f32 %v3852, %v3889
        %v4097 = vadd.f32 %v3853, %v3890
        %v4098 = vadd.f32 %v3854, %v3891
        %v4099 = vadd.f32 %v3897, %v3934
        %v4100 = vadd.f32 %v3898, %v3935
        %v4101 = vadd.f32 %v3899, %v3936
        %v4102 = vadd.f32 %v3900, %v3937
        %v4103 = vadd.f32 %v3901, %v3938
        %v4104 = vadd.f32 %v3902, %v3939
        %v4105 = vadd.f32 %v3903, %v3940
        %v4106 = vadd.f32 %v3904, %v3941
        %v4107 = vadd.f32 %v3905, %v3942
        %v4108 = vadd.f32 %v3906, %v3943
        %v4109 = vadd.f32 %v3907, %v3944
        %v4110 = vadd.f32 %v3908, %v3945
        %v4111 = vadd.f32 %v3909, %v3946
        %v4112 = vadd.f32 %v3910, %v3947
        %v4113 = vadd.f32 %v3911, %v3948
        %v4114 = vadd.f32 %v3912, %v3949
        %v4115 = vadd.f32 %v3913, %v3950
        %v4116 = vadd.f32 %v3914, %v3951
        %v4117 = vadd.f32 %v3915, %v3952
        %v4118 = vadd.f32 %v3916, %v3953
        %v4119 = vadd.f32 %v3917, %v3954
        %v4120 = vadd.f32 %v3918, %v3955
        %v4121 = vadd.f32 %v3919, %v3956
        %v4122 = vadd.f32 %v3920, %v3957
        %v4123 = vadd.f32 %v3921, %v3958
        %v4124 = vadd.f32 %v3922, %v3959
        %v4125 = vadd.f32 %v3923, %v3960
        %v4126 = vadd.f32 %v3924, %v3961
        %v4127 = vadd.f32 %v3925, %v3962
        %v4128 = vadd.f32 %v3926, %v3963
        %v4129 = vadd.f32 %v3927, %v3964
        %v4130 = vadd.f32 %v3928, %v3965
        %v4131 = vadd.f32 %v4003, %v4035
        %v4132 = vadd.f32 %v4004, %v4036
        %v4133 = vadd.f32 %v4005, %v4037
        %v4134 = vadd.f32 %v4006, %v4038
        %v4135 = vadd.f32 %v4007, %v4039
        %v4136 = vadd.f32 %v4008, %v4040
        %v4137 = vadd.f32 %v4009, %v4041
        %v4138 = vadd.f32 %v4010, %v4042
        %v4139 = vadd.f32 %v4011, %v4043
        %v4140 = vadd.f32 %v4012, %v4044
        %v4141 = vadd.f32 %v4013, %v4045
        %v4142 = vadd.f32 %v4014, %v4046
        %v4143 = vadd.f32 %v4015, %v4047
        %v4144 = vadd.f32 %v4016, %v4048
        %v4145 = vadd.f32 %v4017, %v4049
        %v4146 = vadd.f32 %v4018, %v4050
        %v4147 = vadd.f32 %v4019, %v4051
        %v4148 = vadd.f32 %v4020, %v4052
        %v4149 = vadd.f32 %v4021, %v4053
        %v4150 = vadd.f32 %v4022, %v4054
        %v4151 = vadd.f32 %v4023, %v4055
        %v4152 = vadd.f32 %v4024, %v4056
        %v4153 = vadd.f32 %v4025, %v4057
        %v4154 = vadd.f32 %v4026, %v4058
        %v4155 = vadd.f32 %v4027, %v4059
        %v4156 = vadd.f32 %v4028, %v4060
        %v4157 = vadd.f32 %v4029, %v4061
        %v4158 = vadd.f32 %v4030, %v4062
        %v4159 = vadd.f32 %v4031, %v4063
        %v4160 = vadd.f32 %v4032, %v4064
        %v4161 = vadd.f32 %v4033, %v4065
        %v4162 = vadd.f32 %v4034, %v4066
        %v4163 = vadd.f32 %v4067, %v4099
        %v4164 = vadd.f32 %v4068, %v4100
        %v4165 = vadd.f32 %v4069, %v4101
        %v4166 = vadd.f32 %v4070, %v4102
        %v4167 = vadd.f32 %v4071, %v4103
        %v4168 = vadd.f32 %v4072, %v4104
        %v4169 = vadd.f32 %v4073, %v4105
        %v4170 = vadd.f32 %v4074, %v4106
        %v4171 = vadd.f32 %v4075, %v4107
        %v4172 = vadd.f32 %v4076, %v4108
        %v4173 = vadd.f32 %v4077, %v4109
        %v4174 = vadd.f32 %v4078, %v4110
        %v4175 = vadd.f32 %v4079, %v4111
        %v4176 = vadd.f32 %v4080, %v4112
        %v4177 = vadd.f32 %v4081, %v4113
        %v4178 = vadd.f32 %v4082, %v4114
        %v4179 = vadd.f32 %v4083, %v4115
        %v4180 = vadd.f32 %v4084, %v4116
        %v4181 = vadd.f32 %v4085, %v4117
        %v4182 = vadd.f32 %v4086, %v4118
        %v4183 = vadd.f32 %v4087, %v4119
        %v4184 = vadd.f32 %v4088, %v4120
        %v4185 = vadd.f32 %v4089, %v4121
        %v4186 = vadd.f32 %v4090, %v4122
        %v4187 = vadd.f32 %v4091, %v4123
        %v4188 = vadd.f32 %v4092, %v4124
        %v4189 = vadd.f32 %v4093, %v4125
        %v4190 = vadd.f32 %v4094, %v4126
        %v4191 = vadd.f32 %v4095, %v4127
        %v4192 = vadd.f32 %v4096, %v4128
        %v4193 = vadd.f32 %v4097, %v4129
        %v4194 = vadd.f32 %v4098, %v4130
        %v4195 = vadd.f32 %v4131, %v4163
        %v4196 = vadd.f32 %v4132, %v4164
        %v4197 = vadd.f32 %v4133, %v4165
        %v4198 = vadd.f32 %v4134, %v4166
        %v4199 = vadd.f32 %v4135, %v4167
        %v4200 = vadd.f32 %v4136, %v4168
        %v4201 = vadd.f32 %v4137, %v4169
        %v4202 = vadd.f32 %v4138, %v4170
        %v4203 = vadd.f32 %v4139, %v4171
        %v4204 = vadd.f32 %v4140, %v4172
        %v4205 = vadd.f32 %v4141, %v4173
        %v4206 = vadd.f32 %v4142, %v4174
        %v4207 = vadd.f32 %v4143, %v4175
        %v4208 = vadd.f32 %v4144, %v4176
        %v4209 = vadd.f32 %v4145, %v4177
        %v4210 = vadd.f32 %v4146, %v4178
        %v4211 = vadd.f32 %v4147, %v4179
        %v4212 = vadd.f32 %v4148, %v4180
        %v4213 = vadd.f32 %v4149, %v4181
        %v4214 = vadd.f32 %v4150, %v4182
        %v4215 = vadd.f32 %v4151, %v4183
        %v4216 = vadd.f32 %v4152, %v4184
        %v4217 = vadd.f32 %v4153, %v4185
        %v4218 = vadd.f32 %v4154, %v4186
        %v4219 = vadd.f32 %v4155, %v4187
        %v4220 = vadd.f32 %v4156, %v4188
        %v4221 = vadd.f32 %v4157, %v4189
        %v4222 = vadd.f32 %v4158, %v4190
        %v4223 = vadd.f32 %v4159, %v4191
        %v4224 = vadd.f32 %v4160, %v4192
        %v4225 = vadd.f32 %v4161, %v4193
        %v4226 = vadd.f32 %v4162, %v4194
        %v4227 = vadd.f32 %v4195, %v3971
        %v4228 = vadd.f32 %v4196, %v3972
        %v4229 = vadd.f32 %v4197, %v3973
        %v4230 = vadd.f32 %v4198, %v3974
        %v4231 = vadd.f32 %v4199, %v3975
        %v4232 = vadd.f32 %v4200, %v3976
        %v4233 = vadd.f32 %v4201, %v3977
        %v4234 = vadd.f32 %v4202, %v3978
        %v4235 = vadd.f32 %v4203, %v3979
        %v4236 = vadd.f32 %v4204, %v3980
        %v4237 = vadd.f32 %v4205, %v3981
        %v4238 = vadd.f32 %v4206, %v3982
        %v4239 = vadd.f32 %v4207, %v3983
        %v4240 = vadd.f32 %v4208, %v3984
        %v4241 = vadd.f32 %v4209, %v3985
        %v4242 = vadd.f32 %v4210, %v3986
        %v4243 = vadd.f32 %v4211, %v3987
        %v4244 = vadd.f32 %v4212, %v3988
        %v4245 = vadd.f32 %v4213, %v3989
        %v4246 = vadd.f32 %v4214, %v3990
        %v4247 = vadd.f32 %v4215, %v3991
        %v4248 = vadd.f32 %v4216, %v3992
        %v4249 = vadd.f32 %v4217, %v3993
        %v4250 = vadd.f32 %v4218, %v3994
        %v4251 = vadd.f32 %v4219, %v3995
        %v4252 = vadd.f32 %v4220, %v3996
        %v4253 = vadd.f32 %v4221, %v3997
        %v4254 = vadd.f32 %v4222, %v3998
        %v4255 = vadd.f32 %v4223, %v3999
        %v4256 = vadd.f32 %v4224, %v4000
        %v4257 = vadd.f32 %v4225, %v4001
        %v4258 = vadd.f32 %v4226, %v4002
        %v4259 = vld [vmem:[%s5 + $0xb] sm:$0x1]
        %v4260 = vlaneseq
        %v4261 = vshrl.u32 %v4260, 7
        %v4262 = vsub.s32 0, %v4261
        %v4263 = vrot.slane %v4259, %v4262
        %v4264 = vmul.f32 %v4227, %v4263
        %v4265 = vmul.f32 %v4228, %v4263
        %v4266 = vmul.f32 %v4229, %v4263
        %v4267 = vmul.f32 %v4230, %v4263
        %v4268 = vmul.f32 %v4231, %v4263
        %v4269 = vmul.f32 %v4232, %v4263
        %v4270 = vmul.f32 %v4233, %v4263
        %v4271 = vmul.f32 %v4234, %v4263
        %v4272 = vmul.f32 %v4235, %v4263
        %v4273 = vmul.f32 %v4236, %v4263
        %v4274 = vmul.f32 %v4237, %v4263
        %v4275 = vmul.f32 %v4238, %v4263
        %v4276 = vmul.f32 %v4239, %v4263
        %v4277 = vmul.f32 %v4240, %v4263
        %v4278 = vmul.f32 %v4241, %v4263
        %v4279 = vmul.f32 %v4242, %v4263
        %v4280 = vmul.f32 %v4243, %v4263
        %v4281 = vmul.f32 %v4244, %v4263
        %v4282 = vmul.f32 %v4245, %v4263
        %v4283 = vmul.f32 %v4246, %v4263
        %v4284 = vmul.f32 %v4247, %v4263
        %v4285 = vmul.f32 %v4248, %v4263
        %v4286 = vmul.f32 %v4249, %v4263
        %v4287 = vmul.f32 %v4250, %v4263
        %v4288 = vmul.f32 %v4251, %v4263
        %v4289 = vmul.f32 %v4252, %v4263
        %v4290 = vmul.f32 %v4253, %v4263
        %v4291 = vmul.f32 %v4254, %v4263
        %v4292 = vmul.f32 %v4255, %v4263
        %v4293 = vmul.f32 %v4256, %v4263
        %v4294 = vmul.f32 %v4257, %v4263
        %v4295 = vmul.f32 %v4258, %v4263
        %v4296 = vld [vmem:[%s5 + $0xc] sm:$0x1]
        %v4297 = vlaneseq
        %v4298 = vshrl.u32 %v4297, 7
        %v4299 = vsub.s32 0, %v4298
        %v4300 = vrot.slane %v4296, %v4299
        %v4301 = vadd.f32 %v4264, %v4300
        %v4302 = vadd.f32 %v4265, %v4300
        %v4303 = vadd.f32 %v4266, %v4300
        %v4304 = vadd.f32 %v4267, %v4300
        %v4305 = vadd.f32 %v4268, %v4300
        %v4306 = vadd.f32 %v4269, %v4300
        %v4307 = vadd.f32 %v4270, %v4300
        %v4308 = vadd.f32 %v4271, %v4300
        %v4309 = vadd.f32 %v4272, %v4300
        %v4310 = vadd.f32 %v4273, %v4300
        %v4311 = vadd.f32 %v4274, %v4300
        %v4312 = vadd.f32 %v4275, %v4300
        %v4313 = vadd.f32 %v4276, %v4300
        %v4314 = vadd.f32 %v4277, %v4300
        %v4315 = vadd.f32 %v4278, %v4300
        %v4316 = vadd.f32 %v4279, %v4300
        %v4317 = vadd.f32 %v4280, %v4300
        %v4318 = vadd.f32 %v4281, %v4300
        %v4319 = vadd.f32 %v4282, %v4300
        %v4320 = vadd.f32 %v4283, %v4300
        %v4321 = vadd.f32 %v4284, %v4300
        %v4322 = vadd.f32 %v4285, %v4300
        %v4323 = vadd.f32 %v4286, %v4300
        %v4324 = vadd.f32 %v4287, %v4300
        %v4325 = vadd.f32 %v4288, %v4300
        %v4326 = vadd.f32 %v4289, %v4300
        %v4327 = vadd.f32 %v4290, %v4300
        %v4328 = vadd.f32 %v4291, %v4300
        %v4329 = vadd.f32 %v4292, %v4300
        %v4330 = vadd.f32 %v4293, %v4300
        %v4331 = vadd.f32 %v4294, %v4300
        %v4332 = vadd.f32 %v4295, %v4300
        %v4333 = vmax.f32 %v4301, 0.0
        %v4334 = vmax.f32 %v4302, 0.0
        %v4335 = vmax.f32 %v4303, 0.0
        %v4336 = vmax.f32 %v4304, 0.0
        %v4337 = vmax.f32 %v4305, 0.0
        %v4338 = vmax.f32 %v4306, 0.0
        %v4339 = vmax.f32 %v4307, 0.0
        %v4340 = vmax.f32 %v4308, 0.0
        %v4341 = vmax.f32 %v4309, 0.0
        %v4342 = vmax.f32 %v4310, 0.0
        %v4343 = vmax.f32 %v4311, 0.0
        %v4344 = vmax.f32 %v4312, 0.0
        %v4345 = vmax.f32 %v4313, 0.0
        %v4346 = vmax.f32 %v4314, 0.0
        %v4347 = vmax.f32 %v4315, 0.0
        %v4348 = vmax.f32 %v4316, 0.0
        %v4349 = vmax.f32 %v4317, 0.0
        %v4350 = vmax.f32 %v4318, 0.0
        %v4351 = vmax.f32 %v4319, 0.0
        %v4352 = vmax.f32 %v4320, 0.0
        %v4353 = vmax.f32 %v4321, 0.0
        %v4354 = vmax.f32 %v4322, 0.0
        %v4355 = vmax.f32 %v4323, 0.0
        %v4356 = vmax.f32 %v4324, 0.0
        %v4357 = vmax.f32 %v4325, 0.0
        %v4358 = vmax.f32 %v4326, 0.0
        %v4359 = vmax.f32 %v4327, 0.0
        %v4360 = vmax.f32 %v4328, 0.0
        %v4361 = vmax.f32 %v4329, 0.0
        %v4362 = vmax.f32 %v4330, 0.0
        %v4363 = vmax.f32 %v4331, 0.0
        %v4364 = vmax.f32 %v4332, 0.0
        %v4365 = vmin.f32 %v4333, 6.0
        %v4366 = vmin.f32 %v4334, 6.0
        %v4367 = vmin.f32 %v4335, 6.0
        %v4368 = vmin.f32 %v4336, 6.0
        %v4369 = vmin.f32 %v4337, 6.0
        %v4370 = vmin.f32 %v4338, 6.0
        %v4371 = vmin.f32 %v4339, 6.0
        %v4372 = vmin.f32 %v4340, 6.0
        %v4373 = vmin.f32 %v4341, 6.0
        %v4374 = vmin.f32 %v4342, 6.0
        %v4375 = vmin.f32 %v4343, 6.0
        %v4376 = vmin.f32 %v4344, 6.0
        %v4377 = vmin.f32 %v4345, 6.0
        %v4378 = vmin.f32 %v4346, 6.0
        %v4379 = vmin.f32 %v4347, 6.0
        %v4380 = vmin.f32 %v4348, 6.0
        %v4381 = vmin.f32 %v4349, 6.0
        %v4382 = vmin.f32 %v4350, 6.0
        %v4383 = vmin.f32 %v4351, 6.0
        %v4384 = vmin.f32 %v4352, 6.0
        %v4385 = vmin.f32 %v4353, 6.0
        %v4386 = vmin.f32 %v4354, 6.0
        %v4387 = vmin.f32 %v4355, 6.0
        %v4388 = vmin.f32 %v4356, 6.0
        %v4389 = vmin.f32 %v4357, 6.0
        %v4390 = vmin.f32 %v4358, 6.0
        %v4391 = vmin.f32 %v4359, 6.0
        %v4392 = vmin.f32 %v4360, 6.0
        %v4393 = vmin.f32 %v4361, 6.0
        %v4394 = vmin.f32 %v4362, 6.0
        %v4395 = vmin.f32 %v4363, 6.0
        %v4396 = vmin.f32 %v4364, 6.0
        %v4397 = vpack.c.bf16 %v4366, %v4365
        %v4398 = vpack.c.bf16 %v4368, %v4367
        %v4399 = vpack.c.bf16 %v4370, %v4369
        %v4400 = vpack.c.bf16 %v4372, %v4371
        %v4401 = vpack.c.bf16 %v4374, %v4373
        %v4402 = vpack.c.bf16 %v4376, %v4375
        %v4403 = vpack.c.bf16 %v4378, %v4377
        %v4404 = vpack.c.bf16 %v4380, %v4379
        %v4405 = vpack.c.bf16 %v4382, %v4381
        %v4406 = vpack.c.bf16 %v4384, %v4383
        %v4407 = vpack.c.bf16 %v4386, %v4385
        %v4408 = vpack.c.bf16 %v4388, %v4387
        %v4409 = vpack.c.bf16 %v4390, %v4389
        %v4410 = vpack.c.bf16 %v4392, %v4391
        %v4411 = vpack.c.bf16 %v4394, %v4393
        %v4412 = vpack.c.bf16 %v4396, %v4395
        %v4413 = vld [vmem:[%s4 + $0x10] sm:$0xf]
        %v4414 = vld [vmem:[%s4 + $0x14] sm:$0xf]
        %v4415 = vld [vmem:[%s4 + $0x18] sm:$0xf]
        %v4416 = vld [vmem:[%s4 + $0x1c] sm:$0xf]
        %v4417 = vld [vmem:[%s4 + $0x20] sm:$0xf]
        %v4418 = vld [vmem:[%s4 + $0x24] sm:$0xf]
        %v4419 = vld [vmem:[%s4 + $0x28] sm:$0xf]
        %v4420 = vld [vmem:[%s4 + $0x2c] sm:$0xf]
        %v4421 = vld [vmem:[%s4 + $0x30] sm:$0xf]
        %v4422 = vld [vmem:[%s4 + $0x34] sm:$0xf]
        %v4423 = vld [vmem:[%s4 + $0x38] sm:$0xf]
        %v4424 = vld [vmem:[%s4 + $0x3c] sm:$0xf]
        %v4425 = vld [vmem:[%s4 + $0x40] sm:$0xf]
        %v4426 = vld [vmem:[%s4 + $0x44] sm:$0xf]
        %v4427 = vld [vmem:[%s4 + $0x48] sm:$0xf]
        %v4428 = vld [vmem:[%s4 + $0x4c] sm:$0xf]
        %v4445 = vunpack.c.l.b16 %v4413
        %v4446 = vunpack.c.l.b16 %v4414
        %v4447 = vunpack.c.l.b16 %v4415
        %v4448 = vunpack.c.l.b16 %v4416
        %v4449 = vunpack.c.l.b16 %v4417
        %v4450 = vunpack.c.l.b16 %v4418
        %v4451 = vunpack.c.l.b16 %v4419
        %v4452 = vunpack.c.l.b16 %v4420
        %v4453 = vunpack.c.l.b16 %v4421
        %v4454 = vunpack.c.l.b16 %v4422
        %v4455 = vunpack.c.l.b16 %v4423
        %v4456 = vunpack.c.l.b16 %v4424
        %v4457 = vunpack.c.l.b16 %v4425
        %v4458 = vunpack.c.l.b16 %v4426
        %v4459 = vunpack.c.l.b16 %v4427
        %v4460 = vunpack.c.l.b16 %v4428
        %v4461 = vpack.c.b16 %v4446, %v4445
        %v4462 = vpack.c.b16 %v4448, %v4447
        %v4463 = vpack.c.b16 %v4450, %v4449
        %v4464 = vpack.c.b16 %v4452, %v4451
        %v4465 = vpack.c.b16 %v4454, %v4453
        %v4466 = vpack.c.b16 %v4456, %v4455
        %v4467 = vpack.c.b16 %v4458, %v4457
        %v4468 = vpack.c.b16 %v4460, %v4459
        %4477 = vmatprep.subr.bf16.mxu0 0
        %4478 = vmatpush1.bf16.msra.mxu0 %v4461
        %4479 = vmatprep.subr.bf16.mxu0 0
        %4480 = vmatpush1.bf16.msra.mxu0 %v4462
        %4481 = vmatprep.subr.bf16.mxu0 0
        %4482 = vmatpush1.bf16.msra.mxu0 %v4463
        %4483 = vmatprep.subr.bf16.mxu0 0
        %4484 = vmatpush1.bf16.msra.mxu0 %v4464
        %4485 = vmatprep.subr.bf16.mxu0 0
        %4486 = vmatpush1.bf16.msra.mxu0 %v4465
        %4487 = vmatprep.subr.bf16.mxu0 0
        %4488 = vmatpush1.bf16.msra.mxu0 %v4466
        %4489 = vmatprep.subr.bf16.mxu0 0
        %4490 = vmatpush1.bf16.msra.mxu0 %v4467
        %4491 = vmatprep.subr.bf16.mxu0 0
        %4492 = vmatpush1.bf16.msra.mxu0 %v4468
        %4493 = vmatprep.subr.bf16.mxu0 0
        %4494 = vmatpush1.bf16.msra.mxu0 0
        %4495 = vmatprep.subr.bf16.mxu0 0
        %4496 = vmatpush1.bf16.msra.mxu0 0
        %4497 = vmatprep.subr.bf16.mxu0 0
        %4498 = vmatpush1.bf16.msra.mxu0 0
        %4499 = vmatprep.subr.bf16.mxu0 0
        %4500 = vmatpush1.bf16.msra.mxu0 0
        %4501 = vmatprep.subr.bf16.mxu0 0
        %4502 = vmatpush1.bf16.msra.mxu0 0
        %4503 = vmatprep.subr.bf16.mxu0 0
        %4504 = vmatpush1.bf16.msra.mxu0 0
        %4505 = vmatprep.subr.bf16.mxu0 0
        %4506 = vmatpush1.bf16.msra.mxu0 0
        %4507 = vmatprep.subr.bf16.mxu0 0
        %4508 = vmatpush1.bf16.msra.mxu0 0
        %4509 = vmatprep.mubr.bf16.mxu0 0
        %4510 = vmatmul.mubr.bf16.gmra.mrb[0].mxu0 %v4397
        %v4511 = vpop.f32.mrb[0].mxu0
        %v4512 = vadd.f32 0.0, %v4511
        %v4513 = vpop.f32.mrb[0].mxu0
        %v4514 = vpop.f32.mrb[0].mxu0
        %v4515 = vadd.f32 0.0, %v4514
        %v4516 = vpop.f32.mrb[0].mxu0
        %4517 = vmatprep.mubr.bf16.mxu0 0
        %4518 = vmatmul.mubr.bf16.gmra.mrb[0].mxu0 %v4398
        %v4519 = vpop.f32.mrb[0].mxu0
        %v4520 = vadd.f32 0.0, %v4519
        %v4521 = vpop.f32.mrb[0].mxu0
        %v4522 = vpop.f32.mrb[0].mxu0
        %v4523 = vadd.f32 0.0, %v4522
        %v4524 = vpop.f32.mrb[0].mxu0
        %4525 = vmatprep.mubr.bf16.mxu0 0
        %4526 = vmatmul.mubr.bf16.gmra.mrb[0].mxu0 %v4399
        %v4527 = vpop.f32.mrb[0].mxu0
        %v4528 = vadd.f32 0.0, %v4527
        %v4529 = vpop.f32.mrb[0].mxu0
        %v4530 = vpop.f32.mrb[0].mxu0
        %v4531 = vadd.f32 0.0, %v4530
        %v4532 = vpop.f32.mrb[0].mxu0
        %4533 = vmatprep.mubr.bf16.mxu0 0
        %4534 = vmatmul.mubr.bf16.gmra.mrb[0].mxu0 %v4400
        %v4535 = vpop.f32.mrb[0].mxu0
        %v4536 = vadd.f32 0.0, %v4535
        %v4537 = vpop.f32.mrb[0].mxu0
        %v4538 = vpop.f32.mrb[0].mxu0
        %v4539 = vadd.f32 0.0, %v4538
        %v4540 = vpop.f32.mrb[0].mxu0
        %4541 = vmatprep.mubr.bf16.mxu0 0
        %4542 = vmatmul.mubr.bf16.gmra.mrb[0].mxu0 %v4401
        %v4543 = vpop.f32.mrb[0].mxu0
        %v4544 = vadd.f32 0.0, %v4543
        %v4545 = vpop.f32.mrb[0].mxu0
        %v4546 = vpop.f32.mrb[0].mxu0
        %v4547 = vadd.f32 0.0, %v4546
        %v4548 = vpop.f32.mrb[0].mxu0
        %4549 = vmatprep.mubr.bf16.mxu0 0
        %4550 = vmatmul.mubr.bf16.gmra.mrb[0].mxu0 %v4402
        %v4551 = vpop.f32.mrb[0].mxu0
        %v4552 = vadd.f32 0.0, %v4551
        %v4553 = vpop.f32.mrb[0].mxu0
        %v4554 = vpop.f32.mrb[0].mxu0
        %v4555 = vadd.f32 0.0, %v4554
        %v4556 = vpop.f32.mrb[0].mxu0
        %4557 = vmatprep.mubr.bf16.mxu0 0
        %4558 = vmatmul.mubr.bf16.gmra.mrb[0].mxu0 %v4403
        %v4559 = vpop.f32.mrb[0].mxu0
        %v4560 = vadd.f32 0.0, %v4559
        %v4561 = vpop.f32.mrb[0].mxu0
        %v4562 = vpop.f32.mrb[0].mxu0
        %v4563 = vadd.f32 0.0, %v4562
        %v4564 = vpop.f32.mrb[0].mxu0
        %4565 = vmatprep.mubr.bf16.mxu0 0
        %4566 = vmatmul.mubr.bf16.gmra.mrb[0].mxu0 %v4404
        %v4567 = vpop.f32.mrb[0].mxu0
        %v4568 = vadd.f32 0.0, %v4567
        %v4569 = vpop.f32.mrb[0].mxu0
        %v4570 = vpop.f32.mrb[0].mxu0
        %v4571 = vadd.f32 0.0, %v4570
        %v4572 = vpop.f32.mrb[0].mxu0
        %4573 = vmatprep.mubr.bf16.mxu0 0
        %4574 = vmatmul.mubr.bf16.gmra.mrb[0].mxu0 %v4405
        %v4575 = vpop.f32.mrb[0].mxu0
        %v4576 = vadd.f32 0.0, %v4575
        %v4577 = vpop.f32.mrb[0].mxu0
        %v4578 = vpop.f32.mrb[0].mxu0
        %v4579 = vadd.f32 0.0, %v4578
        %v4580 = vpop.f32.mrb[0].mxu0
        %4581 = vmatprep.mubr.bf16.mxu0 0
        %4582 = vmatmul.mubr.bf16.gmra.mrb[0].mxu0 %v4406
        %v4583 = vpop.f32.mrb[0].mxu0
        %v4584 = vadd.f32 0.0, %v4583
        %v4585 = vpop.f32.mrb[0].mxu0
        %v4586 = vpop.f32.mrb[0].mxu0
        %v4587 = vadd.f32 0.0, %v4586
        %v4588 = vpop.f32.mrb[0].mxu0
        %4589 = vmatprep.mubr.bf16.mxu0 0
        %4590 = vmatmul.mubr.bf16.gmra.mrb[0].mxu0 %v4407
        %v4591 = vpop.f32.mrb[0].mxu0
        %v4592 = vadd.f32 0.0, %v4591
        %v4593 = vpop.f32.mrb[0].mxu0
        %v4594 = vpop.f32.mrb[0].mxu0
        %v4595 = vadd.f32 0.0, %v4594
        %v4596 = vpop.f32.mrb[0].mxu0
        %4597 = vmatprep.mubr.bf16.mxu0 0
        %4598 = vmatmul.mubr.bf16.gmra.mrb[0].mxu0 %v4408
        %v4599 = vpop.f32.mrb[0].mxu0
        %v4600 = vadd.f32 0.0, %v4599
        %v4601 = vpop.f32.mrb[0].mxu0
        %v4602 = vpop.f32.mrb[0].mxu0
        %v4603 = vadd.f32 0.0, %v4602
        %v4604 = vpop.f32.mrb[0].mxu0
        %4605 = vmatprep.mubr.bf16.mxu0 0
        %4606 = vmatmul.mubr.bf16.gmra.mrb[0].mxu0 %v4409
        %v4607 = vpop.f32.mrb[0].mxu0
        %v4608 = vadd.f32 0.0, %v4607
        %v4609 = vpop.f32.mrb[0].mxu0
        %v4610 = vpop.f32.mrb[0].mxu0
        %v4611 = vadd.f32 0.0, %v4610
        %v4612 = vpop.f32.mrb[0].mxu0
        %4613 = vmatprep.mubr.bf16.mxu0 0
        %4614 = vmatmul.mubr.bf16.gmra.mrb[0].mxu0 %v4410
        %v4615 = vpop.f32.mrb[0].mxu0
        %v4616 = vadd.f32 0.0, %v4615
        %v4617 = vpop.f32.mrb[0].mxu0
        %v4618 = vpop.f32.mrb[0].mxu0
        %v4619 = vadd.f32 0.0, %v4618
        %v4620 = vpop.f32.mrb[0].mxu0
        %4621 = vmatprep.mubr.bf16.mxu0 0
        %4622 = vmatmul.mubr.bf16.gmra.mrb[0].mxu0 %v4411
        %v4623 = vpop.f32.mrb[0].mxu0
        %v4624 = vadd.f32 0.0, %v4623
        %v4625 = vpop.f32.mrb[0].mxu0
        %v4626 = vpop.f32.mrb[0].mxu0
        %v4627 = vadd.f32 0.0, %v4626
        %v4628 = vpop.f32.mrb[0].mxu0
        %4629 = vmatprep.mubr.bf16.mxu0 0
        %4630 = vmatmul.mubr.bf16.gmra.mrb[0].mxu0 %v4412
        %v4631 = vpop.f32.mrb[0].mxu0
        %v4632 = vadd.f32 0.0, %v4631
        %v4633 = vpop.f32.mrb[0].mxu0
        %v4634 = vpop.f32.mrb[0].mxu0
        %v4635 = vadd.f32 0.0, %v4634
        %v4636 = vpop.f32.mrb[0].mxu0
        %4637 = vdwg.mxu0
        %v4638 = vld [vmem:[%s5 + $0xd] sm:$0x1]
        %v4639 = vlaneseq
        %v4640 = vshrl.u32 %v4639, 7
        %v4641 = vsub.s32 0, %v4640
        %v4642 = vrot.slane %v4638, %v4641
        %v4643 = vmul.f32 %v4512, %v4642
        %v4644 = vmul.f32 %v4515, %v4642
        %v4645 = vmul.f32 %v4520, %v4642
        %v4646 = vmul.f32 %v4523, %v4642
        %v4647 = vmul.f32 %v4528, %v4642
        %v4648 = vmul.f32 %v4531, %v4642
        %v4649 = vmul.f32 %v4536, %v4642
        %v4650 = vmul.f32 %v4539, %v4642
        %v4651 = vmul.f32 %v4544, %v4642
        %v4652 = vmul.f32 %v4547, %v4642
        %v4653 = vmul.f32 %v4552, %v4642
        %v4654 = vmul.f32 %v4555, %v4642
        %v4655 = vmul.f32 %v4560, %v4642
        %v4656 = vmul.f32 %v4563, %v4642
        %v4657 = vmul.f32 %v4568, %v4642
        %v4658 = vmul.f32 %v4571, %v4642
        %v4659 = vmul.f32 %v4576, %v4642
        %v4660 = vmul.f32 %v4579, %v4642
        %v4661 = vmul.f32 %v4584, %v4642
        %v4662 = vmul.f32 %v4587, %v4642
        %v4663 = vmul.f32 %v4592, %v4642
        %v4664 = vmul.f32 %v4595, %v4642
        %v4665 = vmul.f32 %v4600, %v4642
        %v4666 = vmul.f32 %v4603, %v4642
        %v4667 = vmul.f32 %v4608, %v4642
        %v4668 = vmul.f32 %v4611, %v4642
        %v4669 = vmul.f32 %v4616, %v4642
        %v4670 = vmul.f32 %v4619, %v4642
        %v4671 = vmul.f32 %v4624, %v4642
        %v4672 = vmul.f32 %v4627, %v4642
        %v4673 = vmul.f32 %v4632, %v4642
        %v4674 = vmul.f32 %v4635, %v4642
        %v4675 = vld [vmem:[%s5 + $0xe] sm:$0x1]
        %v4676 = vlaneseq
        %v4677 = vshrl.u32 %v4676, 7
        %v4678 = vsub.s32 0, %v4677
        %v4679 = vrot.slane %v4675, %v4678
        %v4680 = vadd.f32 %v4643, %v4679
        %v4681 = vadd.f32 %v4644, %v4679
        %v4682 = vadd.f32 %v4645, %v4679
        %v4683 = vadd.f32 %v4646, %v4679
        %v4684 = vadd.f32 %v4647, %v4679
        %v4685 = vadd.f32 %v4648, %v4679
        %v4686 = vadd.f32 %v4649, %v4679
        %v4687 = vadd.f32 %v4650, %v4679
        %v4688 = vadd.f32 %v4651, %v4679
        %v4689 = vadd.f32 %v4652, %v4679
        %v4690 = vadd.f32 %v4653, %v4679
        %v4691 = vadd.f32 %v4654, %v4679
        %v4692 = vadd.f32 %v4655, %v4679
        %v4693 = vadd.f32 %v4656, %v4679
        %v4694 = vadd.f32 %v4657, %v4679
        %v4695 = vadd.f32 %v4658, %v4679
        %v4696 = vadd.f32 %v4659, %v4679
        %v4697 = vadd.f32 %v4660, %v4679
        %v4698 = vadd.f32 %v4661, %v4679
        %v4699 = vadd.f32 %v4662, %v4679
        %v4700 = vadd.f32 %v4663, %v4679
        %v4701 = vadd.f32 %v4664, %v4679
        %v4702 = vadd.f32 %v4665, %v4679
        %v4703 = vadd.f32 %v4666, %v4679
        %v4704 = vadd.f32 %v4667, %v4679
        %v4705 = vadd.f32 %v4668, %v4679
        %v4706 = vadd.f32 %v4669, %v4679
        %v4707 = vadd.f32 %v4670, %v4679
        %v4708 = vadd.f32 %v4671, %v4679
        %v4709 = vadd.f32 %v4672, %v4679
        %v4710 = vadd.f32 %v4673, %v4679
        %v4711 = vadd.f32 %v4674, %v4679
        %v4712 = vadd.f32 %v4680, %v709
        %v4713 = vadd.f32 %v4681, %v710
        %v4714 = vadd.f32 %v4682, %v711
        %v4715 = vadd.f32 %v4683, %v712
        %v4716 = vadd.f32 %v4684, %v713
        %v4717 = vadd.f32 %v4685, %v714
        %v4718 = vadd.f32 %v4686, %v715
        %v4719 = vadd.f32 %v4687, %v716
        %v4720 = vadd.f32 %v4688, %v717
        %v4721 = vadd.f32 %v4689, %v718
        %v4722 = vadd.f32 %v4690, %v719
        %v4723 = vadd.f32 %v4691, %v720
        %v4724 = vadd.f32 %v4692, %v721
        %v4725 = vadd.f32 %v4693, %v722
        %v4726 = vadd.f32 %v4694, %v723
        %v4727 = vadd.f32 %v4695, %v724
        %v4728 = vadd.f32 %v4696, %v725
        %v4729 = vadd.f32 %v4697, %v726
        %v4730 = vadd.f32 %v4698, %v727
        %v4731 = vadd.f32 %v4699, %v728
        %v4732 = vadd.f32 %v4700, %v729
        %v4733 = vadd.f32 %v4701, %v730
        %v4734 = vadd.f32 %v4702, %v731
        %v4735 = vadd.f32 %v4703, %v732
        %v4736 = vadd.f32 %v4704, %v733
        %v4737 = vadd.f32 %v4705, %v734
        %v4738 = vadd.f32 %v4706, %v735
        %v4739 = vadd.f32 %v4707, %v736
        %v4740 = vadd.f32 %v4708, %v737
        %v4741 = vadd.f32 %v4709, %v738
        %v4742 = vadd.f32 %v4710, %v739
        %v4743 = vadd.f32 %v4711, %v740
        %v4744 = vpack.c.bf16 %v4713, %v4712
        %v4745 = vpack.c.bf16 %v4715, %v4714
        %v4746 = vpack.c.bf16 %v4717, %v4716
        %v4747 = vpack.c.bf16 %v4719, %v4718
        %v4748 = vpack.c.bf16 %v4721, %v4720
        %v4749 = vpack.c.bf16 %v4723, %v4722
        %v4750 = vpack.c.bf16 %v4725, %v4724
        %v4751 = vpack.c.bf16 %v4727, %v4726
        %v4752 = vpack.c.bf16 %v4729, %v4728
        %v4753 = vpack.c.bf16 %v4731, %v4730
        %v4754 = vpack.c.bf16 %v4733, %v4732
        %v4755 = vpack.c.bf16 %v4735, %v4734
        %v4756 = vpack.c.bf16 %v4737, %v4736
        %v4757 = vpack.c.bf16 %v4739, %v4738
        %v4758 = vpack.c.bf16 %v4741, %v4740
        %v4759 = vpack.c.bf16 %v4743, %v4742
        %v4760 = vld [vmem:[%s4 + $0x50] sm:$0xf]
        %v4761 = vld [vmem:[%s4 + $0x54] sm:$0xf]
        %v4762 = vld [vmem:[%s4 + $0x58] sm:$0xf]
        %v4763 = vld [vmem:[%s4 + $0x5c] sm:$0xf]
        %v4764 = vld [vmem:[%s4 + $0x60] sm:$0xf]
        %v4765 = vld [vmem:[%s4 + $0x64] sm:$0xf]
        %v4766 = vld [vmem:[%s4 + $0x68] sm:$0xf]
        %v4767 = vld [vmem:[%s4 + $0x6c] sm:$0xf]
        %v4768 = vld [vmem:[%s4 + $0x70] sm:$0xf]
        %v4769 = vld [vmem:[%s4 + $0x74] sm:$0xf]
        %v4770 = vld [vmem:[%s4 + $0x78] sm:$0xf]
        %v4771 = vld [vmem:[%s4 + $0x7c] sm:$0xf]
        %v4772 = vld [vmem:[%s4 + $0x80] sm:$0xf]
        %v4773 = vld [vmem:[%s4 + $0x84] sm:$0xf]
        %v4774 = vld [vmem:[%s4 + $0x88] sm:$0xf]
        %v4775 = vld [vmem:[%s4 + $0x8c] sm:$0xf]
        %v4792 = vunpack.c.l.b16 %v4760
        %v4793 = vunpack.c.l.b16 %v4761
        %v4794 = vunpack.c.l.b16 %v4762
        %v4795 = vunpack.c.l.b16 %v4763
        %v4796 = vunpack.c.l.b16 %v4764
        %v4797 = vunpack.c.l.b16 %v4765
        %v4798 = vunpack.c.l.b16 %v4766
        %v4799 = vunpack.c.l.b16 %v4767
        %v4800 = vunpack.c.l.b16 %v4768
        %v4801 = vunpack.c.l.b16 %v4769
        %v4802 = vunpack.c.l.b16 %v4770
        %v4803 = vunpack.c.l.b16 %v4771
        %v4804 = vunpack.c.l.b16 %v4772
        %v4805 = vunpack.c.l.b16 %v4773
        %v4806 = vunpack.c.l.b16 %v4774
        %v4807 = vunpack.c.l.b16 %v4775
        %v4808 = vpack.c.b16 %v4793, %v4792
        %v4809 = vpack.c.b16 %v4795, %v4794
        %v4810 = vpack.c.b16 %v4797, %v4796
        %v4811 = vpack.c.b16 %v4799, %v4798
        %v4812 = vpack.c.b16 %v4801, %v4800
        %v4813 = vpack.c.b16 %v4803, %v4802
        %v4814 = vpack.c.b16 %v4805, %v4804
        %v4815 = vpack.c.b16 %v4807, %v4806
        %4824 = vmatprep.subr.bf16.mxu0 0
        %4825 = vmatpush1.bf16.msra.mxu0 %v4808
        %4826 = vmatprep.subr.bf16.mxu0 0
        %4827 = vmatpush1.bf16.msra.mxu0 %v4809
        %4828 = vmatprep.subr.bf16.mxu0 0
        %4829 = vmatpush1.bf16.msra.mxu0 %v4810
        %4830 = vmatprep.subr.bf16.mxu0 0
        %4831 = vmatpush1.bf16.msra.mxu0 %v4811
        %4832 = vmatprep.subr.bf16.mxu0 0
        %4833 = vmatpush1.bf16.msra.mxu0 %v4812
        %4834 = vmatprep.subr.bf16.mxu0 0
        %4835 = vmatpush1.bf16.msra.mxu0 %v4813
        %4836 = vmatprep.subr.bf16.mxu0 0
        %4837 = vmatpush1.bf16.msra.mxu0 %v4814
        %4838 = vmatprep.subr.bf16.mxu0 0
        %4839 = vmatpush1.bf16.msra.mxu0 %v4815
        %4840 = vmatprep.subr.bf16.mxu0 0
        %4841 = vmatpush1.bf16.msra.mxu0 0
        %4842 = vmatprep.subr.bf16.mxu0 0
        %4843 = vmatpush1.bf16.msra.mxu0 0
        %4844 = vmatprep.subr.bf16.mxu0 0
        %4845 = vmatpush1.bf16.msra.mxu0 0
        %4846 = vmatprep.subr.bf16.mxu0 0
        %4847 = vmatpush1.bf16.msra.mxu0 0
        %4848 = vmatprep.subr.bf16.mxu0 0
        %4849 = vmatpush1.bf16.msra.mxu0 0
        %4850 = vmatprep.subr.bf16.mxu0 0
        %4851 = vmatpush1.bf16.msra.mxu0 0
        %4852 = vmatprep.subr.bf16.mxu0 0
        %4853 = vmatpush1.bf16.msra.mxu0 0
        %4854 = vmatprep.subr.bf16.mxu0 0
        %4855 = vmatpush1.bf16.msra.mxu0 0
        %4856 = vmatprep.mubr.bf16.mxu0 0
        %4857 = vmatmul.mubr.bf16.gmra.mrb[0].mxu0 %v4744
        %v4858 = vpop.f32.mrb[0].mxu0
        %v4859 = vadd.f32 0.0, %v4858
        %v4860 = vpop.f32.mrb[0].mxu0
        %v4861 = vpop.f32.mrb[0].mxu0
        %v4862 = vadd.f32 0.0, %v4861
        %v4863 = vpop.f32.mrb[0].mxu0
        %4864 = vmatprep.mubr.bf16.mxu0 0
        %4865 = vmatmul.mubr.bf16.gmra.mrb[0].mxu0 %v4745
        %v4866 = vpop.f32.mrb[0].mxu0
        %v4867 = vadd.f32 0.0, %v4866
        %v4868 = vpop.f32.mrb[0].mxu0
        %v4869 = vpop.f32.mrb[0].mxu0
        %v4870 = vadd.f32 0.0, %v4869
        %v4871 = vpop.f32.mrb[0].mxu0
        %4872 = vmatprep.mubr.bf16.mxu0 0
        %4873 = vmatmul.mubr.bf16.gmra.mrb[0].mxu0 %v4746
        %v4874 = vpop.f32.mrb[0].mxu0
        %v4875 = vadd.f32 0.0, %v4874
        %v4876 = vpop.f32.mrb[0].mxu0
        %v4877 = vpop.f32.mrb[0].mxu0
        %v4878 = vadd.f32 0.0, %v4877
        %v4879 = vpop.f32.mrb[0].mxu0
        %4880 = vmatprep.mubr.bf16.mxu0 0
        %4881 = vmatmul.mubr.bf16.gmra.mrb[0].mxu0 %v4747
        %v4882 = vpop.f32.mrb[0].mxu0
        %v4883 = vadd.f32 0.0, %v4882
        %v4884 = vpop.f32.mrb[0].mxu0
        %v4885 = vpop.f32.mrb[0].mxu0
        %v4886 = vadd.f32 0.0, %v4885
        %v4887 = vpop.f32.mrb[0].mxu0
        %4888 = vmatprep.mubr.bf16.mxu0 0
        %4889 = vmatmul.mubr.bf16.gmra.mrb[0].mxu0 %v4748
        %v4890 = vpop.f32.mrb[0].mxu0
        %v4891 = vadd.f32 0.0, %v4890
        %v4892 = vpop.f32.mrb[0].mxu0
        %v4893 = vpop.f32.mrb[0].mxu0
        %v4894 = vadd.f32 0.0, %v4893
        %v4895 = vpop.f32.mrb[0].mxu0
        %4896 = vmatprep.mubr.bf16.mxu0 0
        %4897 = vmatmul.mubr.bf16.gmra.mrb[0].mxu0 %v4749
        %v4898 = vpop.f32.mrb[0].mxu0
        %v4899 = vadd.f32 0.0, %v4898
        %v4900 = vpop.f32.mrb[0].mxu0
        %v4901 = vpop.f32.mrb[0].mxu0
        %v4902 = vadd.f32 0.0, %v4901
        %v4903 = vpop.f32.mrb[0].mxu0
        %4904 = vmatprep.mubr.bf16.mxu0 0
        %4905 = vmatmul.mubr.bf16.gmra.mrb[0].mxu0 %v4750
        %v4906 = vpop.f32.mrb[0].mxu0
        %v4907 = vadd.f32 0.0, %v4906
        %v4908 = vpop.f32.mrb[0].mxu0
        %v4909 = vpop.f32.mrb[0].mxu0
        %v4910 = vadd.f32 0.0, %v4909
        %v4911 = vpop.f32.mrb[0].mxu0
        %4912 = vmatprep.mubr.bf16.mxu0 0
        %4913 = vmatmul.mubr.bf16.gmra.mrb[0].mxu0 %v4751
        %v4914 = vpop.f32.mrb[0].mxu0
        %v4915 = vadd.f32 0.0, %v4914
        %v4916 = vpop.f32.mrb[0].mxu0
        %v4917 = vpop.f32.mrb[0].mxu0
        %v4918 = vadd.f32 0.0, %v4917
        %v4919 = vpop.f32.mrb[0].mxu0
        %4920 = vmatprep.mubr.bf16.mxu0 0
        %4921 = vmatmul.mubr.bf16.gmra.mrb[0].mxu0 %v4752
        %v4922 = vpop.f32.mrb[0].mxu0
        %v4923 = vadd.f32 0.0, %v4922
        %v4924 = vpop.f32.mrb[0].mxu0
        %v4925 = vpop.f32.mrb[0].mxu0
        %v4926 = vadd.f32 0.0, %v4925
        %v4927 = vpop.f32.mrb[0].mxu0
        %4928 = vmatprep.mubr.bf16.mxu0 0
        %4929 = vmatmul.mubr.bf16.gmra.mrb[0].mxu0 %v4753
        %v4930 = vpop.f32.mrb[0].mxu0
        %v4931 = vadd.f32 0.0, %v4930
        %v4932 = vpop.f32.mrb[0].mxu0
        %v4933 = vpop.f32.mrb[0].mxu0
        %v4934 = vadd.f32 0.0, %v4933
        %v4935 = vpop.f32.mrb[0].mxu0
        %4936 = vmatprep.mubr.bf16.mxu0 0
        %4937 = vmatmul.mubr.bf16.gmra.mrb[0].mxu0 %v4754
        %v4938 = vpop.f32.mrb[0].mxu0
        %v4939 = vadd.f32 0.0, %v4938
        %v4940 = vpop.f32.mrb[0].mxu0
        %v4941 = vpop.f32.mrb[0].mxu0
        %v4942 = vadd.f32 0.0, %v4941
        %v4943 = vpop.f32.mrb[0].mxu0
        %4944 = vmatprep.mubr.bf16.mxu0 0
        %4945 = vmatmul.mubr.bf16.gmra.mrb[0].mxu0 %v4755
        %v4946 = vpop.f32.mrb[0].mxu0
        %v4947 = vadd.f32 0.0, %v4946
        %v4948 = vpop.f32.mrb[0].mxu0
        %v4949 = vpop.f32.mrb[0].mxu0
        %v4950 = vadd.f32 0.0, %v4949
        %v4951 = vpop.f32.mrb[0].mxu0
        %4952 = vmatprep.mubr.bf16.mxu0 0
        %4953 = vmatmul.mubr.bf16.gmra.mrb[0].mxu0 %v4756
        %v4954 = vpop.f32.mrb[0].mxu0
        %v4955 = vadd.f32 0.0, %v4954
        %v4956 = vpop.f32.mrb[0].mxu0
        %v4957 = vpop.f32.mrb[0].mxu0
        %v4958 = vadd.f32 0.0, %v4957
        %v4959 = vpop.f32.mrb[0].mxu0
        %4960 = vmatprep.mubr.bf16.mxu0 0
        %4961 = vmatmul.mubr.bf16.gmra.mrb[0].mxu0 %v4757
        %v4962 = vpop.f32.mrb[0].mxu0
        %v4963 = vadd.f32 0.0, %v4962
        %v4964 = vpop.f32.mrb[0].mxu0
        %v4965 = vpop.f32.mrb[0].mxu0
        %v4966 = vadd.f32 0.0, %v4965
        %v4967 = vpop.f32.mrb[0].mxu0
        %4968 = vmatprep.mubr.bf16.mxu0 0
        %4969 = vmatmul.mubr.bf16.gmra.mrb[0].mxu0 %v4758
        %v4970 = vpop.f32.mrb[0].mxu0
        %v4971 = vadd.f32 0.0, %v4970
        %v4972 = vpop.f32.mrb[0].mxu0
        %v4973 = vpop.f32.mrb[0].mxu0
        %v4974 = vadd.f32 0.0, %v4973
        %v4975 = vpop.f32.mrb[0].mxu0
        %4976 = vmatprep.mubr.bf16.mxu0 0
        %4977 = vmatmul.mubr.bf16.gmra.mrb[0].mxu0 %v4759
        %v4978 = vpop.f32.mrb[0].mxu0
        %v4979 = vadd.f32 0.0, %v4978
        %v4980 = vpop.f32.mrb[0].mxu0
        %v4981 = vpop.f32.mrb[0].mxu0
        %v4982 = vadd.f32 0.0, %v4981
        %v4983 = vpop.f32.mrb[0].mxu0
        %4984 = vdwg.mxu0
        %v4985 = vld [vmem:[%s5 + $0xf] sm:$0x1]
        %v4986 = vlaneseq
        %v4987 = vshrl.u32 %v4986, 7
        %v4988 = vsub.s32 0, %v4987
        %v4989 = vrot.slane %v4985, %v4988
        %v4990 = vmul.f32 %v4859, %v4989
        %v4991 = vmul.f32 %v4862, %v4989
        %v4992 = vmul.f32 %v4867, %v4989
        %v4993 = vmul.f32 %v4870, %v4989
        %v4994 = vmul.f32 %v4875, %v4989
        %v4995 = vmul.f32 %v4878, %v4989
        %v4996 = vmul.f32 %v4883, %v4989
        %v4997 = vmul.f32 %v4886, %v4989
        %v4998 = vmul.f32 %v4891, %v4989
        %v4999 = vmul.f32 %v4894, %v4989
        %v5000 = vmul.f32 %v4899, %v4989
        %v5001 = vmul.f32 %v4902, %v4989
        %v5002 = vmul.f32 %v4907, %v4989
        %v5003 = vmul.f32 %v4910, %v4989
        %v5004 = vmul.f32 %v4915, %v4989
        %v5005 = vmul.f32 %v4918, %v4989
        %v5006 = vmul.f32 %v4923, %v4989
        %v5007 = vmul.f32 %v4926, %v4989
        %v5008 = vmul.f32 %v4931, %v4989
        %v5009 = vmul.f32 %v4934, %v4989
        %v5010 = vmul.f32 %v4939, %v4989
        %v5011 = vmul.f32 %v4942, %v4989
        %v5012 = vmul.f32 %v4947, %v4989
        %v5013 = vmul.f32 %v4950, %v4989
        %v5014 = vmul.f32 %v4955, %v4989
        %v5015 = vmul.f32 %v4958, %v4989
        %v5016 = vmul.f32 %v4963, %v4989
        %v5017 = vmul.f32 %v4966, %v4989
        %v5018 = vmul.f32 %v4971, %v4989
        %v5019 = vmul.f32 %v4974, %v4989
        %v5020 = vmul.f32 %v4979, %v4989
        %v5021 = vmul.f32 %v4982, %v4989
        %v5022 = vld [vmem:[%s5 + $0x10] sm:$0x1]
        %v5023 = vlaneseq
        %v5024 = vshrl.u32 %v5023, 7
        %v5025 = vsub.s32 0, %v5024
        %v5026 = vrot.slane %v5022, %v5025
        %v5027 = vadd.f32 %v4990, %v5026
        %v5028 = vadd.f32 %v4991, %v5026
        %v5029 = vadd.f32 %v4992, %v5026
        %v5030 = vadd.f32 %v4993, %v5026
        %v5031 = vadd.f32 %v4994, %v5026
        %v5032 = vadd.f32 %v4995, %v5026
        %v5033 = vadd.f32 %v4996, %v5026
        %v5034 = vadd.f32 %v4997, %v5026
        %v5035 = vadd.f32 %v4998, %v5026
        %v5036 = vadd.f32 %v4999, %v5026
        %v5037 = vadd.f32 %v5000, %v5026
        %v5038 = vadd.f32 %v5001, %v5026
        %v5039 = vadd.f32 %v5002, %v5026
        %v5040 = vadd.f32 %v5003, %v5026
        %v5041 = vadd.f32 %v5004, %v5026
        %v5042 = vadd.f32 %v5005, %v5026
        %v5043 = vadd.f32 %v5006, %v5026
        %v5044 = vadd.f32 %v5007, %v5026
        %v5045 = vadd.f32 %v5008, %v5026
        %v5046 = vadd.f32 %v5009, %v5026
        %v5047 = vadd.f32 %v5010, %v5026
        %v5048 = vadd.f32 %v5011, %v5026
        %v5049 = vadd.f32 %v5012, %v5026
        %v5050 = vadd.f32 %v5013, %v5026
        %v5051 = vadd.f32 %v5014, %v5026
        %v5052 = vadd.f32 %v5015, %v5026
        %v5053 = vadd.f32 %v5016, %v5026
        %v5054 = vadd.f32 %v5017, %v5026
        %v5055 = vadd.f32 %v5018, %v5026
        %v5056 = vadd.f32 %v5019, %v5026
        %v5057 = vadd.f32 %v5020, %v5026
        %v5058 = vadd.f32 %v5021, %v5026
        %v5059 = vmax.f32 %v5027, 0.0
        %v5060 = vmax.f32 %v5028, 0.0
        %v5061 = vmax.f32 %v5029, 0.0
        %v5062 = vmax.f32 %v5030, 0.0
        %v5063 = vmax.f32 %v5031, 0.0
        %v5064 = vmax.f32 %v5032, 0.0
        %v5065 = vmax.f32 %v5033, 0.0
        %v5066 = vmax.f32 %v5034, 0.0
        %v5067 = vmax.f32 %v5035, 0.0
        %v5068 = vmax.f32 %v5036, 0.0
        %v5069 = vmax.f32 %v5037, 0.0
        %v5070 = vmax.f32 %v5038, 0.0
        %v5071 = vmax.f32 %v5039, 0.0
        %v5072 = vmax.f32 %v5040, 0.0
        %v5073 = vmax.f32 %v5041, 0.0
        %v5074 = vmax.f32 %v5042, 0.0
        %v5075 = vmax.f32 %v5043, 0.0
        %v5076 = vmax.f32 %v5044, 0.0
        %v5077 = vmax.f32 %v5045, 0.0
        %v5078 = vmax.f32 %v5046, 0.0
        %v5079 = vmax.f32 %v5047, 0.0
        %v5080 = vmax.f32 %v5048, 0.0
        %v5081 = vmax.f32 %v5049, 0.0
        %v5082 = vmax.f32 %v5050, 0.0
        %v5083 = vmax.f32 %v5051, 0.0
        %v5084 = vmax.f32 %v5052, 0.0
        %v5085 = vmax.f32 %v5053, 0.0
        %v5086 = vmax.f32 %v5054, 0.0
        %v5087 = vmax.f32 %v5055, 0.0
        %v5088 = vmax.f32 %v5056, 0.0
        %v5089 = vmax.f32 %v5057, 0.0
        %v5090 = vmax.f32 %v5058, 0.0
        %v5091 = vmin.f32 %v5059, 6.0
        %v5092 = vmin.f32 %v5060, 6.0
        %v5093 = vmin.f32 %v5061, 6.0
        %v5094 = vmin.f32 %v5062, 6.0
        %v5095 = vmin.f32 %v5063, 6.0
        %v5096 = vmin.f32 %v5064, 6.0
        %v5097 = vmin.f32 %v5065, 6.0
        %v5098 = vmin.f32 %v5066, 6.0
        %v5099 = vmin.f32 %v5067, 6.0
        %v5100 = vmin.f32 %v5068, 6.0
        %v5101 = vmin.f32 %v5069, 6.0
        %v5102 = vmin.f32 %v5070, 6.0
        %v5103 = vmin.f32 %v5071, 6.0
        %v5104 = vmin.f32 %v5072, 6.0
        %v5105 = vmin.f32 %v5073, 6.0
        %v5106 = vmin.f32 %v5074, 6.0
        %v5107 = vmin.f32 %v5075, 6.0
        %v5108 = vmin.f32 %v5076, 6.0
        %v5109 = vmin.f32 %v5077, 6.0
        %v5110 = vmin.f32 %v5078, 6.0
        %v5111 = vmin.f32 %v5079, 6.0
        %v5112 = vmin.f32 %v5080, 6.0
        %v5113 = vmin.f32 %v5081, 6.0
        %v5114 = vmin.f32 %v5082, 6.0
        %v5115 = vmin.f32 %v5083, 6.0
        %v5116 = vmin.f32 %v5084, 6.0
        %v5117 = vmin.f32 %v5085, 6.0
        %v5118 = vmin.f32 %v5086, 6.0
        %v5119 = vmin.f32 %v5087, 6.0
        %v5120 = vmin.f32 %v5088, 6.0
        %v5121 = vmin.f32 %v5089, 6.0
        %v5122 = vmin.f32 %v5090, 6.0
        %v5123 = vld [vmem:[#allocation2] sm:$0xff]
        %v5124 = vld [vmem:[#allocation2 + $0x8] sm:$0xff]
        %v5125 = vld [vmem:[#allocation2 + $0x10] sm:$0xff]
        %v5126 = vld [vmem:[#allocation2 + $0x18] sm:$0xff]
        %v5127 = vld [vmem:[#allocation2 + $0x20] sm:$0xff]
        %v5128 = vld [vmem:[#allocation2 + $0x28] sm:$0xff]
        %v5129 = vld [vmem:[#allocation2 + $0x30] sm:$0xff]
        %v5130 = vld [vmem:[#allocation2 + $0x38] sm:$0xff]
        %v5131 = vld [vmem:[#allocation2 + $0x40] sm:$0xff]
        %v5132 = vld [vmem:[#allocation2 + $0x48] sm:$0xff]
        %v5133 = vld [vmem:[#allocation2 + $0x50] sm:$0xff]
        %v5134 = vld [vmem:[#allocation2 + $0x58] sm:$0xff]
        %v5135 = vld [vmem:[#allocation2 + $0x60] sm:$0xff]
        %v5136 = vld [vmem:[#allocation2 + $0x68] sm:$0xff]
        %v5137 = vld [vmem:[#allocation2 + $0x70] sm:$0xff]
        %v5138 = vld [vmem:[#allocation2 + $0x78] sm:$0xff]
        %v5139 = vld [vmem:[#allocation2 + $0x80] sm:$0xff]
        %v5140 = vld [vmem:[#allocation2 + $0x88] sm:$0xff]
        %v5141 = vld [vmem:[#allocation2 + $0x90] sm:$0xff]
        %v5142 = vld [vmem:[#allocation2 + $0x98] sm:$0xff]
        %v5143 = vld [vmem:[#allocation2 + $0xa0] sm:$0xff]
        %v5144 = vld [vmem:[#allocation2 + $0xa8] sm:$0xff]
        %v5145 = vld [vmem:[#allocation2 + $0xb0] sm:$0xff]
        %v5146 = vld [vmem:[#allocation2 + $0xb8] sm:$0xff]
        %v5147 = vld [vmem:[#allocation2 + $0xc0] sm:$0xff]
        %v5148 = vld [vmem:[#allocation2 + $0xc8] sm:$0xff]
        %v5149 = vld [vmem:[#allocation2 + $0xd0] sm:$0xff]
        %v5150 = vld [vmem:[#allocation2 + $0xd8] sm:$0xff]
        %v5151 = vld [vmem:[#allocation2 + $0xe0] sm:$0xff]
        %v5152 = vld [vmem:[#allocation2 + $0xe8] sm:$0xff]
        %v5153 = vld [vmem:[#allocation2 + $0xf0] sm:$0xff]
        %v5154 = vld [vmem:[#allocation2 + $0xf8] sm:$0xff]
        %v5155 = vld [vmem:[#allocation2 + $0x100] sm:$0xff]
        %v5156 = vld [vmem:[#allocation2 + $0x108] sm:$0xff]
        %v5157 = vld [vmem:[#allocation2 + $0x110] sm:$0xff]
        %v5158 = vld [vmem:[#allocation2 + $0x118] sm:$0xff]
        %v5159 = vld [vmem:[#allocation2 + $0x120] sm:$0xff]
        %v5160 = vld [vmem:[#allocation2 + $0x128] sm:$0xff]
        %v5161 = vld [vmem:[#allocation2 + $0x130] sm:$0xff]
        %v5162 = vld [vmem:[#allocation2 + $0x138] sm:$0xff]
        %v5163 = vld [vmem:[#allocation2 + $0x140] sm:$0xff]
        %v5164 = vld [vmem:[#allocation2 + $0x148] sm:$0xff]
        %v5165 = vld [vmem:[#allocation2 + $0x150] sm:$0xff]
        %v5166 = vld [vmem:[#allocation2 + $0x158] sm:$0xff]
        %v5167 = vld [vmem:[#allocation2 + $0x160] sm:$0xff]
        %v5168 = vld [vmem:[#allocation2 + $0x168] sm:$0xff]
        %v5169 = vld [vmem:[#allocation2 + $0x170] sm:$0xff]
        %v5170 = vld [vmem:[#allocation2 + $0x178] sm:$0xff]
        %v5171 = vld [vmem:[#allocation2 + $0x180] sm:$0xff]
        %v5172 = vld [vmem:[#allocation2 + $0x188] sm:$0xff]
        %v5173 = vld [vmem:[#allocation2 + $0x190] sm:$0xff]
        %v5174 = vld [vmem:[#allocation2 + $0x198] sm:$0xff]
        %v5175 = vld [vmem:[#allocation2 + $0x1a0] sm:$0xff]
        %v5176 = vld [vmem:[#allocation2 + $0x1a8] sm:$0xff]
        %v5177 = vld [vmem:[#allocation2 + $0x1b0] sm:$0xff]
        %v5178 = vld [vmem:[#allocation2 + $0x1b8] sm:$0xff]
        %v5179 = vld [vmem:[#allocation2 + $0x1c0] sm:$0xff]
        %v5180 = vld [vmem:[#allocation2 + $0x1c8] sm:$0xff]
        %v5181 = vld [vmem:[#allocation2 + $0x1d0] sm:$0xff]
        %v5182 = vld [vmem:[#allocation2 + $0x1d8] sm:$0xff]
        %v5183 = vld [vmem:[#allocation2 + $0x1e0] sm:$0xff]
        %v5184 = vld [vmem:[#allocation2 + $0x1e8] sm:$0xff]
        %v5185 = vld [vmem:[#allocation2 + $0x1f0] sm:$0xff]
        %v5186 = vld [vmem:[#allocation2 + $0x1f8] sm:$0xff]
        %v5187 = vld [vmem:[#allocation2 + $0x200] sm:$0xff]
        %v5188 = vld [vmem:[#allocation2 + $0x208] sm:$0xff]
        %v5189 = vld [vmem:[#allocation2 + $0x210] sm:$0xff]
        %v5190 = vld [vmem:[#allocation2 + $0x218] sm:$0xff]
        %v5191 = vld [vmem:[#allocation2 + $0x220] sm:$0xff]
        %v5192 = vld [vmem:[#allocation2 + $0x228] sm:$0xff]
        %v5193 = vld [vmem:[#allocation2 + $0x230] sm:$0xff]
        %v5194 = vld [vmem:[#allocation2 + $0x238] sm:$0xff]
        %v5195 = vld [vmem:[#allocation2 + $0x240] sm:$0xff]
        %v5196 = vld [vmem:[#allocation2 + $0x248] sm:$0xff]
        %v5197 = vld [vmem:[#allocation2 + $0x250] sm:$0xff]
        %v5198 = vld [vmem:[#allocation2 + $0x258] sm:$0xff]
        %v5199 = vld [vmem:[#allocation2 + $0x260] sm:$0xff]
        %v5200 = vld [vmem:[#allocation2 + $0x268] sm:$0xff]
        %v5201 = vld [vmem:[#allocation2 + $0x270] sm:$0xff]
        %v5202 = vld [vmem:[#allocation2 + $0x278] sm:$0xff]
        %v5203 = vld [vmem:[#allocation2 + $0x280] sm:$0xff]
        %v5204 = vld [vmem:[#allocation2 + $0x288] sm:$0xff]
        %v5205 = vld [vmem:[#allocation2 + $0x290] sm:$0xff]
        %v5206 = vld [vmem:[#allocation2 + $0x298] sm:$0xff]
        %v5207 = vld [vmem:[#allocation2 + $0x2a0] sm:$0xff]
        %v5208 = vld [vmem:[#allocation2 + $0x2a8] sm:$0xff]
        %v5209 = vld [vmem:[#allocation2 + $0x2b0] sm:$0xff]
        %v5210 = vld [vmem:[#allocation2 + $0x2b8] sm:$0xff]
        %v5211 = vld [vmem:[#allocation2 + $0x2c0] sm:$0xff]
        %v5212 = vld [vmem:[#allocation2 + $0x2c8] sm:$0xff]
        %v5213 = vld [vmem:[#allocation2 + $0x2d0] sm:$0xff]
        %v5214 = vld [vmem:[#allocation2 + $0x2d8] sm:$0xff]
        %v5215 = vld [vmem:[#allocation2 + $0x2e0] sm:$0xff]
        %v5216 = vld [vmem:[#allocation2 + $0x2e8] sm:$0xff]
        %v5217 = vld [vmem:[#allocation2 + $0x2f0] sm:$0xff]
        %v5218 = vld [vmem:[#allocation2 + $0x2f8] sm:$0xff]
        %v5219 = vld [vmem:[#allocation2 + $0x300] sm:$0xff]
        %v5220 = vld [vmem:[#allocation2 + $0x308] sm:$0xff]
        %v5221 = vld [vmem:[#allocation2 + $0x310] sm:$0xff]
        %v5222 = vld [vmem:[#allocation2 + $0x318] sm:$0xff]
        %v5223 = vld [vmem:[#allocation2 + $0x320] sm:$0xff]
        %v5224 = vld [vmem:[#allocation2 + $0x328] sm:$0xff]
        %v5225 = vld [vmem:[#allocation2 + $0x330] sm:$0xff]
        %v5226 = vld [vmem:[#allocation2 + $0x338] sm:$0xff]
        %v5227 = vld [vmem:[#allocation2 + $0x340] sm:$0xff]
        %v5228 = vld [vmem:[#allocation2 + $0x348] sm:$0xff]
        %v5229 = vld [vmem:[#allocation2 + $0x350] sm:$0xff]
        %v5230 = vld [vmem:[#allocation2 + $0x358] sm:$0xff]
        %v5231 = vld [vmem:[#allocation2 + $0x360] sm:$0xff]
        %v5232 = vld [vmem:[#allocation2 + $0x368] sm:$0xff]
        %v5233 = vld [vmem:[#allocation2 + $0x370] sm:$0xff]
        %v5234 = vld [vmem:[#allocation2 + $0x378] sm:$0xff]
        %v5235 = vld [vmem:[#allocation2 + $0x380] sm:$0xff]
        %v5236 = vld [vmem:[#allocation2 + $0x388] sm:$0xff]
        %v5237 = vld [vmem:[#allocation2 + $0x390] sm:$0xff]
        %v5238 = vld [vmem:[#allocation2 + $0x398] sm:$0xff]
        %v5239 = vld [vmem:[#allocation2 + $0x3a0] sm:$0xff]
        %v5240 = vld [vmem:[#allocation2 + $0x3a8] sm:$0xff]
        %v5241 = vld [vmem:[#allocation2 + $0x3b0] sm:$0xff]
        %v5242 = vld [vmem:[#allocation2 + $0x3b8] sm:$0xff]
        %v5243 = vld [vmem:[#allocation2 + $0x3c0] sm:$0xff]
        %v5244 = vld [vmem:[#allocation2 + $0x3c8] sm:$0xff]
        %v5245 = vld [vmem:[#allocation2 + $0x3d0] sm:$0xff]
        %v5246 = vld [vmem:[#allocation2 + $0x3d8] sm:$0xff]
        %v5247 = vld [vmem:[#allocation2 + $0x3e0] sm:$0xff]
        %v5248 = vld [vmem:[#allocation2 + $0x3e8] sm:$0xff]
        %v5249 = vld [vmem:[#allocation2 + $0x3f0] sm:$0xff]
        %v5250 = vld [vmem:[#allocation2 + $0x3f8] sm:$0xff]
        %v5251 = vld [vmem:[#allocation2 + $0x400] sm:$0xff]
        %v5252 = vld [vmem:[#allocation2 + $0x408] sm:$0xff]
        %v5253 = vld [vmem:[#allocation2 + $0x410] sm:$0xff]
        %v5254 = vld [vmem:[#allocation2 + $0x418] sm:$0xff]
        %v5255 = vld [vmem:[#allocation2 + $0x420] sm:$0xff]
        %v5256 = vld [vmem:[#allocation2 + $0x428] sm:$0xff]
        %v5257 = vld [vmem:[#allocation2 + $0x430] sm:$0xff]
        %v5258 = vld [vmem:[#allocation2 + $0x438] sm:$0xff]
        %v5259 = vld [vmem:[#allocation2 + $0x440] sm:$0xff]
        %v5260 = vld [vmem:[#allocation2 + $0x448] sm:$0xff]
        %v5261 = vld [vmem:[#allocation2 + $0x450] sm:$0xff]
        %v5262 = vld [vmem:[#allocation2 + $0x458] sm:$0xff]
        %v5263 = vld [vmem:[#allocation2 + $0x460] sm:$0xff]
        %v5264 = vld [vmem:[#allocation2 + $0x468] sm:$0xff]
        %v5265 = vld [vmem:[#allocation2 + $0x470] sm:$0xff]
        %v5266 = vld [vmem:[#allocation2 + $0x478] sm:$0xff]
        %v5267 = vld [vmem:[#allocation2 + $0x480] sm:$0xff]
        %v5268 = vld [vmem:[#allocation2 + $0x488] sm:$0xff]
        %v5269 = vld [vmem:[#allocation2 + $0x490] sm:$0xff]
        %v5270 = vld [vmem:[#allocation2 + $0x498] sm:$0xff]
        %v5271 = vld [vmem:[#allocation2 + $0x4a0] sm:$0xff]
        %v5272 = vld [vmem:[#allocation2 + $0x4a8] sm:$0xff]
        %v5273 = vld [vmem:[#allocation2 + $0x4b0] sm:$0xff]
        %v5274 = vld [vmem:[#allocation2 + $0x4b8] sm:$0xff]
        %v5275 = vld [vmem:[#allocation2 + $0x4c0] sm:$0xff]
        %v5276 = vld [vmem:[#allocation2 + $0x4c8] sm:$0xff]
        %v5277 = vld [vmem:[#allocation2 + $0x4d0] sm:$0xff]
        %v5278 = vld [vmem:[#allocation2 + $0x4d8] sm:$0xff]
        %v5279 = vld [vmem:[#allocation2 + $0x4e0] sm:$0xff]
        %v5280 = vld [vmem:[#allocation2 + $0x4e8] sm:$0xff]
        %v5281 = vld [vmem:[#allocation2 + $0x4f0] sm:$0xff]
        %v5282 = vld [vmem:[#allocation2 + $0x4f8] sm:$0xff]
        %v5283 = vld [vmem:[#allocation2 + $0x500] sm:$0xff]
        %v5284 = vld [vmem:[#allocation2 + $0x508] sm:$0xff]
        %v5285 = vld [vmem:[#allocation2 + $0x510] sm:$0xff]
        %v5286 = vld [vmem:[#allocation2 + $0x518] sm:$0xff]
        %v5287 = vld [vmem:[#allocation2 + $0x520] sm:$0xff]
        %v5288 = vld [vmem:[#allocation2 + $0x528] sm:$0xff]
        %v5289 = vld [vmem:[#allocation2 + $0x530] sm:$0xff]
        %v5290 = vld [vmem:[#allocation2 + $0x538] sm:$0xff]
        %v5291 = vld [vmem:[#allocation2 + $0x540] sm:$0xff]
        %v5292 = vld [vmem:[#allocation2 + $0x548] sm:$0xff]
        %v5293 = vld [vmem:[#allocation2 + $0x550] sm:$0xff]
        %v5294 = vld [vmem:[#allocation2 + $0x558] sm:$0xff]
        %v5295 = vld [vmem:[#allocation2 + $0x560] sm:$0xff]
        %v5296 = vld [vmem:[#allocation2 + $0x568] sm:$0xff]
        %v5297 = vld [vmem:[#allocation2 + $0x570] sm:$0xff]
        %v5298 = vld [vmem:[#allocation2 + $0x578] sm:$0xff]
        %v5299 = vld [vmem:[#allocation2 + $0x580] sm:$0xff]
        %v5300 = vld [vmem:[#allocation2 + $0x588] sm:$0xff]
        %v5301 = vld [vmem:[#allocation2 + $0x590] sm:$0xff]
        %v5302 = vld [vmem:[#allocation2 + $0x598] sm:$0xff]
        %v5303 = vld [vmem:[#allocation2 + $0x5a0] sm:$0xff]
        %v5304 = vld [vmem:[#allocation2 + $0x5a8] sm:$0xff]
        %v5305 = vld [vmem:[#allocation2 + $0x5b0] sm:$0xff]
        %v5306 = vld [vmem:[#allocation2 + $0x5b8] sm:$0xff]
        %v5307 = vld [vmem:[#allocation2 + $0x5c0] sm:$0xff]
        %v5308 = vld [vmem:[#allocation2 + $0x5c8] sm:$0xff]
        %v5309 = vld [vmem:[#allocation2 + $0x5d0] sm:$0xff]
        %v5310 = vld [vmem:[#allocation2 + $0x5d8] sm:$0xff]
        %v5311 = vld [vmem:[#allocation2 + $0x5e0] sm:$0xff]
        %v5312 = vld [vmem:[#allocation2 + $0x5e8] sm:$0xff]
        %v5313 = vld [vmem:[#allocation2 + $0x5f0] sm:$0xff]
        %v5314 = vld [vmem:[#allocation2 + $0x5f8] sm:$0xff]
        %v5315 = vld [vmem:[#allocation2 + $0x600] sm:$0xff]
        %v5316 = vld [vmem:[#allocation2 + $0x608] sm:$0xff]
        %v5317 = vld [vmem:[#allocation2 + $0x610] sm:$0xff]
        %v5318 = vld [vmem:[#allocation2 + $0x618] sm:$0xff]
        %v5319 = vld [vmem:[#allocation2 + $0x620] sm:$0xff]
        %v5320 = vld [vmem:[#allocation2 + $0x628] sm:$0xff]
        %v5321 = vld [vmem:[#allocation2 + $0x630] sm:$0xff]
        %v5322 = vld [vmem:[#allocation2 + $0x638] sm:$0xff]
        %v5323 = vpack.c.bf16 %v5092, %v5091
        %v5324 = vpack.c.bf16 %v5094, %v5093
        %v5325 = vpack.c.bf16 %v5096, %v5095
        %v5326 = vpack.c.bf16 %v5098, %v5097
        %v5327 = vpack.c.bf16 %v5100, %v5099
        %v5328 = vpack.c.bf16 %v5102, %v5101
        %v5329 = vpack.c.bf16 %v5104, %v5103
        %v5330 = vpack.c.bf16 %v5106, %v5105
        %v5331 = vpack.c.bf16 %v5108, %v5107
        %v5332 = vpack.c.bf16 %v5110, %v5109
        %v5333 = vpack.c.bf16 %v5112, %v5111
        %v5334 = vpack.c.bf16 %v5114, %v5113
        %v5335 = vpack.c.bf16 %v5116, %v5115
        %v5336 = vpack.c.bf16 %v5118, %v5117
        %v5337 = vpack.c.bf16 %v5120, %v5119
        %v5338 = vpack.c.bf16 %v5122, %v5121
        %v5539 = vunpack.c.l.b16 %v5123
        %v5540 = vunpack.c.h.b16 %v5123
        %v5541 = vunpack.c.l.b16 %v5124
        %v5542 = vunpack.c.h.b16 %v5124
        %v5543 = vunpack.c.l.b16 %v5125
        %v5544 = vunpack.c.h.b16 %v5125
        %v5545 = vunpack.c.l.b16 %v5126
        %v5546 = vunpack.c.h.b16 %v5126
        %v5547 = vunpack.c.l.b16 %v5127
        %v5548 = vunpack.c.h.b16 %v5127
        %v5549 = vunpack.c.l.b16 %v5128
        %v5550 = vunpack.c.h.b16 %v5128
        %v5551 = vunpack.c.l.b16 %v5129
        %v5552 = vunpack.c.h.b16 %v5129
        %v5553 = vunpack.c.l.b16 %v5130
        %v5554 = vunpack.c.h.b16 %v5130
        %v5555 = vunpack.c.l.b16 %v5131
        %v5556 = vunpack.c.h.b16 %v5131
        %v5557 = vunpack.c.l.b16 %v5132
        %v5558 = vunpack.c.h.b16 %v5132
        %v5559 = vunpack.c.l.b16 %v5133
        %v5560 = vunpack.c.h.b16 %v5133
        %v5561 = vunpack.c.l.b16 %v5134
        %v5562 = vunpack.c.h.b16 %v5134
        %v5563 = vunpack.c.l.b16 %v5135
        %v5564 = vunpack.c.h.b16 %v5135
        %v5565 = vunpack.c.l.b16 %v5136
        %v5566 = vunpack.c.h.b16 %v5136
        %v5567 = vunpack.c.l.b16 %v5137
        %v5568 = vunpack.c.h.b16 %v5137
        %v5569 = vunpack.c.l.b16 %v5138
        %v5570 = vunpack.c.h.b16 %v5138
        %v5571 = vunpack.c.l.b16 %v5139
        %v5572 = vunpack.c.h.b16 %v5139
        %v5573 = vunpack.c.l.b16 %v5140
        %v5574 = vunpack.c.h.b16 %v5140
        %v5575 = vunpack.c.l.b16 %v5141
        %v5576 = vunpack.c.h.b16 %v5141
        %v5577 = vunpack.c.l.b16 %v5142
        %v5578 = vunpack.c.h.b16 %v5142
        %v5579 = vunpack.c.l.b16 %v5143
        %v5580 = vunpack.c.h.b16 %v5143
        %v5581 = vunpack.c.l.b16 %v5144
        %v5582 = vunpack.c.h.b16 %v5144
        %v5583 = vunpack.c.l.b16 %v5145
        %v5584 = vunpack.c.h.b16 %v5145
        %v5585 = vunpack.c.l.b16 %v5146
        %v5586 = vunpack.c.h.b16 %v5146
        %v5587 = vunpack.c.l.b16 %v5147
        %v5588 = vunpack.c.h.b16 %v5147
        %v5589 = vunpack.c.l.b16 %v5148
        %v5590 = vunpack.c.h.b16 %v5148
        %v5591 = vunpack.c.l.b16 %v5149
        %v5592 = vunpack.c.h.b16 %v5149
        %v5593 = vunpack.c.l.b16 %v5150
        %v5594 = vunpack.c.h.b16 %v5150
        %v5595 = vunpack.c.l.b16 %v5151
        %v5596 = vunpack.c.h.b16 %v5151
        %v5597 = vunpack.c.l.b16 %v5152
        %v5598 = vunpack.c.h.b16 %v5152
        %v5599 = vunpack.c.l.b16 %v5153
        %v5600 = vunpack.c.h.b16 %v5153
        %v5601 = vunpack.c.l.b16 %v5154
        %v5602 = vunpack.c.h.b16 %v5154
        %v5603 = vunpack.c.l.b16 %v5155
        %v5604 = vunpack.c.h.b16 %v5155
        %v5605 = vunpack.c.l.b16 %v5156
        %v5606 = vunpack.c.h.b16 %v5156
        %v5607 = vunpack.c.l.b16 %v5157
        %v5608 = vunpack.c.h.b16 %v5157
        %v5609 = vunpack.c.l.b16 %v5158
        %v5610 = vunpack.c.h.b16 %v5158
        %v5611 = vunpack.c.l.b16 %v5159
        %v5612 = vunpack.c.h.b16 %v5159
        %v5613 = vunpack.c.l.b16 %v5160
        %v5614 = vunpack.c.h.b16 %v5160
        %v5615 = vunpack.c.l.b16 %v5161
        %v5616 = vunpack.c.h.b16 %v5161
        %v5617 = vunpack.c.l.b16 %v5162
        %v5618 = vunpack.c.h.b16 %v5162
        %v5619 = vunpack.c.l.b16 %v5163
        %v5620 = vunpack.c.h.b16 %v5163
        %v5621 = vunpack.c.l.b16 %v5164
        %v5622 = vunpack.c.h.b16 %v5164
        %v5623 = vunpack.c.l.b16 %v5165
        %v5624 = vunpack.c.h.b16 %v5165
        %v5625 = vunpack.c.l.b16 %v5166
        %v5626 = vunpack.c.h.b16 %v5166
        %v5627 = vunpack.c.l.b16 %v5167
        %v5628 = vunpack.c.h.b16 %v5167
        %v5629 = vunpack.c.l.b16 %v5168
        %v5630 = vunpack.c.h.b16 %v5168
        %v5631 = vunpack.c.l.b16 %v5169
        %v5632 = vunpack.c.h.b16 %v5169
        %v5633 = vunpack.c.l.b16 %v5170
        %v5634 = vunpack.c.h.b16 %v5170
        %v5635 = vunpack.c.l.b16 %v5171
        %v5636 = vunpack.c.h.b16 %v5171
        %v5637 = vunpack.c.l.b16 %v5172
        %v5638 = vunpack.c.h.b16 %v5172
        %v5639 = vunpack.c.l.b16 %v5173
        %v5640 = vunpack.c.h.b16 %v5173
        %v5641 = vunpack.c.l.b16 %v5174
        %v5642 = vunpack.c.h.b16 %v5174
        %v5643 = vunpack.c.l.b16 %v5175
        %v5644 = vunpack.c.h.b16 %v5175
        %v5645 = vunpack.c.l.b16 %v5176
        %v5646 = vunpack.c.h.b16 %v5176
        %v5647 = vunpack.c.l.b16 %v5177
        %v5648 = vunpack.c.h.b16 %v5177
        %v5649 = vunpack.c.l.b16 %v5178
        %v5650 = vunpack.c.h.b16 %v5178
        %v5651 = vunpack.c.l.b16 %v5179
        %v5652 = vunpack.c.h.b16 %v5179
        %v5653 = vunpack.c.l.b16 %v5180
        %v5654 = vunpack.c.h.b16 %v5180
        %v5655 = vunpack.c.l.b16 %v5181
        %v5656 = vunpack.c.h.b16 %v5181
        %v5657 = vunpack.c.l.b16 %v5182
        %v5658 = vunpack.c.h.b16 %v5182
        %v5659 = vunpack.c.l.b16 %v5183
        %v5660 = vunpack.c.h.b16 %v5183
        %v5661 = vunpack.c.l.b16 %v5184
        %v5662 = vunpack.c.h.b16 %v5184
        %v5663 = vunpack.c.l.b16 %v5185
        %v5664 = vunpack.c.h.b16 %v5185
        %v5665 = vunpack.c.l.b16 %v5186
        %v5666 = vunpack.c.h.b16 %v5186
        %v5667 = vunpack.c.l.b16 %v5187
        %v5668 = vunpack.c.h.b16 %v5187
        %v5669 = vunpack.c.l.b16 %v5188
        %v5670 = vunpack.c.h.b16 %v5188
        %v5671 = vunpack.c.l.b16 %v5189
        %v5672 = vunpack.c.h.b16 %v5189
        %v5673 = vunpack.c.l.b16 %v5190
        %v5674 = vunpack.c.h.b16 %v5190
        %v5675 = vunpack.c.l.b16 %v5191
        %v5676 = vunpack.c.h.b16 %v5191
        %v5677 = vunpack.c.l.b16 %v5192
        %v5678 = vunpack.c.h.b16 %v5192
        %v5679 = vunpack.c.l.b16 %v5193
        %v5680 = vunpack.c.h.b16 %v5193
        %v5681 = vunpack.c.l.b16 %v5194
        %v5682 = vunpack.c.h.b16 %v5194
        %v5683 = vunpack.c.l.b16 %v5195
        %v5684 = vunpack.c.h.b16 %v5195
        %v5685 = vunpack.c.l.b16 %v5196
        %v5686 = vunpack.c.h.b16 %v5196
        %v5687 = vunpack.c.l.b16 %v5197
        %v5688 = vunpack.c.h.b16 %v5197
        %v5689 = vunpack.c.l.b16 %v5198
        %v5690 = vunpack.c.h.b16 %v5198
        %v5691 = vunpack.c.l.b16 %v5199
        %v5692 = vunpack.c.h.b16 %v5199
        %v5693 = vunpack.c.l.b16 %v5200
        %v5694 = vunpack.c.h.b16 %v5200
        %v5695 = vunpack.c.l.b16 %v5201
        %v5696 = vunpack.c.h.b16 %v5201
        %v5697 = vunpack.c.l.b16 %v5202
        %v5698 = vunpack.c.h.b16 %v5202
        %v5699 = vunpack.c.l.b16 %v5203
        %v5700 = vunpack.c.h.b16 %v5203
        %v5701 = vunpack.c.l.b16 %v5204
        %v5702 = vunpack.c.h.b16 %v5204
        %v5703 = vunpack.c.l.b16 %v5205
        %v5704 = vunpack.c.h.b16 %v5205
        %v5705 = vunpack.c.l.b16 %v5206
        %v5706 = vunpack.c.h.b16 %v5206
        %v5707 = vunpack.c.l.b16 %v5207
        %v5708 = vunpack.c.h.b16 %v5207
        %v5709 = vunpack.c.l.b16 %v5208
        %v5710 = vunpack.c.h.b16 %v5208
        %v5711 = vunpack.c.l.b16 %v5209
        %v5712 = vunpack.c.h.b16 %v5209
        %v5713 = vunpack.c.l.b16 %v5210
        %v5714 = vunpack.c.h.b16 %v5210
        %v5715 = vunpack.c.l.b16 %v5211
        %v5716 = vunpack.c.h.b16 %v5211
        %v5717 = vunpack.c.l.b16 %v5212
        %v5718 = vunpack.c.h.b16 %v5212
        %v5719 = vunpack.c.l.b16 %v5213
        %v5720 = vunpack.c.h.b16 %v5213
        %v5721 = vunpack.c.l.b16 %v5214
        %v5722 = vunpack.c.h.b16 %v5214
        %v5723 = vunpack.c.l.b16 %v5215
        %v5724 = vunpack.c.h.b16 %v5215
        %v5725 = vunpack.c.l.b16 %v5216
        %v5726 = vunpack.c.h.b16 %v5216
        %v5727 = vunpack.c.l.b16 %v5217
        %v5728 = vunpack.c.h.b16 %v5217
        %v5729 = vunpack.c.l.b16 %v5218
        %v5730 = vunpack.c.h.b16 %v5218
        %v5731 = vunpack.c.l.b16 %v5219
        %v5732 = vunpack.c.h.b16 %v5219
        %v5733 = vunpack.c.l.b16 %v5220
        %v5734 = vunpack.c.h.b16 %v5220
        %v5735 = vunpack.c.l.b16 %v5221
        %v5736 = vunpack.c.h.b16 %v5221
        %v5737 = vunpack.c.l.b16 %v5222
        %v5738 = vunpack.c.h.b16 %v5222
        %v5739 = vunpack.c.l.b16 %v5223
        %v5740 = vunpack.c.h.b16 %v5223
        %v5741 = vunpack.c.l.b16 %v5224
        %v5742 = vunpack.c.h.b16 %v5224
        %v5743 = vunpack.c.l.b16 %v5225
        %v5744 = vunpack.c.h.b16 %v5225
        %v5745 = vunpack.c.l.b16 %v5226
        %v5746 = vunpack.c.h.b16 %v5226
        %v5747 = vunpack.c.l.b16 %v5227
        %v5748 = vunpack.c.h.b16 %v5227
        %v5749 = vunpack.c.l.b16 %v5228
        %v5750 = vunpack.c.h.b16 %v5228
        %v5751 = vunpack.c.l.b16 %v5229
        %v5752 = vunpack.c.h.b16 %v5229
        %v5753 = vunpack.c.l.b16 %v5230
        %v5754 = vunpack.c.h.b16 %v5230
        %v5755 = vunpack.c.l.b16 %v5231
        %v5756 = vunpack.c.h.b16 %v5231
        %v5757 = vunpack.c.l.b16 %v5232
        %v5758 = vunpack.c.h.b16 %v5232
        %v5759 = vunpack.c.l.b16 %v5233
        %v5760 = vunpack.c.h.b16 %v5233
        %v5761 = vunpack.c.l.b16 %v5234
        %v5762 = vunpack.c.h.b16 %v5234
        %v5763 = vunpack.c.l.b16 %v5235
        %v5764 = vunpack.c.h.b16 %v5235
        %v5765 = vunpack.c.l.b16 %v5236
        %v5766 = vunpack.c.h.b16 %v5236
        %v5767 = vunpack.c.l.b16 %v5237
        %v5768 = vunpack.c.h.b16 %v5237
        %v5769 = vunpack.c.l.b16 %v5238
        %v5770 = vunpack.c.h.b16 %v5238
        %v5771 = vunpack.c.l.b16 %v5239
        %v5772 = vunpack.c.h.b16 %v5239
        %v5773 = vunpack.c.l.b16 %v5240
        %v5774 = vunpack.c.h.b16 %v5240
        %v5775 = vunpack.c.l.b16 %v5241
        %v5776 = vunpack.c.h.b16 %v5241
        %v5777 = vunpack.c.l.b16 %v5242
        %v5778 = vunpack.c.h.b16 %v5242
        %v5779 = vunpack.c.l.b16 %v5243
        %v5780 = vunpack.c.h.b16 %v5243
        %v5781 = vunpack.c.l.b16 %v5244
        %v5782 = vunpack.c.h.b16 %v5244
        %v5783 = vunpack.c.l.b16 %v5245
        %v5784 = vunpack.c.h.b16 %v5245
        %v5785 = vunpack.c.l.b16 %v5246
        %v5786 = vunpack.c.h.b16 %v5246
        %v5787 = vunpack.c.l.b16 %v5247
        %v5788 = vunpack.c.h.b16 %v5247
        %v5789 = vunpack.c.l.b16 %v5248
        %v5790 = vunpack.c.h.b16 %v5248
        %v5791 = vunpack.c.l.b16 %v5249
        %v5792 = vunpack.c.h.b16 %v5249
        %v5793 = vunpack.c.l.b16 %v5250
        %v5794 = vunpack.c.h.b16 %v5250
        %v5795 = vunpack.c.l.b16 %v5251
        %v5796 = vunpack.c.h.b16 %v5251
        %v5797 = vunpack.c.l.b16 %v5252
        %v5798 = vunpack.c.h.b16 %v5252
        %v5799 = vunpack.c.l.b16 %v5253
        %v5800 = vunpack.c.h.b16 %v5253
        %v5801 = vunpack.c.l.b16 %v5254
        %v5802 = vunpack.c.h.b16 %v5254
        %v5803 = vunpack.c.l.b16 %v5255
        %v5804 = vunpack.c.h.b16 %v5255
        %v5805 = vunpack.c.l.b16 %v5256
        %v5806 = vunpack.c.h.b16 %v5256
        %v5807 = vunpack.c.l.b16 %v5257
        %v5808 = vunpack.c.h.b16 %v5257
        %v5809 = vunpack.c.l.b16 %v5258
        %v5810 = vunpack.c.h.b16 %v5258
        %v5811 = vunpack.c.l.b16 %v5259
        %v5812 = vunpack.c.h.b16 %v5259
        %v5813 = vunpack.c.l.b16 %v5260
        %v5814 = vunpack.c.h.b16 %v5260
        %v5815 = vunpack.c.l.b16 %v5261
        %v5816 = vunpack.c.h.b16 %v5261
        %v5817 = vunpack.c.l.b16 %v5262
        %v5818 = vunpack.c.h.b16 %v5262
        %v5819 = vunpack.c.l.b16 %v5263
        %v5820 = vunpack.c.h.b16 %v5263
        %v5821 = vunpack.c.l.b16 %v5264
        %v5822 = vunpack.c.h.b16 %v5264
        %v5823 = vunpack.c.l.b16 %v5265
        %v5824 = vunpack.c.h.b16 %v5265
        %v5825 = vunpack.c.l.b16 %v5266
        %v5826 = vunpack.c.h.b16 %v5266
        %v5827 = vunpack.c.l.b16 %v5267
        %v5828 = vunpack.c.h.b16 %v5267
        %v5829 = vunpack.c.l.b16 %v5268
        %v5830 = vunpack.c.h.b16 %v5268
        %v5831 = vunpack.c.l.b16 %v5269
        %v5832 = vunpack.c.h.b16 %v5269
        %v5833 = vunpack.c.l.b16 %v5270
        %v5834 = vunpack.c.h.b16 %v5270
        %v5835 = vunpack.c.l.b16 %v5271
        %v5836 = vunpack.c.h.b16 %v5271
        %v5837 = vunpack.c.l.b16 %v5272
        %v5838 = vunpack.c.h.b16 %v5272
        %v5839 = vunpack.c.l.b16 %v5273
        %v5840 = vunpack.c.h.b16 %v5273
        %v5841 = vunpack.c.l.b16 %v5274
        %v5842 = vunpack.c.h.b16 %v5274
        %v5843 = vunpack.c.l.b16 %v5275
        %v5844 = vunpack.c.h.b16 %v5275
        %v5845 = vunpack.c.l.b16 %v5276
        %v5846 = vunpack.c.h.b16 %v5276
        %v5847 = vunpack.c.l.b16 %v5277
        %v5848 = vunpack.c.h.b16 %v5277
        %v5849 = vunpack.c.l.b16 %v5278
        %v5850 = vunpack.c.h.b16 %v5278
        %v5851 = vunpack.c.l.b16 %v5279
        %v5852 = vunpack.c.h.b16 %v5279
        %v5853 = vunpack.c.l.b16 %v5280
        %v5854 = vunpack.c.h.b16 %v5280
        %v5855 = vunpack.c.l.b16 %v5281
        %v5856 = vunpack.c.h.b16 %v5281
        %v5857 = vunpack.c.l.b16 %v5282
        %v5858 = vunpack.c.h.b16 %v5282
        %v5859 = vunpack.c.l.b16 %v5283
        %v5860 = vunpack.c.h.b16 %v5283
        %v5861 = vunpack.c.l.b16 %v5284
        %v5862 = vunpack.c.h.b16 %v5284
        %v5863 = vunpack.c.l.b16 %v5285
        %v5864 = vunpack.c.h.b16 %v5285
        %v5865 = vunpack.c.l.b16 %v5286
        %v5866 = vunpack.c.h.b16 %v5286
        %v5867 = vunpack.c.l.b16 %v5287
        %v5868 = vunpack.c.h.b16 %v5287
        %v5869 = vunpack.c.l.b16 %v5288
        %v5870 = vunpack.c.h.b16 %v5288
        %v5871 = vunpack.c.l.b16 %v5289
        %v5872 = vunpack.c.h.b16 %v5289
        %v5873 = vunpack.c.l.b16 %v5290
        %v5874 = vunpack.c.h.b16 %v5290
        %v5875 = vunpack.c.l.b16 %v5291
        %v5876 = vunpack.c.h.b16 %v5291
        %v5877 = vunpack.c.l.b16 %v5292
        %v5878 = vunpack.c.h.b16 %v5292
        %v5879 = vunpack.c.l.b16 %v5293
        %v5880 = vunpack.c.h.b16 %v5293
        %v5881 = vunpack.c.l.b16 %v5294
        %v5882 = vunpack.c.h.b16 %v5294
        %v5883 = vunpack.c.l.b16 %v5295
        %v5884 = vunpack.c.h.b16 %v5295
        %v5885 = vunpack.c.l.b16 %v5296
        %v5886 = vunpack.c.h.b16 %v5296
        %v5887 = vunpack.c.l.b16 %v5297
        %v5888 = vunpack.c.h.b16 %v5297
        %v5889 = vunpack.c.l.b16 %v5298
        %v5890 = vunpack.c.h.b16 %v5298
        %v5891 = vunpack.c.l.b16 %v5299
        %v5892 = vunpack.c.h.b16 %v5299
        %v5893 = vunpack.c.l.b16 %v5300
        %v5894 = vunpack.c.h.b16 %v5300
        %v5895 = vunpack.c.l.b16 %v5301
        %v5896 = vunpack.c.h.b16 %v5301
        %v5897 = vunpack.c.l.b16 %v5302
        %v5898 = vunpack.c.h.b16 %v5302
        %v5899 = vunpack.c.l.b16 %v5303
        %v5900 = vunpack.c.h.b16 %v5303
        %v5901 = vunpack.c.l.b16 %v5304
        %v5902 = vunpack.c.h.b16 %v5304
        %v5903 = vunpack.c.l.b16 %v5305
        %v5904 = vunpack.c.h.b16 %v5305
        %v5905 = vunpack.c.l.b16 %v5306
        %v5906 = vunpack.c.h.b16 %v5306
        %v5907 = vunpack.c.l.b16 %v5307
        %v5908 = vunpack.c.h.b16 %v5307
        %v5909 = vunpack.c.l.b16 %v5308
        %v5910 = vunpack.c.h.b16 %v5308
        %v5911 = vunpack.c.l.b16 %v5309
        %v5912 = vunpack.c.h.b16 %v5309
        %v5913 = vunpack.c.l.b16 %v5310
        %v5914 = vunpack.c.h.b16 %v5310
        %v5915 = vunpack.c.l.b16 %v5311
        %v5916 = vunpack.c.h.b16 %v5311
        %v5917 = vunpack.c.l.b16 %v5312
        %v5918 = vunpack.c.h.b16 %v5312
        %v5919 = vunpack.c.l.b16 %v5313
        %v5920 = vunpack.c.h.b16 %v5313
        %v5921 = vunpack.c.l.b16 %v5314
        %v5922 = vunpack.c.h.b16 %v5314
        %v5923 = vunpack.c.l.b16 %v5315
        %v5924 = vunpack.c.h.b16 %v5315
        %v5925 = vunpack.c.l.b16 %v5316
        %v5926 = vunpack.c.h.b16 %v5316
        %v5927 = vunpack.c.l.b16 %v5317
        %v5928 = vunpack.c.h.b16 %v5317
        %v5929 = vunpack.c.l.b16 %v5318
        %v5930 = vunpack.c.h.b16 %v5318
        %v5931 = vunpack.c.l.b16 %v5319
        %v5932 = vunpack.c.h.b16 %v5319
        %v5933 = vunpack.c.l.b16 %v5320
        %v5934 = vunpack.c.h.b16 %v5320
        %v5935 = vunpack.c.l.b16 %v5321
        %v5936 = vunpack.c.h.b16 %v5321
        %v5937 = vunpack.c.l.b16 %v5322
        %v5938 = vunpack.c.h.b16 %v5322
        %v5939 = vpack.c.b16 %v5541, %v5539
        %v5940 = vpack.c.b16 %v5542, %v5540
        %v5941 = vpack.c.b16 %v5545, %v5543
        %v5942 = vpack.c.b16 %v5546, %v5544
        %v5943 = vpack.c.b16 %v5549, %v5547
        %v5944 = vpack.c.b16 %v5550, %v5548
        %v5945 = vpack.c.b16 %v5553, %v5551
        %v5946 = vpack.c.b16 %v5554, %v5552
        %v5947 = vpack.c.b16 %v5557, %v5555
        %v5948 = vpack.c.b16 %v5558, %v5556
        %v5949 = vpack.c.b16 %v5561, %v5559
        %v5950 = vpack.c.b16 %v5562, %v5560
        %v5951 = vpack.c.b16 %v5565, %v5563
        %v5952 = vpack.c.b16 %v5566, %v5564
        %v5953 = vpack.c.b16 %v5569, %v5567
        %v5954 = vpack.c.b16 %v5570, %v5568
        %v5955 = vpack.c.b16 %v5573, %v5571
        %v5956 = vpack.c.b16 %v5574, %v5572
        %v5957 = vpack.c.b16 %v5577, %v5575
        %v5958 = vpack.c.b16 %v5578, %v5576
        %v5959 = vpack.c.b16 %v5581, %v5579
        %v5960 = vpack.c.b16 %v5582, %v5580
        %v5961 = vpack.c.b16 %v5585, %v5583
        %v5962 = vpack.c.b16 %v5586, %v5584
        %v5963 = vpack.c.b16 %v5589, %v5587
        %v5964 = vpack.c.b16 %v5590, %v5588
        %v5965 = vpack.c.b16 %v5593, %v5591
        %v5966 = vpack.c.b16 %v5594, %v5592
        %v5967 = vpack.c.b16 %v5597, %v5595
        %v5968 = vpack.c.b16 %v5598, %v5596
        %v5969 = vpack.c.b16 %v5601, %v5599
        %v5970 = vpack.c.b16 %v5602, %v5600
        %v5971 = vpack.c.b16 %v5605, %v5603
        %v5972 = vpack.c.b16 %v5606, %v5604
        %v5973 = vpack.c.b16 %v5609, %v5607
        %v5974 = vpack.c.b16 %v5610, %v5608
        %v5975 = vpack.c.b16 %v5613, %v5611
        %v5976 = vpack.c.b16 %v5614, %v5612
        %v5977 = vpack.c.b16 %v5617, %v5615
        %v5978 = vpack.c.b16 %v5618, %v5616
        %v5979 = vpack.c.b16 %v5621, %v5619
        %v5980 = vpack.c.b16 %v5622, %v5620
        %v5981 = vpack.c.b16 %v5625, %v5623
        %v5982 = vpack.c.b16 %v5626, %v5624
        %v5983 = vpack.c.b16 %v5629, %v5627
        %v5984 = vpack.c.b16 %v5630, %v5628
        %v5985 = vpack.c.b16 %v5633, %v5631
        %v5986 = vpack.c.b16 %v5634, %v5632
        %v5987 = vpack.c.b16 %v5637, %v5635
        %v5988 = vpack.c.b16 %v5638, %v5636
        %v5989 = vpack.c.b16 %v5641, %v5639
        %v5990 = vpack.c.b16 %v5642, %v5640
        %v5991 = vpack.c.b16 %v5645, %v5643
        %v5992 = vpack.c.b16 %v5646, %v5644
        %v5993 = vpack.c.b16 %v5649, %v5647
        %v5994 = vpack.c.b16 %v5650, %v5648
        %v5995 = vpack.c.b16 %v5653, %v5651
        %v5996 = vpack.c.b16 %v5654, %v5652
        %v5997 = vpack.c.b16 %v5657, %v5655
        %v5998 = vpack.c.b16 %v5658, %v5656
        %v5999 = vpack.c.b16 %v5661, %v5659
        %v6000 = vpack.c.b16 %v5662, %v5660
        %v6001 = vpack.c.b16 %v5665, %v5663
        %v6002 = vpack.c.b16 %v5666, %v5664
        %v6003 = vpack.c.b16 %v5669, %v5667
        %v6004 = vpack.c.b16 %v5670, %v5668
        %v6005 = vpack.c.b16 %v5673, %v5671
        %v6006 = vpack.c.b16 %v5674, %v5672
        %v6007 = vpack.c.b16 %v5677, %v5675
        %v6008 = vpack.c.b16 %v5678, %v5676
        %v6009 = vpack.c.b16 %v5681, %v5679
        %v6010 = vpack.c.b16 %v5682, %v5680
        %v6011 = vpack.c.b16 %v5685, %v5683
        %v6012 = vpack.c.b16 %v5686, %v5684
        %v6013 = vpack.c.b16 %v5689, %v5687
        %v6014 = vpack.c.b16 %v5690, %v5688
        %v6015 = vpack.c.b16 %v5693, %v5691
        %v6016 = vpack.c.b16 %v5694, %v5692
        %v6017 = vpack.c.b16 %v5697, %v5695
        %v6018 = vpack.c.b16 %v5698, %v5696
        %v6019 = vpack.c.b16 %v5701, %v5699
        %v6020 = vpack.c.b16 %v5702, %v5700
        %v6021 = vpack.c.b16 %v5705, %v5703
        %v6022 = vpack.c.b16 %v5706, %v5704
        %v6023 = vpack.c.b16 %v5709, %v5707
        %v6024 = vpack.c.b16 %v5710, %v5708
        %v6025 = vpack.c.b16 %v5713, %v5711
        %v6026 = vpack.c.b16 %v5714, %v5712
        %v6027 = vpack.c.b16 %v5717, %v5715
        %v6028 = vpack.c.b16 %v5718, %v5716
        %v6029 = vpack.c.b16 %v5721, %v5719
        %v6030 = vpack.c.b16 %v5722, %v5720
        %v6031 = vpack.c.b16 %v5725, %v5723
        %v6032 = vpack.c.b16 %v5726, %v5724
        %v6033 = vpack.c.b16 %v5729, %v5727
        %v6034 = vpack.c.b16 %v5730, %v5728
        %v6035 = vpack.c.b16 %v5733, %v5731
        %v6036 = vpack.c.b16 %v5734, %v5732
        %v6037 = vpack.c.b16 %v5737, %v5735
        %v6038 = vpack.c.b16 %v5738, %v5736
        %v6039 = vpack.c.b16 %v5741, %v5739
        %v6040 = vpack.c.b16 %v5742, %v5740
        %v6041 = vpack.c.b16 %v5745, %v5743
        %v6042 = vpack.c.b16 %v5746, %v5744
        %v6043 = vpack.c.b16 %v5749, %v5747
        %v6044 = vpack.c.b16 %v5750, %v5748
        %v6045 = vpack.c.b16 %v5753, %v5751
        %v6046 = vpack.c.b16 %v5754, %v5752
        %v6047 = vpack.c.b16 %v5757, %v5755
        %v6048 = vpack.c.b16 %v5758, %v5756
        %v6049 = vpack.c.b16 %v5761, %v5759
        %v6050 = vpack.c.b16 %v5762, %v5760
        %v6051 = vpack.c.b16 %v5765, %v5763
        %v6052 = vpack.c.b16 %v5766, %v5764
        %v6053 = vpack.c.b16 %v5769, %v5767
        %v6054 = vpack.c.b16 %v5770, %v5768
        %v6055 = vpack.c.b16 %v5773, %v5771
        %v6056 = vpack.c.b16 %v5774, %v5772
        %v6057 = vpack.c.b16 %v5777, %v5775
        %v6058 = vpack.c.b16 %v5778, %v5776
        %v6059 = vpack.c.b16 %v5781, %v5779
        %v6060 = vpack.c.b16 %v5782, %v5780
        %v6061 = vpack.c.b16 %v5785, %v5783
        %v6062 = vpack.c.b16 %v5786, %v5784
        %v6063 = vpack.c.b16 %v5789, %v5787
        %v6064 = vpack.c.b16 %v5790, %v5788
        %v6065 = vpack.c.b16 %v5793, %v5791
        %v6066 = vpack.c.b16 %v5794, %v5792
        %v6067 = vpack.c.b16 %v5797, %v5795
        %v6068 = vpack.c.b16 %v5798, %v5796
        %v6069 = vpack.c.b16 %v5801, %v5799
        %v6070 = vpack.c.b16 %v5802, %v5800
        %v6071 = vpack.c.b16 %v5805, %v5803
        %v6072 = vpack.c.b16 %v5806, %v5804
        %v6073 = vpack.c.b16 %v5809, %v5807
        %v6074 = vpack.c.b16 %v5810, %v5808
        %v6075 = vpack.c.b16 %v5813, %v5811
        %v6076 = vpack.c.b16 %v5814, %v5812
        %v6077 = vpack.c.b16 %v5817, %v5815
        %v6078 = vpack.c.b16 %v5818, %v5816
        %v6079 = vpack.c.b16 %v5821, %v5819
        %v6080 = vpack.c.b16 %v5822, %v5820
        %v6081 = vpack.c.b16 %v5825, %v5823
        %v6082 = vpack.c.b16 %v5826, %v5824
        %v6083 = vpack.c.b16 %v5829, %v5827
        %v6084 = vpack.c.b16 %v5830, %v5828
        %v6085 = vpack.c.b16 %v5833, %v5831
        %v6086 = vpack.c.b16 %v5834, %v5832
        %v6087 = vpack.c.b16 %v5837, %v5835
        %v6088 = vpack.c.b16 %v5838, %v5836
        %v6089 = vpack.c.b16 %v5841, %v5839
        %v6090 = vpack.c.b16 %v5842, %v5840
        %v6091 = vpack.c.b16 %v5845, %v5843
        %v6092 = vpack.c.b16 %v5846, %v5844
        %v6093 = vpack.c.b16 %v5849, %v5847
        %v6094 = vpack.c.b16 %v5850, %v5848
        %v6095 = vpack.c.b16 %v5853, %v5851
        %v6096 = vpack.c.b16 %v5854, %v5852
        %v6097 = vpack.c.b16 %v5857, %v5855
        %v6098 = vpack.c.b16 %v5858, %v5856
        %v6099 = vpack.c.b16 %v5861, %v5859
        %v6100 = vpack.c.b16 %v5862, %v5860
        %v6101 = vpack.c.b16 %v5865, %v5863
        %v6102 = vpack.c.b16 %v5866, %v5864
        %v6103 = vpack.c.b16 %v5869, %v5867
        %v6104 = vpack.c.b16 %v5870, %v5868
        %v6105 = vpack.c.b16 %v5873, %v5871
        %v6106 = vpack.c.b16 %v5874, %v5872
        %v6107 = vpack.c.b16 %v5877, %v5875
        %v6108 = vpack.c.b16 %v5878, %v5876
        %v6109 = vpack.c.b16 %v5881, %v5879
        %v6110 = vpack.c.b16 %v5882, %v5880
        %v6111 = vpack.c.b16 %v5885, %v5883
        %v6112 = vpack.c.b16 %v5886, %v5884
        %v6113 = vpack.c.b16 %v5889, %v5887
        %v6114 = vpack.c.b16 %v5890, %v5888
        %v6115 = vpack.c.b16 %v5893, %v5891
        %v6116 = vpack.c.b16 %v5894, %v5892
        %v6117 = vpack.c.b16 %v5897, %v5895
        %v6118 = vpack.c.b16 %v5898, %v5896
        %v6119 = vpack.c.b16 %v5901, %v5899
        %v6120 = vpack.c.b16 %v5902, %v5900
        %v6121 = vpack.c.b16 %v5905, %v5903
        %v6122 = vpack.c.b16 %v5906, %v5904
        %v6123 = vpack.c.b16 %v5909, %v5907
        %v6124 = vpack.c.b16 %v5910, %v5908
        %v6125 = vpack.c.b16 %v5913, %v5911
        %v6126 = vpack.c.b16 %v5914, %v5912
        %v6127 = vpack.c.b16 %v5917, %v5915
        %v6128 = vpack.c.b16 %v5918, %v5916
        %v6129 = vpack.c.b16 %v5921, %v5919
        %v6130 = vpack.c.b16 %v5922, %v5920
        %v6131 = vpack.c.b16 %v5925, %v5923
        %v6132 = vpack.c.b16 %v5926, %v5924
        %v6133 = vpack.c.b16 %v5929, %v5927
        %v6134 = vpack.c.b16 %v5930, %v5928
        %v6135 = vpack.c.b16 %v5933, %v5931
        %v6136 = vpack.c.b16 %v5934, %v5932
        %v6137 = vpack.c.b16 %v5937, %v5935
        %v6138 = vpack.c.b16 %v5938, %v5936
        %6339 = vmatprep.subr.bf16.mxu0 0
        %6340 = vmatpush1.bf16.msra.mxu0 %v5323
        %6341 = vmatprep.subr.bf16.mxu0 0
        %6342 = vmatpush1.bf16.msra.mxu0 %v5324
        %6343 = vmatprep.subr.bf16.mxu0 0
        %6344 = vmatpush1.bf16.msra.mxu0 %v5325
        %6345 = vmatprep.subr.bf16.mxu0 0
        %6346 = vmatpush1.bf16.msra.mxu0 %v5326
        %6347 = vmatprep.subr.bf16.mxu0 0
        %6348 = vmatpush1.bf16.msra.mxu0 %v5327
        %6349 = vmatprep.subr.bf16.mxu0 0
        %6350 = vmatpush1.bf16.msra.mxu0 %v5328
        %6351 = vmatprep.subr.bf16.mxu0 0
        %6352 = vmatpush1.bf16.msra.mxu0 %v5329
        %6353 = vmatprep.subr.bf16.mxu0 0
        %6354 = vmatpush1.bf16.msra.mxu0 %v5330
        %6355 = vmatprep.subr.bf16.mxu0 0
        %6356 = vmatpush1.bf16.msra.mxu0 %v5331
        %6357 = vmatprep.subr.bf16.mxu0 0
        %6358 = vmatpush1.bf16.msra.mxu0 %v5332
        %6359 = vmatprep.subr.bf16.mxu0 0
        %6360 = vmatpush1.bf16.msra.mxu0 %v5333
        %6361 = vmatprep.subr.bf16.mxu0 0
        %6362 = vmatpush1.bf16.msra.mxu0 %v5334
        %6363 = vmatprep.subr.bf16.mxu0 0
        %6364 = vmatpush1.bf16.msra.mxu0 %v5335
        %6365 = vmatprep.subr.bf16.mxu0 0
        %6366 = vmatpush1.bf16.msra.mxu0 %v5336
        %6367 = vmatprep.subr.bf16.mxu0 0
        %6368 = vmatpush1.bf16.msra.mxu0 %v5337
        %6369 = vmatprep.subr.bf16.mxu0 0
        %6370 = vmatpush1.bf16.msra.mxu0 %v5338
        %6371 = vmatprep.mubr.bf16.mxu0 %v5940
        %6372 = vmatmul.mubr.bf16.gmra.mrb[0].mxu0 %v5939
        %v6373 = vpop.f32.mrb[0].mxu0
        %v6374 = vadd.f32 0.0, %v6373
        %v6375 = vpop.f32.mrb[0].mxu0
        %v6376 = vpop.f32.mrb[0].mxu0
        %v6377 = vadd.f32 0.0, %v6376
        %v6378 = vpop.f32.mrb[0].mxu0
        %6379 = vmatprep.mubr.bf16.mxu0 %v5942
        %6380 = vmatmul.mubr.bf16.gmra.mrb[0].mxu0 %v5941
        %v6381 = vpop.f32.mrb[0].mxu0
        %v6382 = vadd.f32 0.0, %v6381
        %v6383 = vpop.f32.mrb[0].mxu0
        %v6384 = vpop.f32.mrb[0].mxu0
        %v6385 = vadd.f32 0.0, %v6384
        %v6386 = vpop.f32.mrb[0].mxu0
        %6387 = vmatprep.mubr.bf16.mxu0 %v5944
        %6388 = vmatmul.mubr.bf16.gmra.mrb[0].mxu0 %v5943
        %v6389 = vpop.f32.mrb[0].mxu0
        %v6390 = vadd.f32 0.0, %v6389
        %v6391 = vpop.f32.mrb[0].mxu0
        %v6392 = vpop.f32.mrb[0].mxu0
        %v6393 = vadd.f32 0.0, %v6392
        %v6394 = vpop.f32.mrb[0].mxu0
        %6395 = vmatprep.mubr.bf16.mxu0 %v5946
        %6396 = vmatmul.mubr.bf16.gmra.mrb[0].mxu0 %v5945
        %v6397 = vpop.f32.mrb[0].mxu0
        %v6398 = vadd.f32 0.0, %v6397
        %v6399 = vpop.f32.mrb[0].mxu0
        %v6400 = vpop.f32.mrb[0].mxu0
        %v6401 = vadd.f32 0.0, %v6400
        %v6402 = vpop.f32.mrb[0].mxu0
        %6403 = vmatprep.mubr.bf16.mxu0 %v5948
        %6404 = vmatmul.mubr.bf16.gmra.mrb[0].mxu0 %v5947
        %v6405 = vpop.f32.mrb[0].mxu0
        %v6406 = vadd.f32 0.0, %v6405
        %v6407 = vpop.f32.mrb[0].mxu0
        %v6408 = vpop.f32.mrb[0].mxu0
        %v6409 = vadd.f32 0.0, %v6408
        %v6410 = vpop.f32.mrb[0].mxu0
        %6411 = vmatprep.mubr.bf16.mxu0 %v5950
        %6412 = vmatmul.mubr.bf16.gmra.mrb[0].mxu0 %v5949
        %v6413 = vpop.f32.mrb[0].mxu0
        %v6414 = vadd.f32 0.0, %v6413
        %v6415 = vpop.f32.mrb[0].mxu0
        %v6416 = vpop.f32.mrb[0].mxu0
        %v6417 = vadd.f32 0.0, %v6416
        %v6418 = vpop.f32.mrb[0].mxu0
        %6419 = vmatprep.mubr.bf16.mxu0 %v5952
        %6420 = vmatmul.mubr.bf16.gmra.mrb[0].mxu0 %v5951
        %v6421 = vpop.f32.mrb[0].mxu0
        %v6422 = vadd.f32 0.0, %v6421
        %v6423 = vpop.f32.mrb[0].mxu0
        %v6424 = vpop.f32.mrb[0].mxu0
        %v6425 = vadd.f32 0.0, %v6424
        %v6426 = vpop.f32.mrb[0].mxu0
        %6427 = vmatprep.mubr.bf16.mxu0 %v5954
        %6428 = vmatmul.mubr.bf16.gmra.mrb[0].mxu0 %v5953
        %v6429 = vpop.f32.mrb[0].mxu0
        %v6430 = vadd.f32 0.0, %v6429
        %v6431 = vpop.f32.mrb[0].mxu0
        %v6432 = vpop.f32.mrb[0].mxu0
        %v6433 = vadd.f32 0.0, %v6432
        %v6434 = vpop.f32.mrb[0].mxu0
        %6435 = vmatprep.mubr.bf16.mxu0 %v5956
        %6436 = vmatmul.mubr.bf16.gmra.mrb[0].mxu0 %v5955
        %v6437 = vpop.f32.mrb[0].mxu0
        %v6438 = vadd.f32 0.0, %v6437
        %v6439 = vpop.f32.mrb[0].mxu0
        %v6440 = vpop.f32.mrb[0].mxu0
        %v6441 = vadd.f32 0.0, %v6440
        %v6442 = vpop.f32.mrb[0].mxu0
        %6443 = vmatprep.mubr.bf16.mxu0 %v5958
        %6444 = vmatmul.mubr.bf16.gmra.mrb[0].mxu0 %v5957
        %v6445 = vpop.f32.mrb[0].mxu0
        %v6446 = vadd.f32 0.0, %v6445
        %v6447 = vpop.f32.mrb[0].mxu0
        %v6448 = vpop.f32.mrb[0].mxu0
        %v6449 = vadd.f32 0.0, %v6448
        %v6450 = vpop.f32.mrb[0].mxu0
        %6451 = vmatprep.mubr.bf16.mxu0 %v5960
        %6452 = vmatmul.mubr.bf16.gmra.mrb[0].mxu0 %v5959
        %v6453 = vpop.f32.mrb[0].mxu0
        %v6454 = vadd.f32 0.0, %v6453
        %v6455 = vpop.f32.mrb[0].mxu0
        %v6456 = vpop.f32.mrb[0].mxu0
        %v6457 = vadd.f32 0.0, %v6456
        %v6458 = vpop.f32.mrb[0].mxu0
        %6459 = vmatprep.mubr.bf16.mxu0 %v5962
        %6460 = vmatmul.mubr.bf16.gmra.mrb[0].mxu0 %v5961
        %v6461 = vpop.f32.mrb[0].mxu0
        %v6462 = vadd.f32 0.0, %v6461
        %v6463 = vpop.f32.mrb[0].mxu0
        %v6464 = vpop.f32.mrb[0].mxu0
        %v6465 = vadd.f32 0.0, %v6464
        %v6466 = vpop.f32.mrb[0].mxu0
        %6467 = vmatprep.mubr.bf16.mxu0 %v5964
        %6468 = vmatmul.mubr.bf16.gmra.mrb[0].mxu0 %v5963
        %v6469 = vpop.f32.mrb[0].mxu0
        %v6470 = vadd.f32 0.0, %v6469
        %v6471 = vpop.f32.mrb[0].mxu0
        %v6472 = vpop.f32.mrb[0].mxu0
        %v6473 = vadd.f32 0.0, %v6472
        %v6474 = vpop.f32.mrb[0].mxu0
        %6475 = vmatprep.mubr.bf16.mxu0 %v5966
        %6476 = vmatmul.mubr.bf16.gmra.mrb[0].mxu0 %v5965
        %v6477 = vpop.f32.mrb[0].mxu0
        %v6478 = vadd.f32 0.0, %v6477
        %v6479 = vpop.f32.mrb[0].mxu0
        %v6480 = vpop.f32.mrb[0].mxu0
        %v6481 = vadd.f32 0.0, %v6480
        %v6482 = vpop.f32.mrb[0].mxu0
        %6483 = vmatprep.mubr.bf16.mxu0 %v5968
        %6484 = vmatmul.mubr.bf16.gmra.mrb[0].mxu0 %v5967
        %v6485 = vpop.f32.mrb[0].mxu0
        %v6486 = vadd.f32 0.0, %v6485
        %v6487 = vpop.f32.mrb[0].mxu0
        %v6488 = vpop.f32.mrb[0].mxu0
        %v6489 = vadd.f32 0.0, %v6488
        %v6490 = vpop.f32.mrb[0].mxu0
        %6491 = vmatprep.mubr.bf16.mxu0 %v5970
        %6492 = vmatmul.mubr.bf16.gmra.mrb[0].mxu0 %v5969
        %v6493 = vpop.f32.mrb[0].mxu0
        %v6494 = vadd.f32 0.0, %v6493
        %v6495 = vpop.f32.mrb[0].mxu0
        %v6496 = vpop.f32.mrb[0].mxu0
        %v6497 = vadd.f32 0.0, %v6496
        %v6498 = vpop.f32.mrb[0].mxu0
        %6499 = vmatprep.mubr.bf16.mxu0 %v5972
        %6500 = vmatmul.mubr.bf16.gmra.mrb[0].mxu0 %v5971
        %v6501 = vpop.f32.mrb[0].mxu0
        %v6502 = vadd.f32 0.0, %v6501
        %v6503 = vpop.f32.mrb[0].mxu0
        %v6504 = vpop.f32.mrb[0].mxu0
        %v6505 = vadd.f32 0.0, %v6504
        %v6506 = vpop.f32.mrb[0].mxu0
        %6507 = vmatprep.mubr.bf16.mxu0 %v5974
        %6508 = vmatmul.mubr.bf16.gmra.mrb[0].mxu0 %v5973
        %v6509 = vpop.f32.mrb[0].mxu0
        %v6510 = vadd.f32 0.0, %v6509
        %v6511 = vpop.f32.mrb[0].mxu0
        %v6512 = vpop.f32.mrb[0].mxu0
        %v6513 = vadd.f32 0.0, %v6512
        %v6514 = vpop.f32.mrb[0].mxu0
        %6515 = vmatprep.mubr.bf16.mxu0 %v5976
        %6516 = vmatmul.mubr.bf16.gmra.mrb[0].mxu0 %v5975
        %v6517 = vpop.f32.mrb[0].mxu0
        %v6518 = vadd.f32 0.0, %v6517
        %v6519 = vpop.f32.mrb[0].mxu0
        %v6520 = vpop.f32.mrb[0].mxu0
        %v6521 = vadd.f32 0.0, %v6520
        %v6522 = vpop.f32.mrb[0].mxu0
        %6523 = vmatprep.mubr.bf16.mxu0 %v5978
        %6524 = vmatmul.mubr.bf16.gmra.mrb[0].mxu0 %v5977
        %v6525 = vpop.f32.mrb[0].mxu0
        %v6526 = vadd.f32 0.0, %v6525
        %v6527 = vpop.f32.mrb[0].mxu0
        %v6528 = vpop.f32.mrb[0].mxu0
        %v6529 = vadd.f32 0.0, %v6528
        %v6530 = vpop.f32.mrb[0].mxu0
        %6531 = vmatprep.mubr.bf16.mxu0 %v5980
        %6532 = vmatmul.mubr.bf16.gmra.mrb[0].mxu0 %v5979
        %v6533 = vpop.f32.mrb[0].mxu0
        %v6534 = vadd.f32 0.0, %v6533
        %v6535 = vpop.f32.mrb[0].mxu0
        %v6536 = vpop.f32.mrb[0].mxu0
        %v6537 = vadd.f32 0.0, %v6536
        %v6538 = vpop.f32.mrb[0].mxu0
        %6539 = vmatprep.mubr.bf16.mxu0 %v5982
        %6540 = vmatmul.mubr.bf16.gmra.mrb[0].mxu0 %v5981
        %v6541 = vpop.f32.mrb[0].mxu0
        %v6542 = vadd.f32 0.0, %v6541
        %v6543 = vpop.f32.mrb[0].mxu0
        %v6544 = vpop.f32.mrb[0].mxu0
        %v6545 = vadd.f32 0.0, %v6544
        %v6546 = vpop.f32.mrb[0].mxu0
        %6547 = vmatprep.mubr.bf16.mxu0 %v5984
        %6548 = vmatmul.mubr.bf16.gmra.mrb[0].mxu0 %v5983
        %v6549 = vpop.f32.mrb[0].mxu0
        %v6550 = vadd.f32 0.0, %v6549
        %v6551 = vpop.f32.mrb[0].mxu0
        %v6552 = vpop.f32.mrb[0].mxu0
        %v6553 = vadd.f32 0.0, %v6552
        %v6554 = vpop.f32.mrb[0].mxu0
        %6555 = vmatprep.mubr.bf16.mxu0 %v5986
        %6556 = vmatmul.mubr.bf16.gmra.mrb[0].mxu0 %v5985
        %v6557 = vpop.f32.mrb[0].mxu0
        %v6558 = vadd.f32 0.0, %v6557
        %v6559 = vpop.f32.mrb[0].mxu0
        %v6560 = vpop.f32.mrb[0].mxu0
        %v6561 = vadd.f32 0.0, %v6560
        %v6562 = vpop.f32.mrb[0].mxu0
        %6563 = vmatprep.mubr.bf16.mxu0 %v5988
        %6564 = vmatmul.mubr.bf16.gmra.mrb[0].mxu0 %v5987
        %v6565 = vpop.f32.mrb[0].mxu0
        %v6566 = vadd.f32 0.0, %v6565
        %v6567 = vpop.f32.mrb[0].mxu0
        %v6568 = vpop.f32.mrb[0].mxu0
        %v6569 = vadd.f32 0.0, %v6568
        %v6570 = vpop.f32.mrb[0].mxu0
        %6571 = vmatprep.mubr.bf16.mxu0 %v5990
        %6572 = vmatmul.mubr.bf16.gmra.mrb[0].mxu0 %v5989
        %v6573 = vpop.f32.mrb[0].mxu0
        %v6574 = vadd.f32 0.0, %v6573
        %v6575 = vpop.f32.mrb[0].mxu0
        %v6576 = vpop.f32.mrb[0].mxu0
        %v6577 = vadd.f32 0.0, %v6576
        %v6578 = vpop.f32.mrb[0].mxu0
        %6579 = vmatprep.mubr.bf16.mxu0 %v5992
        %6580 = vmatmul.mubr.bf16.gmra.mrb[0].mxu0 %v5991
        %v6581 = vpop.f32.mrb[0].mxu0
        %v6582 = vadd.f32 0.0, %v6581
        %v6583 = vpop.f32.mrb[0].mxu0
        %v6584 = vpop.f32.mrb[0].mxu0
        %v6585 = vadd.f32 0.0, %v6584
        %v6586 = vpop.f32.mrb[0].mxu0
        %6587 = vmatprep.mubr.bf16.mxu0 %v5994
        %6588 = vmatmul.mubr.bf16.gmra.mrb[0].mxu0 %v5993
        %v6589 = vpop.f32.mrb[0].mxu0
        %v6590 = vadd.f32 0.0, %v6589
        %v6591 = vpop.f32.mrb[0].mxu0
        %v6592 = vpop.f32.mrb[0].mxu0
        %v6593 = vadd.f32 0.0, %v6592
        %v6594 = vpop.f32.mrb[0].mxu0
        %6595 = vmatprep.mubr.bf16.mxu0 %v5996
        %6596 = vmatmul.mubr.bf16.gmra.mrb[0].mxu0 %v5995
        %v6597 = vpop.f32.mrb[0].mxu0
        %v6598 = vadd.f32 0.0, %v6597
        %v6599 = vpop.f32.mrb[0].mxu0
        %v6600 = vpop.f32.mrb[0].mxu0
        %v6601 = vadd.f32 0.0, %v6600
        %v6602 = vpop.f32.mrb[0].mxu0
        %6603 = vmatprep.mubr.bf16.mxu0 %v5998
        %6604 = vmatmul.mubr.bf16.gmra.mrb[0].mxu0 %v5997
        %v6605 = vpop.f32.mrb[0].mxu0
        %v6606 = vadd.f32 0.0, %v6605
        %v6607 = vpop.f32.mrb[0].mxu0
        %v6608 = vpop.f32.mrb[0].mxu0
        %v6609 = vadd.f32 0.0, %v6608
        %v6610 = vpop.f32.mrb[0].mxu0
        %6611 = vmatprep.mubr.bf16.mxu0 %v6000
        %6612 = vmatmul.mubr.bf16.gmra.mrb[0].mxu0 %v5999
        %v6613 = vpop.f32.mrb[0].mxu0
        %v6614 = vadd.f32 0.0, %v6613
        %v6615 = vpop.f32.mrb[0].mxu0
        %v6616 = vpop.f32.mrb[0].mxu0
        %v6617 = vadd.f32 0.0, %v6616
        %v6618 = vpop.f32.mrb[0].mxu0
        %6619 = vmatprep.mubr.bf16.mxu0 %v6002
        %6620 = vmatmul.mubr.bf16.gmra.mrb[0].mxu0 %v6001
        %v6621 = vpop.f32.mrb[0].mxu0
        %v6622 = vadd.f32 0.0, %v6621
        %v6623 = vpop.f32.mrb[0].mxu0
        %v6624 = vpop.f32.mrb[0].mxu0
        %v6625 = vadd.f32 0.0, %v6624
        %v6626 = vpop.f32.mrb[0].mxu0
        %6627 = vmatprep.mubr.bf16.mxu0 %v6004
        %6628 = vmatmul.mubr.bf16.gmra.mrb[0].mxu0 %v6003
        %v6629 = vpop.f32.mrb[0].mxu0
        %v6630 = vadd.f32 0.0, %v6629
        %v6631 = vpop.f32.mrb[0].mxu0
        %v6632 = vpop.f32.mrb[0].mxu0
        %v6633 = vadd.f32 0.0, %v6632
        %v6634 = vpop.f32.mrb[0].mxu0
        %6635 = vmatprep.mubr.bf16.mxu0 %v6006
        %6636 = vmatmul.mubr.bf16.gmra.mrb[0].mxu0 %v6005
        %v6637 = vpop.f32.mrb[0].mxu0
        %v6638 = vadd.f32 0.0, %v6637
        %v6639 = vpop.f32.mrb[0].mxu0
        %v6640 = vpop.f32.mrb[0].mxu0
        %v6641 = vadd.f32 0.0, %v6640
        %v6642 = vpop.f32.mrb[0].mxu0
        %6643 = vmatprep.mubr.bf16.mxu0 %v6008
        %6644 = vmatmul.mubr.bf16.gmra.mrb[0].mxu0 %v6007
        %v6645 = vpop.f32.mrb[0].mxu0
        %v6646 = vadd.f32 0.0, %v6645
        %v6647 = vpop.f32.mrb[0].mxu0
        %v6648 = vpop.f32.mrb[0].mxu0
        %v6649 = vadd.f32 0.0, %v6648
        %v6650 = vpop.f32.mrb[0].mxu0
        %6651 = vmatprep.mubr.bf16.mxu0 %v6010
        %6652 = vmatmul.mubr.bf16.gmra.mrb[0].mxu0 %v6009
        %v6653 = vpop.f32.mrb[0].mxu0
        %v6654 = vadd.f32 0.0, %v6653
        %v6655 = vpop.f32.mrb[0].mxu0
        %v6656 = vpop.f32.mrb[0].mxu0
        %v6657 = vadd.f32 0.0, %v6656
        %v6658 = vpop.f32.mrb[0].mxu0
        %6659 = vmatprep.mubr.bf16.mxu0 %v6012
        %6660 = vmatmul.mubr.bf16.gmra.mrb[0].mxu0 %v6011
        %v6661 = vpop.f32.mrb[0].mxu0
        %v6662 = vadd.f32 0.0, %v6661
        %v6663 = vpop.f32.mrb[0].mxu0
        %v6664 = vpop.f32.mrb[0].mxu0
        %v6665 = vadd.f32 0.0, %v6664
        %v6666 = vpop.f32.mrb[0].mxu0
        %6667 = vmatprep.mubr.bf16.mxu0 %v6014
        %6668 = vmatmul.mubr.bf16.gmra.mrb[0].mxu0 %v6013
        %v6669 = vpop.f32.mrb[0].mxu0
        %v6670 = vadd.f32 0.0, %v6669
        %v6671 = vpop.f32.mrb[0].mxu0
        %v6672 = vpop.f32.mrb[0].mxu0
        %v6673 = vadd.f32 0.0, %v6672
        %v6674 = vpop.f32.mrb[0].mxu0
        %6675 = vmatprep.mubr.bf16.mxu0 %v6016
        %6676 = vmatmul.mubr.bf16.gmra.mrb[0].mxu0 %v6015
        %v6677 = vpop.f32.mrb[0].mxu0
        %v6678 = vadd.f32 0.0, %v6677
        %v6679 = vpop.f32.mrb[0].mxu0
        %v6680 = vpop.f32.mrb[0].mxu0
        %v6681 = vadd.f32 0.0, %v6680
        %v6682 = vpop.f32.mrb[0].mxu0
        %6683 = vmatprep.mubr.bf16.mxu0 %v6018
        %6684 = vmatmul.mubr.bf16.gmra.mrb[0].mxu0 %v6017
        %v6685 = vpop.f32.mrb[0].mxu0
        %v6686 = vadd.f32 0.0, %v6685
        %v6687 = vpop.f32.mrb[0].mxu0
        %v6688 = vpop.f32.mrb[0].mxu0
        %v6689 = vadd.f32 0.0, %v6688
        %v6690 = vpop.f32.mrb[0].mxu0
        %6691 = vmatprep.mubr.bf16.mxu0 %v6020
        %6692 = vmatmul.mubr.bf16.gmra.mrb[0].mxu0 %v6019
        %v6693 = vpop.f32.mrb[0].mxu0
        %v6694 = vadd.f32 0.0, %v6693
        %v6695 = vpop.f32.mrb[0].mxu0
        %v6696 = vpop.f32.mrb[0].mxu0
        %v6697 = vadd.f32 0.0, %v6696
        %v6698 = vpop.f32.mrb[0].mxu0
        %6699 = vmatprep.mubr.bf16.mxu0 %v6022
        %6700 = vmatmul.mubr.bf16.gmra.mrb[0].mxu0 %v6021
        %v6701 = vpop.f32.mrb[0].mxu0
        %v6702 = vadd.f32 0.0, %v6701
        %v6703 = vpop.f32.mrb[0].mxu0
        %v6704 = vpop.f32.mrb[0].mxu0
        %v6705 = vadd.f32 0.0, %v6704
        %v6706 = vpop.f32.mrb[0].mxu0
        %6707 = vmatprep.mubr.bf16.mxu0 %v6024
        %6708 = vmatmul.mubr.bf16.gmra.mrb[0].mxu0 %v6023
        %v6709 = vpop.f32.mrb[0].mxu0
        %v6710 = vadd.f32 0.0, %v6709
        %v6711 = vpop.f32.mrb[0].mxu0
        %v6712 = vpop.f32.mrb[0].mxu0
        %v6713 = vadd.f32 0.0, %v6712
        %v6714 = vpop.f32.mrb[0].mxu0
        %6715 = vmatprep.mubr.bf16.mxu0 %v6026
        %6716 = vmatmul.mubr.bf16.gmra.mrb[0].mxu0 %v6025
        %v6717 = vpop.f32.mrb[0].mxu0
        %v6718 = vadd.f32 0.0, %v6717
        %v6719 = vpop.f32.mrb[0].mxu0
        %v6720 = vpop.f32.mrb[0].mxu0
        %v6721 = vadd.f32 0.0, %v6720
        %v6722 = vpop.f32.mrb[0].mxu0
        %6723 = vmatprep.mubr.bf16.mxu0 %v6028
        %6724 = vmatmul.mubr.bf16.gmra.mrb[0].mxu0 %v6027
        %v6725 = vpop.f32.mrb[0].mxu0
        %v6726 = vadd.f32 0.0, %v6725
        %v6727 = vpop.f32.mrb[0].mxu0
        %v6728 = vpop.f32.mrb[0].mxu0
        %v6729 = vadd.f32 0.0, %v6728
        %v6730 = vpop.f32.mrb[0].mxu0
        %6731 = vmatprep.mubr.bf16.mxu0 %v6030
        %6732 = vmatmul.mubr.bf16.gmra.mrb[0].mxu0 %v6029
        %v6733 = vpop.f32.mrb[0].mxu0
        %v6734 = vadd.f32 0.0, %v6733
        %v6735 = vpop.f32.mrb[0].mxu0
        %v6736 = vpop.f32.mrb[0].mxu0
        %v6737 = vadd.f32 0.0, %v6736
        %v6738 = vpop.f32.mrb[0].mxu0
        %6739 = vmatprep.mubr.bf16.mxu0 %v6032
        %6740 = vmatmul.mubr.bf16.gmra.mrb[0].mxu0 %v6031
        %v6741 = vpop.f32.mrb[0].mxu0
        %v6742 = vadd.f32 0.0, %v6741
        %v6743 = vpop.f32.mrb[0].mxu0
        %v6744 = vpop.f32.mrb[0].mxu0
        %v6745 = vadd.f32 0.0, %v6744
        %v6746 = vpop.f32.mrb[0].mxu0
        %6747 = vmatprep.mubr.bf16.mxu0 %v6034
        %6748 = vmatmul.mubr.bf16.gmra.mrb[0].mxu0 %v6033
        %v6749 = vpop.f32.mrb[0].mxu0
        %v6750 = vadd.f32 0.0, %v6749
        %v6751 = vpop.f32.mrb[0].mxu0
        %v6752 = vpop.f32.mrb[0].mxu0
        %v6753 = vadd.f32 0.0, %v6752
        %v6754 = vpop.f32.mrb[0].mxu0
        %6755 = vmatprep.mubr.bf16.mxu0 %v6036
        %6756 = vmatmul.mubr.bf16.gmra.mrb[0].mxu0 %v6035
        %v6757 = vpop.f32.mrb[0].mxu0
        %v6758 = vadd.f32 0.0, %v6757
        %v6759 = vpop.f32.mrb[0].mxu0
        %v6760 = vpop.f32.mrb[0].mxu0
        %v6761 = vadd.f32 0.0, %v6760
        %v6762 = vpop.f32.mrb[0].mxu0
        %6763 = vmatprep.mubr.bf16.mxu0 %v6038
        %6764 = vmatmul.mubr.bf16.gmra.mrb[0].mxu0 %v6037
        %v6765 = vpop.f32.mrb[0].mxu0
        %v6766 = vadd.f32 0.0, %v6765
        %v6767 = vpop.f32.mrb[0].mxu0
        %v6768 = vpop.f32.mrb[0].mxu0
        %v6769 = vadd.f32 0.0, %v6768
        %v6770 = vpop.f32.mrb[0].mxu0
        %6771 = vmatprep.mubr.bf16.mxu0 %v6040
        %6772 = vmatmul.mubr.bf16.gmra.mrb[0].mxu0 %v6039
        %v6773 = vpop.f32.mrb[0].mxu0
        %v6774 = vadd.f32 0.0, %v6773
        %v6775 = vpop.f32.mrb[0].mxu0
        %v6776 = vpop.f32.mrb[0].mxu0
        %v6777 = vadd.f32 0.0, %v6776
        %v6778 = vpop.f32.mrb[0].mxu0
        %6779 = vmatprep.mubr.bf16.mxu0 %v6042
        %6780 = vmatmul.mubr.bf16.gmra.mrb[0].mxu0 %v6041
        %v6781 = vpop.f32.mrb[0].mxu0
        %v6782 = vadd.f32 0.0, %v6781
        %v6783 = vpop.f32.mrb[0].mxu0
        %v6784 = vpop.f32.mrb[0].mxu0
        %v6785 = vadd.f32 0.0, %v6784
        %v6786 = vpop.f32.mrb[0].mxu0
        %6787 = vmatprep.mubr.bf16.mxu0 %v6044
        %6788 = vmatmul.mubr.bf16.gmra.mrb[0].mxu0 %v6043
        %v6789 = vpop.f32.mrb[0].mxu0
        %v6790 = vadd.f32 0.0, %v6789
        %v6791 = vpop.f32.mrb[0].mxu0
        %v6792 = vpop.f32.mrb[0].mxu0
        %v6793 = vadd.f32 0.0, %v6792
        %v6794 = vpop.f32.mrb[0].mxu0
        %6795 = vmatprep.mubr.bf16.mxu0 %v6046
        %6796 = vmatmul.mubr.bf16.gmra.mrb[0].mxu0 %v6045
        %v6797 = vpop.f32.mrb[0].mxu0
        %v6798 = vadd.f32 0.0, %v6797
        %v6799 = vpop.f32.mrb[0].mxu0
        %v6800 = vpop.f32.mrb[0].mxu0
        %v6801 = vadd.f32 0.0, %v6800
        %v6802 = vpop.f32.mrb[0].mxu0
        %6803 = vmatprep.mubr.bf16.mxu0 %v6048
        %6804 = vmatmul.mubr.bf16.gmra.mrb[0].mxu0 %v6047
        %v6805 = vpop.f32.mrb[0].mxu0
        %v6806 = vadd.f32 0.0, %v6805
        %v6807 = vpop.f32.mrb[0].mxu0
        %v6808 = vpop.f32.mrb[0].mxu0
        %v6809 = vadd.f32 0.0, %v6808
        %v6810 = vpop.f32.mrb[0].mxu0
        %6811 = vmatprep.mubr.bf16.mxu0 %v6050
        %6812 = vmatmul.mubr.bf16.gmra.mrb[0].mxu0 %v6049
        %v6813 = vpop.f32.mrb[0].mxu0
        %v6814 = vadd.f32 0.0, %v6813
        %v6815 = vpop.f32.mrb[0].mxu0
        %v6816 = vpop.f32.mrb[0].mxu0
        %v6817 = vadd.f32 0.0, %v6816
        %v6818 = vpop.f32.mrb[0].mxu0
        %6819 = vmatprep.mubr.bf16.mxu0 %v6052
        %6820 = vmatmul.mubr.bf16.gmra.mrb[0].mxu0 %v6051
        %v6821 = vpop.f32.mrb[0].mxu0
        %v6822 = vadd.f32 0.0, %v6821
        %v6823 = vpop.f32.mrb[0].mxu0
        %v6824 = vpop.f32.mrb[0].mxu0
        %v6825 = vadd.f32 0.0, %v6824
        %v6826 = vpop.f32.mrb[0].mxu0
        %6827 = vmatprep.mubr.bf16.mxu0 %v6054
        %6828 = vmatmul.mubr.bf16.gmra.mrb[0].mxu0 %v6053
        %v6829 = vpop.f32.mrb[0].mxu0
        %v6830 = vadd.f32 0.0, %v6829
        %v6831 = vpop.f32.mrb[0].mxu0
        %v6832 = vpop.f32.mrb[0].mxu0
        %v6833 = vadd.f32 0.0, %v6832
        %v6834 = vpop.f32.mrb[0].mxu0
        %6835 = vmatprep.mubr.bf16.mxu0 %v6056
        %6836 = vmatmul.mubr.bf16.gmra.mrb[0].mxu0 %v6055
        %v6837 = vpop.f32.mrb[0].mxu0
        %v6838 = vadd.f32 0.0, %v6837
        %v6839 = vpop.f32.mrb[0].mxu0
        %v6840 = vpop.f32.mrb[0].mxu0
        %v6841 = vadd.f32 0.0, %v6840
        %v6842 = vpop.f32.mrb[0].mxu0
        %6843 = vmatprep.mubr.bf16.mxu0 %v6058
        %6844 = vmatmul.mubr.bf16.gmra.mrb[0].mxu0 %v6057
        %v6845 = vpop.f32.mrb[0].mxu0
        %v6846 = vadd.f32 0.0, %v6845
        %v6847 = vpop.f32.mrb[0].mxu0
        %v6848 = vpop.f32.mrb[0].mxu0
        %v6849 = vadd.f32 0.0, %v6848
        %v6850 = vpop.f32.mrb[0].mxu0
        %6851 = vmatprep.mubr.bf16.mxu0 %v6060
        %6852 = vmatmul.mubr.bf16.gmra.mrb[0].mxu0 %v6059
        %v6853 = vpop.f32.mrb[0].mxu0
        %v6854 = vadd.f32 0.0, %v6853
        %v6855 = vpop.f32.mrb[0].mxu0
        %v6856 = vpop.f32.mrb[0].mxu0
        %v6857 = vadd.f32 0.0, %v6856
        %v6858 = vpop.f32.mrb[0].mxu0
        %6859 = vmatprep.mubr.bf16.mxu0 %v6062
        %6860 = vmatmul.mubr.bf16.gmra.mrb[0].mxu0 %v6061
        %v6861 = vpop.f32.mrb[0].mxu0
        %v6862 = vadd.f32 0.0, %v6861
        %v6863 = vpop.f32.mrb[0].mxu0
        %v6864 = vpop.f32.mrb[0].mxu0
        %v6865 = vadd.f32 0.0, %v6864
        %v6866 = vpop.f32.mrb[0].mxu0
        %6867 = vmatprep.mubr.bf16.mxu0 %v6064
        %6868 = vmatmul.mubr.bf16.gmra.mrb[0].mxu0 %v6063
        %v6869 = vpop.f32.mrb[0].mxu0
        %v6870 = vadd.f32 0.0, %v6869
        %v6871 = vpop.f32.mrb[0].mxu0
        %v6872 = vpop.f32.mrb[0].mxu0
        %v6873 = vadd.f32 0.0, %v6872
        %v6874 = vpop.f32.mrb[0].mxu0
        %6875 = vmatprep.mubr.bf16.mxu0 %v6066
        %6876 = vmatmul.mubr.bf16.gmra.mrb[0].mxu0 %v6065
        %v6877 = vpop.f32.mrb[0].mxu0
        %v6878 = vadd.f32 0.0, %v6877
        %v6879 = vpop.f32.mrb[0].mxu0
        %v6880 = vpop.f32.mrb[0].mxu0
        %v6881 = vadd.f32 0.0, %v6880
        %v6882 = vpop.f32.mrb[0].mxu0
        %6883 = vmatprep.mubr.bf16.mxu0 %v6068
        %6884 = vmatmul.mubr.bf16.gmra.mrb[0].mxu0 %v6067
        %v6885 = vpop.f32.mrb[0].mxu0
        %v6886 = vadd.f32 0.0, %v6885
        %v6887 = vpop.f32.mrb[0].mxu0
        %v6888 = vpop.f32.mrb[0].mxu0
        %v6889 = vadd.f32 0.0, %v6888
        %v6890 = vpop.f32.mrb[0].mxu0
        %6891 = vmatprep.mubr.bf16.mxu0 %v6070
        %6892 = vmatmul.mubr.bf16.gmra.mrb[0].mxu0 %v6069
        %v6893 = vpop.f32.mrb[0].mxu0
        %v6894 = vadd.f32 0.0, %v6893
        %v6895 = vpop.f32.mrb[0].mxu0
        %v6896 = vpop.f32.mrb[0].mxu0
        %v6897 = vadd.f32 0.0, %v6896
        %v6898 = vpop.f32.mrb[0].mxu0
        %6899 = vmatprep.mubr.bf16.mxu0 %v6072
        %6900 = vmatmul.mubr.bf16.gmra.mrb[0].mxu0 %v6071
        %v6901 = vpop.f32.mrb[0].mxu0
        %v6902 = vadd.f32 0.0, %v6901
        %v6903 = vpop.f32.mrb[0].mxu0
        %v6904 = vpop.f32.mrb[0].mxu0
        %v6905 = vadd.f32 0.0, %v6904
        %v6906 = vpop.f32.mrb[0].mxu0
        %6907 = vmatprep.mubr.bf16.mxu0 %v6074
        %6908 = vmatmul.mubr.bf16.gmra.mrb[0].mxu0 %v6073
        %v6909 = vpop.f32.mrb[0].mxu0
        %v6910 = vadd.f32 0.0, %v6909
        %v6911 = vpop.f32.mrb[0].mxu0
        %v6912 = vpop.f32.mrb[0].mxu0
        %v6913 = vadd.f32 0.0, %v6912
        %v6914 = vpop.f32.mrb[0].mxu0
        %6915 = vmatprep.mubr.bf16.mxu0 %v6076
        %6916 = vmatmul.mubr.bf16.gmra.mrb[0].mxu0 %v6075
        %v6917 = vpop.f32.mrb[0].mxu0
        %v6918 = vadd.f32 0.0, %v6917
        %v6919 = vpop.f32.mrb[0].mxu0
        %v6920 = vpop.f32.mrb[0].mxu0
        %v6921 = vadd.f32 0.0, %v6920
        %v6922 = vpop.f32.mrb[0].mxu0
        %6923 = vmatprep.mubr.bf16.mxu0 %v6078
        %6924 = vmatmul.mubr.bf16.gmra.mrb[0].mxu0 %v6077
        %v6925 = vpop.f32.mrb[0].mxu0
        %v6926 = vadd.f32 0.0, %v6925
        %v6927 = vpop.f32.mrb[0].mxu0
        %v6928 = vpop.f32.mrb[0].mxu0
        %v6929 = vadd.f32 0.0, %v6928
        %v6930 = vpop.f32.mrb[0].mxu0
        %6931 = vmatprep.mubr.bf16.mxu0 %v6080
        %6932 = vmatmul.mubr.bf16.gmra.mrb[0].mxu0 %v6079
        %v6933 = vpop.f32.mrb[0].mxu0
        %v6934 = vadd.f32 0.0, %v6933
        %v6935 = vpop.f32.mrb[0].mxu0
        %v6936 = vpop.f32.mrb[0].mxu0
        %v6937 = vadd.f32 0.0, %v6936
        %v6938 = vpop.f32.mrb[0].mxu0
        %6939 = vmatprep.mubr.bf16.mxu0 %v6082
        %6940 = vmatmul.mubr.bf16.gmra.mrb[0].mxu0 %v6081
        %v6941 = vpop.f32.mrb[0].mxu0
        %v6942 = vadd.f32 0.0, %v6941
        %v6943 = vpop.f32.mrb[0].mxu0
        %v6944 = vpop.f32.mrb[0].mxu0
        %v6945 = vadd.f32 0.0, %v6944
        %v6946 = vpop.f32.mrb[0].mxu0
        %6947 = vmatprep.mubr.bf16.mxu0 %v6084
        %6948 = vmatmul.mubr.bf16.gmra.mrb[0].mxu0 %v6083
        %v6949 = vpop.f32.mrb[0].mxu0
        %v6950 = vadd.f32 0.0, %v6949
        %v6951 = vpop.f32.mrb[0].mxu0
        %v6952 = vpop.f32.mrb[0].mxu0
        %v6953 = vadd.f32 0.0, %v6952
        %v6954 = vpop.f32.mrb[0].mxu0
        %6955 = vmatprep.mubr.bf16.mxu0 %v6086
        %6956 = vmatmul.mubr.bf16.gmra.mrb[0].mxu0 %v6085
        %v6957 = vpop.f32.mrb[0].mxu0
        %v6958 = vadd.f32 0.0, %v6957
        %v6959 = vpop.f32.mrb[0].mxu0
        %v6960 = vpop.f32.mrb[0].mxu0
        %v6961 = vadd.f32 0.0, %v6960
        %v6962 = vpop.f32.mrb[0].mxu0
        %6963 = vmatprep.mubr.bf16.mxu0 %v6088
        %6964 = vmatmul.mubr.bf16.gmra.mrb[0].mxu0 %v6087
        %v6965 = vpop.f32.mrb[0].mxu0
        %v6966 = vadd.f32 0.0, %v6965
        %v6967 = vpop.f32.mrb[0].mxu0
        %v6968 = vpop.f32.mrb[0].mxu0
        %v6969 = vadd.f32 0.0, %v6968
        %v6970 = vpop.f32.mrb[0].mxu0
        %6971 = vmatprep.mubr.bf16.mxu0 %v6090
        %6972 = vmatmul.mubr.bf16.gmra.mrb[0].mxu0 %v6089
        %v6973 = vpop.f32.mrb[0].mxu0
        %v6974 = vadd.f32 0.0, %v6973
        %v6975 = vpop.f32.mrb[0].mxu0
        %v6976 = vpop.f32.mrb[0].mxu0
        %v6977 = vadd.f32 0.0, %v6976
        %v6978 = vpop.f32.mrb[0].mxu0
        %6979 = vmatprep.mubr.bf16.mxu0 %v6092
        %6980 = vmatmul.mubr.bf16.gmra.mrb[0].mxu0 %v6091
        %v6981 = vpop.f32.mrb[0].mxu0
        %v6982 = vadd.f32 0.0, %v6981
        %v6983 = vpop.f32.mrb[0].mxu0
        %v6984 = vpop.f32.mrb[0].mxu0
        %v6985 = vadd.f32 0.0, %v6984
        %v6986 = vpop.f32.mrb[0].mxu0
        %6987 = vmatprep.mubr.bf16.mxu0 %v6094
        %6988 = vmatmul.mubr.bf16.gmra.mrb[0].mxu0 %v6093
        %v6989 = vpop.f32.mrb[0].mxu0
        %v6990 = vadd.f32 0.0, %v6989
        %v6991 = vpop.f32.mrb[0].mxu0
        %v6992 = vpop.f32.mrb[0].mxu0
        %v6993 = vadd.f32 0.0, %v6992
        %v6994 = vpop.f32.mrb[0].mxu0
        %6995 = vmatprep.mubr.bf16.mxu0 %v6096
        %6996 = vmatmul.mubr.bf16.gmra.mrb[0].mxu0 %v6095
        %v6997 = vpop.f32.mrb[0].mxu0
        %v6998 = vadd.f32 0.0, %v6997
        %v6999 = vpop.f32.mrb[0].mxu0
        %v7000 = vpop.f32.mrb[0].mxu0
        %v7001 = vadd.f32 0.0, %v7000
        %v7002 = vpop.f32.mrb[0].mxu0
        %7003 = vmatprep.mubr.bf16.mxu0 %v6098
        %7004 = vmatmul.mubr.bf16.gmra.mrb[0].mxu0 %v6097
        %v7005 = vpop.f32.mrb[0].mxu0
        %v7006 = vadd.f32 0.0, %v7005
        %v7007 = vpop.f32.mrb[0].mxu0
        %v7008 = vpop.f32.mrb[0].mxu0
        %v7009 = vadd.f32 0.0, %v7008
        %v7010 = vpop.f32.mrb[0].mxu0
        %7011 = vmatprep.mubr.bf16.mxu0 %v6100
        %7012 = vmatmul.mubr.bf16.gmra.mrb[0].mxu0 %v6099
        %v7013 = vpop.f32.mrb[0].mxu0
        %v7014 = vadd.f32 0.0, %v7013
        %v7015 = vpop.f32.mrb[0].mxu0
        %v7016 = vpop.f32.mrb[0].mxu0
        %v7017 = vadd.f32 0.0, %v7016
        %v7018 = vpop.f32.mrb[0].mxu0
        %7019 = vmatprep.mubr.bf16.mxu0 %v6102
        %7020 = vmatmul.mubr.bf16.gmra.mrb[0].mxu0 %v6101
        %v7021 = vpop.f32.mrb[0].mxu0
        %v7022 = vadd.f32 0.0, %v7021
        %v7023 = vpop.f32.mrb[0].mxu0
        %v7024 = vpop.f32.mrb[0].mxu0
        %v7025 = vadd.f32 0.0, %v7024
        %v7026 = vpop.f32.mrb[0].mxu0
        %7027 = vmatprep.mubr.bf16.mxu0 %v6104
        %7028 = vmatmul.mubr.bf16.gmra.mrb[0].mxu0 %v6103
        %v7029 = vpop.f32.mrb[0].mxu0
        %v7030 = vadd.f32 0.0, %v7029
        %v7031 = vpop.f32.mrb[0].mxu0
        %v7032 = vpop.f32.mrb[0].mxu0
        %v7033 = vadd.f32 0.0, %v7032
        %v7034 = vpop.f32.mrb[0].mxu0
        %7035 = vmatprep.mubr.bf16.mxu0 %v6106
        %7036 = vmatmul.mubr.bf16.gmra.mrb[0].mxu0 %v6105
        %v7037 = vpop.f32.mrb[0].mxu0
        %v7038 = vadd.f32 0.0, %v7037
        %v7039 = vpop.f32.mrb[0].mxu0
        %v7040 = vpop.f32.mrb[0].mxu0
        %v7041 = vadd.f32 0.0, %v7040
        %v7042 = vpop.f32.mrb[0].mxu0
        %7043 = vmatprep.mubr.bf16.mxu0 %v6108
        %7044 = vmatmul.mubr.bf16.gmra.mrb[0].mxu0 %v6107
        %v7045 = vpop.f32.mrb[0].mxu0
        %v7046 = vadd.f32 0.0, %v7045
        %v7047 = vpop.f32.mrb[0].mxu0
        %v7048 = vpop.f32.mrb[0].mxu0
        %v7049 = vadd.f32 0.0, %v7048
        %v7050 = vpop.f32.mrb[0].mxu0
        %7051 = vmatprep.mubr.bf16.mxu0 %v6110
        %7052 = vmatmul.mubr.bf16.gmra.mrb[0].mxu0 %v6109
        %v7053 = vpop.f32.mrb[0].mxu0
        %v7054 = vadd.f32 0.0, %v7053
        %v7055 = vpop.f32.mrb[0].mxu0
        %v7056 = vpop.f32.mrb[0].mxu0
        %v7057 = vadd.f32 0.0, %v7056
        %v7058 = vpop.f32.mrb[0].mxu0
        %7059 = vmatprep.mubr.bf16.mxu0 %v6112
        %7060 = vmatmul.mubr.bf16.gmra.mrb[0].mxu0 %v6111
        %v7061 = vpop.f32.mrb[0].mxu0
        %v7062 = vadd.f32 0.0, %v7061
        %v7063 = vpop.f32.mrb[0].mxu0
        %v7064 = vpop.f32.mrb[0].mxu0
        %v7065 = vadd.f32 0.0, %v7064
        %v7066 = vpop.f32.mrb[0].mxu0
        %7067 = vmatprep.mubr.bf16.mxu0 %v6114
        %7068 = vmatmul.mubr.bf16.gmra.mrb[0].mxu0 %v6113
        %v7069 = vpop.f32.mrb[0].mxu0
        %v7070 = vadd.f32 0.0, %v7069
        %v7071 = vpop.f32.mrb[0].mxu0
        %v7072 = vpop.f32.mrb[0].mxu0
        %v7073 = vadd.f32 0.0, %v7072
        %v7074 = vpop.f32.mrb[0].mxu0
        %7075 = vmatprep.mubr.bf16.mxu0 %v6116
        %7076 = vmatmul.mubr.bf16.gmra.mrb[0].mxu0 %v6115
        %v7077 = vpop.f32.mrb[0].mxu0
        %v7078 = vadd.f32 0.0, %v7077
        %v7079 = vpop.f32.mrb[0].mxu0
        %v7080 = vpop.f32.mrb[0].mxu0
        %v7081 = vadd.f32 0.0, %v7080
        %v7082 = vpop.f32.mrb[0].mxu0
        %7083 = vmatprep.mubr.bf16.mxu0 %v6118
        %7084 = vmatmul.mubr.bf16.gmra.mrb[0].mxu0 %v6117
        %v7085 = vpop.f32.mrb[0].mxu0
        %v7086 = vadd.f32 0.0, %v7085
        %v7087 = vpop.f32.mrb[0].mxu0
        %v7088 = vpop.f32.mrb[0].mxu0
        %v7089 = vadd.f32 0.0, %v7088
        %v7090 = vpop.f32.mrb[0].mxu0
        %7091 = vmatprep.mubr.bf16.mxu0 %v6120
        %7092 = vmatmul.mubr.bf16.gmra.mrb[0].mxu0 %v6119
        %v7093 = vpop.f32.mrb[0].mxu0
        %v7094 = vadd.f32 0.0, %v7093
        %v7095 = vpop.f32.mrb[0].mxu0
        %v7096 = vpop.f32.mrb[0].mxu0
        %v7097 = vadd.f32 0.0, %v7096
        %v7098 = vpop.f32.mrb[0].mxu0
        %7099 = vmatprep.mubr.bf16.mxu0 %v6122
        %7100 = vmatmul.mubr.bf16.gmra.mrb[0].mxu0 %v6121
        %v7101 = vpop.f32.mrb[0].mxu0
        %v7102 = vadd.f32 0.0, %v7101
        %v7103 = vpop.f32.mrb[0].mxu0
        %v7104 = vpop.f32.mrb[0].mxu0
        %v7105 = vadd.f32 0.0, %v7104
        %v7106 = vpop.f32.mrb[0].mxu0
        %7107 = vmatprep.mubr.bf16.mxu0 %v6124
        %7108 = vmatmul.mubr.bf16.gmra.mrb[0].mxu0 %v6123
        %v7109 = vpop.f32.mrb[0].mxu0
        %v7110 = vadd.f32 0.0, %v7109
        %v7111 = vpop.f32.mrb[0].mxu0
        %v7112 = vpop.f32.mrb[0].mxu0
        %v7113 = vadd.f32 0.0, %v7112
        %v7114 = vpop.f32.mrb[0].mxu0
        %7115 = vmatprep.mubr.bf16.mxu0 %v6126
        %7116 = vmatmul.mubr.bf16.gmra.mrb[0].mxu0 %v6125
        %v7117 = vpop.f32.mrb[0].mxu0
        %v7118 = vadd.f32 0.0, %v7117
        %v7119 = vpop.f32.mrb[0].mxu0
        %v7120 = vpop.f32.mrb[0].mxu0
        %v7121 = vadd.f32 0.0, %v7120
        %v7122 = vpop.f32.mrb[0].mxu0
        %7123 = vmatprep.mubr.bf16.mxu0 %v6128
        %7124 = vmatmul.mubr.bf16.gmra.mrb[0].mxu0 %v6127
        %v7125 = vpop.f32.mrb[0].mxu0
        %v7126 = vadd.f32 0.0, %v7125
        %v7127 = vpop.f32.mrb[0].mxu0
        %v7128 = vpop.f32.mrb[0].mxu0
        %v7129 = vadd.f32 0.0, %v7128
        %v7130 = vpop.f32.mrb[0].mxu0
        %7131 = vmatprep.mubr.bf16.mxu0 %v6130
        %7132 = vmatmul.mubr.bf16.gmra.mrb[0].mxu0 %v6129
        %v7133 = vpop.f32.mrb[0].mxu0
        %v7134 = vadd.f32 0.0, %v7133
        %v7135 = vpop.f32.mrb[0].mxu0
        %v7136 = vpop.f32.mrb[0].mxu0
        %v7137 = vadd.f32 0.0, %v7136
        %v7138 = vpop.f32.mrb[0].mxu0
        %7139 = vmatprep.mubr.bf16.mxu0 %v6132
        %7140 = vmatmul.mubr.bf16.gmra.mrb[0].mxu0 %v6131
        %v7141 = vpop.f32.mrb[0].mxu0
        %v7142 = vadd.f32 0.0, %v7141
        %v7143 = vpop.f32.mrb[0].mxu0
        %v7144 = vpop.f32.mrb[0].mxu0
        %v7145 = vadd.f32 0.0, %v7144
        %v7146 = vpop.f32.mrb[0].mxu0
        %7147 = vmatprep.mubr.bf16.mxu0 %v6134
        %7148 = vmatmul.mubr.bf16.gmra.mrb[0].mxu0 %v6133
        %v7149 = vpop.f32.mrb[0].mxu0
        %v7150 = vadd.f32 0.0, %v7149
        %v7151 = vpop.f32.mrb[0].mxu0
        %v7152 = vpop.f32.mrb[0].mxu0
        %v7153 = vadd.f32 0.0, %v7152
        %v7154 = vpop.f32.mrb[0].mxu0
        %7155 = vmatprep.mubr.bf16.mxu0 %v6136
        %7156 = vmatmul.mubr.bf16.gmra.mrb[0].mxu0 %v6135
        %v7157 = vpop.f32.mrb[0].mxu0
        %v7158 = vadd.f32 0.0, %v7157
        %v7159 = vpop.f32.mrb[0].mxu0
        %v7160 = vpop.f32.mrb[0].mxu0
        %v7161 = vadd.f32 0.0, %v7160
        %v7162 = vpop.f32.mrb[0].mxu0
        %7163 = vmatprep.mubr.bf16.mxu0 %v6138
        %7164 = vmatmul.mubr.bf16.gmra.mrb[0].mxu0 %v6137
        %v7165 = vpop.f32.mrb[0].mxu0
        %v7166 = vadd.f32 0.0, %v7165
        %v7167 = vpop.f32.mrb[0].mxu0
        %v7168 = vpop.f32.mrb[0].mxu0
        %v7169 = vadd.f32 0.0, %v7168
        %v7170 = vpop.f32.mrb[0].mxu0
        %7171 = vdwg.mxu0
        %v7172 = vld [vmem:[%s5 + $0x11] sm:$0x1]
        %v7173 = vlaneseq
        %v7174 = vshrl.u32 %v7173, 7
        %v7175 = vsub.s32 0, %v7174
        %v7176 = vrot.slane %v7172, %v7175
        %v7177 = vmul.f32 %v6374, %v7176
        %v7178 = vmul.f32 %v6377, %v7176
        %v7179 = vmul.f32 %v6382, %v7176
        %v7180 = vmul.f32 %v6385, %v7176
        %v7181 = vmul.f32 %v6390, %v7176
        %v7182 = vmul.f32 %v6393, %v7176
        %v7183 = vmul.f32 %v6398, %v7176
        %v7184 = vmul.f32 %v6401, %v7176
        %v7185 = vld [vmem:[%s5 + $0x12] sm:$0x1]
        %v7186 = vlaneseq
        %v7187 = vshrl.u32 %v7186, 7
        %v7188 = vsub.s32 0, %v7187
        %v7189 = vrot.slane %v7185, %v7188
        %v7190 = vmul.f32 %v6406, %v7189
        %v7191 = vmul.f32 %v6409, %v7189
        %v7192 = vmul.f32 %v6414, %v7189
        %v7193 = vmul.f32 %v6417, %v7189
        %v7194 = vmul.f32 %v6422, %v7189
        %v7195 = vmul.f32 %v6425, %v7189
        %v7196 = vmul.f32 %v6430, %v7189
        %v7197 = vmul.f32 %v6433, %v7189
        %v7198 = vld [vmem:[%s5 + $0x13] sm:$0x1]
        %v7199 = vlaneseq
        %v7200 = vshrl.u32 %v7199, 7
        %v7201 = vsub.s32 0, %v7200
        %v7202 = vrot.slane %v7198, %v7201
        %v7203 = vmul.f32 %v6438, %v7202
        %v7204 = vmul.f32 %v6441, %v7202
        %v7205 = vmul.f32 %v6446, %v7202
        %v7206 = vmul.f32 %v6449, %v7202
        %v7207 = vmul.f32 %v6454, %v7202
        %v7208 = vmul.f32 %v6457, %v7202
        %v7209 = vmul.f32 %v6462, %v7202
        %v7210 = vmul.f32 %v6465, %v7202
        %v7211 = vld [vmem:[%s5 + $0x14] sm:$0x1]
        %v7212 = vlaneseq
        %v7213 = vshrl.u32 %v7212, 7
        %v7214 = vsub.s32 0, %v7213
        %v7215 = vrot.slane %v7211, %v7214
        %v7216 = vmul.f32 %v6470, %v7215
        %v7217 = vmul.f32 %v6473, %v7215
        %v7218 = vmul.f32 %v6478, %v7215
        %v7219 = vmul.f32 %v6481, %v7215
        %v7220 = vmul.f32 %v6486, %v7215
        %v7221 = vmul.f32 %v6489, %v7215
        %v7222 = vmul.f32 %v6494, %v7215
        %v7223 = vmul.f32 %v6497, %v7215
        %v7224 = vld [vmem:[%s5 + $0x15] sm:$0x1]
        %v7225 = vlaneseq
        %v7226 = vshrl.u32 %v7225, 7
        %v7227 = vsub.s32 0, %v7226
        %v7228 = vrot.slane %v7224, %v7227
        %v7229 = vmul.f32 %v6502, %v7228
        %v7230 = vmul.f32 %v6505, %v7228
        %v7231 = vmul.f32 %v6510, %v7228
        %v7232 = vmul.f32 %v6513, %v7228
        %v7233 = vmul.f32 %v6518, %v7228
        %v7234 = vmul.f32 %v6521, %v7228
        %v7235 = vmul.f32 %v6526, %v7228
        %v7236 = vmul.f32 %v6529, %v7228
        %v7237 = vld [vmem:[%s5 + $0x16] sm:$0x1]
        %v7238 = vlaneseq
        %v7239 = vshrl.u32 %v7238, 7
        %v7240 = vsub.s32 0, %v7239
        %v7241 = vrot.slane %v7237, %v7240
        %v7242 = vmul.f32 %v6534, %v7241
        %v7243 = vmul.f32 %v6537, %v7241
        %v7244 = vmul.f32 %v6542, %v7241
        %v7245 = vmul.f32 %v6545, %v7241
        %v7246 = vmul.f32 %v6550, %v7241
        %v7247 = vmul.f32 %v6553, %v7241
        %v7248 = vmul.f32 %v6558, %v7241
        %v7249 = vmul.f32 %v6561, %v7241
        %v7250 = vld [vmem:[%s5 + $0x17] sm:$0x1]
        %v7251 = vlaneseq
        %v7252 = vshrl.u32 %v7251, 7
        %v7253 = vsub.s32 0, %v7252
        %v7254 = vrot.slane %v7250, %v7253
        %v7255 = vmul.f32 %v6566, %v7254
        %v7256 = vmul.f32 %v6569, %v7254
        %v7257 = vmul.f32 %v6574, %v7254
        %v7258 = vmul.f32 %v6577, %v7254
        %v7259 = vmul.f32 %v6582, %v7254
        %v7260 = vmul.f32 %v6585, %v7254
        %v7261 = vmul.f32 %v6590, %v7254
        %v7262 = vmul.f32 %v6593, %v7254
        %v7263 = vld [vmem:[%s5 + $0x18] sm:$0x1]
        %v7264 = vlaneseq
        %v7265 = vshrl.u32 %v7264, 7
        %v7266 = vsub.s32 0, %v7265
        %v7267 = vrot.slane %v7263, %v7266
        %v7268 = vmul.f32 %v6598, %v7267
        %v7269 = vmul.f32 %v6601, %v7267
        %v7270 = vmul.f32 %v6606, %v7267
        %v7271 = vmul.f32 %v6609, %v7267
        %v7272 = vmul.f32 %v6614, %v7267
        %v7273 = vmul.f32 %v6617, %v7267
        %v7274 = vmul.f32 %v6622, %v7267
        %v7275 = vmul.f32 %v6625, %v7267
        %v7276 = vld [vmem:[%s5 + $0x19] sm:$0x1]
        %v7277 = vlaneseq
        %v7278 = vshrl.u32 %v7277, 7
        %v7279 = vsub.s32 0, %v7278
        %v7280 = vrot.slane %v7276, %v7279
        %v7281 = vmul.f32 %v6630, %v7280
        %v7282 = vmul.f32 %v6633, %v7280
        %v7283 = vmul.f32 %v6638, %v7280
        %v7284 = vmul.f32 %v6641, %v7280
        %v7285 = vmul.f32 %v6646, %v7280
        %v7286 = vmul.f32 %v6649, %v7280
        %v7287 = vmul.f32 %v6654, %v7280
        %v7288 = vmul.f32 %v6657, %v7280
        %v7289 = vld [vmem:[%s5 + $0x1a] sm:$0x1]
        %v7290 = vlaneseq
        %v7291 = vshrl.u32 %v7290, 7
        %v7292 = vsub.s32 0, %v7291
        %v7293 = vrot.slane %v7289, %v7292
        %v7294 = vmul.f32 %v6662, %v7293
        %v7295 = vmul.f32 %v6665, %v7293
        %v7296 = vmul.f32 %v6670, %v7293
        %v7297 = vmul.f32 %v6673, %v7293
        %v7298 = vmul.f32 %v6678, %v7293
        %v7299 = vmul.f32 %v6681, %v7293
        %v7300 = vmul.f32 %v6686, %v7293
        %v7301 = vmul.f32 %v6689, %v7293
        %v7302 = vld [vmem:[%s5 + $0x1b] sm:$0x1]
        %v7303 = vlaneseq
        %v7304 = vshrl.u32 %v7303, 7
        %v7305 = vsub.s32 0, %v7304
        %v7306 = vrot.slane %v7302, %v7305
        %v7307 = vmul.f32 %v6694, %v7306
        %v7308 = vmul.f32 %v6697, %v7306
        %v7309 = vmul.f32 %v6702, %v7306
        %v7310 = vmul.f32 %v6705, %v7306
        %v7311 = vmul.f32 %v6710, %v7306
        %v7312 = vmul.f32 %v6713, %v7306
        %v7313 = vmul.f32 %v6718, %v7306
        %v7314 = vmul.f32 %v6721, %v7306
        %v7315 = vld [vmem:[%s5 + $0x1c] sm:$0x1]
        %v7316 = vlaneseq
        %v7317 = vshrl.u32 %v7316, 7
        %v7318 = vsub.s32 0, %v7317
        %v7319 = vrot.slane %v7315, %v7318
        %v7320 = vmul.f32 %v6726, %v7319
        %v7321 = vmul.f32 %v6729, %v7319
        %v7322 = vmul.f32 %v6734, %v7319
        %v7323 = vmul.f32 %v6737, %v7319
        %v7324 = vmul.f32 %v6742, %v7319
        %v7325 = vmul.f32 %v6745, %v7319
        %v7326 = vmul.f32 %v6750, %v7319
        %v7327 = vmul.f32 %v6753, %v7319
        %v7328 = vld [vmem:[%s5 + $0x1d] sm:$0x1]
        %v7329 = vlaneseq
        %v7330 = vshrl.u32 %v7329, 7
        %v7331 = vsub.s32 0, %v7330
        %v7332 = vrot.slane %v7328, %v7331
        %v7333 = vmul.f32 %v6758, %v7332
        %v7334 = vmul.f32 %v6761, %v7332
        %v7335 = vmul.f32 %v6766, %v7332
        %v7336 = vmul.f32 %v6769, %v7332
        %v7337 = vmul.f32 %v6774, %v7332
        %v7338 = vmul.f32 %v6777, %v7332
        %v7339 = vmul.f32 %v6782, %v7332
        %v7340 = vmul.f32 %v6785, %v7332
        %v7341 = vld [vmem:[%s5 + $0x1e] sm:$0x1]
        %v7342 = vlaneseq
        %v7343 = vshrl.u32 %v7342, 7
        %v7344 = vsub.s32 0, %v7343
        %v7345 = vrot.slane %v7341, %v7344
        %v7346 = vmul.f32 %v6790, %v7345
        %v7347 = vmul.f32 %v6793, %v7345
        %v7348 = vmul.f32 %v6798, %v7345
        %v7349 = vmul.f32 %v6801, %v7345
        %v7350 = vmul.f32 %v6806, %v7345
        %v7351 = vmul.f32 %v6809, %v7345
        %v7352 = vmul.f32 %v6814, %v7345
        %v7353 = vmul.f32 %v6817, %v7345
        %v7354 = vld [vmem:[%s5 + $0x1f] sm:$0x1]
        %v7355 = vlaneseq
        %v7356 = vshrl.u32 %v7355, 7
        %v7357 = vsub.s32 0, %v7356
        %v7358 = vrot.slane %v7354, %v7357
        %v7359 = vmul.f32 %v6822, %v7358
        %v7360 = vmul.f32 %v6825, %v7358
        %v7361 = vmul.f32 %v6830, %v7358
        %v7362 = vmul.f32 %v6833, %v7358
        %v7363 = vmul.f32 %v6838, %v7358
        %v7364 = vmul.f32 %v6841, %v7358
        %v7365 = vmul.f32 %v6846, %v7358
        %v7366 = vmul.f32 %v6849, %v7358
        %v7367 = vld [vmem:[%s5 + $0x20] sm:$0x1]
        %v7368 = vlaneseq
        %v7369 = vshrl.u32 %v7368, 7
        %v7370 = vsub.s32 0, %v7369
        %v7371 = vrot.slane %v7367, %v7370
        %v7372 = vmul.f32 %v6854, %v7371
        %v7373 = vmul.f32 %v6857, %v7371
        %v7374 = vmul.f32 %v6862, %v7371
        %v7375 = vmul.f32 %v6865, %v7371
        %v7376 = vmul.f32 %v6870, %v7371
        %v7377 = vmul.f32 %v6873, %v7371
        %v7378 = vmul.f32 %v6878, %v7371
        %v7379 = vmul.f32 %v6881, %v7371
        %v7380 = vld [vmem:[%s5 + $0x21] sm:$0x1]
        %v7381 = vlaneseq
        %v7382 = vshrl.u32 %v7381, 7
        %v7383 = vsub.s32 0, %v7382
        %v7384 = vrot.slane %v7380, %v7383
        %v7385 = vmul.f32 %v6886, %v7384
        %v7386 = vmul.f32 %v6889, %v7384
        %v7387 = vmul.f32 %v6894, %v7384
        %v7388 = vmul.f32 %v6897, %v7384
        %v7389 = vmul.f32 %v6902, %v7384
        %v7390 = vmul.f32 %v6905, %v7384
        %v7391 = vmul.f32 %v6910, %v7384
        %v7392 = vmul.f32 %v6913, %v7384
        %v7393 = vld [vmem:[%s5 + $0x22] sm:$0x1]
        %v7394 = vlaneseq
        %v7395 = vshrl.u32 %v7394, 7
        %v7396 = vsub.s32 0, %v7395
        %v7397 = vrot.slane %v7393, %v7396
        %v7398 = vmul.f32 %v6918, %v7397
        %v7399 = vmul.f32 %v6921, %v7397
        %v7400 = vmul.f32 %v6926, %v7397
        %v7401 = vmul.f32 %v6929, %v7397
        %v7402 = vmul.f32 %v6934, %v7397
        %v7403 = vmul.f32 %v6937, %v7397
        %v7404 = vmul.f32 %v6942, %v7397
        %v7405 = vmul.f32 %v6945, %v7397
        %v7406 = vld [vmem:[%s5 + $0x23] sm:$0x1]
        %v7407 = vlaneseq
        %v7408 = vshrl.u32 %v7407, 7
        %v7409 = vsub.s32 0, %v7408
        %v7410 = vrot.slane %v7406, %v7409
        %v7411 = vmul.f32 %v6950, %v7410
        %v7412 = vmul.f32 %v6953, %v7410
        %v7413 = vmul.f32 %v6958, %v7410
        %v7414 = vmul.f32 %v6961, %v7410
        %v7415 = vmul.f32 %v6966, %v7410
        %v7416 = vmul.f32 %v6969, %v7410
        %v7417 = vmul.f32 %v6974, %v7410
        %v7418 = vmul.f32 %v6977, %v7410
        %v7419 = vld [vmem:[%s5 + $0x24] sm:$0x1]
        %v7420 = vlaneseq
        %v7421 = vshrl.u32 %v7420, 7
        %v7422 = vsub.s32 0, %v7421
        %v7423 = vrot.slane %v7419, %v7422
        %v7424 = vmul.f32 %v6982, %v7423
        %v7425 = vmul.f32 %v6985, %v7423
        %v7426 = vmul.f32 %v6990, %v7423
        %v7427 = vmul.f32 %v6993, %v7423
        %v7428 = vmul.f32 %v6998, %v7423
        %v7429 = vmul.f32 %v7001, %v7423
        %v7430 = vmul.f32 %v7006, %v7423
        %v7431 = vmul.f32 %v7009, %v7423
        %v7432 = vld [vmem:[%s5 + $0x25] sm:$0x1]
        %v7433 = vlaneseq
        %v7434 = vshrl.u32 %v7433, 7
        %v7435 = vsub.s32 0, %v7434
        %v7436 = vrot.slane %v7432, %v7435
        %v7437 = vmul.f32 %v7014, %v7436
        %v7438 = vmul.f32 %v7017, %v7436
        %v7439 = vmul.f32 %v7022, %v7436
        %v7440 = vmul.f32 %v7025, %v7436
        %v7441 = vmul.f32 %v7030, %v7436
        %v7442 = vmul.f32 %v7033, %v7436
        %v7443 = vmul.f32 %v7038, %v7436
        %v7444 = vmul.f32 %v7041, %v7436
        %v7445 = vld [vmem:[%s5 + $0x26] sm:$0x1]
        %v7446 = vlaneseq
        %v7447 = vshrl.u32 %v7446, 7
        %v7448 = vsub.s32 0, %v7447
        %v7449 = vrot.slane %v7445, %v7448
        %v7450 = vmul.f32 %v7046, %v7449
        %v7451 = vmul.f32 %v7049, %v7449
        %v7452 = vmul.f32 %v7054, %v7449
        %v7453 = vmul.f32 %v7057, %v7449
        %v7454 = vmul.f32 %v7062, %v7449
        %v7455 = vmul.f32 %v7065, %v7449
        %v7456 = vmul.f32 %v7070, %v7449
        %v7457 = vmul.f32 %v7073, %v7449
        %v7458 = vld [vmem:[%s5 + $0x27] sm:$0x1]
        %v7459 = vlaneseq
        %v7460 = vshrl.u32 %v7459, 7
        %v7461 = vsub.s32 0, %v7460
        %v7462 = vrot.slane %v7458, %v7461
        %v7463 = vmul.f32 %v7078, %v7462
        %v7464 = vmul.f32 %v7081, %v7462
        %v7465 = vmul.f32 %v7086, %v7462
        %v7466 = vmul.f32 %v7089, %v7462
        %v7467 = vmul.f32 %v7094, %v7462
        %v7468 = vmul.f32 %v7097, %v7462
        %v7469 = vmul.f32 %v7102, %v7462
        %v7470 = vmul.f32 %v7105, %v7462
        %v7471 = vld [vmem:[%s5 + $0x28] sm:$0x1]
        %v7472 = vlaneseq
        %v7473 = vshrl.u32 %v7472, 7
        %v7474 = vsub.s32 0, %v7473
        %v7475 = vrot.slane %v7471, %v7474
        %v7476 = vmul.f32 %v7110, %v7475
        %v7477 = vmul.f32 %v7113, %v7475
        %v7478 = vmul.f32 %v7118, %v7475
        %v7479 = vmul.f32 %v7121, %v7475
        %v7480 = vmul.f32 %v7126, %v7475
        %v7481 = vmul.f32 %v7129, %v7475
        %v7482 = vmul.f32 %v7134, %v7475
        %v7483 = vmul.f32 %v7137, %v7475
        %v7484 = vld [vmem:[%s5 + $0x29] sm:$0x1]
        %v7485 = vlaneseq
        %v7486 = vshrl.u32 %v7485, 7
        %v7487 = vsub.s32 0, %v7486
        %v7488 = vrot.slane %v7484, %v7487
        %v7489 = vmul.f32 %v7142, %v7488
        %v7490 = vmul.f32 %v7145, %v7488
        %v7491 = vmul.f32 %v7150, %v7488
        %v7492 = vmul.f32 %v7153, %v7488
        %v7493 = vmul.f32 %v7158, %v7488
        %v7494 = vmul.f32 %v7161, %v7488
        %v7495 = vmul.f32 %v7166, %v7488
        %v7496 = vmul.f32 %v7169, %v7488
        %v7497 = vadd.f32 %v7177, %v7190
        %v7498 = vadd.f32 %v7178, %v7191
        %v7499 = vadd.f32 %v7179, %v7192
        %v7500 = vadd.f32 %v7180, %v7193
        %v7501 = vadd.f32 %v7181, %v7194
        %v7502 = vadd.f32 %v7182, %v7195
        %v7503 = vadd.f32 %v7183, %v7196
        %v7504 = vadd.f32 %v7184, %v7197
        %v7505 = vadd.f32 %v7203, %v7216
        %v7506 = vadd.f32 %v7204, %v7217
        %v7507 = vadd.f32 %v7205, %v7218
        %v7508 = vadd.f32 %v7206, %v7219
        %v7509 = vadd.f32 %v7207, %v7220
        %v7510 = vadd.f32 %v7208, %v7221
        %v7511 = vadd.f32 %v7209, %v7222
        %v7512 = vadd.f32 %v7210, %v7223
        %v7513 = vadd.f32 %v7229, %v7242
        %v7514 = vadd.f32 %v7230, %v7243
        %v7515 = vadd.f32 %v7231, %v7244
        %v7516 = vadd.f32 %v7232, %v7245
        %v7517 = vadd.f32 %v7233, %v7246
        %v7518 = vadd.f32 %v7234, %v7247
        %v7519 = vadd.f32 %v7235, %v7248
        %v7520 = vadd.f32 %v7236, %v7249
        %v7521 = vadd.f32 %v7255, %v7268
        %v7522 = vadd.f32 %v7256, %v7269
        %v7523 = vadd.f32 %v7257, %v7270
        %v7524 = vadd.f32 %v7258, %v7271
        %v7525 = vadd.f32 %v7259, %v7272
        %v7526 = vadd.f32 %v7260, %v7273
        %v7527 = vadd.f32 %v7261, %v7274
        %v7528 = vadd.f32 %v7262, %v7275
        %v7529 = vadd.f32 %v7281, %v7294
        %v7530 = vadd.f32 %v7282, %v7295
        %v7531 = vadd.f32 %v7283, %v7296
        %v7532 = vadd.f32 %v7284, %v7297
        %v7533 = vadd.f32 %v7285, %v7298
        %v7534 = vadd.f32 %v7286, %v7299
        %v7535 = vadd.f32 %v7287, %v7300
        %v7536 = vadd.f32 %v7288, %v7301
        %v7537 = vadd.f32 %v7307, %v7320
        %v7538 = vadd.f32 %v7308, %v7321
        %v7539 = vadd.f32 %v7309, %v7322
        %v7540 = vadd.f32 %v7310, %v7323
        %v7541 = vadd.f32 %v7311, %v7324
        %v7542 = vadd.f32 %v7312, %v7325
        %v7543 = vadd.f32 %v7313, %v7326
        %v7544 = vadd.f32 %v7314, %v7327
        %v7545 = vadd.f32 %v7333, %v7346
        %v7546 = vadd.f32 %v7334, %v7347
        %v7547 = vadd.f32 %v7335, %v7348
        %v7548 = vadd.f32 %v7336, %v7349
        %v7549 = vadd.f32 %v7337, %v7350
        %v7550 = vadd.f32 %v7338, %v7351
        %v7551 = vadd.f32 %v7339, %v7352
        %v7552 = vadd.f32 %v7340, %v7353
        %v7553 = vadd.f32 %v7359, %v7372
        %v7554 = vadd.f32 %v7360, %v7373
        %v7555 = vadd.f32 %v7361, %v7374
        %v7556 = vadd.f32 %v7362, %v7375
        %v7557 = vadd.f32 %v7363, %v7376
        %v7558 = vadd.f32 %v7364, %v7377
        %v7559 = vadd.f32 %v7365, %v7378
        %v7560 = vadd.f32 %v7366, %v7379
        %v7561 = vadd.f32 %v7385, %v7398
        %v7562 = vadd.f32 %v7386, %v7399
        %v7563 = vadd.f32 %v7387, %v7400
        %v7564 = vadd.f32 %v7388, %v7401
        %v7565 = vadd.f32 %v7389, %v7402
        %v7566 = vadd.f32 %v7390, %v7403
        %v7567 = vadd.f32 %v7391, %v7404
        %v7568 = vadd.f32 %v7392, %v7405
        %v7569 = vadd.f32 %v7411, %v7424
        %v7570 = vadd.f32 %v7412, %v7425
        %v7571 = vadd.f32 %v7413, %v7426
        %v7572 = vadd.f32 %v7414, %v7427
        %v7573 = vadd.f32 %v7415, %v7428
        %v7574 = vadd.f32 %v7416, %v7429
        %v7575 = vadd.f32 %v7417, %v7430
        %v7576 = vadd.f32 %v7418, %v7431
        %v7577 = vadd.f32 %v7437, %v7450
        %v7578 = vadd.f32 %v7438, %v7451
        %v7579 = vadd.f32 %v7439, %v7452
        %v7580 = vadd.f32 %v7440, %v7453
        %v7581 = vadd.f32 %v7441, %v7454
        %v7582 = vadd.f32 %v7442, %v7455
        %v7583 = vadd.f32 %v7443, %v7456
        %v7584 = vadd.f32 %v7444, %v7457
        %v7585 = vadd.f32 %v7463, %v7476
        %v7586 = vadd.f32 %v7464, %v7477
        %v7587 = vadd.f32 %v7465, %v7478
        %v7588 = vadd.f32 %v7466, %v7479
        %v7589 = vadd.f32 %v7467, %v7480
        %v7590 = vadd.f32 %v7468, %v7481
        %v7591 = vadd.f32 %v7469, %v7482
        %v7592 = vadd.f32 %v7470, %v7483
        %v7593 = vadd.f32 %v7497, %v7505
        %v7594 = vadd.f32 %v7498, %v7506
        %v7595 = vadd.f32 %v7499, %v7507
        %v7596 = vadd.f32 %v7500, %v7508
        %v7597 = vadd.f32 %v7501, %v7509
        %v7598 = vadd.f32 %v7502, %v7510
        %v7599 = vadd.f32 %v7503, %v7511
        %v7600 = vadd.f32 %v7504, %v7512
        %v7601 = vadd.f32 %v7513, %v7521
        %v7602 = vadd.f32 %v7514, %v7522
        %v7603 = vadd.f32 %v7515, %v7523
        %v7604 = vadd.f32 %v7516, %v7524
        %v7605 = vadd.f32 %v7517, %v7525
        %v7606 = vadd.f32 %v7518, %v7526
        %v7607 = vadd.f32 %v7519, %v7527
        %v7608 = vadd.f32 %v7520, %v7528
        %v7609 = vadd.f32 %v7529, %v7537
        %v7610 = vadd.f32 %v7530, %v7538
        %v7611 = vadd.f32 %v7531, %v7539
        %v7612 = vadd.f32 %v7532, %v7540
        %v7613 = vadd.f32 %v7533, %v7541
        %v7614 = vadd.f32 %v7534, %v7542
        %v7615 = vadd.f32 %v7535, %v7543
        %v7616 = vadd.f32 %v7536, %v7544
        %v7617 = vadd.f32 %v7545, %v7553
        %v7618 = vadd.f32 %v7546, %v7554
        %v7619 = vadd.f32 %v7547, %v7555
        %v7620 = vadd.f32 %v7548, %v7556
        %v7621 = vadd.f32 %v7549, %v7557
        %v7622 = vadd.f32 %v7550, %v7558
        %v7623 = vadd.f32 %v7551, %v7559
        %v7624 = vadd.f32 %v7552, %v7560
        %v7625 = vadd.f32 %v7561, %v7569
        %v7626 = vadd.f32 %v7562, %v7570
        %v7627 = vadd.f32 %v7563, %v7571
        %v7628 = vadd.f32 %v7564, %v7572
        %v7629 = vadd.f32 %v7565, %v7573
        %v7630 = vadd.f32 %v7566, %v7574
        %v7631 = vadd.f32 %v7567, %v7575
        %v7632 = vadd.f32 %v7568, %v7576
        %v7633 = vadd.f32 %v7577, %v7585
        %v7634 = vadd.f32 %v7578, %v7586
        %v7635 = vadd.f32 %v7579, %v7587
        %v7636 = vadd.f32 %v7580, %v7588
        %v7637 = vadd.f32 %v7581, %v7589
        %v7638 = vadd.f32 %v7582, %v7590
        %v7639 = vadd.f32 %v7583, %v7591
        %v7640 = vadd.f32 %v7584, %v7592
        %v7641 = vadd.f32 %v7593, %v7601
        %v7642 = vadd.f32 %v7594, %v7602
        %v7643 = vadd.f32 %v7595, %v7603
        %v7644 = vadd.f32 %v7596, %v7604
        %v7645 = vadd.f32 %v7597, %v7605
        %v7646 = vadd.f32 %v7598, %v7606
        %v7647 = vadd.f32 %v7599, %v7607
        %v7648 = vadd.f32 %v7600, %v7608
        %v7649 = vadd.f32 %v7609, %v7617
        %v7650 = vadd.f32 %v7610, %v7618
        %v7651 = vadd.f32 %v7611, %v7619
        %v7652 = vadd.f32 %v7612, %v7620
        %v7653 = vadd.f32 %v7613, %v7621
        %v7654 = vadd.f32 %v7614, %v7622
        %v7655 = vadd.f32 %v7615, %v7623
        %v7656 = vadd.f32 %v7616, %v7624
        %v7657 = vadd.f32 %v7625, %v7633
        %v7658 = vadd.f32 %v7626, %v7634
        %v7659 = vadd.f32 %v7627, %v7635
        %v7660 = vadd.f32 %v7628, %v7636
        %v7661 = vadd.f32 %v7629, %v7637
        %v7662 = vadd.f32 %v7630, %v7638
        %v7663 = vadd.f32 %v7631, %v7639
        %v7664 = vadd.f32 %v7632, %v7640
        %v7665 = vadd.f32 %v7641, %v7649
        %v7666 = vadd.f32 %v7642, %v7650
        %v7667 = vadd.f32 %v7643, %v7651
        %v7668 = vadd.f32 %v7644, %v7652
        %v7669 = vadd.f32 %v7645, %v7653
        %v7670 = vadd.f32 %v7646, %v7654
        %v7671 = vadd.f32 %v7647, %v7655
        %v7672 = vadd.f32 %v7648, %v7656
        %v7673 = vadd.f32 %v7657, %v7489
        %v7674 = vadd.f32 %v7658, %v7490
        %v7675 = vadd.f32 %v7659, %v7491
        %v7676 = vadd.f32 %v7660, %v7492
        %v7677 = vadd.f32 %v7661, %v7493
        %v7678 = vadd.f32 %v7662, %v7494
        %v7679 = vadd.f32 %v7663, %v7495
        %v7680 = vadd.f32 %v7664, %v7496
        %v7681 = vadd.f32 %v7665, %v7673
        %v7682 = vadd.f32 %v7666, %v7674
        %v7683 = vadd.f32 %v7667, %v7675
        %v7684 = vadd.f32 %v7668, %v7676
        %v7685 = vadd.f32 %v7669, %v7677
        %v7686 = vadd.f32 %v7670, %v7678
        %v7687 = vadd.f32 %v7671, %v7679
        %v7688 = vadd.f32 %v7672, %v7680
        %v7689 = vld [vmem:[%s5 + $0x2a] sm:$0x1]
        %v7690 = vlaneseq
        %v7691 = vshrl.u32 %v7690, 7
        %v7692 = vsub.s32 0, %v7691
        %v7693 = vrot.slane %v7689, %v7692
        %v7694 = vmul.f32 %v7681, %v7693
        %v7695 = vmul.f32 %v7682, %v7693
        %v7696 = vmul.f32 %v7683, %v7693
        %v7697 = vmul.f32 %v7684, %v7693
        %v7698 = vmul.f32 %v7685, %v7693
        %v7699 = vmul.f32 %v7686, %v7693
        %v7700 = vmul.f32 %v7687, %v7693
        %v7701 = vmul.f32 %v7688, %v7693
        %v7702 = vld [vmem:[%s5 + $0x2b] sm:$0x1]
        %v7703 = vlaneseq
        %v7704 = vshrl.u32 %v7703, 7
        %v7705 = vsub.s32 0, %v7704
        %v7706 = vrot.slane %v7702, %v7705
        %v7707 = vadd.f32 %v7694, %v7706
        %v7708 = vadd.f32 %v7695, %v7706
        %v7709 = vadd.f32 %v7696, %v7706
        %v7710 = vadd.f32 %v7697, %v7706
        %v7711 = vadd.f32 %v7698, %v7706
        %v7712 = vadd.f32 %v7699, %v7706
        %v7713 = vadd.f32 %v7700, %v7706
        %v7714 = vadd.f32 %v7701, %v7706
        %v7715 = vmax.f32 %v7707, 0.0
        %v7716 = vmax.f32 %v7708, 0.0
        %v7717 = vmax.f32 %v7709, 0.0
        %v7718 = vmax.f32 %v7710, 0.0
        %v7719 = vmax.f32 %v7711, 0.0
        %v7720 = vmax.f32 %v7712, 0.0
        %v7721 = vmax.f32 %v7713, 0.0
        %v7722 = vmax.f32 %v7714, 0.0
        %v7723 = vmin.f32 %v7715, 6.0
        %v7724 = vmin.f32 %v7716, 6.0
        %v7725 = vmin.f32 %v7717, 6.0
        %v7726 = vmin.f32 %v7718, 6.0
        %v7727 = vmin.f32 %v7719, 6.0
        %v7728 = vmin.f32 %v7720, 6.0
        %v7729 = vmin.f32 %v7721, 6.0
        %v7730 = vmin.f32 %v7722, 6.0
        %v7731 = vpack.c.bf16 %v7724, %v7723
        %v7732 = vpack.c.bf16 %v7726, %v7725
        %v7733 = vpack.c.bf16 %v7728, %v7727
        %v7734 = vpack.c.bf16 %v7730, %v7729
        %v7735 = vld [vmem:[%s4 + $0x90] sm:$0xf]
        %v7736 = vld [vmem:[%s4 + $0x94] sm:$0xf]
        %v7737 = vld [vmem:[%s4 + $0x98] sm:$0xf]
        %v7738 = vld [vmem:[%s4 + $0x9c] sm:$0xf]
        %v7739 = vld [vmem:[%s4 + $0xa0] sm:$0xf]
        %v7740 = vld [vmem:[%s4 + $0xa4] sm:$0xf]
        %v7741 = vld [vmem:[%s4 + $0xa8] sm:$0xf]
        %v7742 = vld [vmem:[%s4 + $0xac] sm:$0xf]
        %v7743 = vld [vmem:[%s4 + $0xb0] sm:$0xf]
        %v7744 = vld [vmem:[%s4 + $0xb4] sm:$0xf]
        %v7745 = vld [vmem:[%s4 + $0xb8] sm:$0xf]
        %v7746 = vld [vmem:[%s4 + $0xbc] sm:$0xf]
        %v7747 = vld [vmem:[%s4 + $0xc0] sm:$0xf]
        %v7748 = vld [vmem:[%s4 + $0xc4] sm:$0xf]
        %v7749 = vld [vmem:[%s4 + $0xc8] sm:$0xf]
        %v7750 = vld [vmem:[%s4 + $0xcc] sm:$0xf]
        %v7767 = vunpack.c.l.b16 %v7735
        %v7768 = vunpack.c.l.b16 %v7736
        %v7769 = vunpack.c.l.b16 %v7737
        %v7770 = vunpack.c.l.b16 %v7738
        %v7771 = vunpack.c.l.b16 %v7739
        %v7772 = vunpack.c.l.b16 %v7740
        %v7773 = vunpack.c.l.b16 %v7741
        %v7774 = vunpack.c.l.b16 %v7742
        %v7775 = vunpack.c.l.b16 %v7743
        %v7776 = vunpack.c.l.b16 %v7744
        %v7777 = vunpack.c.l.b16 %v7745
        %v7778 = vunpack.c.l.b16 %v7746
        %v7779 = vunpack.c.l.b16 %v7747
        %v7780 = vunpack.c.l.b16 %v7748
        %v7781 = vunpack.c.l.b16 %v7749
        %v7782 = vunpack.c.l.b16 %v7750
        %v7783 = vpack.c.b16 %v7768, %v7767
        %v7784 = vpack.c.b16 %v7770, %v7769
        %v7785 = vpack.c.b16 %v7772, %v7771
        %v7786 = vpack.c.b16 %v7774, %v7773
        %v7787 = vpack.c.b16 %v7776, %v7775
        %v7788 = vpack.c.b16 %v7778, %v7777
        %v7789 = vpack.c.b16 %v7780, %v7779
        %v7790 = vpack.c.b16 %v7782, %v7781
        %7799 = vmatprep.subr.bf16.mxu0 0
        %7800 = vmatpush1.bf16.msra.mxu0 %v7783
        %7801 = vmatprep.subr.bf16.mxu0 0
        %7802 = vmatpush1.bf16.msra.mxu0 %v7784
        %7803 = vmatprep.subr.bf16.mxu0 0
        %7804 = vmatpush1.bf16.msra.mxu0 %v7785
        %7805 = vmatprep.subr.bf16.mxu0 0
        %7806 = vmatpush1.bf16.msra.mxu0 %v7786
        %7807 = vmatprep.subr.bf16.mxu0 0
        %7808 = vmatpush1.bf16.msra.mxu0 %v7787
        %7809 = vmatprep.subr.bf16.mxu0 0
        %7810 = vmatpush1.bf16.msra.mxu0 %v7788
        %7811 = vmatprep.subr.bf16.mxu0 0
        %7812 = vmatpush1.bf16.msra.mxu0 %v7789
        %7813 = vmatprep.subr.bf16.mxu0 0
        %7814 = vmatpush1.bf16.msra.mxu0 %v7790
        %7815 = vmatprep.subr.bf16.mxu0 0
        %7816 = vmatpush1.bf16.msra.mxu0 0
        %7817 = vmatprep.subr.bf16.mxu0 0
        %7818 = vmatpush1.bf16.msra.mxu0 0
        %7819 = vmatprep.subr.bf16.mxu0 0
        %7820 = vmatpush1.bf16.msra.mxu0 0
        %7821 = vmatprep.subr.bf16.mxu0 0
        %7822 = vmatpush1.bf16.msra.mxu0 0
        %7823 = vmatprep.subr.bf16.mxu0 0
        %7824 = vmatpush1.bf16.msra.mxu0 0
        %7825 = vmatprep.subr.bf16.mxu0 0
        %7826 = vmatpush1.bf16.msra.mxu0 0
        %7827 = vmatprep.subr.bf16.mxu0 0
        %7828 = vmatpush1.bf16.msra.mxu0 0
        %7829 = vmatprep.subr.bf16.mxu0 0
        %7830 = vmatpush1.bf16.msra.mxu0 0
        %7831 = vmatprep.mubr.bf16.mxu0 0
        %7832 = vmatmul.mubr.bf16.gmra.mrb[0].mxu0 %v7731
        %v7833 = vpop.f32.mrb[0].mxu0
        %v7834 = vadd.f32 0.0, %v7833
        %v7835 = vpop.f32.mrb[0].mxu0
        %v7836 = vpop.f32.mrb[0].mxu0
        %v7837 = vadd.f32 0.0, %v7836
        %v7838 = vpop.f32.mrb[0].mxu0
        %7839 = vmatprep.mubr.bf16.mxu0 0
        %7840 = vmatmul.mubr.bf16.gmra.mrb[0].mxu0 %v7732
        %v7841 = vpop.f32.mrb[0].mxu0
        %v7842 = vadd.f32 0.0, %v7841
        %v7843 = vpop.f32.mrb[0].mxu0
        %v7844 = vpop.f32.mrb[0].mxu0
        %v7845 = vadd.f32 0.0, %v7844
        %v7846 = vpop.f32.mrb[0].mxu0
        %7847 = vmatprep.mubr.bf16.mxu0 0
        %7848 = vmatmul.mubr.bf16.gmra.mrb[0].mxu0 %v7733
        %v7849 = vpop.f32.mrb[0].mxu0
        %v7850 = vadd.f32 0.0, %v7849
        %v7851 = vpop.f32.mrb[0].mxu0
        %v7852 = vpop.f32.mrb[0].mxu0
        %v7853 = vadd.f32 0.0, %v7852
        %v7854 = vpop.f32.mrb[0].mxu0
        %7855 = vmatprep.mubr.bf16.mxu0 0
        %7856 = vmatmul.mubr.bf16.gmra.mrb[0].mxu0 %v7734
        %v7857 = vpop.f32.mrb[0].mxu0
        %v7858 = vadd.f32 0.0, %v7857
        %v7859 = vpop.f32.mrb[0].mxu0
        %v7860 = vpop.f32.mrb[0].mxu0
        %v7861 = vadd.f32 0.0, %v7860
        %v7862 = vpop.f32.mrb[0].mxu0
        %7863 = vdwg.mxu0
        %v7864 = vld [vmem:[%s5 + $0x2c] sm:$0x1]
        %v7865 = vlaneseq
        %v7866 = vshrl.u32 %v7865, 7
        %v7867 = vsub.s32 0, %v7866
        %v7868 = vrot.slane %v7864, %v7867
        %v7869 = vmul.f32 %v7834, %v7868
        %v7870 = vmul.f32 %v7837, %v7868
        %v7871 = vmul.f32 %v7842, %v7868
        %v7872 = vmul.f32 %v7845, %v7868
        %v7873 = vmul.f32 %v7850, %v7868
        %v7874 = vmul.f32 %v7853, %v7868
        %v7875 = vmul.f32 %v7858, %v7868
        %v7876 = vmul.f32 %v7861, %v7868
        %v7877 = vld [vmem:[%s5 + $0x2d] sm:$0x1]
        %v7878 = vlaneseq
        %v7879 = vshrl.u32 %v7878, 7
        %v7880 = vsub.s32 0, %v7879
        %v7881 = vrot.slane %v7877, %v7880
        %v7882 = vadd.f32 %v7869, %v7881
        %v7883 = vadd.f32 %v7870, %v7881
        %v7884 = vadd.f32 %v7871, %v7881
        %v7885 = vadd.f32 %v7872, %v7881
        %v7886 = vadd.f32 %v7873, %v7881
        %v7887 = vadd.f32 %v7874, %v7881
        %v7888 = vadd.f32 %v7875, %v7881
        %v7889 = vadd.f32 %v7876, %v7881
        %v7890 = vpack.c.bf16 %v7883, %v7882
        %v7891 = vpack.c.bf16 %v7885, %v7884
        %v7892 = vpack.c.bf16 %v7887, %v7886
        %v7893 = vpack.c.bf16 %v7889, %v7888
        %v7894 = vld [vmem:[%s4 + $0xd0] sm:$0xf]
        %v7895 = vld [vmem:[%s4 + $0xd4] sm:$0xf]
        %v7896 = vld [vmem:[%s4 + $0xd8] sm:$0xf]
        %v7897 = vld [vmem:[%s4 + $0xdc] sm:$0xf]
        %v7898 = vld [vmem:[%s4 + $0xe0] sm:$0xf]
        %v7899 = vld [vmem:[%s4 + $0xe4] sm:$0xf]
        %v7900 = vld [vmem:[%s4 + $0xe8] sm:$0xf]
        %v7901 = vld [vmem:[%s4 + $0xec] sm:$0xf]
        %v7902 = vld [vmem:[%s4 + $0xf0] sm:$0xf]
        %v7903 = vld [vmem:[%s4 + $0xf4] sm:$0xf]
        %v7904 = vld [vmem:[%s4 + $0xf8] sm:$0xf]
        %v7905 = vld [vmem:[%s4 + $0xfc] sm:$0xf]
        %v7906 = vld [vmem:[%s4 + $0x100] sm:$0xf]
        %v7907 = vld [vmem:[%s4 + $0x104] sm:$0xf]
        %v7908 = vld [vmem:[%s4 + $0x108] sm:$0xf]
        %v7909 = vld [vmem:[%s4 + $0x10c] sm:$0xf]
        %v7926 = vunpack.c.l.b16 %v7894
        %v7927 = vunpack.c.l.b16 %v7895
        %v7928 = vunpack.c.l.b16 %v7896
        %v7929 = vunpack.c.l.b16 %v7897
        %v7930 = vunpack.c.l.b16 %v7898
        %v7931 = vunpack.c.l.b16 %v7899
        %v7932 = vunpack.c.l.b16 %v7900
        %v7933 = vunpack.c.l.b16 %v7901
        %v7934 = vunpack.c.l.b16 %v7902
        %v7935 = vunpack.c.l.b16 %v7903
        %v7936 = vunpack.c.l.b16 %v7904
        %v7937 = vunpack.c.l.b16 %v7905
        %v7938 = vunpack.c.l.b16 %v7906
        %v7939 = vunpack.c.l.b16 %v7907
        %v7940 = vunpack.c.l.b16 %v7908
        %v7941 = vunpack.c.l.b16 %v7909
        %v7942 = vpack.c.b16 %v7927, %v7926
        %v7943 = vpack.c.b16 %v7929, %v7928
        %v7944 = vpack.c.b16 %v7931, %v7930
        %v7945 = vpack.c.b16 %v7933, %v7932
        %v7946 = vpack.c.b16 %v7935, %v7934
        %v7947 = vpack.c.b16 %v7937, %v7936
        %v7948 = vpack.c.b16 %v7939, %v7938
        %v7949 = vpack.c.b16 %v7941, %v7940
        %7958 = vmatprep.subr.bf16.mxu0 0
        %7959 = vmatpush1.bf16.msra.mxu0 %v7942
        %7960 = vmatprep.subr.bf16.mxu0 0
        %7961 = vmatpush1.bf16.msra.mxu0 %v7943
        %7962 = vmatprep.subr.bf16.mxu0 0
        %7963 = vmatpush1.bf16.msra.mxu0 %v7944
        %7964 = vmatprep.subr.bf16.mxu0 0
        %7965 = vmatpush1.bf16.msra.mxu0 %v7945
        %7966 = vmatprep.subr.bf16.mxu0 0
        %7967 = vmatpush1.bf16.msra.mxu0 %v7946
        %7968 = vmatprep.subr.bf16.mxu0 0
        %7969 = vmatpush1.bf16.msra.mxu0 %v7947
        %7970 = vmatprep.subr.bf16.mxu0 0
        %7971 = vmatpush1.bf16.msra.mxu0 %v7948
        %7972 = vmatprep.subr.bf16.mxu0 0
        %7973 = vmatpush1.bf16.msra.mxu0 %v7949
        %7974 = vmatprep.subr.bf16.mxu0 0
        %7975 = vmatpush1.bf16.msra.mxu0 0
        %7976 = vmatprep.subr.bf16.mxu0 0
        %7977 = vmatpush1.bf16.msra.mxu0 0
        %7978 = vmatprep.subr.bf16.mxu0 0
        %7979 = vmatpush1.bf16.msra.mxu0 0
        %7980 = vmatprep.subr.bf16.mxu0 0
        %7981 = vmatpush1.bf16.msra.mxu0 0
        %7982 = vmatprep.subr.bf16.mxu0 0
        %7983 = vmatpush1.bf16.msra.mxu0 0
        %7984 = vmatprep.subr.bf16.mxu0 0
        %7985 = vmatpush1.bf16.msra.mxu0 0
        %7986 = vmatprep.subr.bf16.mxu0 0
        %7987 = vmatpush1.bf16.msra.mxu0 0
        %7988 = vmatprep.subr.bf16.mxu0 0
        %7989 = vmatpush1.bf16.msra.mxu0 0
        %7990 = vmatprep.mubr.bf16.mxu0 0
        %7991 = vmatmul.mubr.bf16.gmra.mrb[0].mxu0 %v7890
        %v7992 = vpop.f32.mrb[0].mxu0
        %v7993 = vadd.f32 0.0, %v7992
        %v7994 = vpop.f32.mrb[0].mxu0
        %v7995 = vpop.f32.mrb[0].mxu0
        %v7996 = vadd.f32 0.0, %v7995
        %v7997 = vpop.f32.mrb[0].mxu0
        %7998 = vmatprep.mubr.bf16.mxu0 0
        %7999 = vmatmul.mubr.bf16.gmra.mrb[0].mxu0 %v7891
        %v8000 = vpop.f32.mrb[0].mxu0
        %v8001 = vadd.f32 0.0, %v8000
        %v8002 = vpop.f32.mrb[0].mxu0
        %v8003 = vpop.f32.mrb[0].mxu0
        %v8004 = vadd.f32 0.0, %v8003
        %v8005 = vpop.f32.mrb[0].mxu0
        %8006 = vmatprep.mubr.bf16.mxu0 0
        %8007 = vmatmul.mubr.bf16.gmra.mrb[0].mxu0 %v7892
        %v8008 = vpop.f32.mrb[0].mxu0
        %v8009 = vadd.f32 0.0, %v8008
        %v8010 = vpop.f32.mrb[0].mxu0
        %v8011 = vpop.f32.mrb[0].mxu0
        %v8012 = vadd.f32 0.0, %v8011
        %v8013 = vpop.f32.mrb[0].mxu0
        %8014 = vmatprep.mubr.bf16.mxu0 0
        %8015 = vmatmul.mubr.bf16.gmra.mrb[0].mxu0 %v7893
        %v8016 = vpop.f32.mrb[0].mxu0
        %v8017 = vadd.f32 0.0, %v8016
        %v8018 = vpop.f32.mrb[0].mxu0
        %v8019 = vpop.f32.mrb[0].mxu0
        %v8020 = vadd.f32 0.0, %v8019
        %v8021 = vpop.f32.mrb[0].mxu0
        %8022 = vdwg.mxu0
        %v8023 = vld [vmem:[%s5 + $0x2e] sm:$0x1]
        %v8024 = vlaneseq
        %v8025 = vshrl.u32 %v8024, 7
        %v8026 = vsub.s32 0, %v8025
        %v8027 = vrot.slane %v8023, %v8026
        %v8028 = vmul.f32 %v7993, %v8027
        %v8029 = vmul.f32 %v7996, %v8027
        %v8030 = vmul.f32 %v8001, %v8027
        %v8031 = vmul.f32 %v8004, %v8027
        %v8032 = vmul.f32 %v8009, %v8027
        %v8033 = vmul.f32 %v8012, %v8027
        %v8034 = vmul.f32 %v8017, %v8027
        %v8035 = vmul.f32 %v8020, %v8027
        %v8036 = vld [vmem:[%s5 + $0x2f] sm:$0x1]
        %v8037 = vlaneseq
        %v8038 = vshrl.u32 %v8037, 7
        %v8039 = vsub.s32 0, %v8038
        %v8040 = vrot.slane %v8036, %v8039
        %v8041 = vadd.f32 %v8028, %v8040
        %v8042 = vadd.f32 %v8029, %v8040
        %v8043 = vadd.f32 %v8030, %v8040
        %v8044 = vadd.f32 %v8031, %v8040
        %v8045 = vadd.f32 %v8032, %v8040
        %v8046 = vadd.f32 %v8033, %v8040
        %v8047 = vadd.f32 %v8034, %v8040
        %v8048 = vadd.f32 %v8035, %v8040
        %v8049 = vmax.f32 %v8041, 0.0
        %v8050 = vmax.f32 %v8042, 0.0
        %v8051 = vmax.f32 %v8043, 0.0
        %v8052 = vmax.f32 %v8044, 0.0
        %v8053 = vmax.f32 %v8045, 0.0
        %v8054 = vmax.f32 %v8046, 0.0
        %v8055 = vmax.f32 %v8047, 0.0
        %v8056 = vmax.f32 %v8048, 0.0
        %v8057 = vmin.f32 %v8049, 6.0
        %v8058 = vmin.f32 %v8050, 6.0
        %v8059 = vmin.f32 %v8051, 6.0
        %v8060 = vmin.f32 %v8052, 6.0
        %v8061 = vmin.f32 %v8053, 6.0
        %v8062 = vmin.f32 %v8054, 6.0
        %v8063 = vmin.f32 %v8055, 6.0
        %v8064 = vmin.f32 %v8056, 6.0
        %v8065 = vld [vmem:[%s3] sm:$0xf]
        %v8066 = vld [vmem:[%s3 + $0x4] sm:$0xf]
        %v8067 = vld [vmem:[%s3 + $0x8] sm:$0xf]
        %v8068 = vld [vmem:[%s3 + $0xc] sm:$0xf]
        %v8069 = vld [vmem:[%s3 + $0x10] sm:$0xf]
        %v8070 = vld [vmem:[%s3 + $0x14] sm:$0xf]
        %v8071 = vld [vmem:[%s3 + $0x18] sm:$0xf]
        %v8072 = vld [vmem:[%s3 + $0x1c] sm:$0xf]
        %v8073 = vld [vmem:[%s3 + $0x20] sm:$0xf]
        %v8074 = vld [vmem:[%s3 + $0x24] sm:$0xf]
        %v8075 = vld [vmem:[%s3 + $0x28] sm:$0xf]
        %v8076 = vld [vmem:[%s3 + $0x2c] sm:$0xf]
        %v8077 = vld [vmem:[%s3 + $0x30] sm:$0xf]
        %v8078 = vld [vmem:[%s3 + $0x34] sm:$0xf]
        %v8079 = vld [vmem:[%s3 + $0x38] sm:$0xf]
        %v8080 = vld [vmem:[%s3 + $0x3c] sm:$0xf]
        %v8081 = vld [vmem:[%s3 + $0x40] sm:$0xf]
        %v8082 = vld [vmem:[%s3 + $0x44] sm:$0xf]
        %v8083 = vld [vmem:[%s3 + $0x48] sm:$0xf]
        %v8084 = vld [vmem:[%s3 + $0x4c] sm:$0xf]
        %v8085 = vld [vmem:[%s3 + $0x50] sm:$0xf]
        %v8086 = vld [vmem:[%s3 + $0x54] sm:$0xf]
        %v8087 = vld [vmem:[%s3 + $0x58] sm:$0xf]
        %v8088 = vld [vmem:[%s3 + $0x5c] sm:$0xf]
        %v8089 = vld [vmem:[%s3 + $0x60] sm:$0xf]
        %v8090 = vld [vmem:[%s3 + $0x64] sm:$0xf]
        %v8091 = vld [vmem:[%s3 + $0x68] sm:$0xf]
        %v8092 = vld [vmem:[%s3 + $0x6c] sm:$0xf]
        %v8093 = vld [vmem:[%s3 + $0x70] sm:$0xf]
        %v8094 = vld [vmem:[%s3 + $0x74] sm:$0xf]
        %v8095 = vld [vmem:[%s3 + $0x78] sm:$0xf]
        %v8096 = vld [vmem:[%s3 + $0x7c] sm:$0xf]
        %v8097 = vld [vmem:[%s3 + $0x80] sm:$0xf]
        %v8098 = vld [vmem:[%s3 + $0x84] sm:$0xf]
        %v8099 = vld [vmem:[%s3 + $0x88] sm:$0xf]
        %v8100 = vld [vmem:[%s3 + $0x8c] sm:$0xf]
        %v8101 = vld [vmem:[%s3 + $0x90] sm:$0xf]
        %v8102 = vld [vmem:[%s3 + $0x94] sm:$0xf]
        %v8103 = vld [vmem:[%s3 + $0x98] sm:$0xf]
        %v8104 = vld [vmem:[%s3 + $0x9c] sm:$0xf]
        %v8105 = vld [vmem:[%s3 + $0xa0] sm:$0xf]
        %v8106 = vld [vmem:[%s3 + $0xa4] sm:$0xf]
        %v8107 = vld [vmem:[%s3 + $0xa8] sm:$0xf]
        %v8108 = vld [vmem:[%s3 + $0xac] sm:$0xf]
        %v8109 = vld [vmem:[%s3 + $0xb0] sm:$0xf]
        %v8110 = vld [vmem:[%s3 + $0xb4] sm:$0xf]
        %v8111 = vld [vmem:[%s3 + $0xb8] sm:$0xf]
        %v8112 = vld [vmem:[%s3 + $0xbc] sm:$0xf]
        %v8113 = vld [vmem:[%s3 + $0xc0] sm:$0xf]
        %v8114 = vld [vmem:[%s3 + $0xc4] sm:$0xf]
        %v8115 = vld [vmem:[%s3 + $0xc8] sm:$0xf]
        %v8116 = vld [vmem:[%s3 + $0xcc] sm:$0xf]
        %v8117 = vld [vmem:[%s3 + $0xd0] sm:$0xf]
        %v8118 = vld [vmem:[%s3 + $0xd4] sm:$0xf]
        %v8119 = vld [vmem:[%s3 + $0xd8] sm:$0xf]
        %v8120 = vld [vmem:[%s3 + $0xdc] sm:$0xf]
        %v8121 = vld [vmem:[%s3 + $0xe0] sm:$0xf]
        %v8122 = vld [vmem:[%s3 + $0xe4] sm:$0xf]
        %v8123 = vld [vmem:[%s3 + $0xe8] sm:$0xf]
        %v8124 = vld [vmem:[%s3 + $0xec] sm:$0xf]
        %v8125 = vld [vmem:[%s3 + $0xf0] sm:$0xf]
        %v8126 = vld [vmem:[%s3 + $0xf4] sm:$0xf]
        %v8127 = vld [vmem:[%s3 + $0xf8] sm:$0xf]
        %v8128 = vld [vmem:[%s3 + $0xfc] sm:$0xf]
        %v8129 = vld [vmem:[%s3 + $0x100] sm:$0xf]
        %v8130 = vld [vmem:[%s3 + $0x104] sm:$0xf]
        %v8131 = vld [vmem:[%s3 + $0x108] sm:$0xf]
        %v8132 = vld [vmem:[%s3 + $0x10c] sm:$0xf]
        %v8133 = vld [vmem:[%s3 + $0x110] sm:$0xf]
        %v8134 = vld [vmem:[%s3 + $0x114] sm:$0xf]
        %v8135 = vld [vmem:[%s3 + $0x118] sm:$0xf]
        %v8136 = vld [vmem:[%s3 + $0x11c] sm:$0xf]
        %v8137 = vpack.c.bf16 %v8058, %v8057
        %v8138 = vpack.c.bf16 %v8060, %v8059
        %v8139 = vpack.c.bf16 %v8062, %v8061
        %v8140 = vpack.c.bf16 %v8064, %v8063
        %v8213 = vunpack.c.l.b16 %v8065
        %v8214 = vunpack.c.l.b16 %v8066
        %v8215 = vunpack.c.l.b16 %v8067
        %v8216 = vunpack.c.l.b16 %v8068
        %v8217 = vunpack.c.l.b16 %v8069
        %v8218 = vunpack.c.l.b16 %v8070
        %v8219 = vunpack.c.l.b16 %v8071
        %v8220 = vunpack.c.l.b16 %v8072
        %v8221 = vunpack.c.l.b16 %v8073
        %v8222 = vunpack.c.l.b16 %v8074
        %v8223 = vunpack.c.l.b16 %v8075
        %v8224 = vunpack.c.l.b16 %v8076
        %v8225 = vunpack.c.l.b16 %v8077
        %v8226 = vunpack.c.l.b16 %v8078
        %v8227 = vunpack.c.l.b16 %v8079
        %v8228 = vunpack.c.l.b16 %v8080
        %v8229 = vunpack.c.l.b16 %v8081
        %v8230 = vunpack.c.l.b16 %v8082
        %v8231 = vunpack.c.l.b16 %v8083
        %v8232 = vunpack.c.l.b16 %v8084
        %v8233 = vunpack.c.l.b16 %v8085
        %v8234 = vunpack.c.l.b16 %v8086
        %v8235 = vunpack.c.l.b16 %v8087
        %v8236 = vunpack.c.l.b16 %v8088
        %v8237 = vunpack.c.l.b16 %v8089
        %v8238 = vunpack.c.l.b16 %v8090
        %v8239 = vunpack.c.l.b16 %v8091
        %v8240 = vunpack.c.l.b16 %v8092
        %v8241 = vunpack.c.l.b16 %v8093
        %v8242 = vunpack.c.l.b16 %v8094
        %v8243 = vunpack.c.l.b16 %v8095
        %v8244 = vunpack.c.l.b16 %v8096
        %v8245 = vunpack.c.l.b16 %v8097
        %v8246 = vunpack.c.l.b16 %v8098
        %v8247 = vunpack.c.l.b16 %v8099
        %v8248 = vunpack.c.l.b16 %v8100
        %v8249 = vunpack.c.l.b16 %v8101
        %v8250 = vunpack.c.l.b16 %v8102
        %v8251 = vunpack.c.l.b16 %v8103
        %v8252 = vunpack.c.l.b16 %v8104
        %v8253 = vunpack.c.l.b16 %v8105
        %v8254 = vunpack.c.l.b16 %v8106
        %v8255 = vunpack.c.l.b16 %v8107
        %v8256 = vunpack.c.l.b16 %v8108
        %v8257 = vunpack.c.l.b16 %v8109
        %v8258 = vunpack.c.l.b16 %v8110
        %v8259 = vunpack.c.l.b16 %v8111
        %v8260 = vunpack.c.l.b16 %v8112
        %v8261 = vunpack.c.l.b16 %v8113
        %v8262 = vunpack.c.l.b16 %v8114
        %v8263 = vunpack.c.l.b16 %v8115
        %v8264 = vunpack.c.l.b16 %v8116
        %v8265 = vunpack.c.l.b16 %v8117
        %v8266 = vunpack.c.l.b16 %v8118
        %v8267 = vunpack.c.l.b16 %v8119
        %v8268 = vunpack.c.l.b16 %v8120
        %v8269 = vunpack.c.l.b16 %v8121
        %v8270 = vunpack.c.l.b16 %v8122
        %v8271 = vunpack.c.l.b16 %v8123
        %v8272 = vunpack.c.l.b16 %v8124
        %v8273 = vunpack.c.l.b16 %v8125
        %v8274 = vunpack.c.l.b16 %v8126
        %v8275 = vunpack.c.l.b16 %v8127
        %v8276 = vunpack.c.l.b16 %v8128
        %v8277 = vunpack.c.l.b16 %v8129
        %v8278 = vunpack.c.l.b16 %v8130
        %v8279 = vunpack.c.l.b16 %v8131
        %v8280 = vunpack.c.l.b16 %v8132
        %v8281 = vunpack.c.l.b16 %v8133
        %v8282 = vunpack.c.l.b16 %v8134
        %v8283 = vunpack.c.l.b16 %v8135
        %v8284 = vunpack.c.l.b16 %v8136
        %v8285 = vpack.c.b16 %v8214, %v8213
        %v8286 = vpack.c.b16 %v8216, %v8215
        %v8287 = vpack.c.b16 %v8218, %v8217
        %v8288 = vpack.c.b16 %v8220, %v8219
        %v8289 = vpack.c.b16 %v8222, %v8221
        %v8290 = vpack.c.b16 %v8224, %v8223
        %v8291 = vpack.c.b16 %v8226, %v8225
        %v8292 = vpack.c.b16 %v8228, %v8227
        %v8293 = vpack.c.b16 %v8230, %v8229
        %v8294 = vpack.c.b16 %v8232, %v8231
        %v8295 = vpack.c.b16 %v8234, %v8233
        %v8296 = vpack.c.b16 %v8236, %v8235
        %v8297 = vpack.c.b16 %v8238, %v8237
        %v8298 = vpack.c.b16 %v8240, %v8239
        %v8299 = vpack.c.b16 %v8242, %v8241
        %v8300 = vpack.c.b16 %v8244, %v8243
        %v8301 = vpack.c.b16 %v8246, %v8245
        %v8302 = vpack.c.b16 %v8248, %v8247
        %v8303 = vpack.c.b16 %v8250, %v8249
        %v8304 = vpack.c.b16 %v8252, %v8251
        %v8305 = vpack.c.b16 %v8254, %v8253
        %v8306 = vpack.c.b16 %v8256, %v8255
        %v8307 = vpack.c.b16 %v8258, %v8257
        %v8308 = vpack.c.b16 %v8260, %v8259
        %v8309 = vpack.c.b16 %v8262, %v8261
        %v8310 = vpack.c.b16 %v8264, %v8263
        %v8311 = vpack.c.b16 %v8266, %v8265
        %v8312 = vpack.c.b16 %v8268, %v8267
        %v8313 = vpack.c.b16 %v8270, %v8269
        %v8314 = vpack.c.b16 %v8272, %v8271
        %v8315 = vpack.c.b16 %v8274, %v8273
        %v8316 = vpack.c.b16 %v8276, %v8275
        %v8317 = vpack.c.b16 %v8278, %v8277
        %v8318 = vpack.c.b16 %v8280, %v8279
        %v8319 = vpack.c.b16 %v8282, %v8281
        %v8320 = vpack.c.b16 %v8284, %v8283
        %vm8321 = vcmask 523264
        %v8323 = vsel %vm8321, %v8285, 0
        %v8326 = vsel %vm8321, %v8286, 0
        %v8329 = vsel %vm8321, %v8287, 0
        %v8332 = vsel %vm8321, %v8288, 0
        %v8335 = vsel %vm8321, %v8289, 0
        %v8338 = vsel %vm8321, %v8290, 0
        %v8341 = vsel %vm8321, %v8291, 0
        %v8344 = vsel %vm8321, %v8292, 0
        %v8347 = vsel %vm8321, %v8293, 0
        %v8350 = vsel %vm8321, %v8294, 0
        %v8353 = vsel %vm8321, %v8295, 0
        %v8356 = vsel %vm8321, %v8296, 0
        %v8359 = vsel %vm8321, %v8297, 0
        %v8362 = vsel %vm8321, %v8298, 0
        %v8365 = vsel %vm8321, %v8299, 0
        %v8368 = vsel %vm8321, %v8300, 0
        %v8371 = vsel %vm8321, %v8301, 0
        %v8374 = vsel %vm8321, %v8302, 0
        %v8377 = vsel %vm8321, %v8303, 0
        %v8380 = vsel %vm8321, %v8304, 0
        %v8383 = vsel %vm8321, %v8305, 0
        %v8386 = vsel %vm8321, %v8306, 0
        %v8389 = vsel %vm8321, %v8307, 0
        %v8392 = vsel %vm8321, %v8308, 0
        %v8395 = vsel %vm8321, %v8309, 0
        %v8398 = vsel %vm8321, %v8310, 0
        %v8401 = vsel %vm8321, %v8311, 0
        %v8404 = vsel %vm8321, %v8312, 0
        %v8407 = vsel %vm8321, %v8313, 0
        %v8410 = vsel %vm8321, %v8314, 0
        %v8413 = vsel %vm8321, %v8315, 0
        %v8416 = vsel %vm8321, %v8316, 0
        %v8419 = vsel %vm8321, %v8317, 0
        %v8422 = vsel %vm8321, %v8318, 0
        %v8425 = vsel %vm8321, %v8319, 0
        %v8428 = vsel %vm8321, %v8320, 0
        %8430 = vmatprep.subr.bf16.mxu0 0
        %8431 = vmatpush1.bf16.msra.mxu0 %v8137
        %8432 = vmatprep.subr.bf16.mxu0 0
        %8433 = vmatpush1.bf16.msra.mxu0 %v8138
        %8434 = vmatprep.subr.bf16.mxu0 0
        %8435 = vmatpush1.bf16.msra.mxu0 %v8139
        %8436 = vmatprep.subr.bf16.mxu0 0
        %8437 = vmatpush1.bf16.msra.mxu0 %v8140
        %8438 = vmatprep.subr.bf16.mxu0 0
        %8439 = vmatpush1.bf16.msra.mxu0 0
        %8440 = vmatprep.subr.bf16.mxu0 0
        %8441 = vmatpush1.bf16.msra.mxu0 0
        %8442 = vmatprep.subr.bf16.mxu0 0
        %8443 = vmatpush1.bf16.msra.mxu0 0
        %8444 = vmatprep.subr.bf16.mxu0 0
        %8445 = vmatpush1.bf16.msra.mxu0 0
        %8446 = vmatprep.subr.bf16.mxu0 0
        %8447 = vmatpush1.bf16.msra.mxu0 0
        %8448 = vmatprep.subr.bf16.mxu0 0
        %8449 = vmatpush1.bf16.msra.mxu0 0
        %8450 = vmatprep.subr.bf16.mxu0 0
        %8451 = vmatpush1.bf16.msra.mxu0 0
        %8452 = vmatprep.subr.bf16.mxu0 0
        %8453 = vmatpush1.bf16.msra.mxu0 0
        %8454 = vmatprep.subr.bf16.mxu0 0
        %8455 = vmatpush1.bf16.msra.mxu0 0
        %8456 = vmatprep.subr.bf16.mxu0 0
        %8457 = vmatpush1.bf16.msra.mxu0 0
        %8458 = vmatprep.subr.bf16.mxu0 0
        %8459 = vmatpush1.bf16.msra.mxu0 0
        %8460 = vmatprep.subr.bf16.mxu0 0
        %8461 = vmatpush1.bf16.msra.mxu0 0
        %8462 = vmatprep.mubr.bf16.mxu0 0
        %8463 = vmatmul.mubr.bf16.gmra.mrb[0].mxu0 %v8323
        %v8464 = vpop.f32.mrb[0].mxu0
        %v8465 = vadd.f32 0.0, %v8464
        %v8466 = vpop.f32.mrb[0].mxu0
        %v8467 = vpop.f32.mrb[0].mxu0
        %v8468 = vadd.f32 0.0, %v8467
        %v8469 = vpop.f32.mrb[0].mxu0
        %8470 = vmatprep.mubr.bf16.mxu0 0
        %8471 = vmatmul.mubr.bf16.gmra.mrb[0].mxu0 %v8326
        %v8472 = vpop.f32.mrb[0].mxu0
        %v8473 = vadd.f32 0.0, %v8472
        %v8474 = vpop.f32.mrb[0].mxu0
        %v8475 = vpop.f32.mrb[0].mxu0
        %v8476 = vadd.f32 0.0, %v8475
        %v8477 = vpop.f32.mrb[0].mxu0
        %8478 = vmatprep.mubr.bf16.mxu0 0
        %8479 = vmatmul.mubr.bf16.gmra.mrb[0].mxu0 %v8329
        %v8480 = vpop.f32.mrb[0].mxu0
        %v8481 = vadd.f32 0.0, %v8480
        %v8482 = vpop.f32.mrb[0].mxu0
        %v8483 = vpop.f32.mrb[0].mxu0
        %v8484 = vadd.f32 0.0, %v8483
        %v8485 = vpop.f32.mrb[0].mxu0
        %8486 = vmatprep.mubr.bf16.mxu0 0
        %8487 = vmatmul.mubr.bf16.gmra.mrb[0].mxu0 %v8332
        %v8488 = vpop.f32.mrb[0].mxu0
        %v8489 = vadd.f32 0.0, %v8488
        %v8490 = vpop.f32.mrb[0].mxu0
        %v8491 = vpop.f32.mrb[0].mxu0
        %v8492 = vadd.f32 0.0, %v8491
        %v8493 = vpop.f32.mrb[0].mxu0
        %8494 = vmatprep.mubr.bf16.mxu0 0
        %8495 = vmatmul.mubr.bf16.gmra.mrb[0].mxu0 %v8335
        %v8496 = vpop.f32.mrb[0].mxu0
        %v8497 = vadd.f32 0.0, %v8496
        %v8498 = vpop.f32.mrb[0].mxu0
        %v8499 = vpop.f32.mrb[0].mxu0
        %v8500 = vadd.f32 0.0, %v8499
        %v8501 = vpop.f32.mrb[0].mxu0
        %8502 = vmatprep.mubr.bf16.mxu0 0
        %8503 = vmatmul.mubr.bf16.gmra.mrb[0].mxu0 %v8338
        %v8504 = vpop.f32.mrb[0].mxu0
        %v8505 = vadd.f32 0.0, %v8504
        %v8506 = vpop.f32.mrb[0].mxu0
        %v8507 = vpop.f32.mrb[0].mxu0
        %v8508 = vadd.f32 0.0, %v8507
        %v8509 = vpop.f32.mrb[0].mxu0
        %8510 = vmatprep.mubr.bf16.mxu0 0
        %8511 = vmatmul.mubr.bf16.gmra.mrb[0].mxu0 %v8341
        %v8512 = vpop.f32.mrb[0].mxu0
        %v8513 = vadd.f32 0.0, %v8512
        %v8514 = vpop.f32.mrb[0].mxu0
        %v8515 = vpop.f32.mrb[0].mxu0
        %v8516 = vadd.f32 0.0, %v8515
        %v8517 = vpop.f32.mrb[0].mxu0
        %8518 = vmatprep.mubr.bf16.mxu0 0
        %8519 = vmatmul.mubr.bf16.gmra.mrb[0].mxu0 %v8344
        %v8520 = vpop.f32.mrb[0].mxu0
        %v8521 = vadd.f32 0.0, %v8520
        %v8522 = vpop.f32.mrb[0].mxu0
        %v8523 = vpop.f32.mrb[0].mxu0
        %v8524 = vadd.f32 0.0, %v8523
        %v8525 = vpop.f32.mrb[0].mxu0
        %8526 = vmatprep.mubr.bf16.mxu0 0
        %8527 = vmatmul.mubr.bf16.gmra.mrb[0].mxu0 %v8347
        %v8528 = vpop.f32.mrb[0].mxu0
        %v8529 = vadd.f32 0.0, %v8528
        %v8530 = vpop.f32.mrb[0].mxu0
        %v8531 = vpop.f32.mrb[0].mxu0
        %v8532 = vadd.f32 0.0, %v8531
        %v8533 = vpop.f32.mrb[0].mxu0
        %8534 = vmatprep.mubr.bf16.mxu0 0
        %8535 = vmatmul.mubr.bf16.gmra.mrb[0].mxu0 %v8350
        %v8536 = vpop.f32.mrb[0].mxu0
        %v8537 = vadd.f32 0.0, %v8536
        %v8538 = vpop.f32.mrb[0].mxu0
        %v8539 = vpop.f32.mrb[0].mxu0
        %v8540 = vadd.f32 0.0, %v8539
        %v8541 = vpop.f32.mrb[0].mxu0
        %8542 = vmatprep.mubr.bf16.mxu0 0
        %8543 = vmatmul.mubr.bf16.gmra.mrb[0].mxu0 %v8353
        %v8544 = vpop.f32.mrb[0].mxu0
        %v8545 = vadd.f32 0.0, %v8544
        %v8546 = vpop.f32.mrb[0].mxu0
        %v8547 = vpop.f32.mrb[0].mxu0
        %v8548 = vadd.f32 0.0, %v8547
        %v8549 = vpop.f32.mrb[0].mxu0
        %8550 = vmatprep.mubr.bf16.mxu0 0
        %8551 = vmatmul.mubr.bf16.gmra.mrb[0].mxu0 %v8356
        %v8552 = vpop.f32.mrb[0].mxu0
        %v8553 = vadd.f32 0.0, %v8552
        %v8554 = vpop.f32.mrb[0].mxu0
        %v8555 = vpop.f32.mrb[0].mxu0
        %v8556 = vadd.f32 0.0, %v8555
        %v8557 = vpop.f32.mrb[0].mxu0
        %8558 = vmatprep.mubr.bf16.mxu0 0
        %8559 = vmatmul.mubr.bf16.gmra.mrb[0].mxu0 %v8359
        %v8560 = vpop.f32.mrb[0].mxu0
        %v8561 = vadd.f32 0.0, %v8560
        %v8562 = vpop.f32.mrb[0].mxu0
        %v8563 = vpop.f32.mrb[0].mxu0
        %v8564 = vadd.f32 0.0, %v8563
        %v8565 = vpop.f32.mrb[0].mxu0
        %8566 = vmatprep.mubr.bf16.mxu0 0
        %8567 = vmatmul.mubr.bf16.gmra.mrb[0].mxu0 %v8362
        %v8568 = vpop.f32.mrb[0].mxu0
        %v8569 = vadd.f32 0.0, %v8568
        %v8570 = vpop.f32.mrb[0].mxu0
        %v8571 = vpop.f32.mrb[0].mxu0
        %v8572 = vadd.f32 0.0, %v8571
        %v8573 = vpop.f32.mrb[0].mxu0
        %8574 = vmatprep.mubr.bf16.mxu0 0
        %8575 = vmatmul.mubr.bf16.gmra.mrb[0].mxu0 %v8365
        %v8576 = vpop.f32.mrb[0].mxu0
        %v8577 = vadd.f32 0.0, %v8576
        %v8578 = vpop.f32.mrb[0].mxu0
        %v8579 = vpop.f32.mrb[0].mxu0
        %v8580 = vadd.f32 0.0, %v8579
        %v8581 = vpop.f32.mrb[0].mxu0
        %8582 = vmatprep.mubr.bf16.mxu0 0
        %8583 = vmatmul.mubr.bf16.gmra.mrb[0].mxu0 %v8368
        %v8584 = vpop.f32.mrb[0].mxu0
        %v8585 = vadd.f32 0.0, %v8584
        %v8586 = vpop.f32.mrb[0].mxu0
        %v8587 = vpop.f32.mrb[0].mxu0
        %v8588 = vadd.f32 0.0, %v8587
        %v8589 = vpop.f32.mrb[0].mxu0
        %8590 = vmatprep.mubr.bf16.mxu0 0
        %8591 = vmatmul.mubr.bf16.gmra.mrb[0].mxu0 %v8371
        %v8592 = vpop.f32.mrb[0].mxu0
        %v8593 = vadd.f32 0.0, %v8592
        %v8594 = vpop.f32.mrb[0].mxu0
        %v8595 = vpop.f32.mrb[0].mxu0
        %v8596 = vadd.f32 0.0, %v8595
        %v8597 = vpop.f32.mrb[0].mxu0
        %8598 = vmatprep.mubr.bf16.mxu0 0
        %8599 = vmatmul.mubr.bf16.gmra.mrb[0].mxu0 %v8374
        %v8600 = vpop.f32.mrb[0].mxu0
        %v8601 = vadd.f32 0.0, %v8600
        %v8602 = vpop.f32.mrb[0].mxu0
        %v8603 = vpop.f32.mrb[0].mxu0
        %v8604 = vadd.f32 0.0, %v8603
        %v8605 = vpop.f32.mrb[0].mxu0
        %8606 = vmatprep.mubr.bf16.mxu0 0
        %8607 = vmatmul.mubr.bf16.gmra.mrb[0].mxu0 %v8377
        %v8608 = vpop.f32.mrb[0].mxu0
        %v8609 = vadd.f32 0.0, %v8608
        %v8610 = vpop.f32.mrb[0].mxu0
        %v8611 = vpop.f32.mrb[0].mxu0
        %v8612 = vadd.f32 0.0, %v8611
        %v8613 = vpop.f32.mrb[0].mxu0
        %8614 = vmatprep.mubr.bf16.mxu0 0
        %8615 = vmatmul.mubr.bf16.gmra.mrb[0].mxu0 %v8380
        %v8616 = vpop.f32.mrb[0].mxu0
        %v8617 = vadd.f32 0.0, %v8616
        %v8618 = vpop.f32.mrb[0].mxu0
        %v8619 = vpop.f32.mrb[0].mxu0
        %v8620 = vadd.f32 0.0, %v8619
        %v8621 = vpop.f32.mrb[0].mxu0
        %8622 = vmatprep.mubr.bf16.mxu0 0
        %8623 = vmatmul.mubr.bf16.gmra.mrb[0].mxu0 %v8383
        %v8624 = vpop.f32.mrb[0].mxu0
        %v8625 = vadd.f32 0.0, %v8624
        %v8626 = vpop.f32.mrb[0].mxu0
        %v8627 = vpop.f32.mrb[0].mxu0
        %v8628 = vadd.f32 0.0, %v8627
        %v8629 = vpop.f32.mrb[0].mxu0
        %8630 = vmatprep.mubr.bf16.mxu0 0
        %8631 = vmatmul.mubr.bf16.gmra.mrb[0].mxu0 %v8386
        %v8632 = vpop.f32.mrb[0].mxu0
        %v8633 = vadd.f32 0.0, %v8632
        %v8634 = vpop.f32.mrb[0].mxu0
        %v8635 = vpop.f32.mrb[0].mxu0
        %v8636 = vadd.f32 0.0, %v8635
        %v8637 = vpop.f32.mrb[0].mxu0
        %8638 = vmatprep.mubr.bf16.mxu0 0
        %8639 = vmatmul.mubr.bf16.gmra.mrb[0].mxu0 %v8389
        %v8640 = vpop.f32.mrb[0].mxu0
        %v8641 = vadd.f32 0.0, %v8640
        %v8642 = vpop.f32.mrb[0].mxu0
        %v8643 = vpop.f32.mrb[0].mxu0
        %v8644 = vadd.f32 0.0, %v8643
        %v8645 = vpop.f32.mrb[0].mxu0
        %8646 = vmatprep.mubr.bf16.mxu0 0
        %8647 = vmatmul.mubr.bf16.gmra.mrb[0].mxu0 %v8392
        %v8648 = vpop.f32.mrb[0].mxu0
        %v8649 = vadd.f32 0.0, %v8648
        %v8650 = vpop.f32.mrb[0].mxu0
        %v8651 = vpop.f32.mrb[0].mxu0
        %v8652 = vadd.f32 0.0, %v8651
        %v8653 = vpop.f32.mrb[0].mxu0
        %8654 = vmatprep.mubr.bf16.mxu0 0
        %8655 = vmatmul.mubr.bf16.gmra.mrb[0].mxu0 %v8395
        %v8656 = vpop.f32.mrb[0].mxu0
        %v8657 = vadd.f32 0.0, %v8656
        %v8658 = vpop.f32.mrb[0].mxu0
        %v8659 = vpop.f32.mrb[0].mxu0
        %v8660 = vadd.f32 0.0, %v8659
        %v8661 = vpop.f32.mrb[0].mxu0
        %8662 = vmatprep.mubr.bf16.mxu0 0
        %8663 = vmatmul.mubr.bf16.gmra.mrb[0].mxu0 %v8398
        %v8664 = vpop.f32.mrb[0].mxu0
        %v8665 = vadd.f32 0.0, %v8664
        %v8666 = vpop.f32.mrb[0].mxu0
        %v8667 = vpop.f32.mrb[0].mxu0
        %v8668 = vadd.f32 0.0, %v8667
        %v8669 = vpop.f32.mrb[0].mxu0
        %8670 = vmatprep.mubr.bf16.mxu0 0
        %8671 = vmatmul.mubr.bf16.gmra.mrb[0].mxu0 %v8401
        %v8672 = vpop.f32.mrb[0].mxu0
        %v8673 = vadd.f32 0.0, %v8672
        %v8674 = vpop.f32.mrb[0].mxu0
        %v8675 = vpop.f32.mrb[0].mxu0
        %v8676 = vadd.f32 0.0, %v8675
        %v8677 = vpop.f32.mrb[0].mxu0
        %8678 = vmatprep.mubr.bf16.mxu0 0
        %8679 = vmatmul.mubr.bf16.gmra.mrb[0].mxu0 %v8404
        %v8680 = vpop.f32.mrb[0].mxu0
        %v8681 = vadd.f32 0.0, %v8680
        %v8682 = vpop.f32.mrb[0].mxu0
        %v8683 = vpop.f32.mrb[0].mxu0
        %v8684 = vadd.f32 0.0, %v8683
        %v8685 = vpop.f32.mrb[0].mxu0
        %8686 = vmatprep.mubr.bf16.mxu0 0
        %8687 = vmatmul.mubr.bf16.gmra.mrb[0].mxu0 %v8407
        %v8688 = vpop.f32.mrb[0].mxu0
        %v8689 = vadd.f32 0.0, %v8688
        %v8690 = vpop.f32.mrb[0].mxu0
        %v8691 = vpop.f32.mrb[0].mxu0
        %v8692 = vadd.f32 0.0, %v8691
        %v8693 = vpop.f32.mrb[0].mxu0
        %8694 = vmatprep.mubr.bf16.mxu0 0
        %8695 = vmatmul.mubr.bf16.gmra.mrb[0].mxu0 %v8410
        %v8696 = vpop.f32.mrb[0].mxu0
        %v8697 = vadd.f32 0.0, %v8696
        %v8698 = vpop.f32.mrb[0].mxu0
        %v8699 = vpop.f32.mrb[0].mxu0
        %v8700 = vadd.f32 0.0, %v8699
        %v8701 = vpop.f32.mrb[0].mxu0
        %8702 = vmatprep.mubr.bf16.mxu0 0
        %8703 = vmatmul.mubr.bf16.gmra.mrb[0].mxu0 %v8413
        %v8704 = vpop.f32.mrb[0].mxu0
        %v8705 = vadd.f32 0.0, %v8704
        %v8706 = vpop.f32.mrb[0].mxu0
        %v8707 = vpop.f32.mrb[0].mxu0
        %v8708 = vadd.f32 0.0, %v8707
        %v8709 = vpop.f32.mrb[0].mxu0
        %8710 = vmatprep.mubr.bf16.mxu0 0
        %8711 = vmatmul.mubr.bf16.gmra.mrb[0].mxu0 %v8416
        %v8712 = vpop.f32.mrb[0].mxu0
        %v8713 = vadd.f32 0.0, %v8712
        %v8714 = vpop.f32.mrb[0].mxu0
        %v8715 = vpop.f32.mrb[0].mxu0
        %v8716 = vadd.f32 0.0, %v8715
        %v8717 = vpop.f32.mrb[0].mxu0
        %8718 = vmatprep.mubr.bf16.mxu0 0
        %8719 = vmatmul.mubr.bf16.gmra.mrb[0].mxu0 %v8419
        %v8720 = vpop.f32.mrb[0].mxu0
        %v8721 = vadd.f32 0.0, %v8720
        %v8722 = vpop.f32.mrb[0].mxu0
        %v8723 = vpop.f32.mrb[0].mxu0
        %v8724 = vadd.f32 0.0, %v8723
        %v8725 = vpop.f32.mrb[0].mxu0
        %8726 = vmatprep.mubr.bf16.mxu0 0
        %8727 = vmatmul.mubr.bf16.gmra.mrb[0].mxu0 %v8422
        %v8728 = vpop.f32.mrb[0].mxu0
        %v8729 = vadd.f32 0.0, %v8728
        %v8730 = vpop.f32.mrb[0].mxu0
        %v8731 = vpop.f32.mrb[0].mxu0
        %v8732 = vadd.f32 0.0, %v8731
        %v8733 = vpop.f32.mrb[0].mxu0
        %8734 = vmatprep.mubr.bf16.mxu0 0
        %8735 = vmatmul.mubr.bf16.gmra.mrb[0].mxu0 %v8425
        %v8736 = vpop.f32.mrb[0].mxu0
        %v8737 = vadd.f32 0.0, %v8736
        %v8738 = vpop.f32.mrb[0].mxu0
        %v8739 = vpop.f32.mrb[0].mxu0
        %v8740 = vadd.f32 0.0, %v8739
        %v8741 = vpop.f32.mrb[0].mxu0
        %8742 = vmatprep.mubr.bf16.mxu0 0
        %8743 = vmatmul.mubr.bf16.gmra.mrb[0].mxu0 %v8428
        %v8744 = vpop.f32.mrb[0].mxu0
        %v8745 = vadd.f32 0.0, %v8744
        %v8746 = vpop.f32.mrb[0].mxu0
        %v8747 = vpop.f32.mrb[0].mxu0
        %v8748 = vadd.f32 0.0, %v8747
        %v8749 = vpop.f32.mrb[0].mxu0
        %8750 = vdwg.mxu0
        %v8751 = vld [vmem:[%s5 + $0x30] sm:$0x1]
        %v8752 = vlaneseq
        %v8753 = vshrl.u32 %v8752, 7
        %v8754 = vsub.s32 0, %v8753
        %v8755 = vrot.slane %v8751, %v8754
        %v8756 = vmul.f32 %v8465, %v8755
        %v8757 = vmul.f32 %v8468, %v8755
        %v8758 = vmul.f32 %v8473, %v8755
        %v8759 = vmul.f32 %v8476, %v8755
        %v8760 = vmul.f32 %v8481, %v8755
        %v8761 = vmul.f32 %v8484, %v8755
        %v8762 = vmul.f32 %v8489, %v8755
        %v8763 = vmul.f32 %v8492, %v8755
        %v8764 = vld [vmem:[%s5 + $0x31] sm:$0x1]
        %v8765 = vlaneseq
        %v8766 = vshrl.u32 %v8765, 7
        %v8767 = vsub.s32 0, %v8766
        %v8768 = vrot.slane %v8764, %v8767
        %v8769 = vmul.f32 %v8497, %v8768
        %v8770 = vmul.f32 %v8500, %v8768
        %v8771 = vmul.f32 %v8505, %v8768
        %v8772 = vmul.f32 %v8508, %v8768
        %v8773 = vmul.f32 %v8513, %v8768
        %v8774 = vmul.f32 %v8516, %v8768
        %v8775 = vmul.f32 %v8521, %v8768
        %v8776 = vmul.f32 %v8524, %v8768
        %v8777 = vld [vmem:[%s5 + $0x32] sm:$0x1]
        %v8778 = vlaneseq
        %v8779 = vshrl.u32 %v8778, 7
        %v8780 = vsub.s32 0, %v8779
        %v8781 = vrot.slane %v8777, %v8780
        %v8782 = vmul.f32 %v8529, %v8781
        %v8783 = vmul.f32 %v8532, %v8781
        %v8784 = vmul.f32 %v8537, %v8781
        %v8785 = vmul.f32 %v8540, %v8781
        %v8786 = vmul.f32 %v8545, %v8781
        %v8787 = vmul.f32 %v8548, %v8781
        %v8788 = vmul.f32 %v8553, %v8781
        %v8789 = vmul.f32 %v8556, %v8781
        %v8790 = vld [vmem:[%s5 + $0x33] sm:$0x1]
        %v8791 = vlaneseq
        %v8792 = vshrl.u32 %v8791, 7
        %v8793 = vsub.s32 0, %v8792
        %v8794 = vrot.slane %v8790, %v8793
        %v8795 = vmul.f32 %v8561, %v8794
        %v8796 = vmul.f32 %v8564, %v8794
        %v8797 = vmul.f32 %v8569, %v8794
        %v8798 = vmul.f32 %v8572, %v8794
        %v8799 = vmul.f32 %v8577, %v8794
        %v8800 = vmul.f32 %v8580, %v8794
        %v8801 = vmul.f32 %v8585, %v8794
        %v8802 = vmul.f32 %v8588, %v8794
        %v8803 = vld [vmem:[%s5 + $0x34] sm:$0x1]
        %v8804 = vlaneseq
        %v8805 = vshrl.u32 %v8804, 7
        %v8806 = vsub.s32 0, %v8805
        %v8807 = vrot.slane %v8803, %v8806
        %v8808 = vmul.f32 %v8593, %v8807
        %v8809 = vmul.f32 %v8596, %v8807
        %v8810 = vmul.f32 %v8601, %v8807
        %v8811 = vmul.f32 %v8604, %v8807
        %v8812 = vmul.f32 %v8609, %v8807
        %v8813 = vmul.f32 %v8612, %v8807
        %v8814 = vmul.f32 %v8617, %v8807
        %v8815 = vmul.f32 %v8620, %v8807
        %v8816 = vld [vmem:[%s5 + $0x35] sm:$0x1]
        %v8817 = vlaneseq
        %v8818 = vshrl.u32 %v8817, 7
        %v8819 = vsub.s32 0, %v8818
        %v8820 = vrot.slane %v8816, %v8819
        %v8821 = vmul.f32 %v8625, %v8820
        %v8822 = vmul.f32 %v8628, %v8820
        %v8823 = vmul.f32 %v8633, %v8820
        %v8824 = vmul.f32 %v8636, %v8820
        %v8825 = vmul.f32 %v8641, %v8820
        %v8826 = vmul.f32 %v8644, %v8820
        %v8827 = vmul.f32 %v8649, %v8820
        %v8828 = vmul.f32 %v8652, %v8820
        %v8829 = vld [vmem:[%s5 + $0x36] sm:$0x1]
        %v8830 = vlaneseq
        %v8831 = vshrl.u32 %v8830, 7
        %v8832 = vsub.s32 0, %v8831
        %v8833 = vrot.slane %v8829, %v8832
        %v8834 = vmul.f32 %v8657, %v8833
        %v8835 = vmul.f32 %v8660, %v8833
        %v8836 = vmul.f32 %v8665, %v8833
        %v8837 = vmul.f32 %v8668, %v8833
        %v8838 = vmul.f32 %v8673, %v8833
        %v8839 = vmul.f32 %v8676, %v8833
        %v8840 = vmul.f32 %v8681, %v8833
        %v8841 = vmul.f32 %v8684, %v8833
        %v8842 = vld [vmem:[%s5 + $0x37] sm:$0x1]
        %v8843 = vlaneseq
        %v8844 = vshrl.u32 %v8843, 7
        %v8845 = vsub.s32 0, %v8844
        %v8846 = vrot.slane %v8842, %v8845
        %v8847 = vmul.f32 %v8689, %v8846
        %v8848 = vmul.f32 %v8692, %v8846
        %v8849 = vmul.f32 %v8697, %v8846
        %v8850 = vmul.f32 %v8700, %v8846
        %v8851 = vmul.f32 %v8705, %v8846
        %v8852 = vmul.f32 %v8708, %v8846
        %v8853 = vmul.f32 %v8713, %v8846
        %v8854 = vmul.f32 %v8716, %v8846
        %v8855 = vld [vmem:[%s5 + $0x38] sm:$0x1]
        %v8856 = vlaneseq
        %v8857 = vshrl.u32 %v8856, 7
        %v8858 = vsub.s32 0, %v8857
        %v8859 = vrot.slane %v8855, %v8858
        %v8860 = vmul.f32 %v8721, %v8859
        %v8861 = vmul.f32 %v8724, %v8859
        %v8862 = vmul.f32 %v8729, %v8859
        %v8863 = vmul.f32 %v8732, %v8859
        %v8864 = vmul.f32 %v8737, %v8859
        %v8865 = vmul.f32 %v8740, %v8859
        %v8866 = vmul.f32 %v8745, %v8859
        %v8867 = vmul.f32 %v8748, %v8859
        %v8868 = vadd.f32 %v8756, %v8769
        %v8869 = vadd.f32 %v8757, %v8770
        %v8870 = vadd.f32 %v8758, %v8771
        %v8871 = vadd.f32 %v8759, %v8772
        %v8872 = vadd.f32 %v8760, %v8773
        %v8873 = vadd.f32 %v8761, %v8774
        %v8874 = vadd.f32 %v8762, %v8775
        %v8875 = vadd.f32 %v8763, %v8776
        %v8876 = vadd.f32 %v8782, %v8795
        %v8877 = vadd.f32 %v8783, %v8796
        %v8878 = vadd.f32 %v8784, %v8797
        %v8879 = vadd.f32 %v8785, %v8798
        %v8880 = vadd.f32 %v8786, %v8799
        %v8881 = vadd.f32 %v8787, %v8800
        %v8882 = vadd.f32 %v8788, %v8801
        %v8883 = vadd.f32 %v8789, %v8802
        %v8884 = vadd.f32 %v8808, %v8821
        %v8885 = vadd.f32 %v8809, %v8822
        %v8886 = vadd.f32 %v8810, %v8823
        %v8887 = vadd.f32 %v8811, %v8824
        %v8888 = vadd.f32 %v8812, %v8825
        %v8889 = vadd.f32 %v8813, %v8826
        %v8890 = vadd.f32 %v8814, %v8827
        %v8891 = vadd.f32 %v8815, %v8828
        %v8892 = vadd.f32 %v8834, %v8847
        %v8893 = vadd.f32 %v8835, %v8848
        %v8894 = vadd.f32 %v8836, %v8849
        %v8895 = vadd.f32 %v8837, %v8850
        %v8896 = vadd.f32 %v8838, %v8851
        %v8897 = vadd.f32 %v8839, %v8852
        %v8898 = vadd.f32 %v8840, %v8853
        %v8899 = vadd.f32 %v8841, %v8854
        %v8900 = vadd.f32 %v8868, %v8876
        %v8901 = vadd.f32 %v8869, %v8877
        %v8902 = vadd.f32 %v8870, %v8878
        %v8903 = vadd.f32 %v8871, %v8879
        %v8904 = vadd.f32 %v8872, %v8880
        %v8905 = vadd.f32 %v8873, %v8881
        %v8906 = vadd.f32 %v8874, %v8882
        %v8907 = vadd.f32 %v8875, %v8883
        %v8908 = vadd.f32 %v8884, %v8892
        %v8909 = vadd.f32 %v8885, %v8893
        %v8910 = vadd.f32 %v8886, %v8894
        %v8911 = vadd.f32 %v8887, %v8895
        %v8912 = vadd.f32 %v8888, %v8896
        %v8913 = vadd.f32 %v8889, %v8897
        %v8914 = vadd.f32 %v8890, %v8898
        %v8915 = vadd.f32 %v8891, %v8899
        %v8916 = vadd.f32 %v8900, %v8908
        %v8917 = vadd.f32 %v8901, %v8909
        %v8918 = vadd.f32 %v8902, %v8910
        %v8919 = vadd.f32 %v8903, %v8911
        %v8920 = vadd.f32 %v8904, %v8912
        %v8921 = vadd.f32 %v8905, %v8913
        %v8922 = vadd.f32 %v8906, %v8914
        %v8923 = vadd.f32 %v8907, %v8915
        %v8924 = vadd.f32 %v8916, %v8860
        %v8925 = vadd.f32 %v8917, %v8861
        %v8926 = vadd.f32 %v8918, %v8862
        %v8927 = vadd.f32 %v8919, %v8863
        %v8928 = vadd.f32 %v8920, %v8864
        %v8929 = vadd.f32 %v8921, %v8865
        %v8930 = vadd.f32 %v8922, %v8866
        %v8931 = vadd.f32 %v8923, %v8867
        %v8932 = vld [vmem:[%s5 + $0x39] sm:$0x1]
        %v8933 = vlaneseq
        %v8934 = vshrl.u32 %v8933, 7
        %v8935 = vsub.s32 0, %v8934
        %v8936 = vrot.slane %v8932, %v8935
        %v8937 = vmul.f32 %v8924, %v8936
        %v8938 = vmul.f32 %v8925, %v8936
        %v8939 = vmul.f32 %v8926, %v8936
        %v8940 = vmul.f32 %v8927, %v8936
        %v8941 = vmul.f32 %v8928, %v8936
        %v8942 = vmul.f32 %v8929, %v8936
        %v8943 = vmul.f32 %v8930, %v8936
        %v8944 = vmul.f32 %v8931, %v8936
        %v8945 = vld [vmem:[%s5 + $0x3a] sm:$0x1]
        %v8946 = vlaneseq
        %v8947 = vshrl.u32 %v8946, 7
        %v8948 = vsub.s32 0, %v8947
        %v8949 = vrot.slane %v8945, %v8948
        %v8950 = vadd.f32 %v8937, %v8949
        %v8951 = vadd.f32 %v8938, %v8949
        %v8952 = vadd.f32 %v8939, %v8949
        %v8953 = vadd.f32 %v8940, %v8949
        %v8954 = vadd.f32 %v8941, %v8949
        %v8955 = vadd.f32 %v8942, %v8949
        %v8956 = vadd.f32 %v8943, %v8949
        %v8957 = vadd.f32 %v8944, %v8949
        %v8958 = vmax.f32 %v8950, 0.0
        %v8959 = vmax.f32 %v8951, 0.0
        %v8960 = vmax.f32 %v8952, 0.0
        %v8961 = vmax.f32 %v8953, 0.0
        %v8962 = vmax.f32 %v8954, 0.0
        %v8963 = vmax.f32 %v8955, 0.0
        %v8964 = vmax.f32 %v8956, 0.0
        %v8965 = vmax.f32 %v8957, 0.0
        %v8966 = vmin.f32 %v8958, 6.0
        %v8967 = vmin.f32 %v8959, 6.0
        %v8968 = vmin.f32 %v8960, 6.0
        %v8969 = vmin.f32 %v8961, 6.0
        %v8970 = vmin.f32 %v8962, 6.0
        %v8971 = vmin.f32 %v8963, 6.0
        %v8972 = vmin.f32 %v8964, 6.0
        %v8973 = vmin.f32 %v8965, 6.0
        %v8974 = vpack.c.bf16 %v8967, %v8966
        %v8975 = vpack.c.bf16 %v8969, %v8968
        %v8976 = vpack.c.bf16 %v8971, %v8970
        %v8977 = vpack.c.bf16 %v8973, %v8972
        %v8978 = vld [vmem:[%s4 + $0x110] sm:$0xf]
        %v8979 = vld [vmem:[%s4 + $0x114] sm:$0xf]
        %v8980 = vld [vmem:[%s4 + $0x118] sm:$0xf]
        %v8981 = vld [vmem:[%s4 + $0x11c] sm:$0xf]
        %v8982 = vld [vmem:[%s4 + $0x120] sm:$0xf]
        %v8983 = vld [vmem:[%s4 + $0x124] sm:$0xf]
        %v8984 = vld [vmem:[%s4 + $0x128] sm:$0xf]
        %v8985 = vld [vmem:[%s4 + $0x12c] sm:$0xf]
        %v8986 = vld [vmem:[%s4 + $0x130] sm:$0xf]
        %v8987 = vld [vmem:[%s4 + $0x134] sm:$0xf]
        %v8988 = vld [vmem:[%s4 + $0x138] sm:$0xf]
        %v8989 = vld [vmem:[%s4 + $0x13c] sm:$0xf]
        %v8990 = vld [vmem:[%s4 + $0x140] sm:$0xf]
        %v8991 = vld [vmem:[%s4 + $0x144] sm:$0xf]
        %v8992 = vld [vmem:[%s4 + $0x148] sm:$0xf]
        %v8993 = vld [vmem:[%s4 + $0x14c] sm:$0xf]
        %v9010 = vunpack.c.l.b16 %v8978
        %v9011 = vunpack.c.l.b16 %v8979
        %v9012 = vunpack.c.l.b16 %v8980
        %v9013 = vunpack.c.l.b16 %v8981
        %v9014 = vunpack.c.l.b16 %v8982
        %v9015 = vunpack.c.l.b16 %v8983
        %v9016 = vunpack.c.l.b16 %v8984
        %v9017 = vunpack.c.l.b16 %v8985
        %v9018 = vunpack.c.l.b16 %v8986
        %v9019 = vunpack.c.l.b16 %v8987
        %v9020 = vunpack.c.l.b16 %v8988
        %v9021 = vunpack.c.l.b16 %v8989
        %v9022 = vunpack.c.l.b16 %v8990
        %v9023 = vunpack.c.l.b16 %v8991
        %v9024 = vunpack.c.l.b16 %v8992
        %v9025 = vunpack.c.l.b16 %v8993
        %v9026 = vpack.c.b16 %v9011, %v9010
        %v9027 = vpack.c.b16 %v9013, %v9012
        %v9028 = vpack.c.b16 %v9015, %v9014
        %v9029 = vpack.c.b16 %v9017, %v9016
        %v9030 = vpack.c.b16 %v9019, %v9018
        %v9031 = vpack.c.b16 %v9021, %v9020
        %v9032 = vpack.c.b16 %v9023, %v9022
        %v9033 = vpack.c.b16 %v9025, %v9024
        %9042 = vmatprep.subr.bf16.mxu0 0
        %9043 = vmatpush1.bf16.msra.mxu0 %v9026
        %9044 = vmatprep.subr.bf16.mxu0 0
        %9045 = vmatpush1.bf16.msra.mxu0 %v9027
        %9046 = vmatprep.subr.bf16.mxu0 0
        %9047 = vmatpush1.bf16.msra.mxu0 %v9028
        %9048 = vmatprep.subr.bf16.mxu0 0
        %9049 = vmatpush1.bf16.msra.mxu0 %v9029
        %9050 = vmatprep.subr.bf16.mxu0 0
        %9051 = vmatpush1.bf16.msra.mxu0 %v9030
        %9052 = vmatprep.subr.bf16.mxu0 0
        %9053 = vmatpush1.bf16.msra.mxu0 %v9031
        %9054 = vmatprep.subr.bf16.mxu0 0
        %9055 = vmatpush1.bf16.msra.mxu0 %v9032
        %9056 = vmatprep.subr.bf16.mxu0 0
        %9057 = vmatpush1.bf16.msra.mxu0 %v9033
        %9058 = vmatprep.subr.bf16.mxu0 0
        %9059 = vmatpush1.bf16.msra.mxu0 0
        %9060 = vmatprep.subr.bf16.mxu0 0
        %9061 = vmatpush1.bf16.msra.mxu0 0
        %9062 = vmatprep.subr.bf16.mxu0 0
        %9063 = vmatpush1.bf16.msra.mxu0 0
        %9064 = vmatprep.subr.bf16.mxu0 0
        %9065 = vmatpush1.bf16.msra.mxu0 0
        %9066 = vmatprep.subr.bf16.mxu0 0
        %9067 = vmatpush1.bf16.msra.mxu0 0
        %9068 = vmatprep.subr.bf16.mxu0 0
        %9069 = vmatpush1.bf16.msra.mxu0 0
        %9070 = vmatprep.subr.bf16.mxu0 0
        %9071 = vmatpush1.bf16.msra.mxu0 0
        %9072 = vmatprep.subr.bf16.mxu0 0
        %9073 = vmatpush1.bf16.msra.mxu0 0
        %9074 = vmatprep.mubr.bf16.mxu0 0
        %9075 = vmatmul.mubr.bf16.gmra.mrb[0].mxu0 %v8974
        %v9076 = vpop.f32.mrb[0].mxu0
        %v9077 = vadd.f32 0.0, %v9076
        %v9078 = vpop.f32.mrb[0].mxu0
        %v9079 = vpop.f32.mrb[0].mxu0
        %v9080 = vadd.f32 0.0, %v9079
        %v9081 = vpop.f32.mrb[0].mxu0
        %9082 = vmatprep.mubr.bf16.mxu0 0
        %9083 = vmatmul.mubr.bf16.gmra.mrb[0].mxu0 %v8975
        %v9084 = vpop.f32.mrb[0].mxu0
        %v9085 = vadd.f32 0.0, %v9084
        %v9086 = vpop.f32.mrb[0].mxu0
        %v9087 = vpop.f32.mrb[0].mxu0
        %v9088 = vadd.f32 0.0, %v9087
        %v9089 = vpop.f32.mrb[0].mxu0
        %9090 = vmatprep.mubr.bf16.mxu0 0
        %9091 = vmatmul.mubr.bf16.gmra.mrb[0].mxu0 %v8976
        %v9092 = vpop.f32.mrb[0].mxu0
        %v9093 = vadd.f32 0.0, %v9092
        %v9094 = vpop.f32.mrb[0].mxu0
        %v9095 = vpop.f32.mrb[0].mxu0
        %v9096 = vadd.f32 0.0, %v9095
        %v9097 = vpop.f32.mrb[0].mxu0
        %9098 = vmatprep.mubr.bf16.mxu0 0
        %9099 = vmatmul.mubr.bf16.gmra.mrb[0].mxu0 %v8977
        %v9100 = vpop.f32.mrb[0].mxu0
        %v9101 = vadd.f32 0.0, %v9100
        %v9102 = vpop.f32.mrb[0].mxu0
        %v9103 = vpop.f32.mrb[0].mxu0
        %v9104 = vadd.f32 0.0, %v9103
        %v9105 = vpop.f32.mrb[0].mxu0
        %9106 = vdwg.mxu0
        %v9107 = vld [vmem:[%s5 + $0x3b] sm:$0x1]
        %v9108 = vlaneseq
        %v9109 = vshrl.u32 %v9108, 7
        %v9110 = vsub.s32 0, %v9109
        %v9111 = vrot.slane %v9107, %v9110
        %v9112 = vmul.f32 %v9077, %v9111
        %v9113 = vmul.f32 %v9080, %v9111
        %v9114 = vmul.f32 %v9085, %v9111
        %v9115 = vmul.f32 %v9088, %v9111
        %v9116 = vmul.f32 %v9093, %v9111
        %v9117 = vmul.f32 %v9096, %v9111
        %v9118 = vmul.f32 %v9101, %v9111
        %v9119 = vmul.f32 %v9104, %v9111
        %v9120 = vld [vmem:[%s5 + $0x3c] sm:$0x1]
        %v9121 = vlaneseq
        %v9122 = vshrl.u32 %v9121, 7
        %v9123 = vsub.s32 0, %v9122
        %v9124 = vrot.slane %v9120, %v9123
        %v9125 = vadd.f32 %v9112, %v9124
        %v9126 = vadd.f32 %v9113, %v9124
        %v9127 = vadd.f32 %v9114, %v9124
        %v9128 = vadd.f32 %v9115, %v9124
        %v9129 = vadd.f32 %v9116, %v9124
        %v9130 = vadd.f32 %v9117, %v9124
        %v9131 = vadd.f32 %v9118, %v9124
        %v9132 = vadd.f32 %v9119, %v9124
        %v9133 = vadd.f32 %v9125, %v7882
        %v9134 = vadd.f32 %v9126, %v7883
        %v9135 = vadd.f32 %v9127, %v7884
        %v9136 = vadd.f32 %v9128, %v7885
        %v9137 = vadd.f32 %v9129, %v7886
        %v9138 = vadd.f32 %v9130, %v7887
        %v9139 = vadd.f32 %v9131, %v7888
        %v9140 = vadd.f32 %v9132, %v7889
        %v9141 = vadd.f32 %v9133, %v9134
        %v9142 = vadd.f32 %v9141, %v9135
        %v9143 = vadd.f32 %v9142, %v9136
        %v9144 = vadd.f32 %v9143, %v9137
        %v9145 = vadd.f32 %v9144, %v9138
        %v9146 = vadd.f32 %v9145, %v9139
        %v9147 = vadd.f32 %v9146, %v9140
        %v9148 = vrot.slane %v9147, 4
        %v9149 = vadd.f32 %v9147, %v9148
        %v9150 = vrot.slane %v9149, 2
        %v9151 = vadd.f32 %v9149, %v9150
        %v9152 = vrot.slane %v9151, 1
        %v9153 = vadd.f32 %v9151, %v9152
        %v9154 = vrcp.pop 64.0
        %v9155 = vmul.f32 %v9153, %v9154
        %v9156 = vpack.c.bf16 %v9155, %v9155
        %v9157 = vld [vmem:[%s4 + $0x150] sm:$0xf]
        %v9158 = vld [vmem:[%s4 + $0x154] sm:$0xf]
        %v9159 = vld [vmem:[%s4 + $0x158] sm:$0xf]
        %v9160 = vld [vmem:[%s4 + $0x15c] sm:$0xf]
        %v9161 = vld [vmem:[%s4 + $0x160] sm:$0xf]
        %v9162 = vld [vmem:[%s4 + $0x164] sm:$0xf]
        %v9163 = vld [vmem:[%s4 + $0x168] sm:$0xf]
        %v9164 = vld [vmem:[%s4 + $0x16c] sm:$0xf]
        %v9165 = vld [vmem:[%s4 + $0x170] sm:$0xf]
        %v9166 = vld [vmem:[%s4 + $0x174] sm:$0xf]
        %v9167 = vld [vmem:[%s4 + $0x178] sm:$0xf]
        %v9168 = vld [vmem:[%s4 + $0x17c] sm:$0xf]
        %v9169 = vld [vmem:[%s4 + $0x180] sm:$0xf]
        %v9170 = vld [vmem:[%s4 + $0x184] sm:$0xf]
        %v9171 = vld [vmem:[%s4 + $0x188] sm:$0xf]
        %v9172 = vld [vmem:[%s4 + $0x18c] sm:$0xf]
        %v9173 = vld [vmem:[%s5 + $0x3d] sm:$0x1]
        %v9190 = vunpack.c.l.b16 %v9157
        %v9191 = vunpack.c.l.b16 %v9158
        %v9192 = vunpack.c.l.b16 %v9159
        %v9193 = vunpack.c.l.b16 %v9160
        %v9194 = vunpack.c.l.b16 %v9161
        %v9195 = vunpack.c.l.b16 %v9162
        %v9196 = vunpack.c.l.b16 %v9163
        %v9197 = vunpack.c.l.b16 %v9164
        %v9198 = vunpack.c.l.b16 %v9165
        %v9199 = vunpack.c.l.b16 %v9166
        %v9200 = vunpack.c.l.b16 %v9167
        %v9201 = vunpack.c.l.b16 %v9168
        %v9202 = vunpack.c.l.b16 %v9169
        %v9203 = vunpack.c.l.b16 %v9170
        %v9204 = vunpack.c.l.b16 %v9171
        %v9205 = vunpack.c.l.b16 %v9172
        %v9206 = vpack.c.b16 %v9191, %v9190
        %v9207 = vpack.c.b16 %v9193, %v9192
        %v9208 = vpack.c.b16 %v9195, %v9194
        %v9209 = vpack.c.b16 %v9197, %v9196
        %v9210 = vpack.c.b16 %v9199, %v9198
        %v9211 = vpack.c.b16 %v9201, %v9200
        %v9212 = vpack.c.b16 %v9203, %v9202
        %v9213 = vpack.c.b16 %v9205, %v9204
        %9222 = vmatprep.subr.bf16.mxu0 0
        %9223 = vmatpush1.bf16.msra.mxu0 %v9206
        %9224 = vmatprep.subr.bf16.mxu0 0
        %9225 = vmatpush1.bf16.msra.mxu0 %v9207
        %9226 = vmatprep.subr.bf16.mxu0 0
        %9227 = vmatpush1.bf16.msra.mxu0 %v9208
        %9228 = vmatprep.subr.bf16.mxu0 0
        %9229 = vmatpush1.bf16.msra.mxu0 %v9209
        %9230 = vmatprep.subr.bf16.mxu0 0
        %9231 = vmatpush1.bf16.msra.mxu0 %v9210
        %9232 = vmatprep.subr.bf16.mxu0 0
        %9233 = vmatpush1.bf16.msra.mxu0 %v9211
        %9234 = vmatprep.subr.bf16.mxu0 0
        %9235 = vmatpush1.bf16.msra.mxu0 %v9212
        %9236 = vmatprep.subr.bf16.mxu0 0
        %9237 = vmatpush1.bf16.msra.mxu0 %v9213
        %9238 = vmatprep.subr.bf16.mxu0 0
        %9239 = vmatpush1.bf16.msra.mxu0 0
        %9240 = vmatprep.subr.bf16.mxu0 0
        %9241 = vmatpush1.bf16.msra.mxu0 0
        %9242 = vmatprep.subr.bf16.mxu0 0
        %9243 = vmatpush1.bf16.msra.mxu0 0
        %9244 = vmatprep.subr.bf16.mxu0 0
        %9245 = vmatpush1.bf16.msra.mxu0 0
        %9246 = vmatprep.subr.bf16.mxu0 0
        %9247 = vmatpush1.bf16.msra.mxu0 0
        %9248 = vmatprep.subr.bf16.mxu0 0
        %9249 = vmatpush1.bf16.msra.mxu0 0
        %9250 = vmatprep.subr.bf16.mxu0 0
        %9251 = vmatpush1.bf16.msra.mxu0 0
        %9252 = vmatprep.subr.bf16.mxu0 0
        %9253 = vmatpush1.bf16.msra.mxu0 0
        %9254 = vmatprep.mubr.bf16.mxu0 0
        %9255 = vmatmul.mubr.bf16.gmra.mrb[0].mxu0 %v9156
        %v9256 = vpop.f32.mrb[0].mxu0
        %v9257 = vadd.f32 %v9173, %v9256
        %v9258 = vpop.f32.mrb[0].mxu0
        %v9259 = vpop.f32.mrb[0].mxu0
        %v9260 = vpop.f32.mrb[0].mxu0
        %9261 = vdwg.mxu0
        %9262 = vst [vmem:[%s258] sm:$0x1] %v9257
        %s9263 = sand.u32 %s160, 1
        %s9264 = scalar_lea.sflag [#allocation4], %s9263
        %s9265 = sand.u32 %s160, 1
        %s9266 = scalar_lea.vmem [#allocation5], %s9265
        // Predicated region
        $region49: #{forward.1} parent=43 // pred_check
          %p9267 = pneg %p170
        $region50: #{forward.1} parent=43 // pred_check_branch
          %9269 = sbr.rel (%p9267) target = $region52
        $region51: #{forward.1} parent=43 // pred_region
          %s9271 = ssub.s32 16, 16
          %9272 = vsyncadd %s9264, %s9271
          %s9273 = smul.addr %s21, 16
          %s9274 = scalar_lea.hbm %s6, %s9273
          %s9276 = sshll.u32 %s9266, 4
          %s9277 = int_to_ptr.vmem [resolvable:$true] %s9276
          %9279 = dma.vmem_to_hbm [thread:$0]  %s9277, 16, %s9274, %s9264
        $region52: #{forward.1} parent=43 // pred_fallthru
          _
      $region44: #{forward.1} parent=5 // pred_fallthru
        _
      %p9280 = scmp.le.s32.totalorder 2, %s16
      // Predicated region
      $region53: #{forward.1} parent=5 // pred_check
        %p9281 = pneg %p9280
      $region54: #{forward.1} parent=5 // pred_check_branch
        %9283 = sbr.rel (%p9281) target = $region56
      $region55: #{forward.1} parent=5 // pred_region
        %s9284 = ssub.s32 %s16, 2
        // Predicated region
        $region57: #{forward.1} parent=55 // pred_check
          %p9285 = pneg %p176
        $region58: #{forward.1} parent=55 // pred_check_branch
          %9287 = sbr.rel (%p9285) target = $region60
        $region59: #{forward.1} parent=55 // pred_region
          %s9288 = sand.u32 %s161, 1
          %s9289 = scalar_lea.sflag [#allocation4], %s9288
          %s9290 = sand.u32 %s161, 1
          %s9291 = scalar_lea.vmem [#allocation5], %s9290
          %9292 = dma.done %s9289, 16
        $region60: #{forward.1} parent=55 // pred_fallthru
          _
      $region56: #{forward.1} parent=5 // pred_fallthru
        _
    $region6: #{forward.1} parent=1 // loop_footer
      %s20 = sadd.s32 1, %s16
    $region7: #{forward.1} parent=1 // loop_footer_branch
      %15 = sbr.rel target = $region3
    $region8: #{forward.1} parent=1 // loop_exit
      _
    %9293 = vsyncpa [#allocation3], 1
    %s9294 = scalar_lea.sflag [#allocation3], 1
    %9295 = vsyncpa %s9294, 1
    %9296 = vsyncpa [#allocation4], 1
    %s9297 = scalar_lea.sflag [#allocation4], 1
    %9298 = vsyncpa %s9297, 1

</llo_original>
